<compile_context>
chip_gen: v7x
topology: tpu7x:2x2x1
jax: 0.10.0
libtpu: 0.0.40
codegen_flags: <defaults>
</compile_context>

<pallas_src>
import jax
import jax.numpy as jnp
import numpy as np
from jax import lax
from jax.experimental import pallas as pl
from jax.experimental.pallas import tpu as pltpu


def basic_block_kernel(x_ref, w1_ref, w2_ref, b1_ref, b2_ref, o_ref, mid_ref):
    # x_ref  : (1, H+4, W+2, Cin)   per-batch input; rows padded by 2, cols by 1
    # w1_ref : (9, Cin, Cout)       conv1 taps with bn1 scale folded in
    # w2_ref : (9, Cout, Cout)      conv2 taps with bn2 scale folded in
    # b*_ref : (1, Cout) f32        folded BN biases
    # o_ref  : (1, TH, W, Cout)     output row tile
    # mid_ref: (TH+2, W+2, Cout)    scratch: conv1 output (+1 halo row each side)
    #                               with a zero border that supplies conv2 padding
    _, TH, W, Cout = o_ref.shape
    Cin = x_ref.shape[3]
    t = pl.program_id(1)
    r0 = t * TH                       # first output row of this tile

    # ---- conv1 * bn1_scale over TH+2 halo rows: 9 shifted matmuls, f32 acc ----
    acc1 = None
    for dy in range(3):
        slab = x_ref[0, pl.ds(r0 + dy, TH + 2), :, :]        # (TH+2, W+2, Cin)
        for dx in range(3):
            patch = slab[:, dx:dx + W, :].reshape((TH + 2) * W, Cin)
            tap = jnp.dot(patch, w1_ref[dy * 3 + dx],
                          preferred_element_type=jnp.float32)
            acc1 = tap if acc1 is None else acc1 + tap

    # bn1 bias + relu (f32), store into the scratch interior.
    y = jnp.maximum(acc1 + b1_ref[...], 0.0)
    mid_ref[:, 1:W + 1, :] = y.reshape(TH + 2, W, Cout).astype(mid_ref.dtype)

    # conv2 zero padding: border columns every step (cheap, order-independent
    # under megacore grid sharding); halo rows only where they fall outside
    # the image (tile at the top / bottom of the picture).
    zero_col = jnp.zeros((TH + 2, 1, Cout), mid_ref.dtype)
    mid_ref[:, 0:1, :] = zero_col
    mid_ref[:, W + 1:W + 2, :] = zero_col

    zero_row = jnp.zeros((1, W, Cout), mid_ref.dtype)

    @pl.when(t == 0)
    def _():
        mid_ref[0:1, 1:W + 1, :] = zero_row

    @pl.when(t == pl.num_programs(1) - 1)
    def _():
        mid_ref[TH + 1:TH + 2, 1:W + 1, :] = zero_row

    # ---- conv2 * bn2_scale: 9 shifted matmuls out of the scratch, f32 acc ----
    acc2 = None
    for dy in range(3):
        slab = mid_ref[dy:dy + TH, :, :]                     # (TH, W+2, Cout)
        for dx in range(3):
            patch = slab[:, dx:dx + W, :].reshape(TH * W, Cout)
            tap = jnp.dot(patch, w2_ref[dy * 3 + dx],
                          preferred_element_type=jnp.float32)
            acc2 = tap if acc2 is None else acc2 + tap

    # ---- bn2 bias + residual add + relu (all f32) ----
    res = x_ref[0, pl.ds(r0 + 2, TH), :, :][:, 1:W + 1, :]
    res = res.reshape(TH * W, Cin).astype(jnp.float32)
    out = jnp.maximum(acc2 + b2_ref[...] + res, 0.0)
    o_ref[...] = out.reshape(1, TH, W, Cout).astype(o_ref.dtype)


def basic_block_pallas(x_nchw, w1, w2, bn1, bn2, eps=1e-5,
                       compute_dtype=jnp.bfloat16, row_tile=8):
    """x_nchw: (B, Cin, H, W); w1: (Cout, Cin, 3, 3); w2: (Cout, Cout, 3, 3).
    bn1/bn2: dicts with gamma, beta, mean, var of shape (Cout,)."""
    B, Cin, H, W = x_nchw.shape
    Cout = w1.shape[0]
    assert Cin == Cout, "stride=1 / downsample=None requires Cin == Cout"

    cdtype = jnp.dtype(compute_dtype)
    out_dtype = x_nchw.dtype

    # Row-tile size: largest divisor of H that is <= row_tile.
    th = min(row_tile, H)
    while H % th:
        th -= 1
    n_tiles = H // th

    # NCHW -> NHWC (channels on the lane axis).  Rows padded by 2 (halo needed
    # for the conv1 halo rows that feed conv2), columns padded by 1 (conv1
    # padding; conv2's column padding comes from the scratch zero border).
    x_nhwc = jnp.transpose(x_nchw, (0, 2, 3, 1))
    x_pad = jnp.pad(x_nhwc, ((0, 0), (2, 2), (1, 1), (0, 0))).astype(cdtype)

    # Fold inference-mode BN: scale goes into the conv weights, bias stays f32.
    def fold(bn):
        s = bn["gamma"] / jnp.sqrt(bn["var"] + eps)
        b = bn["beta"] - bn["mean"] * s
        return s, b

    s1, bias1 = fold(bn1)
    s2, bias2 = fold(bn2)

    # (Cout, Cin, 3, 3) -> tap-major (9, Cin, Cout), BN scale folded into out-ch.
    w1_t = (jnp.transpose(w1, (2, 3, 1, 0)).reshape(9, Cin, Cout)
            * s1[None, None, :]).astype(cdtype)
    w2_t = (jnp.transpose(w2, (2, 3, 1, 0)).reshape(9, Cout, Cout)
            * s2[None, None, :]).astype(cdtype)
    bias1 = bias1.reshape(1, Cout).astype(jnp.float32)
    bias2 = bias2.reshape(1, Cout).astype(jnp.float32)

    def const_spec(shape, single_buffer):
        idx = lambda b, t: (0,) * len(shape)
        if single_buffer:
            # Invariant across the whole grid: a single VMEM buffer is enough.
            return pl.BlockSpec(shape, idx, pipeline_mode=pl.Buffered(1))
        return pl.BlockSpec(shape, idx)

    def build(single_buffer):
        return pl.pallas_call(
            basic_block_kernel,
            out_shape=jax.ShapeDtypeStruct((B, H, W, Cout), out_dtype),
            grid_spec=pltpu.PrefetchScalarGridSpec(
                num_scalar_prefetch=0,
                grid=(B, n_tiles),
                in_specs=[
                    pl.BlockSpec((1, H + 4, W + 2, Cin),
                                 lambda b, t: (b, 0, 0, 0)),
                    const_spec((9, Cin, Cout), single_buffer),
                    const_spec((9, Cout, Cout), single_buffer),
                    const_spec((1, Cout), single_buffer),
                    const_spec((1, Cout), single_buffer),
                ],
                out_specs=pl.BlockSpec((1, th, W, Cout),
                                       lambda b, t: (b, t, 0, 0)),
                scratch_shapes=[pltpu.VMEM((th + 2, W + 2, Cout), cdtype)],
            ),
            compiler_params=pltpu.CompilerParams(
                dimension_semantics=("parallel", "parallel"),
                vmem_limit_bytes=64 * 1024 * 1024,
            ),
        )

    args = (x_pad, w1_t, w2_t, bias1, bias2)
    try:
        out_nhwc = build(True)(*args)
    except Exception:
        # pipeline_mode / Buffered(1) not supported on this build: fall back
        # to default double buffering (correctness unchanged).
        out_nhwc = build(False)(*args)

    # Back to NCHW to match the PyTorch module's output convention.
    # TODO(synk): callers that are already NHWC end-to-end should skip the
    # wrapper transposes (extra HBM passes) and feed/consume NHWC directly.
    return jnp.transpose(out_nhwc, (0, 3, 1, 2))


def basic_block_reference(x_nchw, w1, w2, bn1, bn2, eps=1e-5):
    """Pure-JAX reference (NHWC conv via lax) for correctness check."""
    x = jnp.transpose(x_nchw, (0, 2, 3, 1))

    def conv(x_nhwc, w_oihw):
        w_hwio = jnp.transpose(w_oihw, (2, 3, 1, 0))
        return lax.conv_general_dilated(
            x_nhwc, w_hwio, window_strides=(1, 1), padding="SAME",
            dimension_numbers=("NHWC", "HWIO", "NHWC"))

    def bn(y, p):
        s = p["gamma"] / jnp.sqrt(p["var"] + eps)
        b = p["beta"] - p["mean"] * s
        return y * s + b

    out = jnp.maximum(bn(conv(x, w1), bn1), 0.0)
    out = bn(conv(out, w2), bn2)
    out = jnp.maximum(out + x, 0.0)
    return jnp.transpose(out, (0, 3, 1, 2))


if __name__ == "__main__":
    B, C, H, W = 2, 4, 16, 16  # in_channels == out_channels, stride=1

    key = jax.random.PRNGKey(0)
    (k_x, k_w1, k_w2, k_g1, k_b1, k_g2, k_b2,
     k_m1, k_v1, k_m2, k_v2) = jax.random.split(key, 11)

    x = jax.random.normal(k_x, (B, C, H, W), jnp.float32)
    w1 = jax.random.normal(k_w1, (C, C, 3, 3), jnp.float32) * 0.2
    w2 = jax.random.normal(k_w2, (C, C, 3, 3), jnp.float32) * 0.2

    bn1 = dict(
        gamma=1.0 + 0.1 * jax.random.normal(k_g1, (C,), jnp.float32),
        beta=0.1 * jax.random.normal(k_b1, (C,), jnp.float32),
        mean=0.1 * jax.random.normal(k_m1, (C,), jnp.float32),
        var=jnp.abs(jax.random.normal(k_v1, (C,), jnp.float32)) + 0.5,
    )
    bn2 = dict(
        gamma=1.0 + 0.1 * jax.random.normal(k_g2, (C,), jnp.float32),
        beta=0.1 * jax.random.normal(k_b2, (C,), jnp.float32),
        mean=0.1 * jax.random.normal(k_m2, (C,), jnp.float32),
        var=jnp.abs(jax.random.normal(k_v2, (C,), jnp.float32)) + 0.5,
    )

    ref = jax.block_until_ready(basic_block_reference(x, w1, w2, bn1, bn2))

    # Strict check: f32 compute path (exercises the row-tiling / halo logic).
    out_f32 = jax.block_until_ready(
        basic_block_pallas(x, w1, w2, bn1, bn2, compute_dtype=jnp.float32))
    np.testing.assert_allclose(np.asarray(out_f32), np.asarray(ref),
                               rtol=1e-4, atol=1e-4)

    # Fast path: bf16 matmuls on the MXU, f32 accumulation / elementwise.
    out_bf16 = jax.block_until_ready(
        basic_block_pallas(x, w1, w2, bn1, bn2, compute_dtype=jnp.bfloat16))
    np.testing.assert_allclose(np.asarray(out_bf16), np.asarray(ref),
                               rtol=1e-1, atol=1e-1)

    print("KERNEL_OK")
</pallas_src>

<mosaic_0001>
module attributes {stable_mosaic.version = 11 : i64} {
  func.func @basic_block_kernel(%arg0: i32, %arg1: i32, %arg2: memref<1x20x18x4xf32, #tpu.memory_space<vmem>>, %arg3: memref<9x4x4xf32, #tpu.memory_space<vmem>>, %arg4: memref<9x4x4xf32, #tpu.memory_space<vmem>>, %arg5: memref<1x4xf32, #tpu.memory_space<vmem>>, %arg6: memref<1x4xf32, #tpu.memory_space<vmem>>, %arg7: memref<1x8x16x4xf32, #tpu.memory_space<vmem>>, %arg8: memref<10x18x4xf32, #tpu.memory_space<vmem>>) attributes {dimension_semantics = [#tpu.dimension_semantics<parallel>, #tpu.dimension_semantics<parallel>], iteration_bounds = array<i64: 2, 2>, scalar_prefetch = 0 : i64, scratch_operands = 1 : i64, tpu.core_type = #tpu.core_type<tc>, window_params = [{transform_indices = @transform_0, window_bounds = array<i64: 1, 20, 18, 4>}, {pipeline_mode = #tpu.pipeline_mode<synchronous>, transform_indices = @transform_1, window_bounds = array<i64: 9, 4, 4>}, {pipeline_mode = #tpu.pipeline_mode<synchronous>, transform_indices = @transform_2, window_bounds = array<i64: 9, 4, 4>}, {pipeline_mode = #tpu.pipeline_mode<synchronous>, transform_indices = @transform_3, window_bounds = array<i64: 1, 4>}, {pipeline_mode = #tpu.pipeline_mode<synchronous>, transform_indices = @transform_4, window_bounds = array<i64: 1, 4>}, {transform_indices = @transform_5, window_bounds = array<i64: 1, 8, 16, 4>}]} {
    %c8_i32 = arith.constant 8 : i32
    %0 = arith.muli %arg1, %c8_i32 : i32
    %c0_i32 = arith.constant 0 : i32
    %1 = arith.addi %0, %c0_i32 : i32
    %c0 = arith.constant 0 : index
    %2 = arith.index_cast %1 : i32 to index
    %c0_0 = arith.constant 0 : index
    %c0_1 = arith.constant 0 : index
    %3 = vector.load %arg2[%c0, %2, %c0_0, %c0_1] : memref<1x20x18x4xf32, #tpu.memory_space<vmem>>, vector<1x10x18x4xf32>
    %4 = vector.shape_cast %3 : vector<1x10x18x4xf32> to vector<10x18x4xf32>
    %5 = vector.extract_strided_slice %4 {offsets = [0, 0, 0], sizes = [10, 16, 4], strides = [1, 1, 1]} : vector<10x18x4xf32> to vector<10x16x4xf32>
    %6 = vector.shape_cast %5 : vector<10x16x4xf32> to vector<160x4xf32>
    %c0_2 = arith.constant 0 : index
    %c0_3 = arith.constant 0 : index
    %c0_4 = arith.constant 0 : index
    %7 = vector.load %arg3[%c0_2, %c0_3, %c0_4] : memref<9x4x4xf32, #tpu.memory_space<vmem>>, vector<1x4x4xf32>
    %8 = vector.shape_cast %7 : vector<1x4x4xf32> to vector<4x4xf32>
    %cst = arith.constant dense<0.000000e+00> : vector<160x4xf32>
    %9 = tpu.matmul %6, %8, %cst {dimension_numbers = #tpu.dot_dimension_numbers<[1], [0], [0], [1], [0, 0, 1, 1], [], []>} : vector<160x4xf32>, vector<4x4xf32>, vector<160x4xf32> -> vector<160x4xf32>
    %10 = vector.extract_strided_slice %4 {offsets = [0, 1, 0], sizes = [10, 16, 4], strides = [1, 1, 1]} : vector<10x18x4xf32> to vector<10x16x4xf32>
    %11 = vector.shape_cast %10 : vector<10x16x4xf32> to vector<160x4xf32>
    %c1 = arith.constant 1 : index
    %c0_5 = arith.constant 0 : index
    %c0_6 = arith.constant 0 : index
    %12 = vector.load %arg3[%c1, %c0_5, %c0_6] : memref<9x4x4xf32, #tpu.memory_space<vmem>>, vector<1x4x4xf32>
    %13 = vector.shape_cast %12 : vector<1x4x4xf32> to vector<4x4xf32>
    %cst_7 = arith.constant dense<0.000000e+00> : vector<160x4xf32>
    %14 = tpu.matmul %11, %13, %cst_7 {dimension_numbers = #tpu.dot_dimension_numbers<[1], [0], [0], [1], [0, 0, 1, 1], [], []>} : vector<160x4xf32>, vector<4x4xf32>, vector<160x4xf32> -> vector<160x4xf32>
    %15 = arith.addf %9, %14 : vector<160x4xf32>
    %16 = vector.extract_strided_slice %4 {offsets = [0, 2, 0], sizes = [10, 16, 4], strides = [1, 1, 1]} : vector<10x18x4xf32> to vector<10x16x4xf32>
    %17 = vector.shape_cast %16 : vector<10x16x4xf32> to vector<160x4xf32>
    %c2 = arith.constant 2 : index
    %c0_8 = arith.constant 0 : index
    %c0_9 = arith.constant 0 : index
    %18 = vector.load %arg3[%c2, %c0_8, %c0_9] : memref<9x4x4xf32, #tpu.memory_space<vmem>>, vector<1x4x4xf32>
    %19 = vector.shape_cast %18 : vector<1x4x4xf32> to vector<4x4xf32>
    %cst_10 = arith.constant dense<0.000000e+00> : vector<160x4xf32>
    %20 = tpu.matmul %17, %19, %cst_10 {dimension_numbers = #tpu.dot_dimension_numbers<[1], [0], [0], [1], [0, 0, 1, 1], [], []>} : vector<160x4xf32>, vector<4x4xf32>, vector<160x4xf32> -> vector<160x4xf32>
    %21 = arith.addf %15, %20 : vector<160x4xf32>
    %c1_i32 = arith.constant 1 : i32
    %22 = arith.addi %0, %c1_i32 : i32
    %c0_11 = arith.constant 0 : index
    %23 = arith.index_cast %22 : i32 to index
    %c0_12 = arith.constant 0 : index
    %c0_13 = arith.constant 0 : index
    %24 = vector.load %arg2[%c0_11, %23, %c0_12, %c0_13] : memref<1x20x18x4xf32, #tpu.memory_space<vmem>>, vector<1x10x18x4xf32>
    %25 = vector.shape_cast %24 : vector<1x10x18x4xf32> to vector<10x18x4xf32>
    %26 = vector.extract_strided_slice %25 {offsets = [0, 0, 0], sizes = [10, 16, 4], strides = [1, 1, 1]} : vector<10x18x4xf32> to vector<10x16x4xf32>
    %27 = vector.shape_cast %26 : vector<10x16x4xf32> to vector<160x4xf32>
    %c3 = arith.constant 3 : index
    %c0_14 = arith.constant 0 : index
    %c0_15 = arith.constant 0 : index
    %28 = vector.load %arg3[%c3, %c0_14, %c0_15] : memref<9x4x4xf32, #tpu.memory_space<vmem>>, vector<1x4x4xf32>
    %29 = vector.shape_cast %28 : vector<1x4x4xf32> to vector<4x4xf32>
    %cst_16 = arith.constant dense<0.000000e+00> : vector<160x4xf32>
    %30 = tpu.matmul %27, %29, %cst_16 {dimension_numbers = #tpu.dot_dimension_numbers<[1], [0], [0], [1], [0, 0, 1, 1], [], []>} : vector<160x4xf32>, vector<4x4xf32>, vector<160x4xf32> -> vector<160x4xf32>
    %31 = arith.addf %21, %30 : vector<160x4xf32>
    %32 = vector.extract_strided_slice %25 {offsets = [0, 1, 0], sizes = [10, 16, 4], strides = [1, 1, 1]} : vector<10x18x4xf32> to vector<10x16x4xf32>
    %33 = vector.shape_cast %32 : vector<10x16x4xf32> to vector<160x4xf32>
    %c4 = arith.constant 4 : index
    %c0_17 = arith.constant 0 : index
    %c0_18 = arith.constant 0 : index
    %34 = vector.load %arg3[%c4, %c0_17, %c0_18] : memref<9x4x4xf32, #tpu.memory_space<vmem>>, vector<1x4x4xf32>
    %35 = vector.shape_cast %34 : vector<1x4x4xf32> to vector<4x4xf32>
    %cst_19 = arith.constant dense<0.000000e+00> : vector<160x4xf32>
    %36 = tpu.matmul %33, %35, %cst_19 {dimension_numbers = #tpu.dot_dimension_numbers<[1], [0], [0], [1], [0, 0, 1, 1], [], []>} : vector<160x4xf32>, vector<4x4xf32>, vector<160x4xf32> -> vector<160x4xf32>
    %37 = arith.addf %31, %36 : vector<160x4xf32>
    %38 = vector.extract_strided_slice %25 {offsets = [0, 2, 0], sizes = [10, 16, 4], strides = [1, 1, 1]} : vector<10x18x4xf32> to vector<10x16x4xf32>
    %39 = vector.shape_cast %38 : vector<10x16x4xf32> to vector<160x4xf32>
    %c5 = arith.constant 5 : index
    %c0_20 = arith.constant 0 : index
    %c0_21 = arith.constant 0 : index
    %40 = vector.load %arg3[%c5, %c0_20, %c0_21] : memref<9x4x4xf32, #tpu.memory_space<vmem>>, vector<1x4x4xf32>
    %41 = vector.shape_cast %40 : vector<1x4x4xf32> to vector<4x4xf32>
    %cst_22 = arith.constant dense<0.000000e+00> : vector<160x4xf32>
    %42 = tpu.matmul %39, %41, %cst_22 {dimension_numbers = #tpu.dot_dimension_numbers<[1], [0], [0], [1], [0, 0, 1, 1], [], []>} : vector<160x4xf32>, vector<4x4xf32>, vector<160x4xf32> -> vector<160x4xf32>
    %43 = arith.addf %37, %42 : vector<160x4xf32>
    %c2_i32 = arith.constant 2 : i32
    %44 = arith.addi %0, %c2_i32 : i32
    %c0_23 = arith.constant 0 : index
    %45 = arith.index_cast %44 : i32 to index
    %c0_24 = arith.constant 0 : index
    %c0_25 = arith.constant 0 : index
    %46 = vector.load %arg2[%c0_23, %45, %c0_24, %c0_25] : memref<1x20x18x4xf32, #tpu.memory_space<vmem>>, vector<1x10x18x4xf32>
    %47 = vector.shape_cast %46 : vector<1x10x18x4xf32> to vector<10x18x4xf32>
    %48 = vector.extract_strided_slice %47 {offsets = [0, 0, 0], sizes = [10, 16, 4], strides = [1, 1, 1]} : vector<10x18x4xf32> to vector<10x16x4xf32>
    %49 = vector.shape_cast %48 : vector<10x16x4xf32> to vector<160x4xf32>
    %c6 = arith.constant 6 : index
    %c0_26 = arith.constant 0 : index
    %c0_27 = arith.constant 0 : index
    %50 = vector.load %arg3[%c6, %c0_26, %c0_27] : memref<9x4x4xf32, #tpu.memory_space<vmem>>, vector<1x4x4xf32>
    %51 = vector.shape_cast %50 : vector<1x4x4xf32> to vector<4x4xf32>
    %cst_28 = arith.constant dense<0.000000e+00> : vector<160x4xf32>
    %52 = tpu.matmul %49, %51, %cst_28 {dimension_numbers = #tpu.dot_dimension_numbers<[1], [0], [0], [1], [0, 0, 1, 1], [], []>} : vector<160x4xf32>, vector<4x4xf32>, vector<160x4xf32> -> vector<160x4xf32>
    %53 = arith.addf %43, %52 : vector<160x4xf32>
    %54 = vector.extract_strided_slice %47 {offsets = [0, 1, 0], sizes = [10, 16, 4], strides = [1, 1, 1]} : vector<10x18x4xf32> to vector<10x16x4xf32>
    %55 = vector.shape_cast %54 : vector<10x16x4xf32> to vector<160x4xf32>
    %c7 = arith.constant 7 : index
    %c0_29 = arith.constant 0 : index
    %c0_30 = arith.constant 0 : index
    %56 = vector.load %arg3[%c7, %c0_29, %c0_30] : memref<9x4x4xf32, #tpu.memory_space<vmem>>, vector<1x4x4xf32>
    %57 = vector.shape_cast %56 : vector<1x4x4xf32> to vector<4x4xf32>
    %cst_31 = arith.constant dense<0.000000e+00> : vector<160x4xf32>
    %58 = tpu.matmul %55, %57, %cst_31 {dimension_numbers = #tpu.dot_dimension_numbers<[1], [0], [0], [1], [0, 0, 1, 1], [], []>} : vector<160x4xf32>, vector<4x4xf32>, vector<160x4xf32> -> vector<160x4xf32>
    %59 = arith.addf %53, %58 : vector<160x4xf32>
    %60 = vector.extract_strided_slice %47 {offsets = [0, 2, 0], sizes = [10, 16, 4], strides = [1, 1, 1]} : vector<10x18x4xf32> to vector<10x16x4xf32>
    %61 = vector.shape_cast %60 : vector<10x16x4xf32> to vector<160x4xf32>
    %c8 = arith.constant 8 : index
    %c0_32 = arith.constant 0 : index
    %c0_33 = arith.constant 0 : index
    %62 = vector.load %arg3[%c8, %c0_32, %c0_33] : memref<9x4x4xf32, #tpu.memory_space<vmem>>, vector<1x4x4xf32>
    %63 = vector.shape_cast %62 : vector<1x4x4xf32> to vector<4x4xf32>
    %cst_34 = arith.constant dense<0.000000e+00> : vector<160x4xf32>
    %64 = tpu.matmul %61, %63, %cst_34 {dimension_numbers = #tpu.dot_dimension_numbers<[1], [0], [0], [1], [0, 0, 1, 1], [], []>} : vector<160x4xf32>, vector<4x4xf32>, vector<160x4xf32> -> vector<160x4xf32>
    %65 = arith.addf %59, %64 : vector<160x4xf32>
    %c0_35 = arith.constant 0 : index
    %c0_36 = arith.constant 0 : index
    %66 = vector.load %arg5[%c0_35, %c0_36] : memref<1x4xf32, #tpu.memory_space<vmem>>, vector<1x4xf32>
    %67 = vector.broadcast %66 : vector<1x4xf32> to vector<160x4xf32>
    %68 = arith.addf %65, %67 : vector<160x4xf32>
    %cst_37 = arith.constant 0.000000e+00 : f32
    %69 = vector.broadcast %cst_37 : f32 to vector<160x4xf32>
    %70 = arith.maximumf %68, %69 : vector<160x4xf32>
    %71 = vector.shape_cast %70 : vector<160x4xf32> to vector<10x16x4xf32>
    %c0_38 = arith.constant 0 : index
    %c1_39 = arith.constant 1 : index
    %c0_40 = arith.constant 0 : index
    %72 = vector.load %arg8[%c0_38, %c1_39, %c0_40] : memref<10x18x4xf32, #tpu.memory_space<vmem>>, vector<10x16x4xf32>
    tpu.vector_store %arg8[%c0_38, %c1_39, %c0_40], %71 {strides = array<i32>} : memref<10x18x4xf32, #tpu.memory_space<vmem>>, vector<10x16x4xf32>,
    %cst_41 = arith.constant 0.000000e+00 : f32
    %73 = vector.broadcast %cst_41 : f32 to vector<10x1x4xf32>
    %c0_42 = arith.constant 0 : index
    %c0_43 = arith.constant 0 : index
    %c0_44 = arith.constant 0 : index
    %74 = vector.load %arg8[%c0_42, %c0_43, %c0_44] : memref<10x18x4xf32, #tpu.memory_space<vmem>>, vector<10x1x4xf32>
    tpu.vector_store %arg8[%c0_42, %c0_43, %c0_44], %73 {strides = array<i32>} : memref<10x18x4xf32, #tpu.memory_space<vmem>>, vector<10x1x4xf32>,
    %c0_45 = arith.constant 0 : index
    %c17 = arith.constant 17 : index
    %c0_46 = arith.constant 0 : index
    %75 = vector.load %arg8[%c0_45, %c17, %c0_46] : memref<10x18x4xf32, #tpu.memory_space<vmem>>, vector<10x1x4xf32>
    tpu.vector_store %arg8[%c0_45, %c17, %c0_46], %73 {strides = array<i32>} : memref<10x18x4xf32, #tpu.memory_space<vmem>>, vector<10x1x4xf32>,
    %cst_47 = arith.constant 0.000000e+00 : f32
    %76 = vector.broadcast %cst_47 : f32 to vector<1x16x4xf32>
    %c0_i32_48 = arith.constant 0 : i32
    %77 = arith.cmpi eq, %arg1, %c0_i32_48 : i32
    %78 = arith.extui %77 : i1 to i32
    %c0_i32_49 = arith.constant 0 : i32
    %79 = arith.cmpi ne, %78, %c0_i32_49 : i32
    scf.if %79 {
      %c0_108 = arith.constant 0 : index
      %c1_109 = arith.constant 1 : index
      %c0_110 = arith.constant 0 : index
      %153 = vector.load %arg8[%c0_108, %c1_109, %c0_110] : memref<10x18x4xf32, #tpu.memory_space<vmem>>, vector<1x16x4xf32>
      tpu.vector_store %arg8[%c0_108, %c1_109, %c0_110], %76 {strides = array<i32>} : memref<10x18x4xf32, #tpu.memory_space<vmem>>, vector<1x16x4xf32>,
    } else {
    }
    %c1_i32_50 = arith.constant 1 : i32
    %80 = arith.cmpi eq, %arg1, %c1_i32_50 : i32
    %81 = arith.extui %80 : i1 to i32
    %c0_i32_51 = arith.constant 0 : i32
    %82 = arith.cmpi ne, %81, %c0_i32_51 : i32
    scf.if %82 {
      %c9 = arith.constant 9 : index
      %c1_108 = arith.constant 1 : index
      %c0_109 = arith.constant 0 : index
      %153 = vector.load %arg8[%c9, %c1_108, %c0_109] : memref<10x18x4xf32, #tpu.memory_space<vmem>>, vector<1x16x4xf32>
      tpu.vector_store %arg8[%c9, %c1_108, %c0_109], %76 {strides = array<i32>} : memref<10x18x4xf32, #tpu.memory_space<vmem>>, vector<1x16x4xf32>,
    } else {
    }
    %c0_52 = arith.constant 0 : index
    %c0_53 = arith.constant 0 : index
    %c0_54 = arith.constant 0 : index
    %83 = vector.load %arg8[%c0_52, %c0_53, %c0_54] : memref<10x18x4xf32, #tpu.memory_space<vmem>>, vector<8x18x4xf32>
    %84 = vector.extract_strided_slice %83 {offsets = [0, 0, 0], sizes = [8, 16, 4], strides = [1, 1, 1]} : vector<8x18x4xf32> to vector<8x16x4xf32>
    %85 = vector.shape_cast %84 : vector<8x16x4xf32> to vector<128x4xf32>
    %c0_55 = arith.constant 0 : index
    %c0_56 = arith.constant 0 : index
    %c0_57 = arith.constant 0 : index
    %86 = vector.load %arg4[%c0_55, %c0_56, %c0_57] : memref<9x4x4xf32, #tpu.memory_space<vmem>>, vector<1x4x4xf32>
    %87 = vector.shape_cast %86 : vector<1x4x4xf32> to vector<4x4xf32>
    %cst_58 = arith.constant dense<0.000000e+00> : vector<128x4xf32>
    %88 = tpu.matmul %85, %87, %cst_58 {dimension_numbers = #tpu.dot_dimension_numbers<[1], [0], [0], [1], [0, 0, 1, 1], [], []>} : vector<128x4xf32>, vector<4x4xf32>, vector<128x4xf32> -> vector<128x4xf32>
    %89 = vector.extract_strided_slice %83 {offsets = [0, 1, 0], sizes = [8, 16, 4], strides = [1, 1, 1]} : vector<8x18x4xf32> to vector<8x16x4xf32>
    %90 = vector.shape_cast %89 : vector<8x16x4xf32> to vector<128x4xf32>
    %c1_59 = arith.constant 1 : index
    %c0_60 = arith.constant 0 : index
    %c0_61 = arith.constant 0 : index
    %91 = vector.load %arg4[%c1_59, %c0_60, %c0_61] : memref<9x4x4xf32, #tpu.memory_space<vmem>>, vector<1x4x4xf32>
    %92 = vector.shape_cast %91 : vector<1x4x4xf32> to vector<4x4xf32>
    %cst_62 = arith.constant dense<0.000000e+00> : vector<128x4xf32>
    %93 = tpu.matmul %90, %92, %cst_62 {dimension_numbers = #tpu.dot_dimension_numbers<[1], [0], [0], [1], [0, 0, 1, 1], [], []>} : vector<128x4xf32>, vector<4x4xf32>, vector<128x4xf32> -> vector<128x4xf32>
    %94 = arith.addf %88, %93 : vector<128x4xf32>
    %95 = vector.extract_strided_slice %83 {offsets = [0, 2, 0], sizes = [8, 16, 4], strides = [1, 1, 1]} : vector<8x18x4xf32> to vector<8x16x4xf32>
    %96 = vector.shape_cast %95 : vector<8x16x4xf32> to vector<128x4xf32>
    %c2_63 = arith.constant 2 : index
    %c0_64 = arith.constant 0 : index
    %c0_65 = arith.constant 0 : index
    %97 = vector.load %arg4[%c2_63, %c0_64, %c0_65] : memref<9x4x4xf32, #tpu.memory_space<vmem>>, vector<1x4x4xf32>
    %98 = vector.shape_cast %97 : vector<1x4x4xf32> to vector<4x4xf32>
    %cst_66 = arith.constant dense<0.000000e+00> : vector<128x4xf32>
    %99 = tpu.matmul %96, %98, %cst_66 {dimension_numbers = #tpu.dot_dimension_numbers<[1], [0], [0], [1], [0, 0, 1, 1], [], []>} : vector<128x4xf32>, vector<4x4xf32>, vector<128x4xf32> -> vector<128x4xf32>
    %100 = arith.addf %94, %99 : vector<128x4xf32>
    %c1_67 = arith.constant 1 : index
    %c0_68 = arith.constant 0 : index
    %c0_69 = arith.constant 0 : index
    %101 = vector.load %arg8[%c1_67, %c0_68, %c0_69] : memref<10x18x4xf32, #tpu.memory_space<vmem>>, vector<8x18x4xf32>
    %102 = vector.extract_strided_slice %101 {offsets = [0, 0, 0], sizes = [8, 16, 4], strides = [1, 1, 1]} : vector<8x18x4xf32> to vector<8x16x4xf32>
    %103 = vector.shape_cast %102 : vector<8x16x4xf32> to vector<128x4xf32>
    %c3_70 = arith.constant 3 : index
    %c0_71 = arith.constant 0 : index
    %c0_72 = arith.constant 0 : index
    %104 = vector.load %arg4[%c3_70, %c0_71, %c0_72] : memref<9x4x4xf32, #tpu.memory_space<vmem>>, vector<1x4x4xf32>
    %105 = vector.shape_cast %104 : vector<1x4x4xf32> to vector<4x4xf32>
    %cst_73 = arith.constant dense<0.000000e+00> : vector<128x4xf32>
    %106 = tpu.matmul %103, %105, %cst_73 {dimension_numbers = #tpu.dot_dimension_numbers<[1], [0], [0], [1], [0, 0, 1, 1], [], []>} : vector<128x4xf32>, vector<4x4xf32>, vector<128x4xf32> -> vector<128x4xf32>
    %107 = arith.addf %100, %106 : vector<128x4xf32>
    %108 = vector.extract_strided_slice %101 {offsets = [0, 1, 0], sizes = [8, 16, 4], strides = [1, 1, 1]} : vector<8x18x4xf32> to vector<8x16x4xf32>
    %109 = vector.shape_cast %108 : vector<8x16x4xf32> to vector<128x4xf32>
    %c4_74 = arith.constant 4 : index
    %c0_75 = arith.constant 0 : index
    %c0_76 = arith.constant 0 : index
    %110 = vector.load %arg4[%c4_74, %c0_75, %c0_76] : memref<9x4x4xf32, #tpu.memory_space<vmem>>, vector<1x4x4xf32>
    %111 = vector.shape_cast %110 : vector<1x4x4xf32> to vector<4x4xf32>
    %cst_77 = arith.constant dense<0.000000e+00> : vector<128x4xf32>
    %112 = tpu.matmul %109, %111, %cst_77 {dimension_numbers = #tpu.dot_dimension_numbers<[1], [0], [0], [1], [0, 0, 1, 1], [], []>} : vector<128x4xf32>, vector<4x4xf32>, vector<128x4xf32> -> vector<128x4xf32>
    %113 = arith.addf %107, %112 : vector<128x4xf32>
    %114 = vector.extract_strided_slice %101 {offsets = [0, 2, 0], sizes = [8, 16, 4], strides = [1, 1, 1]} : vector<8x18x4xf32> to vector<8x16x4xf32>
    %115 = vector.shape_cast %114 : vector<8x16x4xf32> to vector<128x4xf32>
    %c5_78 = arith.constant 5 : index
    %c0_79 = arith.constant 0 : index
    %c0_80 = arith.constant 0 : index
    %116 = vector.load %arg4[%c5_78, %c0_79, %c0_80] : memref<9x4x4xf32, #tpu.memory_space<vmem>>, vector<1x4x4xf32>
    %117 = vector.shape_cast %116 : vector<1x4x4xf32> to vector<4x4xf32>
    %cst_81 = arith.constant dense<0.000000e+00> : vector<128x4xf32>
    %118 = tpu.matmul %115, %117, %cst_81 {dimension_numbers = #tpu.dot_dimension_numbers<[1], [0], [0], [1], [0, 0, 1, 1], [], []>} : vector<128x4xf32>, vector<4x4xf32>, vector<128x4xf32> -> vector<128x4xf32>
    %119 = arith.addf %113, %118 : vector<128x4xf32>
    %c2_82 = arith.constant 2 : index
    %c0_83 = arith.constant 0 : index
    %c0_84 = arith.constant 0 : index
    %120 = vector.load %arg8[%c2_82, %c0_83, %c0_84] : memref<10x18x4xf32, #tpu.memory_space<vmem>>, vector<8x18x4xf32>
    %121 = vector.extract_strided_slice %120 {offsets = [0, 0, 0], sizes = [8, 16, 4], strides = [1, 1, 1]} : vector<8x18x4xf32> to vector<8x16x4xf32>
    %122 = vector.shape_cast %121 : vector<8x16x4xf32> to vector<128x4xf32>
    %c6_85 = arith.constant 6 : index
    %c0_86 = arith.constant 0 : index
    %c0_87 = arith.constant 0 : index
    %123 = vector.load %arg4[%c6_85, %c0_86, %c0_87] : memref<9x4x4xf32, #tpu.memory_space<vmem>>, vector<1x4x4xf32>
    %124 = vector.shape_cast %123 : vector<1x4x4xf32> to vector<4x4xf32>
    %cst_88 = arith.constant dense<0.000000e+00> : vector<128x4xf32>
    %125 = tpu.matmul %122, %124, %cst_88 {dimension_numbers = #tpu.dot_dimension_numbers<[1], [0], [0], [1], [0, 0, 1, 1], [], []>} : vector<128x4xf32>, vector<4x4xf32>, vector<128x4xf32> -> vector<128x4xf32>
    %126 = arith.addf %119, %125 : vector<128x4xf32>
    %127 = vector.extract_strided_slice %120 {offsets = [0, 1, 0], sizes = [8, 16, 4], strides = [1, 1, 1]} : vector<8x18x4xf32> to vector<8x16x4xf32>
    %128 = vector.shape_cast %127 : vector<8x16x4xf32> to vector<128x4xf32>
    %c7_89 = arith.constant 7 : index
    %c0_90 = arith.constant 0 : index
    %c0_91 = arith.constant 0 : index
    %129 = vector.load %arg4[%c7_89, %c0_90, %c0_91] : memref<9x4x4xf32, #tpu.memory_space<vmem>>, vector<1x4x4xf32>
    %130 = vector.shape_cast %129 : vector<1x4x4xf32> to vector<4x4xf32>
    %cst_92 = arith.constant dense<0.000000e+00> : vector<128x4xf32>
    %131 = tpu.matmul %128, %130, %cst_92 {dimension_numbers = #tpu.dot_dimension_numbers<[1], [0], [0], [1], [0, 0, 1, 1], [], []>} : vector<128x4xf32>, vector<4x4xf32>, vector<128x4xf32> -> vector<128x4xf32>
    %132 = arith.addf %126, %131 : vector<128x4xf32>
    %133 = vector.extract_strided_slice %120 {offsets = [0, 2, 0], sizes = [8, 16, 4], strides = [1, 1, 1]} : vector<8x18x4xf32> to vector<8x16x4xf32>
    %134 = vector.shape_cast %133 : vector<8x16x4xf32> to vector<128x4xf32>
    %c8_93 = arith.constant 8 : index
    %c0_94 = arith.constant 0 : index
    %c0_95 = arith.constant 0 : index
    %135 = vector.load %arg4[%c8_93, %c0_94, %c0_95] : memref<9x4x4xf32, #tpu.memory_space<vmem>>, vector<1x4x4xf32>
    %136 = vector.shape_cast %135 : vector<1x4x4xf32> to vector<4x4xf32>
    %cst_96 = arith.constant dense<0.000000e+00> : vector<128x4xf32>
    %137 = tpu.matmul %134, %136, %cst_96 {dimension_numbers = #tpu.dot_dimension_numbers<[1], [0], [0], [1], [0, 0, 1, 1], [], []>} : vector<128x4xf32>, vector<4x4xf32>, vector<128x4xf32> -> vector<128x4xf32>
    %138 = arith.addf %132, %137 : vector<128x4xf32>
    %c2_i32_97 = arith.constant 2 : i32
    %139 = arith.addi %0, %c2_i32_97 : i32
    %c0_98 = arith.constant 0 : index
    %140 = arith.index_cast %139 : i32 to index
    %c0_99 = arith.constant 0 : index
    %c0_100 = arith.constant 0 : index
    %141 = vector.load %arg2[%c0_98, %140, %c0_99, %c0_100] : memref<1x20x18x4xf32, #tpu.memory_space<vmem>>, vector<1x8x18x4xf32>
    %142 = vector.shape_cast %141 : vector<1x8x18x4xf32> to vector<8x18x4xf32>
    %143 = vector.extract_strided_slice %142 {offsets = [0, 1, 0], sizes = [8, 16, 4], strides = [1, 1, 1]} : vector<8x18x4xf32> to vector<8x16x4xf32>
    %144 = vector.shape_cast %143 : vector<8x16x4xf32> to vector<128x4xf32>
    %c0_101 = arith.constant 0 : index
    %c0_102 = arith.constant 0 : index
    %145 = vector.load %arg6[%c0_101, %c0_102] : memref<1x4xf32, #tpu.memory_space<vmem>>, vector<1x4xf32>
    %146 = vector.broadcast %145 : vector<1x4xf32> to vector<128x4xf32>
    %147 = arith.addf %138, %146 : vector<128x4xf32>
    %148 = arith.addf %147, %144 : vector<128x4xf32>
    %cst_103 = arith.constant 0.000000e+00 : f32
    %149 = vector.broadcast %cst_103 : f32 to vector<128x4xf32>
    %150 = arith.maximumf %148, %149 : vector<128x4xf32>
    %151 = vector.shape_cast %150 : vector<128x4xf32> to vector<1x8x16x4xf32>
    %c0_104 = arith.constant 0 : index
    %c0_105 = arith.constant 0 : index
    %c0_106 = arith.constant 0 : index
    %c0_107 = arith.constant 0 : index
    %152 = vector.load %arg7[%c0_104, %c0_105, %c0_106, %c0_107] : memref<1x8x16x4xf32, #tpu.memory_space<vmem>>, vector<1x8x16x4xf32>
    tpu.vector_store %arg7[%c0_104, %c0_105, %c0_106, %c0_107], %151 {strides = array<i32>} : memref<1x8x16x4xf32, #tpu.memory_space<vmem>>, vector<1x8x16x4xf32>,
    return
  }
  func.func @transform_0(%arg0: i32, %arg1: i32) -> (i32, i32, i32, i32) {
    %c0_i32 = arith.constant 0 : i32
    %c0_i32_0 = arith.constant 0 : i32
    %c0_i32_1 = arith.constant 0 : i32
    %c0_i32_2 = arith.constant 0 : i32
    return %arg0, %c0_i32, %c0_i32_0, %c0_i32_1 : i32, i32, i32, i32
  }
  func.func @transform_1(%arg0: i32, %arg1: i32) -> (i32, i32, i32) {
    %c0_i32 = arith.constant 0 : i32
    %c0_i32_0 = arith.constant 0 : i32
    %c0_i32_1 = arith.constant 0 : i32
    %c0_i32_2 = arith.constant 0 : i32
    return %c0_i32, %c0_i32_0, %c0_i32_1 : i32, i32, i32
  }
  func.func @transform_2(%arg0: i32, %arg1: i32) -> (i32, i32, i32) {
    %c0_i32 = arith.constant 0 : i32
    %c0_i32_0 = arith.constant 0 : i32
    %c0_i32_1 = arith.constant 0 : i32
    %c0_i32_2 = arith.constant 0 : i32
    return %c0_i32, %c0_i32_0, %c0_i32_1 : i32, i32, i32
  }
  func.func @transform_3(%arg0: i32, %arg1: i32) -> (i32, i32) {
    %c0_i32 = arith.constant 0 : i32
    %c0_i32_0 = arith.constant 0 : i32
    %c0_i32_1 = arith.constant 0 : i32
    return %c0_i32, %c0_i32_0 : i32, i32
  }
  func.func @transform_4(%arg0: i32, %arg1: i32) -> (i32, i32) {
    %c0_i32 = arith.constant 0 : i32
    %c0_i32_0 = arith.constant 0 : i32
    %c0_i32_1 = arith.constant 0 : i32
    return %c0_i32, %c0_i32_0 : i32, i32
  }
  func.func @transform_5(%arg0: i32, %arg1: i32) -> (i32, i32, i32, i32) {
    %c0_i32 = arith.constant 0 : i32
    %c0_i32_0 = arith.constant 0 : i32
    %c0_i32_1 = arith.constant 0 : i32
    return %arg0, %arg1, %c0_i32, %c0_i32_0 : i32, i32, i32, i32
  }
}

module attributes {stable_mosaic.version = 11 : i64} {
  func.func @basic_block_kernel(%arg0: i32, %arg1: i32, %arg2: memref<1x20x18x4xf32, #tpu.memory_space<vmem>>, %arg3: memref<9x4x4xf32, #tpu.memory_space<vmem>>, %arg4: memref<9x4x4xf32, #tpu.memory_space<vmem>>, %arg5: memref<1x4xf32, #tpu.memory_space<vmem>>, %arg6: memref<1x4xf32, #tpu.memory_space<vmem>>, %arg7: memref<1x8x16x4xf32, #tpu.memory_space<vmem>>, %arg8: memref<10x18x4xf32, #tpu.memory_space<vmem>>) attributes {dimension_semantics = [#tpu.dimension_semantics<parallel>, #tpu.dimension_semantics<parallel>], iteration_bounds = array<i64: 2, 2>, scalar_prefetch = 0 : i64, scratch_operands = 1 : i64, tpu.core_type = #tpu.core_type<tc>, window_params = [{transform_indices = @transform_0, window_bounds = array<i64: 1, 20, 18, 4>}, {pipeline_mode = #tpu.pipeline_mode<synchronous>, transform_indices = @transform_1, window_bounds = array<i64: 9, 4, 4>}, {pipeline_mode = #tpu.pipeline_mode<synchronous>, transform_indices = @transform_2, window_bounds = array<i64: 9, 4, 4>}, {pipeline_mode = #tpu.pipeline_mode<synchronous>, transform_indices = @transform_3, window_bounds = array<i64: 1, 4>}, {pipeline_mode = #tpu.pipeline_mode<synchronous>, transform_indices = @transform_4, window_bounds = array<i64: 1, 4>}, {transform_indices = @transform_5, window_bounds = array<i64: 1, 8, 16, 4>}]} {
    %c8_i32 = arith.constant 8 : i32
    %0 = arith.muli %arg1, %c8_i32 : i32
    %c0_i32 = arith.constant 0 : i32
    %1 = arith.addi %0, %c0_i32 : i32
    %c0 = arith.constant 0 : index
    %2 = arith.index_cast %1 : i32 to index
    %c0_0 = arith.constant 0 : index
    %c0_1 = arith.constant 0 : index
    %3 = vector.load %arg2[%c0, %2, %c0_0, %c0_1] : memref<1x20x18x4xf32, #tpu.memory_space<vmem>>, vector<1x10x18x4xf32>
    %4 = vector.shape_cast %3 : vector<1x10x18x4xf32> to vector<10x18x4xf32>
    %5 = vector.extract_strided_slice %4 {offsets = [0, 0, 0], sizes = [10, 16, 4], strides = [1, 1, 1]} : vector<10x18x4xf32> to vector<10x16x4xf32>
    %6 = vector.shape_cast %5 : vector<10x16x4xf32> to vector<160x4xf32>
    %c0_2 = arith.constant 0 : index
    %c0_3 = arith.constant 0 : index
    %c0_4 = arith.constant 0 : index
    %7 = vector.load %arg3[%c0_2, %c0_3, %c0_4] : memref<9x4x4xf32, #tpu.memory_space<vmem>>, vector<1x4x4xf32>
    %8 = vector.shape_cast %7 : vector<1x4x4xf32> to vector<4x4xf32>
    %cst = arith.constant dense<0.000000e+00> : vector<160x4xf32>
    %9 = tpu.matmul %6, %8, %cst {dimension_numbers = #tpu.dot_dimension_numbers<[1], [0], [0], [1], [0, 0, 1, 1], [], []>} : vector<160x4xf32>, vector<4x4xf32>, vector<160x4xf32> -> vector<160x4xf32>
    %10 = vector.extract_strided_slice %4 {offsets = [0, 1, 0], sizes = [10, 16, 4], strides = [1, 1, 1]} : vector<10x18x4xf32> to vector<10x16x4xf32>
    %11 = vector.shape_cast %10 : vector<10x16x4xf32> to vector<160x4xf32>
    %c1 = arith.constant 1 : index
    %c0_5 = arith.constant 0 : index
    %c0_6 = arith.constant 0 : index
    %12 = vector.load %arg3[%c1, %c0_5, %c0_6] : memref<9x4x4xf32, #tpu.memory_space<vmem>>, vector<1x4x4xf32>
    %13 = vector.shape_cast %12 : vector<1x4x4xf32> to vector<4x4xf32>
    %cst_7 = arith.constant dense<0.000000e+00> : vector<160x4xf32>
    %14 = tpu.matmul %11, %13, %cst_7 {dimension_numbers = #tpu.dot_dimension_numbers<[1], [0], [0], [1], [0, 0, 1, 1], [], []>} : vector<160x4xf32>, vector<4x4xf32>, vector<160x4xf32> -> vector<160x4xf32>
    %15 = arith.addf %9, %14 : vector<160x4xf32>
    %16 = vector.extract_strided_slice %4 {offsets = [0, 2, 0], sizes = [10, 16, 4], strides = [1, 1, 1]} : vector<10x18x4xf32> to vector<10x16x4xf32>
    %17 = vector.shape_cast %16 : vector<10x16x4xf32> to vector<160x4xf32>
    %c2 = arith.constant 2 : index
    %c0_8 = arith.constant 0 : index
    %c0_9 = arith.constant 0 : index
    %18 = vector.load %arg3[%c2, %c0_8, %c0_9] : memref<9x4x4xf32, #tpu.memory_space<vmem>>, vector<1x4x4xf32>
    %19 = vector.shape_cast %18 : vector<1x4x4xf32> to vector<4x4xf32>
    %cst_10 = arith.constant dense<0.000000e+00> : vector<160x4xf32>
    %20 = tpu.matmul %17, %19, %cst_10 {dimension_numbers = #tpu.dot_dimension_numbers<[1], [0], [0], [1], [0, 0, 1, 1], [], []>} : vector<160x4xf32>, vector<4x4xf32>, vector<160x4xf32> -> vector<160x4xf32>
    %21 = arith.addf %15, %20 : vector<160x4xf32>
    %c1_i32 = arith.constant 1 : i32
    %22 = arith.addi %0, %c1_i32 : i32
    %c0_11 = arith.constant 0 : index
    %23 = arith.index_cast %22 : i32 to index
    %c0_12 = arith.constant 0 : index
    %c0_13 = arith.constant 0 : index
    %24 = vector.load %arg2[%c0_11, %23, %c0_12, %c0_13] : memref<1x20x18x4xf32, #tpu.memory_space<vmem>>, vector<1x10x18x4xf32>
    %25 = vector.shape_cast %24 : vector<1x10x18x4xf32> to vector<10x18x4xf32>
    %26 = vector.extract_strided_slice %25 {offsets = [0, 0, 0], sizes = [10, 16, 4], strides = [1, 1, 1]} : vector<10x18x4xf32> to vector<10x16x4xf32>
    %27 = vector.shape_cast %26 : vector<10x16x4xf32> to vector<160x4xf32>
    %c3 = arith.constant 3 : index
    %c0_14 = arith.constant 0 : index
    %c0_15 = arith.constant 0 : index
    %28 = vector.load %arg3[%c3, %c0_14, %c0_15] : memref<9x4x4xf32, #tpu.memory_space<vmem>>, vector<1x4x4xf32>
    %29 = vector.shape_cast %28 : vector<1x4x4xf32> to vector<4x4xf32>
    %cst_16 = arith.constant dense<0.000000e+00> : vector<160x4xf32>
    %30 = tpu.matmul %27, %29, %cst_16 {dimension_numbers = #tpu.dot_dimension_numbers<[1], [0], [0], [1], [0, 0, 1, 1], [], []>} : vector<160x4xf32>, vector<4x4xf32>, vector<160x4xf32> -> vector<160x4xf32>
    %31 = arith.addf %21, %30 : vector<160x4xf32>
    %32 = vector.extract_strided_slice %25 {offsets = [0, 1, 0], sizes = [10, 16, 4], strides = [1, 1, 1]} : vector<10x18x4xf32> to vector<10x16x4xf32>
    %33 = vector.shape_cast %32 : vector<10x16x4xf32> to vector<160x4xf32>
    %c4 = arith.constant 4 : index
    %c0_17 = arith.constant 0 : index
    %c0_18 = arith.constant 0 : index
    %34 = vector.load %arg3[%c4, %c0_17, %c0_18] : memref<9x4x4xf32, #tpu.memory_space<vmem>>, vector<1x4x4xf32>
    %35 = vector.shape_cast %34 : vector<1x4x4xf32> to vector<4x4xf32>
    %cst_19 = arith.constant dense<0.000000e+00> : vector<160x4xf32>
    %36 = tpu.matmul %33, %35, %cst_19 {dimension_numbers = #tpu.dot_dimension_numbers<[1], [0], [0], [1], [0, 0, 1, 1], [], []>} : vector<160x4xf32>, vector<4x4xf32>, vector<160x4xf32> -> vector<160x4xf32>
    %37 = arith.addf %31, %36 : vector<160x4xf32>
    %38 = vector.extract_strided_slice %25 {offsets = [0, 2, 0], sizes = [10, 16, 4], strides = [1, 1, 1]} : vector<10x18x4xf32> to vector<10x16x4xf32>
    %39 = vector.shape_cast %38 : vector<10x16x4xf32> to vector<160x4xf32>
    %c5 = arith.constant 5 : index
    %c0_20 = arith.constant 0 : index
    %c0_21 = arith.constant 0 : index
    %40 = vector.load %arg3[%c5, %c0_20, %c0_21] : memref<9x4x4xf32, #tpu.memory_space<vmem>>, vector<1x4x4xf32>
    %41 = vector.shape_cast %40 : vector<1x4x4xf32> to vector<4x4xf32>
    %cst_22 = arith.constant dense<0.000000e+00> : vector<160x4xf32>
    %42 = tpu.matmul %39, %41, %cst_22 {dimension_numbers = #tpu.dot_dimension_numbers<[1], [0], [0], [1], [0, 0, 1, 1], [], []>} : vector<160x4xf32>, vector<4x4xf32>, vector<160x4xf32> -> vector<160x4xf32>
    %43 = arith.addf %37, %42 : vector<160x4xf32>
    %c2_i32 = arith.constant 2 : i32
    %44 = arith.addi %0, %c2_i32 : i32
    %c0_23 = arith.constant 0 : index
    %45 = arith.index_cast %44 : i32 to index
    %c0_24 = arith.constant 0 : index
    %c0_25 = arith.constant 0 : index
    %46 = vector.load %arg2[%c0_23, %45, %c0_24, %c0_25] : memref<1x20x18x4xf32, #tpu.memory_space<vmem>>, vector<1x10x18x4xf32>
    %47 = vector.shape_cast %46 : vector<1x10x18x4xf32> to vector<10x18x4xf32>
    %48 = vector.extract_strided_slice %47 {offsets = [0, 0, 0], sizes = [10, 16, 4], strides = [1, 1, 1]} : vector<10x18x4xf32> to vector<10x16x4xf32>
    %49 = vector.shape_cast %48 : vector<10x16x4xf32> to vector<160x4xf32>
    %c6 = arith.constant 6 : index
    %c0_26 = arith.constant 0 : index
    %c0_27 = arith.constant 0 : index
    %50 = vector.load %arg3[%c6, %c0_26, %c0_27] : memref<9x4x4xf32, #tpu.memory_space<vmem>>, vector<1x4x4xf32>
    %51 = vector.shape_cast %50 : vector<1x4x4xf32> to vector<4x4xf32>
    %cst_28 = arith.constant dense<0.000000e+00> : vector<160x4xf32>
    %52 = tpu.matmul %49, %51, %cst_28 {dimension_numbers = #tpu.dot_dimension_numbers<[1], [0], [0], [1], [0, 0, 1, 1], [], []>} : vector<160x4xf32>, vector<4x4xf32>, vector<160x4xf32> -> vector<160x4xf32>
    %53 = arith.addf %43, %52 : vector<160x4xf32>
    %54 = vector.extract_strided_slice %47 {offsets = [0, 1, 0], sizes = [10, 16, 4], strides = [1, 1, 1]} : vector<10x18x4xf32> to vector<10x16x4xf32>
    %55 = vector.shape_cast %54 : vector<10x16x4xf32> to vector<160x4xf32>
    %c7 = arith.constant 7 : index
    %c0_29 = arith.constant 0 : index
    %c0_30 = arith.constant 0 : index
    %56 = vector.load %arg3[%c7, %c0_29, %c0_30] : memref<9x4x4xf32, #tpu.memory_space<vmem>>, vector<1x4x4xf32>
    %57 = vector.shape_cast %56 : vector<1x4x4xf32> to vector<4x4xf32>
    %cst_31 = arith.constant dense<0.000000e+00> : vector<160x4xf32>
    %58 = tpu.matmul %55, %57, %cst_31 {dimension_numbers = #tpu.dot_dimension_numbers<[1], [0], [0], [1], [0, 0, 1, 1], [], []>} : vector<160x4xf32>, vector<4x4xf32>, vector<160x4xf32> -> vector<160x4xf32>
    %59 = arith.addf %53, %58 : vector<160x4xf32>
    %60 = vector.extract_strided_slice %47 {offsets = [0, 2, 0], sizes = [10, 16, 4], strides = [1, 1, 1]} : vector<10x18x4xf32> to vector<10x16x4xf32>
    %61 = vector.shape_cast %60 : vector<10x16x4xf32> to vector<160x4xf32>
    %c8 = arith.constant 8 : index
    %c0_32 = arith.constant 0 : index
    %c0_33 = arith.constant 0 : index
    %62 = vector.load %arg3[%c8, %c0_32, %c0_33] : memref<9x4x4xf32, #tpu.memory_space<vmem>>, vector<1x4x4xf32>
    %63 = vector.shape_cast %62 : vector<1x4x4xf32> to vector<4x4xf32>
    %cst_34 = arith.constant dense<0.000000e+00> : vector<160x4xf32>
    %64 = tpu.matmul %61, %63, %cst_34 {dimension_numbers = #tpu.dot_dimension_numbers<[1], [0], [0], [1], [0, 0, 1, 1], [], []>} : vector<160x4xf32>, vector<4x4xf32>, vector<160x4xf32> -> vector<160x4xf32>
    %65 = arith.addf %59, %64 : vector<160x4xf32>
    %c0_35 = arith.constant 0 : index
    %c0_36 = arith.constant 0 : index
    %66 = vector.load %arg5[%c0_35, %c0_36] : memref<1x4xf32, #tpu.memory_space<vmem>>, vector<1x4xf32>
    %67 = vector.broadcast %66 : vector<1x4xf32> to vector<160x4xf32>
    %68 = arith.addf %65, %67 : vector<160x4xf32>
    %cst_37 = arith.constant 0.000000e+00 : f32
    %69 = vector.broadcast %cst_37 : f32 to vector<160x4xf32>
    %70 = arith.maximumf %68, %69 : vector<160x4xf32>
    %71 = vector.shape_cast %70 : vector<160x4xf32> to vector<10x16x4xf32>
    %c0_38 = arith.constant 0 : index
    %c1_39 = arith.constant 1 : index
    %c0_40 = arith.constant 0 : index
    %72 = vector.load %arg8[%c0_38, %c1_39, %c0_40] : memref<10x18x4xf32, #tpu.memory_space<vmem>>, vector<10x16x4xf32>
    tpu.vector_store %arg8[%c0_38, %c1_39, %c0_40], %71 {strides = array<i32>} : memref<10x18x4xf32, #tpu.memory_space<vmem>>, vector<10x16x4xf32>,
    %cst_41 = arith.constant 0.000000e+00 : f32
    %73 = vector.broadcast %cst_41 : f32 to vector<10x1x4xf32>
    %c0_42 = arith.constant 0 : index
    %c0_43 = arith.constant 0 : index
    %c0_44 = arith.constant 0 : index
    %74 = vector.load %arg8[%c0_42, %c0_43, %c0_44] : memref<10x18x4xf32, #tpu.memory_space<vmem>>, vector<10x1x4xf32>
    tpu.vector_store %arg8[%c0_42, %c0_43, %c0_44], %73 {strides = array<i32>} : memref<10x18x4xf32, #tpu.memory_space<vmem>>, vector<10x1x4xf32>,
    %c0_45 = arith.constant 0 : index
    %c17 = arith.constant 17 : index
    %c0_46 = arith.constant 0 : index
    %75 = vector.load %arg8[%c0_45, %c17, %c0_46] : memref<10x18x4xf32, #tpu.memory_space<vmem>>, vector<10x1x4xf32>
    tpu.vector_store %arg8[%c0_45, %c17, %c0_46], %73 {strides = array<i32>} : memref<10x18x4xf32, #tpu.memory_space<vmem>>, vector<10x1x4xf32>,
    %cst_47 = arith.constant 0.000000e+00 : f32
    %76 = vector.broadcast %cst_47 : f32 to vector<1x16x4xf32>
    %c0_i32_48 = arith.constant 0 : i32
    %77 = arith.cmpi eq, %arg1, %c0_i32_48 : i32
    %78 = arith.extui %77 : i1 to i32
    %c0_i32_49 = arith.constant 0 : i32
    %79 = arith.cmpi ne, %78, %c0_i32_49 : i32
    scf.if %79 {
      %c0_108 = arith.constant 0 : index
      %c1_109 = arith.constant 1 : index
      %c0_110 = arith.constant 0 : index
      %153 = vector.load %arg8[%c0_108, %c1_109, %c0_110] : memref<10x18x4xf32, #tpu.memory_space<vmem>>, vector<1x16x4xf32>
      tpu.vector_store %arg8[%c0_108, %c1_109, %c0_110], %76 {strides = array<i32>} : memref<10x18x4xf32, #tpu.memory_space<vmem>>, vector<1x16x4xf32>,
    } else {
    }
    %c1_i32_50 = arith.constant 1 : i32
    %80 = arith.cmpi eq, %arg1, %c1_i32_50 : i32
    %81 = arith.extui %80 : i1 to i32
    %c0_i32_51 = arith.constant 0 : i32
    %82 = arith.cmpi ne, %81, %c0_i32_51 : i32
    scf.if %82 {
      %c9 = arith.constant 9 : index
      %c1_108 = arith.constant 1 : index
      %c0_109 = arith.constant 0 : index
      %153 = vector.load %arg8[%c9, %c1_108, %c0_109] : memref<10x18x4xf32, #tpu.memory_space<vmem>>, vector<1x16x4xf32>
      tpu.vector_store %arg8[%c9, %c1_108, %c0_109], %76 {strides = array<i32>} : memref<10x18x4xf32, #tpu.memory_space<vmem>>, vector<1x16x4xf32>,
    } else {
    }
    %c0_52 = arith.constant 0 : index
    %c0_53 = arith.constant 0 : index
    %c0_54 = arith.constant 0 : index
    %83 = vector.load %arg8[%c0_52, %c0_53, %c0_54] : memref<10x18x4xf32, #tpu.memory_space<vmem>>, vector<8x18x4xf32>
    %84 = vector.extract_strided_slice %83 {offsets = [0, 0, 0], sizes = [8, 16, 4], strides = [1, 1, 1]} : vector<8x18x4xf32> to vector<8x16x4xf32>
    %85 = vector.shape_cast %84 : vector<8x16x4xf32> to vector<128x4xf32>
    %c0_55 = arith.constant 0 : index
    %c0_56 = arith.constant 0 : index
    %c0_57 = arith.constant 0 : index
    %86 = vector.load %arg4[%c0_55, %c0_56, %c0_57] : memref<9x4x4xf32, #tpu.memory_space<vmem>>, vector<1x4x4xf32>
    %87 = vector.shape_cast %86 : vector<1x4x4xf32> to vector<4x4xf32>
    %cst_58 = arith.constant dense<0.000000e+00> : vector<128x4xf32>
    %88 = tpu.matmul %85, %87, %cst_58 {dimension_numbers = #tpu.dot_dimension_numbers<[1], [0], [0], [1], [0, 0, 1, 1], [], []>} : vector<128x4xf32>, vector<4x4xf32>, vector<128x4xf32> -> vector<128x4xf32>
    %89 = vector.extract_strided_slice %83 {offsets = [0, 1, 0], sizes = [8, 16, 4], strides = [1, 1, 1]} : vector<8x18x4xf32> to vector<8x16x4xf32>
    %90 = vector.shape_cast %89 : vector<8x16x4xf32> to vector<128x4xf32>
    %c1_59 = arith.constant 1 : index
    %c0_60 = arith.constant 0 : index
    %c0_61 = arith.constant 0 : index
    %91 = vector.load %arg4[%c1_59, %c0_60, %c0_61] : memref<9x4x4xf32, #tpu.memory_space<vmem>>, vector<1x4x4xf32>
    %92 = vector.shape_cast %91 : vector<1x4x4xf32> to vector<4x4xf32>
    %cst_62 = arith.constant dense<0.000000e+00> : vector<128x4xf32>
    %93 = tpu.matmul %90, %92, %cst_62 {dimension_numbers = #tpu.dot_dimension_numbers<[1], [0], [0], [1], [0, 0, 1, 1], [], []>} : vector<128x4xf32>, vector<4x4xf32>, vector<128x4xf32> -> vector<128x4xf32>
    %94 = arith.addf %88, %93 : vector<128x4xf32>
    %95 = vector.extract_strided_slice %83 {offsets = [0, 2, 0], sizes = [8, 16, 4], strides = [1, 1, 1]} : vector<8x18x4xf32> to vector<8x16x4xf32>
    %96 = vector.shape_cast %95 : vector<8x16x4xf32> to vector<128x4xf32>
    %c2_63 = arith.constant 2 : index
    %c0_64 = arith.constant 0 : index
    %c0_65 = arith.constant 0 : index
    %97 = vector.load %arg4[%c2_63, %c0_64, %c0_65] : memref<9x4x4xf32, #tpu.memory_space<vmem>>, vector<1x4x4xf32>
    %98 = vector.shape_cast %97 : vector<1x4x4xf32> to vector<4x4xf32>
    %cst_66 = arith.constant dense<0.000000e+00> : vector<128x4xf32>
    %99 = tpu.matmul %96, %98, %cst_66 {dimension_numbers = #tpu.dot_dimension_numbers<[1], [0], [0], [1], [0, 0, 1, 1], [], []>} : vector<128x4xf32>, vector<4x4xf32>, vector<128x4xf32> -> vector<128x4xf32>
    %100 = arith.addf %94, %99 : vector<128x4xf32>
    %c1_67 = arith.constant 1 : index
    %c0_68 = arith.constant 0 : index
    %c0_69 = arith.constant 0 : index
    %101 = vector.load %arg8[%c1_67, %c0_68, %c0_69] : memref<10x18x4xf32, #tpu.memory_space<vmem>>, vector<8x18x4xf32>
    %102 = vector.extract_strided_slice %101 {offsets = [0, 0, 0], sizes = [8, 16, 4], strides = [1, 1, 1]} : vector<8x18x4xf32> to vector<8x16x4xf32>
    %103 = vector.shape_cast %102 : vector<8x16x4xf32> to vector<128x4xf32>
    %c3_70 = arith.constant 3 : index
    %c0_71 = arith.constant 0 : index
    %c0_72 = arith.constant 0 : index
    %104 = vector.load %arg4[%c3_70, %c0_71, %c0_72] : memref<9x4x4xf32, #tpu.memory_space<vmem>>, vector<1x4x4xf32>
    %105 = vector.shape_cast %104 : vector<1x4x4xf32> to vector<4x4xf32>
    %cst_73 = arith.constant dense<0.000000e+00> : vector<128x4xf32>
    %106 = tpu.matmul %103, %105, %cst_73 {dimension_numbers = #tpu.dot_dimension_numbers<[1], [0], [0], [1], [0, 0, 1, 1], [], []>} : vector<128x4xf32>, vector<4x4xf32>, vector<128x4xf32> -> vector<128x4xf32>
    %107 = arith.addf %100, %106 : vector<128x4xf32>
    %108 = vector.extract_strided_slice %101 {offsets = [0, 1, 0], sizes = [8, 16, 4], strides = [1, 1, 1]} : vector<8x18x4xf32> to vector<8x16x4xf32>
    %109 = vector.shape_cast %108 : vector<8x16x4xf32> to vector<128x4xf32>
    %c4_74 = arith.constant 4 : index
    %c0_75 = arith.constant 0 : index
    %c0_76 = arith.constant 0 : index
    %110 = vector.load %arg4[%c4_74, %c0_75, %c0_76] : memref<9x4x4xf32, #tpu.memory_space<vmem>>, vector<1x4x4xf32>
    %111 = vector.shape_cast %110 : vector<1x4x4xf32> to vector<4x4xf32>
    %cst_77 = arith.constant dense<0.000000e+00> : vector<128x4xf32>
    %112 = tpu.matmul %109, %111, %cst_77 {dimension_numbers = #tpu.dot_dimension_numbers<[1], [0], [0], [1], [0, 0, 1, 1], [], []>} : vector<128x4xf32>, vector<4x4xf32>, vector<128x4xf32> -> vector<128x4xf32>
    %113 = arith.addf %107, %112 : vector<128x4xf32>
    %114 = vector.extract_strided_slice %101 {offsets = [0, 2, 0], sizes = [8, 16, 4], strides = [1, 1, 1]} : vector<8x18x4xf32> to vector<8x16x4xf32>
    %115 = vector.shape_cast %114 : vector<8x16x4xf32> to vector<128x4xf32>
    %c5_78 = arith.constant 5 : index
    %c0_79 = arith.constant 0 : index
    %c0_80 = arith.constant 0 : index
    %116 = vector.load %arg4[%c5_78, %c0_79, %c0_80] : memref<9x4x4xf32, #tpu.memory_space<vmem>>, vector<1x4x4xf32>
    %117 = vector.shape_cast %116 : vector<1x4x4xf32> to vector<4x4xf32>
    %cst_81 = arith.constant dense<0.000000e+00> : vector<128x4xf32>
    %118 = tpu.matmul %115, %117, %cst_81 {dimension_numbers = #tpu.dot_dimension_numbers<[1], [0], [0], [1], [0, 0, 1, 1], [], []>} : vector<128x4xf32>, vector<4x4xf32>, vector<128x4xf32> -> vector<128x4xf32>
    %119 = arith.addf %113, %118 : vector<128x4xf32>
    %c2_82 = arith.constant 2 : index
    %c0_83 = arith.constant 0 : index
    %c0_84 = arith.constant 0 : index
    %120 = vector.load %arg8[%c2_82, %c0_83, %c0_84] : memref<10x18x4xf32, #tpu.memory_space<vmem>>, vector<8x18x4xf32>
    %121 = vector.extract_strided_slice %120 {offsets = [0, 0, 0], sizes = [8, 16, 4], strides = [1, 1, 1]} : vector<8x18x4xf32> to vector<8x16x4xf32>
    %122 = vector.shape_cast %121 : vector<8x16x4xf32> to vector<128x4xf32>
    %c6_85 = arith.constant 6 : index
    %c0_86 = arith.constant 0 : index
    %c0_87 = arith.constant 0 : index
    %123 = vector.load %arg4[%c6_85, %c0_86, %c0_87] : memref<9x4x4xf32, #tpu.memory_space<vmem>>, vector<1x4x4xf32>
    %124 = vector.shape_cast %123 : vector<1x4x4xf32> to vector<4x4xf32>
    %cst_88 = arith.constant dense<0.000000e+00> : vector<128x4xf32>
    %125 = tpu.matmul %122, %124, %cst_88 {dimension_numbers = #tpu.dot_dimension_numbers<[1], [0], [0], [1], [0, 0, 1, 1], [], []>} : vector<128x4xf32>, vector<4x4xf32>, vector<128x4xf32> -> vector<128x4xf32>
    %126 = arith.addf %119, %125 : vector<128x4xf32>
    %127 = vector.extract_strided_slice %120 {offsets = [0, 1, 0], sizes = [8, 16, 4], strides = [1, 1, 1]} : vector<8x18x4xf32> to vector<8x16x4xf32>
    %128 = vector.shape_cast %127 : vector<8x16x4xf32> to vector<128x4xf32>
    %c7_89 = arith.constant 7 : index
    %c0_90 = arith.constant 0 : index
    %c0_91 = arith.constant 0 : index
    %129 = vector.load %arg4[%c7_89, %c0_90, %c0_91] : memref<9x4x4xf32, #tpu.memory_space<vmem>>, vector<1x4x4xf32>
    %130 = vector.shape_cast %129 : vector<1x4x4xf32> to vector<4x4xf32>
    %cst_92 = arith.constant dense<0.000000e+00> : vector<128x4xf32>
    %131 = tpu.matmul %128, %130, %cst_92 {dimension_numbers = #tpu.dot_dimension_numbers<[1], [0], [0], [1], [0, 0, 1, 1], [], []>} : vector<128x4xf32>, vector<4x4xf32>, vector<128x4xf32> -> vector<128x4xf32>
    %132 = arith.addf %126, %131 : vector<128x4xf32>
    %133 = vector.extract_strided_slice %120 {offsets = [0, 2, 0], sizes = [8, 16, 4], strides = [1, 1, 1]} : vector<8x18x4xf32> to vector<8x16x4xf32>
    %134 = vector.shape_cast %133 : vector<8x16x4xf32> to vector<128x4xf32>
    %c8_93 = arith.constant 8 : index
    %c0_94 = arith.constant 0 : index
    %c0_95 = arith.constant 0 : index
    %135 = vector.load %arg4[%c8_93, %c0_94, %c0_95] : memref<9x4x4xf32, #tpu.memory_space<vmem>>, vector<1x4x4xf32>
    %136 = vector.shape_cast %135 : vector<1x4x4xf32> to vector<4x4xf32>
    %cst_96 = arith.constant dense<0.000000e+00> : vector<128x4xf32>
    %137 = tpu.matmul %134, %136, %cst_96 {dimension_numbers = #tpu.dot_dimension_numbers<[1], [0], [0], [1], [0, 0, 1, 1], [], []>} : vector<128x4xf32>, vector<4x4xf32>, vector<128x4xf32> -> vector<128x4xf32>
    %138 = arith.addf %132, %137 : vector<128x4xf32>
    %c2_i32_97 = arith.constant 2 : i32
    %139 = arith.addi %0, %c2_i32_97 : i32
    %c0_98 = arith.constant 0 : index
    %140 = arith.index_cast %139 : i32 to index
    %c0_99 = arith.constant 0 : index
    %c0_100 = arith.constant 0 : index
    %141 = vector.load %arg2[%c0_98, %140, %c0_99, %c0_100] : memref<1x20x18x4xf32, #tpu.memory_space<vmem>>, vector<1x8x18x4xf32>
    %142 = vector.shape_cast %141 : vector<1x8x18x4xf32> to vector<8x18x4xf32>
    %143 = vector.extract_strided_slice %142 {offsets = [0, 1, 0], sizes = [8, 16, 4], strides = [1, 1, 1]} : vector<8x18x4xf32> to vector<8x16x4xf32>
    %144 = vector.shape_cast %143 : vector<8x16x4xf32> to vector<128x4xf32>
    %c0_101 = arith.constant 0 : index
    %c0_102 = arith.constant 0 : index
    %145 = vector.load %arg6[%c0_101, %c0_102] : memref<1x4xf32, #tpu.memory_space<vmem>>, vector<1x4xf32>
    %146 = vector.broadcast %145 : vector<1x4xf32> to vector<128x4xf32>
    %147 = arith.addf %138, %146 : vector<128x4xf32>
    %148 = arith.addf %147, %144 : vector<128x4xf32>
    %cst_103 = arith.constant 0.000000e+00 : f32
    %149 = vector.broadcast %cst_103 : f32 to vector<128x4xf32>
    %150 = arith.maximumf %148, %149 : vector<128x4xf32>
    %151 = vector.shape_cast %150 : vector<128x4xf32> to vector<1x8x16x4xf32>
    %c0_104 = arith.constant 0 : index
    %c0_105 = arith.constant 0 : index
    %c0_106 = arith.constant 0 : index
    %c0_107 = arith.constant 0 : index
    %152 = vector.load %arg7[%c0_104, %c0_105, %c0_106, %c0_107] : memref<1x8x16x4xf32, #tpu.memory_space<vmem>>, vector<1x8x16x4xf32>
    tpu.vector_store %arg7[%c0_104, %c0_105, %c0_106, %c0_107], %151 {strides = array<i32>} : memref<1x8x16x4xf32, #tpu.memory_space<vmem>>, vector<1x8x16x4xf32>,
    return
  }
  func.func @transform_0(%arg0: i32, %arg1: i32) -> (i32, i32, i32, i32) {
    %c0_i32 = arith.constant 0 : i32
    %c0_i32_0 = arith.constant 0 : i32
    %c0_i32_1 = arith.constant 0 : i32
    %c0_i32_2 = arith.constant 0 : i32
    return %arg0, %c0_i32, %c0_i32_0, %c0_i32_1 : i32, i32, i32, i32
  }
  func.func @transform_1(%arg0: i32, %arg1: i32) -> (i32, i32, i32) {
    %c0_i32 = arith.constant 0 : i32
    %c0_i32_0 = arith.constant 0 : i32
    %c0_i32_1 = arith.constant 0 : i32
    %c0_i32_2 = arith.constant 0 : i32
    return %c0_i32, %c0_i32_0, %c0_i32_1 : i32, i32, i32
  }
  func.func @transform_2(%arg0: i32, %arg1: i32) -> (i32, i32, i32) {
    %c0_i32 = arith.constant 0 : i32
    %c0_i32_0 = arith.constant 0 : i32
    %c0_i32_1 = arith.constant 0 : i32
    %c0_i32_2 = arith.constant 0 : i32
    return %c0_i32, %c0_i32_0, %c0_i32_1 : i32, i32, i32
  }
  func.func @transform_3(%arg0: i32, %arg1: i32) -> (i32, i32) {
    %c0_i32 = arith.constant 0 : i32
    %c0_i32_0 = arith.constant 0 : i32
    %c0_i32_1 = arith.constant 0 : i32
    return %c0_i32, %c0_i32_0 : i32, i32
  }
  func.func @transform_4(%arg0: i32, %arg1: i32) -> (i32, i32) {
    %c0_i32 = arith.constant 0 : i32
    %c0_i32_0 = arith.constant 0 : i32
    %c0_i32_1 = arith.constant 0 : i32
    return %c0_i32, %c0_i32_0 : i32, i32
  }
  func.func @transform_5(%arg0: i32, %arg1: i32) -> (i32, i32, i32, i32) {
    %c0_i32 = arith.constant 0 : i32
    %c0_i32_0 = arith.constant 0 : i32
    %c0_i32_1 = arith.constant 0 : i32
    return %arg0, %arg1, %c0_i32, %c0_i32_0 : i32, i32, i32, i32
  }
}

</mosaic_0001>

<llo_original>
// kernel: tpu_custom_call.1
$region0: #{tpu_custom_call.1}
  #allocation0 [shape = 'u32[]', space=smem, size = 0x4, offset = 0x4, fixed_abs, tag = 'smem constant byte address 0x4 - core index']
  #allocation1 [shape = 'u32[144,128]{1,0:T(1,128)}', space=vmem, size = 0x12000, scoped, tag = 'internal scratch']
  #allocation2 [shape = 'f32[10,18,4]{2,1,0:T(8,128)}', space=vmem, size = 0x1e000, scoped, tag = 'scratch operand']
  %s0 = inlined_call_operand.hbm [shape: f32[2,20,18,4], index: 0, kind: input, shape index: {}]
  %s1 = inlined_call_operand.hbm [shape: f32[9,4,4], index: 1, kind: input, shape index: {}]
  %s2 = inlined_call_operand.hbm [shape: f32[9,4,4], index: 2, kind: input, shape index: {}]
  %s3 = inlined_call_operand.hbm [shape: f32[1,4], index: 3, kind: input, shape index: {}]
  %s4 = inlined_call_operand.hbm [shape: f32[1,4], index: 4, kind: input, shape index: {}]
  %s5 = inlined_call_operand.hbm [shape: f32[2,16,16,4], index: 5, kind: output, shape index: {}]
  %s6 = sld [smem:[#allocation0]]
  $region81: #{tpu_custom_call.1} parent=0
    _
  %s8 = ssub.s32 1, %s6
  %s9 = scalar_select 0, %s8, %s6
  $region1: #{tpu_custom_call.1} parent=0
    #allocation3 [shape = 'u8[491520]{0}', space=vmem, size = 0x78000, scoped, tag = 'input window, operand 0']
    #allocation4 [shape = 's32[2]{0}', space=sflag, size = 0x8, scoped, tag = 'scoped memory for tpu_custom_call.1']
    #allocation5 [shape = 's32[2]{0}', space=sflag, size = 0x8, scoped, tag = 'scoped memory for tpu_custom_call.1']
    #allocation6 [shape = 'u8[18432]{0}', space=vmem, size = 0x4800, scoped, tag = 'input window, operand 1, single buffered']
    #allocation7 [shape = 's32[1]{0}', space=sflag, size = 0x4, scoped, tag = 'scoped memory for tpu_custom_call.1']
    #allocation8 [shape = 'u8[18432]{0}', space=vmem, size = 0x4800, scoped, tag = 'input window, operand 2, single buffered']
    #allocation9 [shape = 'u8[512]{0}', space=vmem, size = 0x400, scoped, tag = 'input window, operand 3, single buffered']
    #allocation10 [shape = 's32[1]{0}', space=sflag, size = 0x4, scoped, tag = 'scoped memory for tpu_custom_call.1']
    #allocation11 [shape = 'u8[512]{0}', space=vmem, size = 0x400, scoped, tag = 'input window, operand 4, single buffered']
    #allocation12 [shape = 'u8[131072]{0}', space=vmem, size = 0x20000, scoped, tag = 'output window, operand 0']
    %10 = vsyncpa [#allocation4], 0
    %s11 = scalar_lea.sflag [#allocation4], 1
    %12 = vsyncpa %s11, 0
    %13 = vsyncpa [#allocation7], 0
    %14 = vsyncpa [#allocation10], 0
    %15 = vsyncpa [#allocation5], 0
    %s16 = scalar_lea.sflag [#allocation5], 1
    %17 = vsyncpa %s16, 0
    loop: start=0, step=1, limit=6
    $region2: #{tpu_custom_call.1} parent=1 // loop_pre_header
      _
    $region3: #{tpu_custom_call.1} parent=1 // loop_header
      %s19 = sphi 0, %s23
      %p20 = scmp.ge.s32.totalorder %s19, 6
      %s26 = sphi 0, %s38
      %s27 = sphi 0, %s34
      %s28 = sphi 0, %s26
      %s29 = sphi 0, %s27
      %s30 = sphi 0, %s28
      %s31 = sphi 0, %s29
      %s41 = sphi 0, %s43
      %s44 = sphi 0, %s41
      %s45 = sphi 0, %s44
      %s61 = sphi 0, %s45
      %s65 = sphi 0, %s65
      %s67 = sphi 0, %s65
      %s68 = sphi 0, %s67
      %s82 = sphi 0, %s68
      %s86 = sphi 0, %s86
      %s88 = sphi 0, %s86
      %s89 = sphi 0, %s88
      %s103 = sphi 0, %s89
      %s107 = sphi 0, %s107
      %s109 = sphi 0, %s107
      %s110 = sphi 0, %s109
      %s124 = sphi 0, %s110
      %s128 = sphi 0, %s128
      %s130 = sphi 0, %s128
      %s131 = sphi 0, %s130
      %s145 = sphi 0, %s131
      %s153 = sphi 0, %s155
      %s156 = sphi 0, %s153
      %s157 = sphi 0, %s156
      %s173 = sphi 0, %s157
    $region4: #{tpu_custom_call.1} parent=1 // loop_header_branch
      %22 = sbr.rel (%p20) target = $region8
    $region5: #{tpu_custom_call.1} parent=1 // loop_body
      %s24 = ssub.s32 %s19, 1
      %s25 = ssub.s32 %s19, 2
      %s32 = sadd.s32 1, %s27
      %p33 = scmp.ge.s32.totalorder %s32, 2
      %s34 = scalar_select %p33, 0, %s32
      %s35 = sadd.s32 1, %s26
      %s36 = scalar_select %p33, %s35, %s26
      %p37 = scmp.ge.s32.totalorder %s36, 2
      %s38 = scalar_select %p37, 0, %s36
      %s39 = ssub.s32 %s26, %s38
      %p40 = scmp.eq.s32.totalorder %s39, 0
      %s42 = sadd.s32 %s41, 1
      %s43 = scalar_select %p40, %s41, %s42
      %p46 = pneg %p40
      %p47 = scmp.eq.s32.totalorder %s19, 3
      %p48 = por %p46, %p47
      %p49 = scmp.ne.s32.totalorder %s41, %s44
      %p50 = scmp.eq.s32.totalorder %s19, 0
      %p51 = por %p49, %p50
      %p52 = scmp.ne.s32.totalorder %s41, %s44
      %p53 = scmp.eq.s32.totalorder %s24, 3
      %p54 = por %p52, %p53
      %p55 = scmp.ne.s32.totalorder %s44, %s45
      %p56 = scmp.eq.s32.totalorder %s24, 0
      %p57 = por %p55, %p56
      %p58 = scmp.ne.s32.totalorder %s44, %s45
      %p59 = scmp.eq.s32.totalorder %s25, 3
      %p60 = por %p58, %p59
      %p62 = scmp.ne.s32.totalorder %s45, %s61
      %p63 = scmp.eq.s32.totalorder %s25, 0
      %p64 = por %p62, %p63
      %s66 = sadd.s32 %s65, 1
      %p69 = scmp.eq.s32.totalorder %s19, 3
      %p70 = scmp.ne.s32.totalorder %s65, %s67
      %p71 = scmp.eq.s32.totalorder %s19, 0
      %p72 = por %p70, %p71
      %p73 = scmp.ne.s32.totalorder %s65, %s67
      %p74 = scmp.eq.s32.totalorder %s24, 3
      %p75 = por %p73, %p74
      %p76 = scmp.ne.s32.totalorder %s67, %s68
      %p77 = scmp.eq.s32.totalorder %s24, 0
      %p78 = por %p76, %p77
      %p79 = scmp.ne.s32.totalorder %s67, %s68
      %p80 = scmp.eq.s32.totalorder %s25, 3
      %p81 = por %p79, %p80
      %p83 = scmp.ne.s32.totalorder %s68, %s82
      %p84 = scmp.eq.s32.totalorder %s25, 0
      %p85 = por %p83, %p84
      %s87 = sadd.s32 %s86, 1
      %p90 = scmp.eq.s32.totalorder %s19, 3
      %p91 = scmp.ne.s32.totalorder %s86, %s88
      %p92 = scmp.eq.s32.totalorder %s19, 0
      %p93 = por %p91, %p92
      %p94 = scmp.ne.s32.totalorder %s86, %s88
      %p95 = scmp.eq.s32.totalorder %s24, 3
      %p96 = por %p94, %p95
      %p97 = scmp.ne.s32.totalorder %s88, %s89
      %p98 = scmp.eq.s32.totalorder %s24, 0
      %p99 = por %p97, %p98
      %p100 = scmp.ne.s32.totalorder %s88, %s89
      %p101 = scmp.eq.s32.totalorder %s25, 3
      %p102 = por %p100, %p101
      %p104 = scmp.ne.s32.totalorder %s89, %s103
      %p105 = scmp.eq.s32.totalorder %s25, 0
      %p106 = por %p104, %p105
      %s108 = sadd.s32 %s107, 1
      %p111 = scmp.eq.s32.totalorder %s19, 3
      %p112 = scmp.ne.s32.totalorder %s107, %s109
      %p113 = scmp.eq.s32.totalorder %s19, 0
      %p114 = por %p112, %p113
      %p115 = scmp.ne.s32.totalorder %s107, %s109
      %p116 = scmp.eq.s32.totalorder %s24, 3
      %p117 = por %p115, %p116
      %p118 = scmp.ne.s32.totalorder %s109, %s110
      %p119 = scmp.eq.s32.totalorder %s24, 0
      %p120 = por %p118, %p119
      %p121 = scmp.ne.s32.totalorder %s109, %s110
      %p122 = scmp.eq.s32.totalorder %s25, 3
      %p123 = por %p121, %p122
      %p125 = scmp.ne.s32.totalorder %s110, %s124
      %p126 = scmp.eq.s32.totalorder %s25, 0
      %p127 = por %p125, %p126
      %s129 = sadd.s32 %s128, 1
      %p132 = scmp.eq.s32.totalorder %s19, 3
      %p133 = scmp.ne.s32.totalorder %s128, %s130
      %p134 = scmp.eq.s32.totalorder %s19, 0
      %p135 = por %p133, %p134
      %p136 = scmp.ne.s32.totalorder %s128, %s130
      %p137 = scmp.eq.s32.totalorder %s24, 3
      %p138 = por %p136, %p137
      %p139 = scmp.ne.s32.totalorder %s130, %s131
      %p140 = scmp.eq.s32.totalorder %s24, 0
      %p141 = por %p139, %p140
      %p142 = scmp.ne.s32.totalorder %s130, %s131
      %p143 = scmp.eq.s32.totalorder %s25, 3
      %p144 = por %p142, %p143
      %p146 = scmp.ne.s32.totalorder %s131, %s145
      %p147 = scmp.eq.s32.totalorder %s25, 0
      %p148 = por %p146, %p147
      %s149 = ssub.s32 %s26, %s38
      %s150 = ssub.s32 %s27, %s34
      %s151 = sor.u32 %s149, %s150
      %p152 = scmp.eq.s32.totalorder %s151, 0
      %s154 = sadd.s32 %s153, 1
      %s155 = scalar_select %p152, %s153, %s154
      %p158 = pneg %p152
      %p159 = scmp.eq.s32.totalorder %s19, 3
      %p160 = por %p158, %p159
      %p161 = scmp.ne.s32.totalorder %s153, %s156
      %p162 = scmp.eq.s32.totalorder %s19, 0
      %p163 = por %p161, %p162
      %p164 = scmp.ne.s32.totalorder %s153, %s156
      %p165 = scmp.eq.s32.totalorder %s24, 3
      %p166 = por %p164, %p165
      %p167 = scmp.ne.s32.totalorder %s156, %s157
      %p168 = scmp.eq.s32.totalorder %s24, 0
      %p169 = por %p167, %p168
      %p170 = scmp.ne.s32.totalorder %s156, %s157
      %p171 = scmp.eq.s32.totalorder %s25, 3
      %p172 = por %p170, %p171
      %p174 = scmp.ne.s32.totalorder %s157, %s173
      %p175 = scmp.eq.s32.totalorder %s25, 0
      %p176 = por %p174, %p175
      %p177 = scmp.le.s32.totalorder 1, %s19
      %p178 = scmp.lt.s32.totalorder %s19, 5
      %p179 = pnand %p177, %p178
      %p180 = pneg %p179
      // Predicated region
      $region9: #{tpu_custom_call.1} parent=5 // pred_check
        _
      $region10: #{tpu_custom_call.1} parent=5 // pred_check_branch
        %182 = sbr.rel (%p179) target = $region12
      $region11: #{tpu_custom_call.1} parent=5 // pred_region
        %s183 = ssub.s32 %s19, 1
        // Predicated region
        $region13: #{tpu_custom_call.1} parent=11 // pred_check
          %p184 = pneg %p78
        $region14: #{tpu_custom_call.1} parent=11 // pred_check_branch
          %186 = sbr.rel (%p184) target = $region16
        $region15: #{tpu_custom_call.1} parent=11 // pred_region
          %s188 = ssub.s32 576, 576
          %189 = vsyncadd [#allocation7], %s188
          %s190 = sshll.u32 [#allocation6], 4
          %s191 = int_to_ptr.vmem [resolvable:$true] %s190
          %196 = dma.hbm_to_vmem [thread:$0]  %s1, 576, %s191, [#allocation7], 64, 64, 4
        $region16: #{tpu_custom_call.1} parent=11 // pred_fallthru
          _
        // Predicated region
        $region17: #{tpu_custom_call.1} parent=11 // pred_check
          %p197 = pneg %p99
        $region18: #{tpu_custom_call.1} parent=11 // pred_check_branch
          %199 = sbr.rel (%p197) target = $region20
        $region19: #{tpu_custom_call.1} parent=11 // pred_region
          %s201 = ssub.s32 576, 576
          %202 = vsyncadd [#allocation7], %s201
          %s203 = sshll.u32 [#allocation8], 4
          %s204 = int_to_ptr.vmem [resolvable:$true] %s203
          %209 = dma.hbm_to_vmem [thread:$0]  %s2, 576, %s204, [#allocation7], 64, 64, 4
        $region20: #{tpu_custom_call.1} parent=11 // pred_fallthru
          _
        // Predicated region
        $region21: #{tpu_custom_call.1} parent=11 // pred_check
          %p210 = pneg %p120
        $region22: #{tpu_custom_call.1} parent=11 // pred_check_branch
          %212 = sbr.rel (%p210) target = $region24
        $region23: #{tpu_custom_call.1} parent=11 // pred_region
          %s214 = ssub.s32 16, 16
          %215 = vsyncadd [#allocation10], %s214
          %s217 = sshll.u32 [#allocation9], 4
          %s218 = int_to_ptr.vmem [resolvable:$true] %s217
          %220 = dma.hbm_to_vmem [thread:$0]  %s3, 16, %s218, [#allocation10]
        $region24: #{tpu_custom_call.1} parent=11 // pred_fallthru
          _
        // Predicated region
        $region25: #{tpu_custom_call.1} parent=11 // pred_check
          %p221 = pneg %p141
        $region26: #{tpu_custom_call.1} parent=11 // pred_check_branch
          %223 = sbr.rel (%p221) target = $region28
        $region27: #{tpu_custom_call.1} parent=11 // pred_region
          %s225 = ssub.s32 16, 16
          %226 = vsyncadd [#allocation10], %s225
          %s228 = sshll.u32 [#allocation11], 4
          %s229 = int_to_ptr.vmem [resolvable:$true] %s228
          %231 = dma.hbm_to_vmem [thread:$0]  %s4, 16, %s229, [#allocation10]
        $region28: #{tpu_custom_call.1} parent=11 // pred_fallthru
          _
      $region12: #{tpu_custom_call.1} parent=5 // pred_fallthru
        _
      %p232 = scmp.lt.s32.totalorder %s19, 4
      // Predicated region
      $region29: #{tpu_custom_call.1} parent=5 // pred_check
        %p233 = pneg %p232
      $region30: #{tpu_custom_call.1} parent=5 // pred_check_branch
        %235 = sbr.rel (%p233) target = $region32
      $region31: #{tpu_custom_call.1} parent=5 // pred_region
        // Predicated region
        $region33: #{tpu_custom_call.1} parent=31 // pred_check
          %p236 = pneg %p51
        $region34: #{tpu_custom_call.1} parent=31 // pred_check_branch
          %238 = sbr.rel (%p236) target = $region36
        $region35: #{tpu_custom_call.1} parent=31 // pred_region
          %s239 = sand.u32 %s41, 1
          %s240 = scalar_lea.sflag [#allocation4], %s239
          %s241 = sand.u32 %s41, 1
          %s242 = smul.addr %s241, 480
          %s243 = scalar_lea.vmem [#allocation3], %s242
          %s245 = ssub.s32 7680, 7680
          %246 = vsyncadd %s240, %s245
          %s247 = smul.addr %s26, 60
          %s248 = smul.addr %s247, 128
          %s249 = scalar_lea.hbm %s0, %s248
          %s250 = sshll.u32 %s243, 4
          %s251 = int_to_ptr.vmem [resolvable:$true] %s250
          %256 = dma.hbm_to_vmem [thread:$0]  %s249, 7680, %s251, %s240, 128, 128, 8
        $region36: #{tpu_custom_call.1} parent=31 // pred_fallthru
          _
      $region32: #{tpu_custom_call.1} parent=5 // pred_fallthru
        _
      %p257 = scmp.le.s32.totalorder 1, %s19
      %p258 = scmp.lt.s32.totalorder %s19, 5
      %p259 = pnand %p257, %p258
      %p260 = pneg %p259
      // Predicated region
      $region37: #{tpu_custom_call.1} parent=5 // pred_check
        _
      $region38: #{tpu_custom_call.1} parent=5 // pred_check_branch
        %262 = sbr.rel (%p259) target = $region40
      $region39: #{tpu_custom_call.1} parent=5 // pred_region
        %s263 = ssub.s32 %s19, 1
        %s264 = sand.u32 %s44, 1
        %s265 = scalar_lea.sflag [#allocation4], %s264
        %s266 = sand.u32 %s44, 1
        %s267 = smul.addr %s266, 480
        %s268 = scalar_lea.vmem [#allocation3], %s267
        // Predicated region
        $region41: #{tpu_custom_call.1} parent=39 // pred_check
          %p269 = pneg %p57
        $region42: #{tpu_custom_call.1} parent=39 // pred_check_branch
          %271 = sbr.rel (%p269) target = $region44
        $region43: #{tpu_custom_call.1} parent=39 // pred_region
          %272 = dma.done %s265, 7680
        $region44: #{tpu_custom_call.1} parent=39 // pred_fallthru
          _
        // Predicated region
        $region45: #{tpu_custom_call.1} parent=39 // pred_check
          %p273 = pneg %p78
        $region46: #{tpu_custom_call.1} parent=39 // pred_check_branch
          %275 = sbr.rel (%p273) target = $region48
        $region47: #{tpu_custom_call.1} parent=39 // pred_region
          %276 = dma.done [#allocation7], 576
        $region48: #{tpu_custom_call.1} parent=39 // pred_fallthru
          _
        // Predicated region
        $region49: #{tpu_custom_call.1} parent=39 // pred_check
          %p277 = pneg %p99
        $region50: #{tpu_custom_call.1} parent=39 // pred_check_branch
          %279 = sbr.rel (%p277) target = $region52
        $region51: #{tpu_custom_call.1} parent=39 // pred_region
          %280 = dma.done [#allocation7], 576
        $region52: #{tpu_custom_call.1} parent=39 // pred_fallthru
          _
        // Predicated region
        $region53: #{tpu_custom_call.1} parent=39 // pred_check
          %p281 = pneg %p120
        $region54: #{tpu_custom_call.1} parent=39 // pred_check_branch
          %283 = sbr.rel (%p281) target = $region56
        $region55: #{tpu_custom_call.1} parent=39 // pred_region
          %284 = dma.done [#allocation10], 16
        $region56: #{tpu_custom_call.1} parent=39 // pred_fallthru
          _
        // Predicated region
        $region57: #{tpu_custom_call.1} parent=39 // pred_check
          %p285 = pneg %p141
        $region58: #{tpu_custom_call.1} parent=39 // pred_check_branch
          %287 = sbr.rel (%p285) target = $region60
        $region59: #{tpu_custom_call.1} parent=39 // pred_region
          %288 = dma.done [#allocation10], 16
        $region60: #{tpu_custom_call.1} parent=39 // pred_fallthru
          _
        %s289 = sand.u32 %s44, 1
        %s290 = scalar_lea.sflag [#allocation4], %s289
        %s291 = sand.u32 %s44, 1
        %s292 = smul.addr %s291, 480
        %s293 = scalar_lea.vmem [#allocation3], %s292
        %p294 = pneg %p57
        %p295 = pneg %p54
        %p296 = pneg %p78
        %p297 = pneg %p75
        %p298 = pneg %p99
        %p299 = pneg %p96
        %p300 = pneg %p120
        %p301 = pneg %p117
        %p302 = pneg %p141
        %p303 = pneg %p138
        %p304 = pneg %p169
        %p305 = pneg %p166
        %s306 = sand.u32 %s156, 1
        %s307 = scalar_lea.sflag [#allocation5], %s306
        %s308 = sand.u32 %s156, 1
        %s309 = smul.addr %s308, 128
        %s310 = scalar_lea.vmem [#allocation12], %s309
        %s311 = smul.u32 8, %s29
        %s312 = smul.u32 %s29, 8
        %s313 = smul.u32 %s312, 24
        %s314 = scalar_lea.vmem %s268, %s313 [#allocation3]
        %v315 = vld [vmem:[%s314] sm:$0xff]
        %v316 = vld [vmem:[%s314 + $0x8] sm:$0xff]
        %v317 = vld [vmem:[%s314 + $0x10] sm:$0x3]
        %v318 = vld [vmem:[%s314 + $0x18] sm:$0xff]
        %v319 = vld [vmem:[%s314 + $0x20] sm:$0xff]
        %v320 = vld [vmem:[%s314 + $0x28] sm:$0x3]
        %v321 = vld [vmem:[%s314 + $0x30] sm:$0xff]
        %v322 = vld [vmem:[%s314 + $0x38] sm:$0xff]
        %v323 = vld [vmem:[%s314 + $0x40] sm:$0x3]
        %v324 = vld [vmem:[%s314 + $0x48] sm:$0xff]
        %v325 = vld [vmem:[%s314 + $0x50] sm:$0xff]
        %v326 = vld [vmem:[%s314 + $0x58] sm:$0x3]
        %v327 = vld [vmem:[%s314 + $0x60] sm:$0xff]
        %v328 = vld [vmem:[%s314 + $0x68] sm:$0xff]
        %v329 = vld [vmem:[%s314 + $0x70] sm:$0x3]
        %v330 = vld [vmem:[%s314 + $0x78] sm:$0xff]
        %v331 = vld [vmem:[%s314 + $0x80] sm:$0xff]
        %v332 = vld [vmem:[%s314 + $0x88] sm:$0x3]
        %v333 = vld [vmem:[%s314 + $0x90] sm:$0xff]
        %v334 = vld [vmem:[%s314 + $0x98] sm:$0xff]
        %v335 = vld [vmem:[%s314 + $0xa0] sm:$0x3]
        %v336 = vld [vmem:[%s314 + $0xa8] sm:$0xff]
        %v337 = vld [vmem:[%s314 + $0xb0] sm:$0xff]
        %v338 = vld [vmem:[%s314 + $0xb8] sm:$0x3]
        %v339 = vld [vmem:[%s314 + $0xc0] sm:$0xff]
        %v340 = vld [vmem:[%s314 + $0xc8] sm:$0xff]
        %v341 = vld [vmem:[%s314 + $0xd0] sm:$0x3]
        %v342 = vld [vmem:[%s314 + $0xd8] sm:$0xff]
        %v343 = vld [vmem:[%s314 + $0xe0] sm:$0xff]
        %v344 = vld [vmem:[%s314 + $0xe8] sm:$0x3]
        %v345 = vld [vmem:[#allocation6] sm:$0xf]
        %vm376 = vcmask 1046528
        %v377 = vrot.slane %v315, 1
        %v378 = vrot.slane %v316, 1
        %v379 = vsel %vm376, %v377, %v378
        %v380 = vrot.slane %v317, 1
        %v381 = vsel %vm376, %v378, %v380
        %v382 = vrot.slane %v318, 1
        %v383 = vrot.slane %v319, 1
        %v384 = vsel %vm376, %v382, %v383
        %v385 = vrot.slane %v320, 1
        %v386 = vsel %vm376, %v383, %v385
        %v387 = vrot.slane %v321, 1
        %v388 = vrot.slane %v322, 1
        %v389 = vsel %vm376, %v387, %v388
        %v390 = vrot.slane %v323, 1
        %v391 = vsel %vm376, %v388, %v390
        %v392 = vrot.slane %v324, 1
        %v393 = vrot.slane %v325, 1
        %v394 = vsel %vm376, %v392, %v393
        %v395 = vrot.slane %v326, 1
        %v396 = vsel %vm376, %v393, %v395
        %v397 = vrot.slane %v327, 1
        %v398 = vrot.slane %v328, 1
        %v399 = vsel %vm376, %v397, %v398
        %v400 = vrot.slane %v329, 1
        %v401 = vsel %vm376, %v398, %v400
        %v402 = vrot.slane %v330, 1
        %v403 = vrot.slane %v331, 1
        %v404 = vsel %vm376, %v402, %v403
        %v405 = vrot.slane %v332, 1
        %v406 = vsel %vm376, %v403, %v405
        %v407 = vrot.slane %v333, 1
        %v408 = vrot.slane %v334, 1
        %v409 = vsel %vm376, %v407, %v408
        %v410 = vrot.slane %v335, 1
        %v411 = vsel %vm376, %v408, %v410
        %v412 = vrot.slane %v336, 1
        %v413 = vrot.slane %v337, 1
        %v414 = vsel %vm376, %v412, %v413
        %v415 = vrot.slane %v338, 1
        %v416 = vsel %vm376, %v413, %v415
        %v417 = vrot.slane %v339, 1
        %v418 = vrot.slane %v340, 1
        %v419 = vsel %vm376, %v417, %v418
        %v420 = vrot.slane %v341, 1
        %v421 = vsel %vm376, %v418, %v420
        %v422 = vrot.slane %v342, 1
        %v423 = vrot.slane %v343, 1
        %v424 = vsel %vm376, %v422, %v423
        %v425 = vrot.slane %v344, 1
        %v426 = vsel %vm376, %v423, %v425
        %s427 = scalar_lea.vmem [#allocation6], 4
        %v428 = vld [vmem:[%s427] sm:$0xf]
        %vm429 = vcmask 31744
        %v430 = vsel %vm429, %v379, 0
        %v432 = vsel %vm429, %v381, 0
        %v434 = vsel %vm429, %v384, 0
        %v436 = vsel %vm429, %v386, 0
        %v438 = vsel %vm429, %v389, 0
        %v440 = vsel %vm429, %v391, 0
        %v442 = vsel %vm429, %v394, 0
        %v444 = vsel %vm429, %v396, 0
        %v446 = vsel %vm429, %v399, 0
        %v448 = vsel %vm429, %v401, 0
        %v450 = vsel %vm429, %v404, 0
        %v452 = vsel %vm429, %v406, 0
        %v454 = vsel %vm429, %v409, 0
        %v456 = vsel %vm429, %v411, 0
        %v458 = vsel %vm429, %v414, 0
        %v460 = vsel %vm429, %v416, 0
        %v462 = vsel %vm429, %v419, 0
        %v464 = vsel %vm429, %v421, 0
        %v466 = vsel %vm429, %v424, 0
        %v468 = vsel %vm429, %v426, 0
        %vm470 = vcmask 1043456
        %v472 = vsel %vm470, %v428, 0
        %474 = vmatprep.subr.mxu0 0.0
        %475 = vmatpush1.msra.mxu0 %v472
        %476 = vmatprep.subr.mxu0 0.0
        %477 = vmatpush1.msra.mxu0 0.0
        %478 = vmatprep.subr.mxu0 0.0
        %479 = vmatpush1.msra.mxu0 0.0
        %480 = vmatprep.subr.mxu0 0.0
        %481 = vmatpush1.msra.mxu0 0.0
        %482 = vmatprep.subr.mxu0 0.0
        %483 = vmatpush1.msra.mxu0 0.0
        %484 = vmatprep.subr.mxu0 0.0
        %485 = vmatpush1.msra.mxu0 0.0
        %486 = vmatprep.subr.mxu0 0.0
        %487 = vmatpush1.msra.mxu0 0.0
        %488 = vmatprep.subr.mxu0 0.0
        %489 = vmatpush1.msra.mxu0 0.0
        %490 = vmatprep.subr.mxu0 0.0
        %491 = vmatpush1.msra.mxu0 0.0
        %492 = vmatprep.subr.mxu0 0.0
        %493 = vmatpush1.msra.mxu0 0.0
        %494 = vmatprep.subr.mxu0 0.0
        %495 = vmatpush1.msra.mxu0 0.0
        %496 = vmatprep.subr.mxu0 0.0
        %497 = vmatpush1.msra.mxu0 0.0
        %498 = vmatprep.subr.mxu0 0.0
        %499 = vmatpush1.msra.mxu0 0.0
        %500 = vmatprep.subr.mxu0 0.0
        %501 = vmatpush1.msra.mxu0 0.0
        %502 = vmatprep.subr.mxu0 0.0
        %503 = vmatpush1.msra.mxu0 0.0
        %504 = vmatprep.subr.mxu0 0.0
        %505 = vmatpush1.msra.mxu0 0.0
        %506 = vmatprep.subr.mxu0 0.0
        %507 = vmatpush1.msra.mxu0 0.0
        %508 = vmatprep.subr.mxu0 0.0
        %509 = vmatpush1.msra.mxu0 0.0
        %510 = vmatprep.subr.mxu0 0.0
        %511 = vmatpush1.msra.mxu0 0.0
        %512 = vmatprep.subr.mxu0 0.0
        %513 = vmatpush1.msra.mxu0 0.0
        %514 = vmatprep.subr.mxu0 0.0
        %515 = vmatpush1.msra.mxu0 0.0
        %516 = vmatprep.subr.mxu0 0.0
        %517 = vmatpush1.msra.mxu0 0.0
        %518 = vmatprep.subr.mxu0 0.0
        %519 = vmatpush1.msra.mxu0 0.0
        %520 = vmatprep.subr.mxu0 0.0
        %521 = vmatpush1.msra.mxu0 0.0
        %522 = vmatprep.subr.mxu0 0.0
        %523 = vmatpush1.msra.mxu0 0.0
        %524 = vmatprep.subr.mxu0 0.0
        %525 = vmatpush1.msra.mxu0 0.0
        %526 = vmatprep.subr.mxu0 0.0
        %527 = vmatpush1.msra.mxu0 0.0
        %528 = vmatprep.subr.mxu0 0.0
        %529 = vmatpush1.msra.mxu0 0.0
        %530 = vmatprep.subr.mxu0 0.0
        %531 = vmatpush1.msra.mxu0 0.0
        %532 = vmatprep.subr.mxu0 0.0
        %533 = vmatpush1.msra.mxu0 0.0
        %534 = vmatprep.subr.mxu0 0.0
        %535 = vmatpush1.msra.mxu0 0.0
        %536 = vmatprep.subr.mxu0 0.0
        %537 = vmatpush1.msra.mxu0 0.0
        %538 = vmatprep.mubr.f32.mxu0 0.0
        %539 = vmatmul.mubr.f32.gmra.mrb[0].mxu0 %v430
        %v540 = vpop.f32.mrb[0].mxu0
        %v541 = vadd.f32 0.0, %v540
        %v542 = vpop.f32.mrb[0].mxu0
        %543 = vmatprep.mubr.f32.mxu0 0.0
        %544 = vmatmul.mubr.f32.gmra.mrb[0].mxu0 %v432
        %v545 = vpop.f32.mrb[0].mxu0
        %v546 = vadd.f32 0.0, %v545
        %v547 = vpop.f32.mrb[0].mxu0
        %548 = vmatprep.mubr.f32.mxu0 0.0
        %549 = vmatmul.mubr.f32.gmra.mrb[0].mxu0 %v434
        %v550 = vpop.f32.mrb[0].mxu0
        %v551 = vadd.f32 0.0, %v550
        %v552 = vpop.f32.mrb[0].mxu0
        %553 = vmatprep.mubr.f32.mxu0 0.0
        %554 = vmatmul.mubr.f32.gmra.mrb[0].mxu0 %v436
        %v555 = vpop.f32.mrb[0].mxu0
        %v556 = vadd.f32 0.0, %v555
        %v557 = vpop.f32.mrb[0].mxu0
        %558 = vmatprep.mubr.f32.mxu0 0.0
        %559 = vmatmul.mubr.f32.gmra.mrb[0].mxu0 %v438
        %v560 = vpop.f32.mrb[0].mxu0
        %v561 = vadd.f32 0.0, %v560
        %v562 = vpop.f32.mrb[0].mxu0
        %563 = vmatprep.mubr.f32.mxu0 0.0
        %564 = vmatmul.mubr.f32.gmra.mrb[0].mxu0 %v440
        %v565 = vpop.f32.mrb[0].mxu0
        %v566 = vadd.f32 0.0, %v565
        %v567 = vpop.f32.mrb[0].mxu0
        %568 = vmatprep.mubr.f32.mxu0 0.0
        %569 = vmatmul.mubr.f32.gmra.mrb[0].mxu0 %v442
        %v570 = vpop.f32.mrb[0].mxu0
        %v571 = vadd.f32 0.0, %v570
        %v572 = vpop.f32.mrb[0].mxu0
        %573 = vmatprep.mubr.f32.mxu0 0.0
        %574 = vmatmul.mubr.f32.gmra.mrb[0].mxu0 %v444
        %v575 = vpop.f32.mrb[0].mxu0
        %v576 = vadd.f32 0.0, %v575
        %v577 = vpop.f32.mrb[0].mxu0
        %578 = vmatprep.mubr.f32.mxu0 0.0
        %579 = vmatmul.mubr.f32.gmra.mrb[0].mxu0 %v446
        %v580 = vpop.f32.mrb[0].mxu0
        %v581 = vadd.f32 0.0, %v580
        %v582 = vpop.f32.mrb[0].mxu0
        %583 = vmatprep.mubr.f32.mxu0 0.0
        %584 = vmatmul.mubr.f32.gmra.mrb[0].mxu0 %v448
        %v585 = vpop.f32.mrb[0].mxu0
        %v586 = vadd.f32 0.0, %v585
        %v587 = vpop.f32.mrb[0].mxu0
        %588 = vmatprep.mubr.f32.mxu0 0.0
        %589 = vmatmul.mubr.f32.gmra.mrb[0].mxu0 %v450
        %v590 = vpop.f32.mrb[0].mxu0
        %v591 = vadd.f32 0.0, %v590
        %v592 = vpop.f32.mrb[0].mxu0
        %593 = vmatprep.mubr.f32.mxu0 0.0
        %594 = vmatmul.mubr.f32.gmra.mrb[0].mxu0 %v452
        %v595 = vpop.f32.mrb[0].mxu0
        %v596 = vadd.f32 0.0, %v595
        %v597 = vpop.f32.mrb[0].mxu0
        %598 = vmatprep.mubr.f32.mxu0 0.0
        %599 = vmatmul.mubr.f32.gmra.mrb[0].mxu0 %v454
        %v600 = vpop.f32.mrb[0].mxu0
        %v601 = vadd.f32 0.0, %v600
        %v602 = vpop.f32.mrb[0].mxu0
        %603 = vmatprep.mubr.f32.mxu0 0.0
        %604 = vmatmul.mubr.f32.gmra.mrb[0].mxu0 %v456
        %v605 = vpop.f32.mrb[0].mxu0
        %v606 = vadd.f32 0.0, %v605
        %v607 = vpop.f32.mrb[0].mxu0
        %608 = vmatprep.mubr.f32.mxu0 0.0
        %609 = vmatmul.mubr.f32.gmra.mrb[0].mxu0 %v458
        %v610 = vpop.f32.mrb[0].mxu0
        %v611 = vadd.f32 0.0, %v610
        %v612 = vpop.f32.mrb[0].mxu0
        %613 = vmatprep.mubr.f32.mxu0 0.0
        %614 = vmatmul.mubr.f32.gmra.mrb[0].mxu0 %v460
        %v615 = vpop.f32.mrb[0].mxu0
        %v616 = vadd.f32 0.0, %v615
        %v617 = vpop.f32.mrb[0].mxu0
        %618 = vmatprep.mubr.f32.mxu0 0.0
        %619 = vmatmul.mubr.f32.gmra.mrb[0].mxu0 %v462
        %v620 = vpop.f32.mrb[0].mxu0
        %v621 = vadd.f32 0.0, %v620
        %v622 = vpop.f32.mrb[0].mxu0
        %623 = vmatprep.mubr.f32.mxu0 0.0
        %624 = vmatmul.mubr.f32.gmra.mrb[0].mxu0 %v464
        %v625 = vpop.f32.mrb[0].mxu0
        %v626 = vadd.f32 0.0, %v625
        %v627 = vpop.f32.mrb[0].mxu0
        %628 = vmatprep.mubr.f32.mxu0 0.0
        %629 = vmatmul.mubr.f32.gmra.mrb[0].mxu0 %v466
        %v630 = vpop.f32.mrb[0].mxu0
        %v631 = vadd.f32 0.0, %v630
        %v632 = vpop.f32.mrb[0].mxu0
        %633 = vmatprep.mubr.f32.mxu0 0.0
        %634 = vmatmul.mubr.f32.gmra.mrb[0].mxu0 %v468
        %v635 = vpop.f32.mrb[0].mxu0
        %v636 = vadd.f32 0.0, %v635
        %v637 = vpop.f32.mrb[0].mxu0
        %638 = vdwg.mxu0
        %v639 = vsel %vm429, %v315, 0
        %v641 = vsel %vm429, %v316, 0
        %v643 = vsel %vm429, %v318, 0
        %v645 = vsel %vm429, %v319, 0
        %v647 = vsel %vm429, %v321, 0
        %v649 = vsel %vm429, %v322, 0
        %v651 = vsel %vm429, %v324, 0
        %v653 = vsel %vm429, %v325, 0
        %v655 = vsel %vm429, %v327, 0
        %v657 = vsel %vm429, %v328, 0
        %v659 = vsel %vm429, %v330, 0
        %v661 = vsel %vm429, %v331, 0
        %v663 = vsel %vm429, %v333, 0
        %v665 = vsel %vm429, %v334, 0
        %v667 = vsel %vm429, %v336, 0
        %v669 = vsel %vm429, %v337, 0
        %v671 = vsel %vm429, %v339, 0
        %v673 = vsel %vm429, %v340, 0
        %v675 = vsel %vm429, %v342, 0
        %v677 = vsel %vm429, %v343, 0
        %v680 = vsel %vm470, %v345, 0
        %682 = vmatprep.subr.mxu0 0.0
        %683 = vmatpush1.msra.mxu0 %v680
        %684 = vmatprep.subr.mxu0 0.0
        %685 = vmatpush1.msra.mxu0 0.0
        %686 = vmatprep.subr.mxu0 0.0
        %687 = vmatpush1.msra.mxu0 0.0
        %688 = vmatprep.subr.mxu0 0.0
        %689 = vmatpush1.msra.mxu0 0.0
        %690 = vmatprep.subr.mxu0 0.0
        %691 = vmatpush1.msra.mxu0 0.0
        %692 = vmatprep.subr.mxu0 0.0
        %693 = vmatpush1.msra.mxu0 0.0
        %694 = vmatprep.subr.mxu0 0.0
        %695 = vmatpush1.msra.mxu0 0.0
        %696 = vmatprep.subr.mxu0 0.0
        %697 = vmatpush1.msra.mxu0 0.0
        %698 = vmatprep.subr.mxu0 0.0
        %699 = vmatpush1.msra.mxu0 0.0
        %700 = vmatprep.subr.mxu0 0.0
        %701 = vmatpush1.msra.mxu0 0.0
        %702 = vmatprep.subr.mxu0 0.0
        %703 = vmatpush1.msra.mxu0 0.0
        %704 = vmatprep.subr.mxu0 0.0
        %705 = vmatpush1.msra.mxu0 0.0
        %706 = vmatprep.subr.mxu0 0.0
        %707 = vmatpush1.msra.mxu0 0.0
        %708 = vmatprep.subr.mxu0 0.0
        %709 = vmatpush1.msra.mxu0 0.0
        %710 = vmatprep.subr.mxu0 0.0
        %711 = vmatpush1.msra.mxu0 0.0
        %712 = vmatprep.subr.mxu0 0.0
        %713 = vmatpush1.msra.mxu0 0.0
        %714 = vmatprep.subr.mxu0 0.0
        %715 = vmatpush1.msra.mxu0 0.0
        %716 = vmatprep.subr.mxu0 0.0
        %717 = vmatpush1.msra.mxu0 0.0
        %718 = vmatprep.subr.mxu0 0.0
        %719 = vmatpush1.msra.mxu0 0.0
        %720 = vmatprep.subr.mxu0 0.0
        %721 = vmatpush1.msra.mxu0 0.0
        %722 = vmatprep.subr.mxu0 0.0
        %723 = vmatpush1.msra.mxu0 0.0
        %724 = vmatprep.subr.mxu0 0.0
        %725 = vmatpush1.msra.mxu0 0.0
        %726 = vmatprep.subr.mxu0 0.0
        %727 = vmatpush1.msra.mxu0 0.0
        %728 = vmatprep.subr.mxu0 0.0
        %729 = vmatpush1.msra.mxu0 0.0
        %730 = vmatprep.subr.mxu0 0.0
        %731 = vmatpush1.msra.mxu0 0.0
        %732 = vmatprep.subr.mxu0 0.0
        %733 = vmatpush1.msra.mxu0 0.0
        %734 = vmatprep.subr.mxu0 0.0
        %735 = vmatpush1.msra.mxu0 0.0
        %736 = vmatprep.subr.mxu0 0.0
        %737 = vmatpush1.msra.mxu0 0.0
        %738 = vmatprep.subr.mxu0 0.0
        %739 = vmatpush1.msra.mxu0 0.0
        %740 = vmatprep.subr.mxu0 0.0
        %741 = vmatpush1.msra.mxu0 0.0
        %742 = vmatprep.subr.mxu0 0.0
        %743 = vmatpush1.msra.mxu0 0.0
        %744 = vmatprep.subr.mxu0 0.0
        %745 = vmatpush1.msra.mxu0 0.0
        %746 = vmatprep.mubr.f32.mxu0 0.0
        %747 = vmatmul.mubr.f32.gmra.mrb[0].mxu0 %v639
        %v748 = vpop.f32.mrb[0].mxu0
        %v749 = vadd.f32 %v541, %v748
        %v750 = vpop.f32.mrb[0].mxu0
        %751 = vmatprep.mubr.f32.mxu0 0.0
        %752 = vmatmul.mubr.f32.gmra.mrb[0].mxu0 %v641
        %v753 = vpop.f32.mrb[0].mxu0
        %v754 = vadd.f32 %v546, %v753
        %v755 = vpop.f32.mrb[0].mxu0
        %756 = vmatprep.mubr.f32.mxu0 0.0
        %757 = vmatmul.mubr.f32.gmra.mrb[0].mxu0 %v643
        %v758 = vpop.f32.mrb[0].mxu0
        %v759 = vadd.f32 %v551, %v758
        %v760 = vpop.f32.mrb[0].mxu0
        %761 = vmatprep.mubr.f32.mxu0 0.0
        %762 = vmatmul.mubr.f32.gmra.mrb[0].mxu0 %v645
        %v763 = vpop.f32.mrb[0].mxu0
        %v764 = vadd.f32 %v556, %v763
        %v765 = vpop.f32.mrb[0].mxu0
        %766 = vmatprep.mubr.f32.mxu0 0.0
        %767 = vmatmul.mubr.f32.gmra.mrb[0].mxu0 %v647
        %v768 = vpop.f32.mrb[0].mxu0
        %v769 = vadd.f32 %v561, %v768
        %v770 = vpop.f32.mrb[0].mxu0
        %771 = vmatprep.mubr.f32.mxu0 0.0
        %772 = vmatmul.mubr.f32.gmra.mrb[0].mxu0 %v649
        %v773 = vpop.f32.mrb[0].mxu0
        %v774 = vadd.f32 %v566, %v773
        %v775 = vpop.f32.mrb[0].mxu0
        %776 = vmatprep.mubr.f32.mxu0 0.0
        %777 = vmatmul.mubr.f32.gmra.mrb[0].mxu0 %v651
        %v778 = vpop.f32.mrb[0].mxu0
        %v779 = vadd.f32 %v571, %v778
        %v780 = vpop.f32.mrb[0].mxu0
        %781 = vmatprep.mubr.f32.mxu0 0.0
        %782 = vmatmul.mubr.f32.gmra.mrb[0].mxu0 %v653
        %v783 = vpop.f32.mrb[0].mxu0
        %v784 = vadd.f32 %v576, %v783
        %v785 = vpop.f32.mrb[0].mxu0
        %786 = vmatprep.mubr.f32.mxu0 0.0
        %787 = vmatmul.mubr.f32.gmra.mrb[0].mxu0 %v655
        %v788 = vpop.f32.mrb[0].mxu0
        %v789 = vadd.f32 %v581, %v788
        %v790 = vpop.f32.mrb[0].mxu0
        %791 = vmatprep.mubr.f32.mxu0 0.0
        %792 = vmatmul.mubr.f32.gmra.mrb[0].mxu0 %v657
        %v793 = vpop.f32.mrb[0].mxu0
        %v794 = vadd.f32 %v586, %v793
        %v795 = vpop.f32.mrb[0].mxu0
        %796 = vmatprep.mubr.f32.mxu0 0.0
        %797 = vmatmul.mubr.f32.gmra.mrb[0].mxu0 %v659
        %v798 = vpop.f32.mrb[0].mxu0
        %v799 = vadd.f32 %v591, %v798
        %v800 = vpop.f32.mrb[0].mxu0
        %801 = vmatprep.mubr.f32.mxu0 0.0
        %802 = vmatmul.mubr.f32.gmra.mrb[0].mxu0 %v661
        %v803 = vpop.f32.mrb[0].mxu0
        %v804 = vadd.f32 %v596, %v803
        %v805 = vpop.f32.mrb[0].mxu0
        %806 = vmatprep.mubr.f32.mxu0 0.0
        %807 = vmatmul.mubr.f32.gmra.mrb[0].mxu0 %v663
        %v808 = vpop.f32.mrb[0].mxu0
        %v809 = vadd.f32 %v601, %v808
        %v810 = vpop.f32.mrb[0].mxu0
        %811 = vmatprep.mubr.f32.mxu0 0.0
        %812 = vmatmul.mubr.f32.gmra.mrb[0].mxu0 %v665
        %v813 = vpop.f32.mrb[0].mxu0
        %v814 = vadd.f32 %v606, %v813
        %v815 = vpop.f32.mrb[0].mxu0
        %816 = vmatprep.mubr.f32.mxu0 0.0
        %817 = vmatmul.mubr.f32.gmra.mrb[0].mxu0 %v667
        %v818 = vpop.f32.mrb[0].mxu0
        %v819 = vadd.f32 %v611, %v818
        %v820 = vpop.f32.mrb[0].mxu0
        %821 = vmatprep.mubr.f32.mxu0 0.0
        %822 = vmatmul.mubr.f32.gmra.mrb[0].mxu0 %v669
        %v823 = vpop.f32.mrb[0].mxu0
        %v824 = vadd.f32 %v616, %v823
        %v825 = vpop.f32.mrb[0].mxu0
        %826 = vmatprep.mubr.f32.mxu0 0.0
        %827 = vmatmul.mubr.f32.gmra.mrb[0].mxu0 %v671
        %v828 = vpop.f32.mrb[0].mxu0
        %v829 = vadd.f32 %v621, %v828
        %v830 = vpop.f32.mrb[0].mxu0
        %831 = vmatprep.mubr.f32.mxu0 0.0
        %832 = vmatmul.mubr.f32.gmra.mrb[0].mxu0 %v673
        %v833 = vpop.f32.mrb[0].mxu0
        %v834 = vadd.f32 %v626, %v833
        %v835 = vpop.f32.mrb[0].mxu0
        %836 = vmatprep.mubr.f32.mxu0 0.0
        %837 = vmatmul.mubr.f32.gmra.mrb[0].mxu0 %v675
        %v838 = vpop.f32.mrb[0].mxu0
        %v839 = vadd.f32 %v631, %v838
        %v840 = vpop.f32.mrb[0].mxu0
        %841 = vmatprep.mubr.f32.mxu0 0.0
        %842 = vmatmul.mubr.f32.gmra.mrb[0].mxu0 %v677
        %v843 = vpop.f32.mrb[0].mxu0
        %v844 = vadd.f32 %v636, %v843
        %v845 = vpop.f32.mrb[0].mxu0
        %846 = vdwg.mxu0
        %vm847 = vcmask 1045504
        %v848 = vrot.slane %v315, 2
        %v849 = vrot.slane %v316, 2
        %v850 = vsel %vm847, %v848, %v849
        %v851 = vrot.slane %v317, 2
        %v852 = vsel %vm847, %v849, %v851
        %v853 = vrot.slane %v318, 2
        %v854 = vrot.slane %v319, 2
        %v855 = vsel %vm847, %v853, %v854
        %v856 = vrot.slane %v320, 2
        %v857 = vsel %vm847, %v854, %v856
        %v858 = vrot.slane %v321, 2
        %v859 = vrot.slane %v322, 2
        %v860 = vsel %vm847, %v858, %v859
        %v861 = vrot.slane %v323, 2
        %v862 = vsel %vm847, %v859, %v861
        %v863 = vrot.slane %v324, 2
        %v864 = vrot.slane %v325, 2
        %v865 = vsel %vm847, %v863, %v864
        %v866 = vrot.slane %v326, 2
        %v867 = vsel %vm847, %v864, %v866
        %v868 = vrot.slane %v327, 2
        %v869 = vrot.slane %v328, 2
        %v870 = vsel %vm847, %v868, %v869
        %v871 = vrot.slane %v329, 2
        %v872 = vsel %vm847, %v869, %v871
        %v873 = vrot.slane %v330, 2
        %v874 = vrot.slane %v331, 2
        %v875 = vsel %vm847, %v873, %v874
        %v876 = vrot.slane %v332, 2
        %v877 = vsel %vm847, %v874, %v876
        %v878 = vrot.slane %v333, 2
        %v879 = vrot.slane %v334, 2
        %v880 = vsel %vm847, %v878, %v879
        %v881 = vrot.slane %v335, 2
        %v882 = vsel %vm847, %v879, %v881
        %v883 = vrot.slane %v336, 2
        %v884 = vrot.slane %v337, 2
        %v885 = vsel %vm847, %v883, %v884
        %v886 = vrot.slane %v338, 2
        %v887 = vsel %vm847, %v884, %v886
        %v888 = vrot.slane %v339, 2
        %v889 = vrot.slane %v340, 2
        %v890 = vsel %vm847, %v888, %v889
        %v891 = vrot.slane %v341, 2
        %v892 = vsel %vm847, %v889, %v891
        %v893 = vrot.slane %v342, 2
        %v894 = vrot.slane %v343, 2
        %v895 = vsel %vm847, %v893, %v894
        %v896 = vrot.slane %v344, 2
        %v897 = vsel %vm847, %v894, %v896
        %s898 = scalar_lea.vmem [#allocation6], 8
        %v899 = vld [vmem:[%s898] sm:$0xf]
        %v900 = vsel %vm429, %v850, 0
        %v902 = vsel %vm429, %v852, 0
        %v904 = vsel %vm429, %v855, 0
        %v906 = vsel %vm429, %v857, 0
        %v908 = vsel %vm429, %v860, 0
        %v910 = vsel %vm429, %v862, 0
        %v912 = vsel %vm429, %v865, 0
        %v914 = vsel %vm429, %v867, 0
        %v916 = vsel %vm429, %v870, 0
        %v918 = vsel %vm429, %v872, 0
        %v920 = vsel %vm429, %v875, 0
        %v922 = vsel %vm429, %v877, 0
        %v924 = vsel %vm429, %v880, 0
        %v926 = vsel %vm429, %v882, 0
        %v928 = vsel %vm429, %v885, 0
        %v930 = vsel %vm429, %v887, 0
        %v932 = vsel %vm429, %v890, 0
        %v934 = vsel %vm429, %v892, 0
        %v936 = vsel %vm429, %v895, 0
        %v938 = vsel %vm429, %v897, 0
        %v941 = vsel %vm470, %v899, 0
        %943 = vmatprep.subr.mxu0 0.0
        %944 = vmatpush1.msra.mxu0 %v941
        %945 = vmatprep.subr.mxu0 0.0
        %946 = vmatpush1.msra.mxu0 0.0
        %947 = vmatprep.subr.mxu0 0.0
        %948 = vmatpush1.msra.mxu0 0.0
        %949 = vmatprep.subr.mxu0 0.0
        %950 = vmatpush1.msra.mxu0 0.0
        %951 = vmatprep.subr.mxu0 0.0
        %952 = vmatpush1.msra.mxu0 0.0
        %953 = vmatprep.subr.mxu0 0.0
        %954 = vmatpush1.msra.mxu0 0.0
        %955 = vmatprep.subr.mxu0 0.0
        %956 = vmatpush1.msra.mxu0 0.0
        %957 = vmatprep.subr.mxu0 0.0
        %958 = vmatpush1.msra.mxu0 0.0
        %959 = vmatprep.subr.mxu0 0.0
        %960 = vmatpush1.msra.mxu0 0.0
        %961 = vmatprep.subr.mxu0 0.0
        %962 = vmatpush1.msra.mxu0 0.0
        %963 = vmatprep.subr.mxu0 0.0
        %964 = vmatpush1.msra.mxu0 0.0
        %965 = vmatprep.subr.mxu0 0.0
        %966 = vmatpush1.msra.mxu0 0.0
        %967 = vmatprep.subr.mxu0 0.0
        %968 = vmatpush1.msra.mxu0 0.0
        %969 = vmatprep.subr.mxu0 0.0
        %970 = vmatpush1.msra.mxu0 0.0
        %971 = vmatprep.subr.mxu0 0.0
        %972 = vmatpush1.msra.mxu0 0.0
        %973 = vmatprep.subr.mxu0 0.0
        %974 = vmatpush1.msra.mxu0 0.0
        %975 = vmatprep.subr.mxu0 0.0
        %976 = vmatpush1.msra.mxu0 0.0
        %977 = vmatprep.subr.mxu0 0.0
        %978 = vmatpush1.msra.mxu0 0.0
        %979 = vmatprep.subr.mxu0 0.0
        %980 = vmatpush1.msra.mxu0 0.0
        %981 = vmatprep.subr.mxu0 0.0
        %982 = vmatpush1.msra.mxu0 0.0
        %983 = vmatprep.subr.mxu0 0.0
        %984 = vmatpush1.msra.mxu0 0.0
        %985 = vmatprep.subr.mxu0 0.0
        %986 = vmatpush1.msra.mxu0 0.0
        %987 = vmatprep.subr.mxu0 0.0
        %988 = vmatpush1.msra.mxu0 0.0
        %989 = vmatprep.subr.mxu0 0.0
        %990 = vmatpush1.msra.mxu0 0.0
        %991 = vmatprep.subr.mxu0 0.0
        %992 = vmatpush1.msra.mxu0 0.0
        %993 = vmatprep.subr.mxu0 0.0
        %994 = vmatpush1.msra.mxu0 0.0
        %995 = vmatprep.subr.mxu0 0.0
        %996 = vmatpush1.msra.mxu0 0.0
        %997 = vmatprep.subr.mxu0 0.0
        %998 = vmatpush1.msra.mxu0 0.0
        %999 = vmatprep.subr.mxu0 0.0
        %1000 = vmatpush1.msra.mxu0 0.0
        %1001 = vmatprep.subr.mxu0 0.0
        %1002 = vmatpush1.msra.mxu0 0.0
        %1003 = vmatprep.subr.mxu0 0.0
        %1004 = vmatpush1.msra.mxu0 0.0
        %1005 = vmatprep.subr.mxu0 0.0
        %1006 = vmatpush1.msra.mxu0 0.0
        %1007 = vmatprep.mubr.f32.mxu0 0.0
        %1008 = vmatmul.mubr.f32.gmra.mrb[0].mxu0 %v900
        %v1009 = vpop.f32.mrb[0].mxu0
        %v1010 = vadd.f32 0.0, %v1009
        %v1011 = vpop.f32.mrb[0].mxu0
        %1012 = vmatprep.mubr.f32.mxu0 0.0
        %1013 = vmatmul.mubr.f32.gmra.mrb[0].mxu0 %v902
        %v1014 = vpop.f32.mrb[0].mxu0
        %v1015 = vadd.f32 0.0, %v1014
        %v1016 = vpop.f32.mrb[0].mxu0
        %1017 = vmatprep.mubr.f32.mxu0 0.0
        %1018 = vmatmul.mubr.f32.gmra.mrb[0].mxu0 %v904
        %v1019 = vpop.f32.mrb[0].mxu0
        %v1020 = vadd.f32 0.0, %v1019
        %v1021 = vpop.f32.mrb[0].mxu0
        %1022 = vmatprep.mubr.f32.mxu0 0.0
        %1023 = vmatmul.mubr.f32.gmra.mrb[0].mxu0 %v906
        %v1024 = vpop.f32.mrb[0].mxu0
        %v1025 = vadd.f32 0.0, %v1024
        %v1026 = vpop.f32.mrb[0].mxu0
        %1027 = vmatprep.mubr.f32.mxu0 0.0
        %1028 = vmatmul.mubr.f32.gmra.mrb[0].mxu0 %v908
        %v1029 = vpop.f32.mrb[0].mxu0
        %v1030 = vadd.f32 0.0, %v1029
        %v1031 = vpop.f32.mrb[0].mxu0
        %1032 = vmatprep.mubr.f32.mxu0 0.0
        %1033 = vmatmul.mubr.f32.gmra.mrb[0].mxu0 %v910
        %v1034 = vpop.f32.mrb[0].mxu0
        %v1035 = vadd.f32 0.0, %v1034
        %v1036 = vpop.f32.mrb[0].mxu0
        %1037 = vmatprep.mubr.f32.mxu0 0.0
        %1038 = vmatmul.mubr.f32.gmra.mrb[0].mxu0 %v912
        %v1039 = vpop.f32.mrb[0].mxu0
        %v1040 = vadd.f32 0.0, %v1039
        %v1041 = vpop.f32.mrb[0].mxu0
        %1042 = vmatprep.mubr.f32.mxu0 0.0
        %1043 = vmatmul.mubr.f32.gmra.mrb[0].mxu0 %v914
        %v1044 = vpop.f32.mrb[0].mxu0
        %v1045 = vadd.f32 0.0, %v1044
        %v1046 = vpop.f32.mrb[0].mxu0
        %1047 = vmatprep.mubr.f32.mxu0 0.0
        %1048 = vmatmul.mubr.f32.gmra.mrb[0].mxu0 %v916
        %v1049 = vpop.f32.mrb[0].mxu0
        %v1050 = vadd.f32 0.0, %v1049
        %v1051 = vpop.f32.mrb[0].mxu0
        %1052 = vmatprep.mubr.f32.mxu0 0.0
        %1053 = vmatmul.mubr.f32.gmra.mrb[0].mxu0 %v918
        %v1054 = vpop.f32.mrb[0].mxu0
        %v1055 = vadd.f32 0.0, %v1054
        %v1056 = vpop.f32.mrb[0].mxu0
        %1057 = vmatprep.mubr.f32.mxu0 0.0
        %1058 = vmatmul.mubr.f32.gmra.mrb[0].mxu0 %v920
        %v1059 = vpop.f32.mrb[0].mxu0
        %v1060 = vadd.f32 0.0, %v1059
        %v1061 = vpop.f32.mrb[0].mxu0
        %1062 = vmatprep.mubr.f32.mxu0 0.0
        %1063 = vmatmul.mubr.f32.gmra.mrb[0].mxu0 %v922
        %v1064 = vpop.f32.mrb[0].mxu0
        %v1065 = vadd.f32 0.0, %v1064
        %v1066 = vpop.f32.mrb[0].mxu0
        %1067 = vmatprep.mubr.f32.mxu0 0.0
        %1068 = vmatmul.mubr.f32.gmra.mrb[0].mxu0 %v924
        %v1069 = vpop.f32.mrb[0].mxu0
        %v1070 = vadd.f32 0.0, %v1069
        %v1071 = vpop.f32.mrb[0].mxu0
        %1072 = vmatprep.mubr.f32.mxu0 0.0
        %1073 = vmatmul.mubr.f32.gmra.mrb[0].mxu0 %v926
        %v1074 = vpop.f32.mrb[0].mxu0
        %v1075 = vadd.f32 0.0, %v1074
        %v1076 = vpop.f32.mrb[0].mxu0
        %1077 = vmatprep.mubr.f32.mxu0 0.0
        %1078 = vmatmul.mubr.f32.gmra.mrb[0].mxu0 %v928
        %v1079 = vpop.f32.mrb[0].mxu0
        %v1080 = vadd.f32 0.0, %v1079
        %v1081 = vpop.f32.mrb[0].mxu0
        %1082 = vmatprep.mubr.f32.mxu0 0.0
        %1083 = vmatmul.mubr.f32.gmra.mrb[0].mxu0 %v930
        %v1084 = vpop.f32.mrb[0].mxu0
        %v1085 = vadd.f32 0.0, %v1084
        %v1086 = vpop.f32.mrb[0].mxu0
        %1087 = vmatprep.mubr.f32.mxu0 0.0
        %1088 = vmatmul.mubr.f32.gmra.mrb[0].mxu0 %v932
        %v1089 = vpop.f32.mrb[0].mxu0
        %v1090 = vadd.f32 0.0, %v1089
        %v1091 = vpop.f32.mrb[0].mxu0
        %1092 = vmatprep.mubr.f32.mxu0 0.0
        %1093 = vmatmul.mubr.f32.gmra.mrb[0].mxu0 %v934
        %v1094 = vpop.f32.mrb[0].mxu0
        %v1095 = vadd.f32 0.0, %v1094
        %v1096 = vpop.f32.mrb[0].mxu0
        %1097 = vmatprep.mubr.f32.mxu0 0.0
        %1098 = vmatmul.mubr.f32.gmra.mrb[0].mxu0 %v936
        %v1099 = vpop.f32.mrb[0].mxu0
        %v1100 = vadd.f32 0.0, %v1099
        %v1101 = vpop.f32.mrb[0].mxu0
        %1102 = vmatprep.mubr.f32.mxu0 0.0
        %1103 = vmatmul.mubr.f32.gmra.mrb[0].mxu0 %v938
        %v1104 = vpop.f32.mrb[0].mxu0
        %v1105 = vadd.f32 0.0, %v1104
        %v1106 = vpop.f32.mrb[0].mxu0
        %1107 = vdwg.mxu0
        %v1108 = vadd.f32 %v749, %v1010
        %v1109 = vadd.f32 %v754, %v1015
        %v1110 = vadd.f32 %v759, %v1020
        %v1111 = vadd.f32 %v764, %v1025
        %v1112 = vadd.f32 %v769, %v1030
        %v1113 = vadd.f32 %v774, %v1035
        %v1114 = vadd.f32 %v779, %v1040
        %v1115 = vadd.f32 %v784, %v1045
        %v1116 = vadd.f32 %v789, %v1050
        %v1117 = vadd.f32 %v794, %v1055
        %v1118 = vadd.f32 %v799, %v1060
        %v1119 = vadd.f32 %v804, %v1065
        %v1120 = vadd.f32 %v809, %v1070
        %v1121 = vadd.f32 %v814, %v1075
        %v1122 = vadd.f32 %v819, %v1080
        %v1123 = vadd.f32 %v824, %v1085
        %v1124 = vadd.f32 %v829, %v1090
        %v1125 = vadd.f32 %v834, %v1095
        %v1126 = vadd.f32 %v839, %v1100
        %v1127 = vadd.f32 %v844, %v1105
        %s1128 = sadd.s32 %s312, 1
        %s1129 = smul.u32 %s1128, 24
        %s1130 = scalar_lea.vmem %s268, %s1129 [#allocation3]
        %v1131 = vld [vmem:[%s1130] sm:$0xff]
        %v1132 = vld [vmem:[%s1130 + $0x8] sm:$0xff]
        %v1133 = vld [vmem:[%s1130 + $0x10] sm:$0x3]
        %v1134 = vld [vmem:[%s1130 + $0x18] sm:$0xff]
        %v1135 = vld [vmem:[%s1130 + $0x20] sm:$0xff]
        %v1136 = vld [vmem:[%s1130 + $0x28] sm:$0x3]
        %v1137 = vld [vmem:[%s1130 + $0x30] sm:$0xff]
        %v1138 = vld [vmem:[%s1130 + $0x38] sm:$0xff]
        %v1139 = vld [vmem:[%s1130 + $0x40] sm:$0x3]
        %v1140 = vld [vmem:[%s1130 + $0x48] sm:$0xff]
        %v1141 = vld [vmem:[%s1130 + $0x50] sm:$0xff]
        %v1142 = vld [vmem:[%s1130 + $0x58] sm:$0x3]
        %v1143 = vld [vmem:[%s1130 + $0x60] sm:$0xff]
        %v1144 = vld [vmem:[%s1130 + $0x68] sm:$0xff]
        %v1145 = vld [vmem:[%s1130 + $0x70] sm:$0x3]
        %v1146 = vld [vmem:[%s1130 + $0x78] sm:$0xff]
        %v1147 = vld [vmem:[%s1130 + $0x80] sm:$0xff]
        %v1148 = vld [vmem:[%s1130 + $0x88] sm:$0x3]
        %v1149 = vld [vmem:[%s1130 + $0x90] sm:$0xff]
        %v1150 = vld [vmem:[%s1130 + $0x98] sm:$0xff]
        %v1151 = vld [vmem:[%s1130 + $0xa0] sm:$0x3]
        %v1152 = vld [vmem:[%s1130 + $0xa8] sm:$0xff]
        %v1153 = vld [vmem:[%s1130 + $0xb0] sm:$0xff]
        %v1154 = vld [vmem:[%s1130 + $0xb8] sm:$0x3]
        %v1155 = vld [vmem:[%s1130 + $0xc0] sm:$0xff]
        %v1156 = vld [vmem:[%s1130 + $0xc8] sm:$0xff]
        %v1157 = vld [vmem:[%s1130 + $0xd0] sm:$0x3]
        %v1158 = vld [vmem:[%s1130 + $0xd8] sm:$0xff]
        %v1159 = vld [vmem:[%s1130 + $0xe0] sm:$0xff]
        %v1160 = vld [vmem:[%s1130 + $0xe8] sm:$0x3]
        %s1161 = scalar_lea.vmem [#allocation6], 12
        %v1162 = vld [vmem:[%s1161] sm:$0xf]
        %v1164 = vsel %vm429, %v1131, 0
        %v1167 = vsel %vm429, %v1132, 0
        %v1170 = vsel %vm429, %v1134, 0
        %v1173 = vsel %vm429, %v1135, 0
        %v1176 = vsel %vm429, %v1137, 0
        %v1179 = vsel %vm429, %v1138, 0
        %v1182 = vsel %vm429, %v1140, 0
        %v1185 = vsel %vm429, %v1141, 0
        %v1188 = vsel %vm429, %v1143, 0
        %v1191 = vsel %vm429, %v1144, 0
        %v1194 = vsel %vm429, %v1146, 0
        %v1197 = vsel %vm429, %v1147, 0
        %v1200 = vsel %vm429, %v1149, 0
        %v1203 = vsel %vm429, %v1150, 0
        %v1206 = vsel %vm429, %v1152, 0
        %v1209 = vsel %vm429, %v1153, 0
        %v1212 = vsel %vm429, %v1155, 0
        %v1215 = vsel %vm429, %v1156, 0
        %v1218 = vsel %vm429, %v1158, 0
        %v1221 = vsel %vm429, %v1159, 0
        %v1224 = vsel %vm470, %v1162, 0
        %1226 = vmatprep.subr.mxu0 0.0
        %1227 = vmatpush1.msra.mxu0 %v1224
        %1228 = vmatprep.subr.mxu0 0.0
        %1229 = vmatpush1.msra.mxu0 0.0
        %1230 = vmatprep.subr.mxu0 0.0
        %1231 = vmatpush1.msra.mxu0 0.0
        %1232 = vmatprep.subr.mxu0 0.0
        %1233 = vmatpush1.msra.mxu0 0.0
        %1234 = vmatprep.subr.mxu0 0.0
        %1235 = vmatpush1.msra.mxu0 0.0
        %1236 = vmatprep.subr.mxu0 0.0
        %1237 = vmatpush1.msra.mxu0 0.0
        %1238 = vmatprep.subr.mxu0 0.0
        %1239 = vmatpush1.msra.mxu0 0.0
        %1240 = vmatprep.subr.mxu0 0.0
        %1241 = vmatpush1.msra.mxu0 0.0
        %1242 = vmatprep.subr.mxu0 0.0
        %1243 = vmatpush1.msra.mxu0 0.0
        %1244 = vmatprep.subr.mxu0 0.0
        %1245 = vmatpush1.msra.mxu0 0.0
        %1246 = vmatprep.subr.mxu0 0.0
        %1247 = vmatpush1.msra.mxu0 0.0
        %1248 = vmatprep.subr.mxu0 0.0
        %1249 = vmatpush1.msra.mxu0 0.0
        %1250 = vmatprep.subr.mxu0 0.0
        %1251 = vmatpush1.msra.mxu0 0.0
        %1252 = vmatprep.subr.mxu0 0.0
        %1253 = vmatpush1.msra.mxu0 0.0
        %1254 = vmatprep.subr.mxu0 0.0
        %1255 = vmatpush1.msra.mxu0 0.0
        %1256 = vmatprep.subr.mxu0 0.0
        %1257 = vmatpush1.msra.mxu0 0.0
        %1258 = vmatprep.subr.mxu0 0.0
        %1259 = vmatpush1.msra.mxu0 0.0
        %1260 = vmatprep.subr.mxu0 0.0
        %1261 = vmatpush1.msra.mxu0 0.0
        %1262 = vmatprep.subr.mxu0 0.0
        %1263 = vmatpush1.msra.mxu0 0.0
        %1264 = vmatprep.subr.mxu0 0.0
        %1265 = vmatpush1.msra.mxu0 0.0
        %1266 = vmatprep.subr.mxu0 0.0
        %1267 = vmatpush1.msra.mxu0 0.0
        %1268 = vmatprep.subr.mxu0 0.0
        %1269 = vmatpush1.msra.mxu0 0.0
        %1270 = vmatprep.subr.mxu0 0.0
        %1271 = vmatpush1.msra.mxu0 0.0
        %1272 = vmatprep.subr.mxu0 0.0
        %1273 = vmatpush1.msra.mxu0 0.0
        %1274 = vmatprep.subr.mxu0 0.0
        %1275 = vmatpush1.msra.mxu0 0.0
        %1276 = vmatprep.subr.mxu0 0.0
        %1277 = vmatpush1.msra.mxu0 0.0
        %1278 = vmatprep.subr.mxu0 0.0
        %1279 = vmatpush1.msra.mxu0 0.0
        %1280 = vmatprep.subr.mxu0 0.0
        %1281 = vmatpush1.msra.mxu0 0.0
        %1282 = vmatprep.subr.mxu0 0.0
        %1283 = vmatpush1.msra.mxu0 0.0
        %1284 = vmatprep.subr.mxu0 0.0
        %1285 = vmatpush1.msra.mxu0 0.0
        %1286 = vmatprep.subr.mxu0 0.0
        %1287 = vmatpush1.msra.mxu0 0.0
        %1288 = vmatprep.subr.mxu0 0.0
        %1289 = vmatpush1.msra.mxu0 0.0
        %1290 = vmatprep.mubr.f32.mxu0 0.0
        %1291 = vmatmul.mubr.f32.gmra.mrb[0].mxu0 %v1164
        %v1292 = vpop.f32.mrb[0].mxu0
        %v1293 = vadd.f32 0.0, %v1292
        %v1294 = vpop.f32.mrb[0].mxu0
        %1295 = vmatprep.mubr.f32.mxu0 0.0
        %1296 = vmatmul.mubr.f32.gmra.mrb[0].mxu0 %v1167
        %v1297 = vpop.f32.mrb[0].mxu0
        %v1298 = vadd.f32 0.0, %v1297
        %v1299 = vpop.f32.mrb[0].mxu0
        %1300 = vmatprep.mubr.f32.mxu0 0.0
        %1301 = vmatmul.mubr.f32.gmra.mrb[0].mxu0 %v1170
        %v1302 = vpop.f32.mrb[0].mxu0
        %v1303 = vadd.f32 0.0, %v1302
        %v1304 = vpop.f32.mrb[0].mxu0
        %1305 = vmatprep.mubr.f32.mxu0 0.0
        %1306 = vmatmul.mubr.f32.gmra.mrb[0].mxu0 %v1173
        %v1307 = vpop.f32.mrb[0].mxu0
        %v1308 = vadd.f32 0.0, %v1307
        %v1309 = vpop.f32.mrb[0].mxu0
        %1310 = vmatprep.mubr.f32.mxu0 0.0
        %1311 = vmatmul.mubr.f32.gmra.mrb[0].mxu0 %v1176
        %v1312 = vpop.f32.mrb[0].mxu0
        %v1313 = vadd.f32 0.0, %v1312
        %v1314 = vpop.f32.mrb[0].mxu0
        %1315 = vmatprep.mubr.f32.mxu0 0.0
        %1316 = vmatmul.mubr.f32.gmra.mrb[0].mxu0 %v1179
        %v1317 = vpop.f32.mrb[0].mxu0
        %v1318 = vadd.f32 0.0, %v1317
        %v1319 = vpop.f32.mrb[0].mxu0
        %1320 = vmatprep.mubr.f32.mxu0 0.0
        %1321 = vmatmul.mubr.f32.gmra.mrb[0].mxu0 %v1182
        %v1322 = vpop.f32.mrb[0].mxu0
        %v1323 = vadd.f32 0.0, %v1322
        %v1324 = vpop.f32.mrb[0].mxu0
        %1325 = vmatprep.mubr.f32.mxu0 0.0
        %1326 = vmatmul.mubr.f32.gmra.mrb[0].mxu0 %v1185
        %v1327 = vpop.f32.mrb[0].mxu0
        %v1328 = vadd.f32 0.0, %v1327
        %v1329 = vpop.f32.mrb[0].mxu0
        %1330 = vmatprep.mubr.f32.mxu0 0.0
        %1331 = vmatmul.mubr.f32.gmra.mrb[0].mxu0 %v1188
        %v1332 = vpop.f32.mrb[0].mxu0
        %v1333 = vadd.f32 0.0, %v1332
        %v1334 = vpop.f32.mrb[0].mxu0
        %1335 = vmatprep.mubr.f32.mxu0 0.0
        %1336 = vmatmul.mubr.f32.gmra.mrb[0].mxu0 %v1191
        %v1337 = vpop.f32.mrb[0].mxu0
        %v1338 = vadd.f32 0.0, %v1337
        %v1339 = vpop.f32.mrb[0].mxu0
        %1340 = vmatprep.mubr.f32.mxu0 0.0
        %1341 = vmatmul.mubr.f32.gmra.mrb[0].mxu0 %v1194
        %v1342 = vpop.f32.mrb[0].mxu0
        %v1343 = vadd.f32 0.0, %v1342
        %v1344 = vpop.f32.mrb[0].mxu0
        %1345 = vmatprep.mubr.f32.mxu0 0.0
        %1346 = vmatmul.mubr.f32.gmra.mrb[0].mxu0 %v1197
        %v1347 = vpop.f32.mrb[0].mxu0
        %v1348 = vadd.f32 0.0, %v1347
        %v1349 = vpop.f32.mrb[0].mxu0
        %1350 = vmatprep.mubr.f32.mxu0 0.0
        %1351 = vmatmul.mubr.f32.gmra.mrb[0].mxu0 %v1200
        %v1352 = vpop.f32.mrb[0].mxu0
        %v1353 = vadd.f32 0.0, %v1352
        %v1354 = vpop.f32.mrb[0].mxu0
        %1355 = vmatprep.mubr.f32.mxu0 0.0
        %1356 = vmatmul.mubr.f32.gmra.mrb[0].mxu0 %v1203
        %v1357 = vpop.f32.mrb[0].mxu0
        %v1358 = vadd.f32 0.0, %v1357
        %v1359 = vpop.f32.mrb[0].mxu0
        %1360 = vmatprep.mubr.f32.mxu0 0.0
        %1361 = vmatmul.mubr.f32.gmra.mrb[0].mxu0 %v1206
        %v1362 = vpop.f32.mrb[0].mxu0
        %v1363 = vadd.f32 0.0, %v1362
        %v1364 = vpop.f32.mrb[0].mxu0
        %1365 = vmatprep.mubr.f32.mxu0 0.0
        %1366 = vmatmul.mubr.f32.gmra.mrb[0].mxu0 %v1209
        %v1367 = vpop.f32.mrb[0].mxu0
        %v1368 = vadd.f32 0.0, %v1367
        %v1369 = vpop.f32.mrb[0].mxu0
        %1370 = vmatprep.mubr.f32.mxu0 0.0
        %1371 = vmatmul.mubr.f32.gmra.mrb[0].mxu0 %v1212
        %v1372 = vpop.f32.mrb[0].mxu0
        %v1373 = vadd.f32 0.0, %v1372
        %v1374 = vpop.f32.mrb[0].mxu0
        %1375 = vmatprep.mubr.f32.mxu0 0.0
        %1376 = vmatmul.mubr.f32.gmra.mrb[0].mxu0 %v1215
        %v1377 = vpop.f32.mrb[0].mxu0
        %v1378 = vadd.f32 0.0, %v1377
        %v1379 = vpop.f32.mrb[0].mxu0
        %1380 = vmatprep.mubr.f32.mxu0 0.0
        %1381 = vmatmul.mubr.f32.gmra.mrb[0].mxu0 %v1218
        %v1382 = vpop.f32.mrb[0].mxu0
        %v1383 = vadd.f32 0.0, %v1382
        %v1384 = vpop.f32.mrb[0].mxu0
        %1385 = vmatprep.mubr.f32.mxu0 0.0
        %1386 = vmatmul.mubr.f32.gmra.mrb[0].mxu0 %v1221
        %v1387 = vpop.f32.mrb[0].mxu0
        %v1388 = vadd.f32 0.0, %v1387
        %v1389 = vpop.f32.mrb[0].mxu0
        %1390 = vdwg.mxu0
        %v1391 = vadd.f32 %v1108, %v1293
        %v1392 = vadd.f32 %v1109, %v1298
        %v1393 = vadd.f32 %v1110, %v1303
        %v1394 = vadd.f32 %v1111, %v1308
        %v1395 = vadd.f32 %v1112, %v1313
        %v1396 = vadd.f32 %v1113, %v1318
        %v1397 = vadd.f32 %v1114, %v1323
        %v1398 = vadd.f32 %v1115, %v1328
        %v1399 = vadd.f32 %v1116, %v1333
        %v1400 = vadd.f32 %v1117, %v1338
        %v1401 = vadd.f32 %v1118, %v1343
        %v1402 = vadd.f32 %v1119, %v1348
        %v1403 = vadd.f32 %v1120, %v1353
        %v1404 = vadd.f32 %v1121, %v1358
        %v1405 = vadd.f32 %v1122, %v1363
        %v1406 = vadd.f32 %v1123, %v1368
        %v1407 = vadd.f32 %v1124, %v1373
        %v1408 = vadd.f32 %v1125, %v1378
        %v1409 = vadd.f32 %v1126, %v1383
        %v1410 = vadd.f32 %v1127, %v1388
        %v1421 = vrot.slane %v1131, 1
        %v1422 = vrot.slane %v1132, 1
        %v1423 = vsel %vm376, %v1421, %v1422
        %v1424 = vrot.slane %v1133, 1
        %v1425 = vsel %vm376, %v1422, %v1424
        %v1426 = vrot.slane %v1134, 1
        %v1427 = vrot.slane %v1135, 1
        %v1428 = vsel %vm376, %v1426, %v1427
        %v1429 = vrot.slane %v1136, 1
        %v1430 = vsel %vm376, %v1427, %v1429
        %v1431 = vrot.slane %v1137, 1
        %v1432 = vrot.slane %v1138, 1
        %v1433 = vsel %vm376, %v1431, %v1432
        %v1434 = vrot.slane %v1139, 1
        %v1435 = vsel %vm376, %v1432, %v1434
        %v1436 = vrot.slane %v1140, 1
        %v1437 = vrot.slane %v1141, 1
        %v1438 = vsel %vm376, %v1436, %v1437
        %v1439 = vrot.slane %v1142, 1
        %v1440 = vsel %vm376, %v1437, %v1439
        %v1441 = vrot.slane %v1143, 1
        %v1442 = vrot.slane %v1144, 1
        %v1443 = vsel %vm376, %v1441, %v1442
        %v1444 = vrot.slane %v1145, 1
        %v1445 = vsel %vm376, %v1442, %v1444
        %v1446 = vrot.slane %v1146, 1
        %v1447 = vrot.slane %v1147, 1
        %v1448 = vsel %vm376, %v1446, %v1447
        %v1449 = vrot.slane %v1148, 1
        %v1450 = vsel %vm376, %v1447, %v1449
        %v1451 = vrot.slane %v1149, 1
        %v1452 = vrot.slane %v1150, 1
        %v1453 = vsel %vm376, %v1451, %v1452
        %v1454 = vrot.slane %v1151, 1
        %v1455 = vsel %vm376, %v1452, %v1454
        %v1456 = vrot.slane %v1152, 1
        %v1457 = vrot.slane %v1153, 1
        %v1458 = vsel %vm376, %v1456, %v1457
        %v1459 = vrot.slane %v1154, 1
        %v1460 = vsel %vm376, %v1457, %v1459
        %v1461 = vrot.slane %v1155, 1
        %v1462 = vrot.slane %v1156, 1
        %v1463 = vsel %vm376, %v1461, %v1462
        %v1464 = vrot.slane %v1157, 1
        %v1465 = vsel %vm376, %v1462, %v1464
        %v1466 = vrot.slane %v1158, 1
        %v1467 = vrot.slane %v1159, 1
        %v1468 = vsel %vm376, %v1466, %v1467
        %v1469 = vrot.slane %v1160, 1
        %v1470 = vsel %vm376, %v1467, %v1469
        %s1471 = scalar_lea.vmem [#allocation6], 16
        %v1472 = vld [vmem:[%s1471] sm:$0xf]
        %v1473 = vsel %vm429, %v1423, 0
        %v1475 = vsel %vm429, %v1425, 0
        %v1477 = vsel %vm429, %v1428, 0
        %v1479 = vsel %vm429, %v1430, 0
        %v1481 = vsel %vm429, %v1433, 0
        %v1483 = vsel %vm429, %v1435, 0
        %v1485 = vsel %vm429, %v1438, 0
        %v1487 = vsel %vm429, %v1440, 0
        %v1489 = vsel %vm429, %v1443, 0
        %v1491 = vsel %vm429, %v1445, 0
        %v1493 = vsel %vm429, %v1448, 0
        %v1495 = vsel %vm429, %v1450, 0
        %v1497 = vsel %vm429, %v1453, 0
        %v1499 = vsel %vm429, %v1455, 0
        %v1501 = vsel %vm429, %v1458, 0
        %v1503 = vsel %vm429, %v1460, 0
        %v1505 = vsel %vm429, %v1463, 0
        %v1507 = vsel %vm429, %v1465, 0
        %v1509 = vsel %vm429, %v1468, 0
        %v1511 = vsel %vm429, %v1470, 0
        %v1514 = vsel %vm470, %v1472, 0
        %1516 = vmatprep.subr.mxu0 0.0
        %1517 = vmatpush1.msra.mxu0 %v1514
        %1518 = vmatprep.subr.mxu0 0.0
        %1519 = vmatpush1.msra.mxu0 0.0
        %1520 = vmatprep.subr.mxu0 0.0
        %1521 = vmatpush1.msra.mxu0 0.0
        %1522 = vmatprep.subr.mxu0 0.0
        %1523 = vmatpush1.msra.mxu0 0.0
        %1524 = vmatprep.subr.mxu0 0.0
        %1525 = vmatpush1.msra.mxu0 0.0
        %1526 = vmatprep.subr.mxu0 0.0
        %1527 = vmatpush1.msra.mxu0 0.0
        %1528 = vmatprep.subr.mxu0 0.0
        %1529 = vmatpush1.msra.mxu0 0.0
        %1530 = vmatprep.subr.mxu0 0.0
        %1531 = vmatpush1.msra.mxu0 0.0
        %1532 = vmatprep.subr.mxu0 0.0
        %1533 = vmatpush1.msra.mxu0 0.0
        %1534 = vmatprep.subr.mxu0 0.0
        %1535 = vmatpush1.msra.mxu0 0.0
        %1536 = vmatprep.subr.mxu0 0.0
        %1537 = vmatpush1.msra.mxu0 0.0
        %1538 = vmatprep.subr.mxu0 0.0
        %1539 = vmatpush1.msra.mxu0 0.0
        %1540 = vmatprep.subr.mxu0 0.0
        %1541 = vmatpush1.msra.mxu0 0.0
        %1542 = vmatprep.subr.mxu0 0.0
        %1543 = vmatpush1.msra.mxu0 0.0
        %1544 = vmatprep.subr.mxu0 0.0
        %1545 = vmatpush1.msra.mxu0 0.0
        %1546 = vmatprep.subr.mxu0 0.0
        %1547 = vmatpush1.msra.mxu0 0.0
        %1548 = vmatprep.subr.mxu0 0.0
        %1549 = vmatpush1.msra.mxu0 0.0
        %1550 = vmatprep.subr.mxu0 0.0
        %1551 = vmatpush1.msra.mxu0 0.0
        %1552 = vmatprep.subr.mxu0 0.0
        %1553 = vmatpush1.msra.mxu0 0.0
        %1554 = vmatprep.subr.mxu0 0.0
        %1555 = vmatpush1.msra.mxu0 0.0
        %1556 = vmatprep.subr.mxu0 0.0
        %1557 = vmatpush1.msra.mxu0 0.0
        %1558 = vmatprep.subr.mxu0 0.0
        %1559 = vmatpush1.msra.mxu0 0.0
        %1560 = vmatprep.subr.mxu0 0.0
        %1561 = vmatpush1.msra.mxu0 0.0
        %1562 = vmatprep.subr.mxu0 0.0
        %1563 = vmatpush1.msra.mxu0 0.0
        %1564 = vmatprep.subr.mxu0 0.0
        %1565 = vmatpush1.msra.mxu0 0.0
        %1566 = vmatprep.subr.mxu0 0.0
        %1567 = vmatpush1.msra.mxu0 0.0
        %1568 = vmatprep.subr.mxu0 0.0
        %1569 = vmatpush1.msra.mxu0 0.0
        %1570 = vmatprep.subr.mxu0 0.0
        %1571 = vmatpush1.msra.mxu0 0.0
        %1572 = vmatprep.subr.mxu0 0.0
        %1573 = vmatpush1.msra.mxu0 0.0
        %1574 = vmatprep.subr.mxu0 0.0
        %1575 = vmatpush1.msra.mxu0 0.0
        %1576 = vmatprep.subr.mxu0 0.0
        %1577 = vmatpush1.msra.mxu0 0.0
        %1578 = vmatprep.subr.mxu0 0.0
        %1579 = vmatpush1.msra.mxu0 0.0
        %1580 = vmatprep.mubr.f32.mxu0 0.0
        %1581 = vmatmul.mubr.f32.gmra.mrb[0].mxu0 %v1473
        %v1582 = vpop.f32.mrb[0].mxu0
        %v1583 = vadd.f32 0.0, %v1582
        %v1584 = vpop.f32.mrb[0].mxu0
        %1585 = vmatprep.mubr.f32.mxu0 0.0
        %1586 = vmatmul.mubr.f32.gmra.mrb[0].mxu0 %v1475
        %v1587 = vpop.f32.mrb[0].mxu0
        %v1588 = vadd.f32 0.0, %v1587
        %v1589 = vpop.f32.mrb[0].mxu0
        %1590 = vmatprep.mubr.f32.mxu0 0.0
        %1591 = vmatmul.mubr.f32.gmra.mrb[0].mxu0 %v1477
        %v1592 = vpop.f32.mrb[0].mxu0
        %v1593 = vadd.f32 0.0, %v1592
        %v1594 = vpop.f32.mrb[0].mxu0
        %1595 = vmatprep.mubr.f32.mxu0 0.0
        %1596 = vmatmul.mubr.f32.gmra.mrb[0].mxu0 %v1479
        %v1597 = vpop.f32.mrb[0].mxu0
        %v1598 = vadd.f32 0.0, %v1597
        %v1599 = vpop.f32.mrb[0].mxu0
        %1600 = vmatprep.mubr.f32.mxu0 0.0
        %1601 = vmatmul.mubr.f32.gmra.mrb[0].mxu0 %v1481
        %v1602 = vpop.f32.mrb[0].mxu0
        %v1603 = vadd.f32 0.0, %v1602
        %v1604 = vpop.f32.mrb[0].mxu0
        %1605 = vmatprep.mubr.f32.mxu0 0.0
        %1606 = vmatmul.mubr.f32.gmra.mrb[0].mxu0 %v1483
        %v1607 = vpop.f32.mrb[0].mxu0
        %v1608 = vadd.f32 0.0, %v1607
        %v1609 = vpop.f32.mrb[0].mxu0
        %1610 = vmatprep.mubr.f32.mxu0 0.0
        %1611 = vmatmul.mubr.f32.gmra.mrb[0].mxu0 %v1485
        %v1612 = vpop.f32.mrb[0].mxu0
        %v1613 = vadd.f32 0.0, %v1612
        %v1614 = vpop.f32.mrb[0].mxu0
        %1615 = vmatprep.mubr.f32.mxu0 0.0
        %1616 = vmatmul.mubr.f32.gmra.mrb[0].mxu0 %v1487
        %v1617 = vpop.f32.mrb[0].mxu0
        %v1618 = vadd.f32 0.0, %v1617
        %v1619 = vpop.f32.mrb[0].mxu0
        %1620 = vmatprep.mubr.f32.mxu0 0.0
        %1621 = vmatmul.mubr.f32.gmra.mrb[0].mxu0 %v1489
        %v1622 = vpop.f32.mrb[0].mxu0
        %v1623 = vadd.f32 0.0, %v1622
        %v1624 = vpop.f32.mrb[0].mxu0
        %1625 = vmatprep.mubr.f32.mxu0 0.0
        %1626 = vmatmul.mubr.f32.gmra.mrb[0].mxu0 %v1491
        %v1627 = vpop.f32.mrb[0].mxu0
        %v1628 = vadd.f32 0.0, %v1627
        %v1629 = vpop.f32.mrb[0].mxu0
        %1630 = vmatprep.mubr.f32.mxu0 0.0
        %1631 = vmatmul.mubr.f32.gmra.mrb[0].mxu0 %v1493
        %v1632 = vpop.f32.mrb[0].mxu0
        %v1633 = vadd.f32 0.0, %v1632
        %v1634 = vpop.f32.mrb[0].mxu0
        %1635 = vmatprep.mubr.f32.mxu0 0.0
        %1636 = vmatmul.mubr.f32.gmra.mrb[0].mxu0 %v1495
        %v1637 = vpop.f32.mrb[0].mxu0
        %v1638 = vadd.f32 0.0, %v1637
        %v1639 = vpop.f32.mrb[0].mxu0
        %1640 = vmatprep.mubr.f32.mxu0 0.0
        %1641 = vmatmul.mubr.f32.gmra.mrb[0].mxu0 %v1497
        %v1642 = vpop.f32.mrb[0].mxu0
        %v1643 = vadd.f32 0.0, %v1642
        %v1644 = vpop.f32.mrb[0].mxu0
        %1645 = vmatprep.mubr.f32.mxu0 0.0
        %1646 = vmatmul.mubr.f32.gmra.mrb[0].mxu0 %v1499
        %v1647 = vpop.f32.mrb[0].mxu0
        %v1648 = vadd.f32 0.0, %v1647
        %v1649 = vpop.f32.mrb[0].mxu0
        %1650 = vmatprep.mubr.f32.mxu0 0.0
        %1651 = vmatmul.mubr.f32.gmra.mrb[0].mxu0 %v1501
        %v1652 = vpop.f32.mrb[0].mxu0
        %v1653 = vadd.f32 0.0, %v1652
        %v1654 = vpop.f32.mrb[0].mxu0
        %1655 = vmatprep.mubr.f32.mxu0 0.0
        %1656 = vmatmul.mubr.f32.gmra.mrb[0].mxu0 %v1503
        %v1657 = vpop.f32.mrb[0].mxu0
        %v1658 = vadd.f32 0.0, %v1657
        %v1659 = vpop.f32.mrb[0].mxu0
        %1660 = vmatprep.mubr.f32.mxu0 0.0
        %1661 = vmatmul.mubr.f32.gmra.mrb[0].mxu0 %v1505
        %v1662 = vpop.f32.mrb[0].mxu0
        %v1663 = vadd.f32 0.0, %v1662
        %v1664 = vpop.f32.mrb[0].mxu0
        %1665 = vmatprep.mubr.f32.mxu0 0.0
        %1666 = vmatmul.mubr.f32.gmra.mrb[0].mxu0 %v1507
        %v1667 = vpop.f32.mrb[0].mxu0
        %v1668 = vadd.f32 0.0, %v1667
        %v1669 = vpop.f32.mrb[0].mxu0
        %1670 = vmatprep.mubr.f32.mxu0 0.0
        %1671 = vmatmul.mubr.f32.gmra.mrb[0].mxu0 %v1509
        %v1672 = vpop.f32.mrb[0].mxu0
        %v1673 = vadd.f32 0.0, %v1672
        %v1674 = vpop.f32.mrb[0].mxu0
        %1675 = vmatprep.mubr.f32.mxu0 0.0
        %1676 = vmatmul.mubr.f32.gmra.mrb[0].mxu0 %v1511
        %v1677 = vpop.f32.mrb[0].mxu0
        %v1678 = vadd.f32 0.0, %v1677
        %v1679 = vpop.f32.mrb[0].mxu0
        %1680 = vdwg.mxu0
        %v1681 = vadd.f32 %v1391, %v1583
        %v1682 = vadd.f32 %v1392, %v1588
        %v1683 = vadd.f32 %v1393, %v1593
        %v1684 = vadd.f32 %v1394, %v1598
        %v1685 = vadd.f32 %v1395, %v1603
        %v1686 = vadd.f32 %v1396, %v1608
        %v1687 = vadd.f32 %v1397, %v1613
        %v1688 = vadd.f32 %v1398, %v1618
        %v1689 = vadd.f32 %v1399, %v1623
        %v1690 = vadd.f32 %v1400, %v1628
        %v1691 = vadd.f32 %v1401, %v1633
        %v1692 = vadd.f32 %v1402, %v1638
        %v1693 = vadd.f32 %v1403, %v1643
        %v1694 = vadd.f32 %v1404, %v1648
        %v1695 = vadd.f32 %v1405, %v1653
        %v1696 = vadd.f32 %v1406, %v1658
        %v1697 = vadd.f32 %v1407, %v1663
        %v1698 = vadd.f32 %v1408, %v1668
        %v1699 = vadd.f32 %v1409, %v1673
        %v1700 = vadd.f32 %v1410, %v1678
        %v1701 = vrot.slane %v1131, 2
        %v1702 = vrot.slane %v1132, 2
        %v1703 = vsel %vm847, %v1701, %v1702
        %v1704 = vrot.slane %v1133, 2
        %v1705 = vsel %vm847, %v1702, %v1704
        %v1706 = vrot.slane %v1134, 2
        %v1707 = vrot.slane %v1135, 2
        %v1708 = vsel %vm847, %v1706, %v1707
        %v1709 = vrot.slane %v1136, 2
        %v1710 = vsel %vm847, %v1707, %v1709
        %v1711 = vrot.slane %v1137, 2
        %v1712 = vrot.slane %v1138, 2
        %v1713 = vsel %vm847, %v1711, %v1712
        %v1714 = vrot.slane %v1139, 2
        %v1715 = vsel %vm847, %v1712, %v1714
        %v1716 = vrot.slane %v1140, 2
        %v1717 = vrot.slane %v1141, 2
        %v1718 = vsel %vm847, %v1716, %v1717
        %v1719 = vrot.slane %v1142, 2
        %v1720 = vsel %vm847, %v1717, %v1719
        %v1721 = vrot.slane %v1143, 2
        %v1722 = vrot.slane %v1144, 2
        %v1723 = vsel %vm847, %v1721, %v1722
        %v1724 = vrot.slane %v1145, 2
        %v1725 = vsel %vm847, %v1722, %v1724
        %v1726 = vrot.slane %v1146, 2
        %v1727 = vrot.slane %v1147, 2
        %v1728 = vsel %vm847, %v1726, %v1727
        %v1729 = vrot.slane %v1148, 2
        %v1730 = vsel %vm847, %v1727, %v1729
        %v1731 = vrot.slane %v1149, 2
        %v1732 = vrot.slane %v1150, 2
        %v1733 = vsel %vm847, %v1731, %v1732
        %v1734 = vrot.slane %v1151, 2
        %v1735 = vsel %vm847, %v1732, %v1734
        %v1736 = vrot.slane %v1152, 2
        %v1737 = vrot.slane %v1153, 2
        %v1738 = vsel %vm847, %v1736, %v1737
        %v1739 = vrot.slane %v1154, 2
        %v1740 = vsel %vm847, %v1737, %v1739
        %v1741 = vrot.slane %v1155, 2
        %v1742 = vrot.slane %v1156, 2
        %v1743 = vsel %vm847, %v1741, %v1742
        %v1744 = vrot.slane %v1157, 2
        %v1745 = vsel %vm847, %v1742, %v1744
        %v1746 = vrot.slane %v1158, 2
        %v1747 = vrot.slane %v1159, 2
        %v1748 = vsel %vm847, %v1746, %v1747
        %v1749 = vrot.slane %v1160, 2
        %v1750 = vsel %vm847, %v1747, %v1749
        %s1751 = scalar_lea.vmem [#allocation6], 20
        %v1752 = vld [vmem:[%s1751] sm:$0xf]
        %v1753 = vsel %vm429, %v1703, 0
        %v1755 = vsel %vm429, %v1705, 0
        %v1757 = vsel %vm429, %v1708, 0
        %v1759 = vsel %vm429, %v1710, 0
        %v1761 = vsel %vm429, %v1713, 0
        %v1763 = vsel %vm429, %v1715, 0
        %v1765 = vsel %vm429, %v1718, 0
        %v1767 = vsel %vm429, %v1720, 0
        %v1769 = vsel %vm429, %v1723, 0
        %v1771 = vsel %vm429, %v1725, 0
        %v1773 = vsel %vm429, %v1728, 0
        %v1775 = vsel %vm429, %v1730, 0
        %v1777 = vsel %vm429, %v1733, 0
        %v1779 = vsel %vm429, %v1735, 0
        %v1781 = vsel %vm429, %v1738, 0
        %v1783 = vsel %vm429, %v1740, 0
        %v1785 = vsel %vm429, %v1743, 0
        %v1787 = vsel %vm429, %v1745, 0
        %v1789 = vsel %vm429, %v1748, 0
        %v1791 = vsel %vm429, %v1750, 0
        %v1794 = vsel %vm470, %v1752, 0
        %1796 = vmatprep.subr.mxu0 0.0
        %1797 = vmatpush1.msra.mxu0 %v1794
        %1798 = vmatprep.subr.mxu0 0.0
        %1799 = vmatpush1.msra.mxu0 0.0
        %1800 = vmatprep.subr.mxu0 0.0
        %1801 = vmatpush1.msra.mxu0 0.0
        %1802 = vmatprep.subr.mxu0 0.0
        %1803 = vmatpush1.msra.mxu0 0.0
        %1804 = vmatprep.subr.mxu0 0.0
        %1805 = vmatpush1.msra.mxu0 0.0
        %1806 = vmatprep.subr.mxu0 0.0
        %1807 = vmatpush1.msra.mxu0 0.0
        %1808 = vmatprep.subr.mxu0 0.0
        %1809 = vmatpush1.msra.mxu0 0.0
        %1810 = vmatprep.subr.mxu0 0.0
        %1811 = vmatpush1.msra.mxu0 0.0
        %1812 = vmatprep.subr.mxu0 0.0
        %1813 = vmatpush1.msra.mxu0 0.0
        %1814 = vmatprep.subr.mxu0 0.0
        %1815 = vmatpush1.msra.mxu0 0.0
        %1816 = vmatprep.subr.mxu0 0.0
        %1817 = vmatpush1.msra.mxu0 0.0
        %1818 = vmatprep.subr.mxu0 0.0
        %1819 = vmatpush1.msra.mxu0 0.0
        %1820 = vmatprep.subr.mxu0 0.0
        %1821 = vmatpush1.msra.mxu0 0.0
        %1822 = vmatprep.subr.mxu0 0.0
        %1823 = vmatpush1.msra.mxu0 0.0
        %1824 = vmatprep.subr.mxu0 0.0
        %1825 = vmatpush1.msra.mxu0 0.0
        %1826 = vmatprep.subr.mxu0 0.0
        %1827 = vmatpush1.msra.mxu0 0.0
        %1828 = vmatprep.subr.mxu0 0.0
        %1829 = vmatpush1.msra.mxu0 0.0
        %1830 = vmatprep.subr.mxu0 0.0
        %1831 = vmatpush1.msra.mxu0 0.0
        %1832 = vmatprep.subr.mxu0 0.0
        %1833 = vmatpush1.msra.mxu0 0.0
        %1834 = vmatprep.subr.mxu0 0.0
        %1835 = vmatpush1.msra.mxu0 0.0
        %1836 = vmatprep.subr.mxu0 0.0
        %1837 = vmatpush1.msra.mxu0 0.0
        %1838 = vmatprep.subr.mxu0 0.0
        %1839 = vmatpush1.msra.mxu0 0.0
        %1840 = vmatprep.subr.mxu0 0.0
        %1841 = vmatpush1.msra.mxu0 0.0
        %1842 = vmatprep.subr.mxu0 0.0
        %1843 = vmatpush1.msra.mxu0 0.0
        %1844 = vmatprep.subr.mxu0 0.0
        %1845 = vmatpush1.msra.mxu0 0.0
        %1846 = vmatprep.subr.mxu0 0.0
        %1847 = vmatpush1.msra.mxu0 0.0
        %1848 = vmatprep.subr.mxu0 0.0
        %1849 = vmatpush1.msra.mxu0 0.0
        %1850 = vmatprep.subr.mxu0 0.0
        %1851 = vmatpush1.msra.mxu0 0.0
        %1852 = vmatprep.subr.mxu0 0.0
        %1853 = vmatpush1.msra.mxu0 0.0
        %1854 = vmatprep.subr.mxu0 0.0
        %1855 = vmatpush1.msra.mxu0 0.0
        %1856 = vmatprep.subr.mxu0 0.0
        %1857 = vmatpush1.msra.mxu0 0.0
        %1858 = vmatprep.subr.mxu0 0.0
        %1859 = vmatpush1.msra.mxu0 0.0
        %1860 = vmatprep.mubr.f32.mxu0 0.0
        %1861 = vmatmul.mubr.f32.gmra.mrb[0].mxu0 %v1753
        %v1862 = vpop.f32.mrb[0].mxu0
        %v1863 = vadd.f32 0.0, %v1862
        %v1864 = vpop.f32.mrb[0].mxu0
        %1865 = vmatprep.mubr.f32.mxu0 0.0
        %1866 = vmatmul.mubr.f32.gmra.mrb[0].mxu0 %v1755
        %v1867 = vpop.f32.mrb[0].mxu0
        %v1868 = vadd.f32 0.0, %v1867
        %v1869 = vpop.f32.mrb[0].mxu0
        %1870 = vmatprep.mubr.f32.mxu0 0.0
        %1871 = vmatmul.mubr.f32.gmra.mrb[0].mxu0 %v1757
        %v1872 = vpop.f32.mrb[0].mxu0
        %v1873 = vadd.f32 0.0, %v1872
        %v1874 = vpop.f32.mrb[0].mxu0
        %1875 = vmatprep.mubr.f32.mxu0 0.0
        %1876 = vmatmul.mubr.f32.gmra.mrb[0].mxu0 %v1759
        %v1877 = vpop.f32.mrb[0].mxu0
        %v1878 = vadd.f32 0.0, %v1877
        %v1879 = vpop.f32.mrb[0].mxu0
        %1880 = vmatprep.mubr.f32.mxu0 0.0
        %1881 = vmatmul.mubr.f32.gmra.mrb[0].mxu0 %v1761
        %v1882 = vpop.f32.mrb[0].mxu0
        %v1883 = vadd.f32 0.0, %v1882
        %v1884 = vpop.f32.mrb[0].mxu0
        %1885 = vmatprep.mubr.f32.mxu0 0.0
        %1886 = vmatmul.mubr.f32.gmra.mrb[0].mxu0 %v1763
        %v1887 = vpop.f32.mrb[0].mxu0
        %v1888 = vadd.f32 0.0, %v1887
        %v1889 = vpop.f32.mrb[0].mxu0
        %1890 = vmatprep.mubr.f32.mxu0 0.0
        %1891 = vmatmul.mubr.f32.gmra.mrb[0].mxu0 %v1765
        %v1892 = vpop.f32.mrb[0].mxu0
        %v1893 = vadd.f32 0.0, %v1892
        %v1894 = vpop.f32.mrb[0].mxu0
        %1895 = vmatprep.mubr.f32.mxu0 0.0
        %1896 = vmatmul.mubr.f32.gmra.mrb[0].mxu0 %v1767
        %v1897 = vpop.f32.mrb[0].mxu0
        %v1898 = vadd.f32 0.0, %v1897
        %v1899 = vpop.f32.mrb[0].mxu0
        %1900 = vmatprep.mubr.f32.mxu0 0.0
        %1901 = vmatmul.mubr.f32.gmra.mrb[0].mxu0 %v1769
        %v1902 = vpop.f32.mrb[0].mxu0
        %v1903 = vadd.f32 0.0, %v1902
        %v1904 = vpop.f32.mrb[0].mxu0
        %1905 = vmatprep.mubr.f32.mxu0 0.0
        %1906 = vmatmul.mubr.f32.gmra.mrb[0].mxu0 %v1771
        %v1907 = vpop.f32.mrb[0].mxu0
        %v1908 = vadd.f32 0.0, %v1907
        %v1909 = vpop.f32.mrb[0].mxu0
        %1910 = vmatprep.mubr.f32.mxu0 0.0
        %1911 = vmatmul.mubr.f32.gmra.mrb[0].mxu0 %v1773
        %v1912 = vpop.f32.mrb[0].mxu0
        %v1913 = vadd.f32 0.0, %v1912
        %v1914 = vpop.f32.mrb[0].mxu0
        %1915 = vmatprep.mubr.f32.mxu0 0.0
        %1916 = vmatmul.mubr.f32.gmra.mrb[0].mxu0 %v1775
        %v1917 = vpop.f32.mrb[0].mxu0
        %v1918 = vadd.f32 0.0, %v1917
        %v1919 = vpop.f32.mrb[0].mxu0
        %1920 = vmatprep.mubr.f32.mxu0 0.0
        %1921 = vmatmul.mubr.f32.gmra.mrb[0].mxu0 %v1777
        %v1922 = vpop.f32.mrb[0].mxu0
        %v1923 = vadd.f32 0.0, %v1922
        %v1924 = vpop.f32.mrb[0].mxu0
        %1925 = vmatprep.mubr.f32.mxu0 0.0
        %1926 = vmatmul.mubr.f32.gmra.mrb[0].mxu0 %v1779
        %v1927 = vpop.f32.mrb[0].mxu0
        %v1928 = vadd.f32 0.0, %v1927
        %v1929 = vpop.f32.mrb[0].mxu0
        %1930 = vmatprep.mubr.f32.mxu0 0.0
        %1931 = vmatmul.mubr.f32.gmra.mrb[0].mxu0 %v1781
        %v1932 = vpop.f32.mrb[0].mxu0
        %v1933 = vadd.f32 0.0, %v1932
        %v1934 = vpop.f32.mrb[0].mxu0
        %1935 = vmatprep.mubr.f32.mxu0 0.0
        %1936 = vmatmul.mubr.f32.gmra.mrb[0].mxu0 %v1783
        %v1937 = vpop.f32.mrb[0].mxu0
        %v1938 = vadd.f32 0.0, %v1937
        %v1939 = vpop.f32.mrb[0].mxu0
        %1940 = vmatprep.mubr.f32.mxu0 0.0
        %1941 = vmatmul.mubr.f32.gmra.mrb[0].mxu0 %v1785
        %v1942 = vpop.f32.mrb[0].mxu0
        %v1943 = vadd.f32 0.0, %v1942
        %v1944 = vpop.f32.mrb[0].mxu0
        %1945 = vmatprep.mubr.f32.mxu0 0.0
        %1946 = vmatmul.mubr.f32.gmra.mrb[0].mxu0 %v1787
        %v1947 = vpop.f32.mrb[0].mxu0
        %v1948 = vadd.f32 0.0, %v1947
        %v1949 = vpop.f32.mrb[0].mxu0
        %1950 = vmatprep.mubr.f32.mxu0 0.0
        %1951 = vmatmul.mubr.f32.gmra.mrb[0].mxu0 %v1789
        %v1952 = vpop.f32.mrb[0].mxu0
        %v1953 = vadd.f32 0.0, %v1952
        %v1954 = vpop.f32.mrb[0].mxu0
        %1955 = vmatprep.mubr.f32.mxu0 0.0
        %1956 = vmatmul.mubr.f32.gmra.mrb[0].mxu0 %v1791
        %v1957 = vpop.f32.mrb[0].mxu0
        %v1958 = vadd.f32 0.0, %v1957
        %v1959 = vpop.f32.mrb[0].mxu0
        %1960 = vdwg.mxu0
        %v1961 = vadd.f32 %v1681, %v1863
        %v1962 = vadd.f32 %v1682, %v1868
        %v1963 = vadd.f32 %v1683, %v1873
        %v1964 = vadd.f32 %v1684, %v1878
        %v1965 = vadd.f32 %v1685, %v1883
        %v1966 = vadd.f32 %v1686, %v1888
        %v1967 = vadd.f32 %v1687, %v1893
        %v1968 = vadd.f32 %v1688, %v1898
        %v1969 = vadd.f32 %v1689, %v1903
        %v1970 = vadd.f32 %v1690, %v1908
        %v1971 = vadd.f32 %v1691, %v1913
        %v1972 = vadd.f32 %v1692, %v1918
        %v1973 = vadd.f32 %v1693, %v1923
        %v1974 = vadd.f32 %v1694, %v1928
        %v1975 = vadd.f32 %v1695, %v1933
        %v1976 = vadd.f32 %v1696, %v1938
        %v1977 = vadd.f32 %v1697, %v1943
        %v1978 = vadd.f32 %v1698, %v1948
        %v1979 = vadd.f32 %v1699, %v1953
        %v1980 = vadd.f32 %v1700, %v1958
        %s1981 = sadd.s32 %s312, 2
        %s1982 = smul.u32 %s1981, 24
        %s1983 = scalar_lea.vmem %s268, %s1982 [#allocation3]
        %v1984 = vld [vmem:[%s1983] sm:$0xff]
        %v1985 = vld [vmem:[%s1983 + $0x8] sm:$0xff]
        %v1986 = vld [vmem:[%s1983 + $0x10] sm:$0x3]
        %v1987 = vld [vmem:[%s1983 + $0x18] sm:$0xff]
        %v1988 = vld [vmem:[%s1983 + $0x20] sm:$0xff]
        %v1989 = vld [vmem:[%s1983 + $0x28] sm:$0x3]
        %v1990 = vld [vmem:[%s1983 + $0x30] sm:$0xff]
        %v1991 = vld [vmem:[%s1983 + $0x38] sm:$0xff]
        %v1992 = vld [vmem:[%s1983 + $0x40] sm:$0x3]
        %v1993 = vld [vmem:[%s1983 + $0x48] sm:$0xff]
        %v1994 = vld [vmem:[%s1983 + $0x50] sm:$0xff]
        %v1995 = vld [vmem:[%s1983 + $0x58] sm:$0x3]
        %v1996 = vld [vmem:[%s1983 + $0x60] sm:$0xff]
        %v1997 = vld [vmem:[%s1983 + $0x68] sm:$0xff]
        %v1998 = vld [vmem:[%s1983 + $0x70] sm:$0x3]
        %v1999 = vld [vmem:[%s1983 + $0x78] sm:$0xff]
        %v2000 = vld [vmem:[%s1983 + $0x80] sm:$0xff]
        %v2001 = vld [vmem:[%s1983 + $0x88] sm:$0x3]
        %v2002 = vld [vmem:[%s1983 + $0x90] sm:$0xff]
        %v2003 = vld [vmem:[%s1983 + $0x98] sm:$0xff]
        %v2004 = vld [vmem:[%s1983 + $0xa0] sm:$0x3]
        %v2005 = vld [vmem:[%s1983 + $0xa8] sm:$0xff]
        %v2006 = vld [vmem:[%s1983 + $0xb0] sm:$0xff]
        %v2007 = vld [vmem:[%s1983 + $0xb8] sm:$0x3]
        %v2008 = vld [vmem:[%s1983 + $0xc0] sm:$0xff]
        %v2009 = vld [vmem:[%s1983 + $0xc8] sm:$0xff]
        %v2010 = vld [vmem:[%s1983 + $0xd0] sm:$0x3]
        %v2011 = vld [vmem:[%s1983 + $0xd8] sm:$0xff]
        %v2012 = vld [vmem:[%s1983 + $0xe0] sm:$0xff]
        %v2013 = vld [vmem:[%s1983 + $0xe8] sm:$0x3]
        %s2014 = scalar_lea.vmem [#allocation6], 24
        %v2015 = vld [vmem:[%s2014] sm:$0xf]
        %v2017 = vsel %vm429, %v1984, 0
        %v2020 = vsel %vm429, %v1985, 0
        %v2023 = vsel %vm429, %v1987, 0
        %v2026 = vsel %vm429, %v1988, 0
        %v2029 = vsel %vm429, %v1990, 0
        %v2032 = vsel %vm429, %v1991, 0
        %v2035 = vsel %vm429, %v1993, 0
        %v2038 = vsel %vm429, %v1994, 0
        %v2041 = vsel %vm429, %v1996, 0
        %v2044 = vsel %vm429, %v1997, 0
        %v2047 = vsel %vm429, %v1999, 0
        %v2050 = vsel %vm429, %v2000, 0
        %v2053 = vsel %vm429, %v2002, 0
        %v2056 = vsel %vm429, %v2003, 0
        %v2059 = vsel %vm429, %v2005, 0
        %v2062 = vsel %vm429, %v2006, 0
        %v2065 = vsel %vm429, %v2008, 0
        %v2068 = vsel %vm429, %v2009, 0
        %v2071 = vsel %vm429, %v2011, 0
        %v2074 = vsel %vm429, %v2012, 0
        %v2077 = vsel %vm470, %v2015, 0
        %2079 = vmatprep.subr.mxu0 0.0
        %2080 = vmatpush1.msra.mxu0 %v2077
        %2081 = vmatprep.subr.mxu0 0.0
        %2082 = vmatpush1.msra.mxu0 0.0
        %2083 = vmatprep.subr.mxu0 0.0
        %2084 = vmatpush1.msra.mxu0 0.0
        %2085 = vmatprep.subr.mxu0 0.0
        %2086 = vmatpush1.msra.mxu0 0.0
        %2087 = vmatprep.subr.mxu0 0.0
        %2088 = vmatpush1.msra.mxu0 0.0
        %2089 = vmatprep.subr.mxu0 0.0
        %2090 = vmatpush1.msra.mxu0 0.0
        %2091 = vmatprep.subr.mxu0 0.0
        %2092 = vmatpush1.msra.mxu0 0.0
        %2093 = vmatprep.subr.mxu0 0.0
        %2094 = vmatpush1.msra.mxu0 0.0
        %2095 = vmatprep.subr.mxu0 0.0
        %2096 = vmatpush1.msra.mxu0 0.0
        %2097 = vmatprep.subr.mxu0 0.0
        %2098 = vmatpush1.msra.mxu0 0.0
        %2099 = vmatprep.subr.mxu0 0.0
        %2100 = vmatpush1.msra.mxu0 0.0
        %2101 = vmatprep.subr.mxu0 0.0
        %2102 = vmatpush1.msra.mxu0 0.0
        %2103 = vmatprep.subr.mxu0 0.0
        %2104 = vmatpush1.msra.mxu0 0.0
        %2105 = vmatprep.subr.mxu0 0.0
        %2106 = vmatpush1.msra.mxu0 0.0
        %2107 = vmatprep.subr.mxu0 0.0
        %2108 = vmatpush1.msra.mxu0 0.0
        %2109 = vmatprep.subr.mxu0 0.0
        %2110 = vmatpush1.msra.mxu0 0.0
        %2111 = vmatprep.subr.mxu0 0.0
        %2112 = vmatpush1.msra.mxu0 0.0
        %2113 = vmatprep.subr.mxu0 0.0
        %2114 = vmatpush1.msra.mxu0 0.0
        %2115 = vmatprep.subr.mxu0 0.0
        %2116 = vmatpush1.msra.mxu0 0.0
        %2117 = vmatprep.subr.mxu0 0.0
        %2118 = vmatpush1.msra.mxu0 0.0
        %2119 = vmatprep.subr.mxu0 0.0
        %2120 = vmatpush1.msra.mxu0 0.0
        %2121 = vmatprep.subr.mxu0 0.0
        %2122 = vmatpush1.msra.mxu0 0.0
        %2123 = vmatprep.subr.mxu0 0.0
        %2124 = vmatpush1.msra.mxu0 0.0
        %2125 = vmatprep.subr.mxu0 0.0
        %2126 = vmatpush1.msra.mxu0 0.0
        %2127 = vmatprep.subr.mxu0 0.0
        %2128 = vmatpush1.msra.mxu0 0.0
        %2129 = vmatprep.subr.mxu0 0.0
        %2130 = vmatpush1.msra.mxu0 0.0
        %2131 = vmatprep.subr.mxu0 0.0
        %2132 = vmatpush1.msra.mxu0 0.0
        %2133 = vmatprep.subr.mxu0 0.0
        %2134 = vmatpush1.msra.mxu0 0.0
        %2135 = vmatprep.subr.mxu0 0.0
        %2136 = vmatpush1.msra.mxu0 0.0
        %2137 = vmatprep.subr.mxu0 0.0
        %2138 = vmatpush1.msra.mxu0 0.0
        %2139 = vmatprep.subr.mxu0 0.0
        %2140 = vmatpush1.msra.mxu0 0.0
        %2141 = vmatprep.subr.mxu0 0.0
        %2142 = vmatpush1.msra.mxu0 0.0
        %2143 = vmatprep.mubr.f32.mxu0 0.0
        %2144 = vmatmul.mubr.f32.gmra.mrb[0].mxu0 %v2017
        %v2145 = vpop.f32.mrb[0].mxu0
        %v2146 = vadd.f32 0.0, %v2145
        %v2147 = vpop.f32.mrb[0].mxu0
        %2148 = vmatprep.mubr.f32.mxu0 0.0
        %2149 = vmatmul.mubr.f32.gmra.mrb[0].mxu0 %v2020
        %v2150 = vpop.f32.mrb[0].mxu0
        %v2151 = vadd.f32 0.0, %v2150
        %v2152 = vpop.f32.mrb[0].mxu0
        %2153 = vmatprep.mubr.f32.mxu0 0.0
        %2154 = vmatmul.mubr.f32.gmra.mrb[0].mxu0 %v2023
        %v2155 = vpop.f32.mrb[0].mxu0
        %v2156 = vadd.f32 0.0, %v2155
        %v2157 = vpop.f32.mrb[0].mxu0
        %2158 = vmatprep.mubr.f32.mxu0 0.0
        %2159 = vmatmul.mubr.f32.gmra.mrb[0].mxu0 %v2026
        %v2160 = vpop.f32.mrb[0].mxu0
        %v2161 = vadd.f32 0.0, %v2160
        %v2162 = vpop.f32.mrb[0].mxu0
        %2163 = vmatprep.mubr.f32.mxu0 0.0
        %2164 = vmatmul.mubr.f32.gmra.mrb[0].mxu0 %v2029
        %v2165 = vpop.f32.mrb[0].mxu0
        %v2166 = vadd.f32 0.0, %v2165
        %v2167 = vpop.f32.mrb[0].mxu0
        %2168 = vmatprep.mubr.f32.mxu0 0.0
        %2169 = vmatmul.mubr.f32.gmra.mrb[0].mxu0 %v2032
        %v2170 = vpop.f32.mrb[0].mxu0
        %v2171 = vadd.f32 0.0, %v2170
        %v2172 = vpop.f32.mrb[0].mxu0
        %2173 = vmatprep.mubr.f32.mxu0 0.0
        %2174 = vmatmul.mubr.f32.gmra.mrb[0].mxu0 %v2035
        %v2175 = vpop.f32.mrb[0].mxu0
        %v2176 = vadd.f32 0.0, %v2175
        %v2177 = vpop.f32.mrb[0].mxu0
        %2178 = vmatprep.mubr.f32.mxu0 0.0
        %2179 = vmatmul.mubr.f32.gmra.mrb[0].mxu0 %v2038
        %v2180 = vpop.f32.mrb[0].mxu0
        %v2181 = vadd.f32 0.0, %v2180
        %v2182 = vpop.f32.mrb[0].mxu0
        %2183 = vmatprep.mubr.f32.mxu0 0.0
        %2184 = vmatmul.mubr.f32.gmra.mrb[0].mxu0 %v2041
        %v2185 = vpop.f32.mrb[0].mxu0
        %v2186 = vadd.f32 0.0, %v2185
        %v2187 = vpop.f32.mrb[0].mxu0
        %2188 = vmatprep.mubr.f32.mxu0 0.0
        %2189 = vmatmul.mubr.f32.gmra.mrb[0].mxu0 %v2044
        %v2190 = vpop.f32.mrb[0].mxu0
        %v2191 = vadd.f32 0.0, %v2190
        %v2192 = vpop.f32.mrb[0].mxu0
        %2193 = vmatprep.mubr.f32.mxu0 0.0
        %2194 = vmatmul.mubr.f32.gmra.mrb[0].mxu0 %v2047
        %v2195 = vpop.f32.mrb[0].mxu0
        %v2196 = vadd.f32 0.0, %v2195
        %v2197 = vpop.f32.mrb[0].mxu0
        %2198 = vmatprep.mubr.f32.mxu0 0.0
        %2199 = vmatmul.mubr.f32.gmra.mrb[0].mxu0 %v2050
        %v2200 = vpop.f32.mrb[0].mxu0
        %v2201 = vadd.f32 0.0, %v2200
        %v2202 = vpop.f32.mrb[0].mxu0
        %2203 = vmatprep.mubr.f32.mxu0 0.0
        %2204 = vmatmul.mubr.f32.gmra.mrb[0].mxu0 %v2053
        %v2205 = vpop.f32.mrb[0].mxu0
        %v2206 = vadd.f32 0.0, %v2205
        %v2207 = vpop.f32.mrb[0].mxu0
        %2208 = vmatprep.mubr.f32.mxu0 0.0
        %2209 = vmatmul.mubr.f32.gmra.mrb[0].mxu0 %v2056
        %v2210 = vpop.f32.mrb[0].mxu0
        %v2211 = vadd.f32 0.0, %v2210
        %v2212 = vpop.f32.mrb[0].mxu0
        %2213 = vmatprep.mubr.f32.mxu0 0.0
        %2214 = vmatmul.mubr.f32.gmra.mrb[0].mxu0 %v2059
        %v2215 = vpop.f32.mrb[0].mxu0
        %v2216 = vadd.f32 0.0, %v2215
        %v2217 = vpop.f32.mrb[0].mxu0
        %2218 = vmatprep.mubr.f32.mxu0 0.0
        %2219 = vmatmul.mubr.f32.gmra.mrb[0].mxu0 %v2062
        %v2220 = vpop.f32.mrb[0].mxu0
        %v2221 = vadd.f32 0.0, %v2220
        %v2222 = vpop.f32.mrb[0].mxu0
        %2223 = vmatprep.mubr.f32.mxu0 0.0
        %2224 = vmatmul.mubr.f32.gmra.mrb[0].mxu0 %v2065
        %v2225 = vpop.f32.mrb[0].mxu0
        %v2226 = vadd.f32 0.0, %v2225
        %v2227 = vpop.f32.mrb[0].mxu0
        %2228 = vmatprep.mubr.f32.mxu0 0.0
        %2229 = vmatmul.mubr.f32.gmra.mrb[0].mxu0 %v2068
        %v2230 = vpop.f32.mrb[0].mxu0
        %v2231 = vadd.f32 0.0, %v2230
        %v2232 = vpop.f32.mrb[0].mxu0
        %2233 = vmatprep.mubr.f32.mxu0 0.0
        %2234 = vmatmul.mubr.f32.gmra.mrb[0].mxu0 %v2071
        %v2235 = vpop.f32.mrb[0].mxu0
        %v2236 = vadd.f32 0.0, %v2235
        %v2237 = vpop.f32.mrb[0].mxu0
        %2238 = vmatprep.mubr.f32.mxu0 0.0
        %2239 = vmatmul.mubr.f32.gmra.mrb[0].mxu0 %v2074
        %v2240 = vpop.f32.mrb[0].mxu0
        %v2241 = vadd.f32 0.0, %v2240
        %v2242 = vpop.f32.mrb[0].mxu0
        %2243 = vdwg.mxu0
        %v2244 = vadd.f32 %v1961, %v2146
        %v2245 = vadd.f32 %v1962, %v2151
        %v2246 = vadd.f32 %v1963, %v2156
        %v2247 = vadd.f32 %v1964, %v2161
        %v2248 = vadd.f32 %v1965, %v2166
        %v2249 = vadd.f32 %v1966, %v2171
        %v2250 = vadd.f32 %v1967, %v2176
        %v2251 = vadd.f32 %v1968, %v2181
        %v2252 = vadd.f32 %v1969, %v2186
        %v2253 = vadd.f32 %v1970, %v2191
        %v2254 = vadd.f32 %v1971, %v2196
        %v2255 = vadd.f32 %v1972, %v2201
        %v2256 = vadd.f32 %v1973, %v2206
        %v2257 = vadd.f32 %v1974, %v2211
        %v2258 = vadd.f32 %v1975, %v2216
        %v2259 = vadd.f32 %v1976, %v2221
        %v2260 = vadd.f32 %v1977, %v2226
        %v2261 = vadd.f32 %v1978, %v2231
        %v2262 = vadd.f32 %v1979, %v2236
        %v2263 = vadd.f32 %v1980, %v2241
        %v2274 = vrot.slane %v1984, 1
        %v2275 = vrot.slane %v1985, 1
        %v2276 = vsel %vm376, %v2274, %v2275
        %v2277 = vrot.slane %v1986, 1
        %v2278 = vsel %vm376, %v2275, %v2277
        %v2279 = vrot.slane %v1987, 1
        %v2280 = vrot.slane %v1988, 1
        %v2281 = vsel %vm376, %v2279, %v2280
        %v2282 = vrot.slane %v1989, 1
        %v2283 = vsel %vm376, %v2280, %v2282
        %v2284 = vrot.slane %v1990, 1
        %v2285 = vrot.slane %v1991, 1
        %v2286 = vsel %vm376, %v2284, %v2285
        %v2287 = vrot.slane %v1992, 1
        %v2288 = vsel %vm376, %v2285, %v2287
        %v2289 = vrot.slane %v1993, 1
        %v2290 = vrot.slane %v1994, 1
        %v2291 = vsel %vm376, %v2289, %v2290
        %v2292 = vrot.slane %v1995, 1
        %v2293 = vsel %vm376, %v2290, %v2292
        %v2294 = vrot.slane %v1996, 1
        %v2295 = vrot.slane %v1997, 1
        %v2296 = vsel %vm376, %v2294, %v2295
        %v2297 = vrot.slane %v1998, 1
        %v2298 = vsel %vm376, %v2295, %v2297
        %v2299 = vrot.slane %v1999, 1
        %v2300 = vrot.slane %v2000, 1
        %v2301 = vsel %vm376, %v2299, %v2300
        %v2302 = vrot.slane %v2001, 1
        %v2303 = vsel %vm376, %v2300, %v2302
        %v2304 = vrot.slane %v2002, 1
        %v2305 = vrot.slane %v2003, 1
        %v2306 = vsel %vm376, %v2304, %v2305
        %v2307 = vrot.slane %v2004, 1
        %v2308 = vsel %vm376, %v2305, %v2307
        %v2309 = vrot.slane %v2005, 1
        %v2310 = vrot.slane %v2006, 1
        %v2311 = vsel %vm376, %v2309, %v2310
        %v2312 = vrot.slane %v2007, 1
        %v2313 = vsel %vm376, %v2310, %v2312
        %v2314 = vrot.slane %v2008, 1
        %v2315 = vrot.slane %v2009, 1
        %v2316 = vsel %vm376, %v2314, %v2315
        %v2317 = vrot.slane %v2010, 1
        %v2318 = vsel %vm376, %v2315, %v2317
        %v2319 = vrot.slane %v2011, 1
        %v2320 = vrot.slane %v2012, 1
        %v2321 = vsel %vm376, %v2319, %v2320
        %v2322 = vrot.slane %v2013, 1
        %v2323 = vsel %vm376, %v2320, %v2322
        %s2324 = scalar_lea.vmem [#allocation6], 28
        %v2325 = vld [vmem:[%s2324] sm:$0xf]
        %v2326 = vsel %vm429, %v2276, 0
        %v2328 = vsel %vm429, %v2278, 0
        %v2330 = vsel %vm429, %v2281, 0
        %v2332 = vsel %vm429, %v2283, 0
        %v2334 = vsel %vm429, %v2286, 0
        %v2336 = vsel %vm429, %v2288, 0
        %v2338 = vsel %vm429, %v2291, 0
        %v2340 = vsel %vm429, %v2293, 0
        %v2342 = vsel %vm429, %v2296, 0
        %v2344 = vsel %vm429, %v2298, 0
        %v2346 = vsel %vm429, %v2301, 0
        %v2348 = vsel %vm429, %v2303, 0
        %v2350 = vsel %vm429, %v2306, 0
        %v2352 = vsel %vm429, %v2308, 0
        %v2354 = vsel %vm429, %v2311, 0
        %v2356 = vsel %vm429, %v2313, 0
        %v2358 = vsel %vm429, %v2316, 0
        %v2360 = vsel %vm429, %v2318, 0
        %v2362 = vsel %vm429, %v2321, 0
        %v2364 = vsel %vm429, %v2323, 0
        %v2367 = vsel %vm470, %v2325, 0
        %2369 = vmatprep.subr.mxu0 0.0
        %2370 = vmatpush1.msra.mxu0 %v2367
        %2371 = vmatprep.subr.mxu0 0.0
        %2372 = vmatpush1.msra.mxu0 0.0
        %2373 = vmatprep.subr.mxu0 0.0
        %2374 = vmatpush1.msra.mxu0 0.0
        %2375 = vmatprep.subr.mxu0 0.0
        %2376 = vmatpush1.msra.mxu0 0.0
        %2377 = vmatprep.subr.mxu0 0.0
        %2378 = vmatpush1.msra.mxu0 0.0
        %2379 = vmatprep.subr.mxu0 0.0
        %2380 = vmatpush1.msra.mxu0 0.0
        %2381 = vmatprep.subr.mxu0 0.0
        %2382 = vmatpush1.msra.mxu0 0.0
        %2383 = vmatprep.subr.mxu0 0.0
        %2384 = vmatpush1.msra.mxu0 0.0
        %2385 = vmatprep.subr.mxu0 0.0
        %2386 = vmatpush1.msra.mxu0 0.0
        %2387 = vmatprep.subr.mxu0 0.0
        %2388 = vmatpush1.msra.mxu0 0.0
        %2389 = vmatprep.subr.mxu0 0.0
        %2390 = vmatpush1.msra.mxu0 0.0
        %2391 = vmatprep.subr.mxu0 0.0
        %2392 = vmatpush1.msra.mxu0 0.0
        %2393 = vmatprep.subr.mxu0 0.0
        %2394 = vmatpush1.msra.mxu0 0.0
        %2395 = vmatprep.subr.mxu0 0.0
        %2396 = vmatpush1.msra.mxu0 0.0
        %2397 = vmatprep.subr.mxu0 0.0
        %2398 = vmatpush1.msra.mxu0 0.0
        %2399 = vmatprep.subr.mxu0 0.0
        %2400 = vmatpush1.msra.mxu0 0.0
        %2401 = vmatprep.subr.mxu0 0.0
        %2402 = vmatpush1.msra.mxu0 0.0
        %2403 = vmatprep.subr.mxu0 0.0
        %2404 = vmatpush1.msra.mxu0 0.0
        %2405 = vmatprep.subr.mxu0 0.0
        %2406 = vmatpush1.msra.mxu0 0.0
        %2407 = vmatprep.subr.mxu0 0.0
        %2408 = vmatpush1.msra.mxu0 0.0
        %2409 = vmatprep.subr.mxu0 0.0
        %2410 = vmatpush1.msra.mxu0 0.0
        %2411 = vmatprep.subr.mxu0 0.0
        %2412 = vmatpush1.msra.mxu0 0.0
        %2413 = vmatprep.subr.mxu0 0.0
        %2414 = vmatpush1.msra.mxu0 0.0
        %2415 = vmatprep.subr.mxu0 0.0
        %2416 = vmatpush1.msra.mxu0 0.0
        %2417 = vmatprep.subr.mxu0 0.0
        %2418 = vmatpush1.msra.mxu0 0.0
        %2419 = vmatprep.subr.mxu0 0.0
        %2420 = vmatpush1.msra.mxu0 0.0
        %2421 = vmatprep.subr.mxu0 0.0
        %2422 = vmatpush1.msra.mxu0 0.0
        %2423 = vmatprep.subr.mxu0 0.0
        %2424 = vmatpush1.msra.mxu0 0.0
        %2425 = vmatprep.subr.mxu0 0.0
        %2426 = vmatpush1.msra.mxu0 0.0
        %2427 = vmatprep.subr.mxu0 0.0
        %2428 = vmatpush1.msra.mxu0 0.0
        %2429 = vmatprep.subr.mxu0 0.0
        %2430 = vmatpush1.msra.mxu0 0.0
        %2431 = vmatprep.subr.mxu0 0.0
        %2432 = vmatpush1.msra.mxu0 0.0
        %2433 = vmatprep.mubr.f32.mxu0 0.0
        %2434 = vmatmul.mubr.f32.gmra.mrb[0].mxu0 %v2326
        %v2435 = vpop.f32.mrb[0].mxu0
        %v2436 = vadd.f32 0.0, %v2435
        %v2437 = vpop.f32.mrb[0].mxu0
        %2438 = vmatprep.mubr.f32.mxu0 0.0
        %2439 = vmatmul.mubr.f32.gmra.mrb[0].mxu0 %v2328
        %v2440 = vpop.f32.mrb[0].mxu0
        %v2441 = vadd.f32 0.0, %v2440
        %v2442 = vpop.f32.mrb[0].mxu0
        %2443 = vmatprep.mubr.f32.mxu0 0.0
        %2444 = vmatmul.mubr.f32.gmra.mrb[0].mxu0 %v2330
        %v2445 = vpop.f32.mrb[0].mxu0
        %v2446 = vadd.f32 0.0, %v2445
        %v2447 = vpop.f32.mrb[0].mxu0
        %2448 = vmatprep.mubr.f32.mxu0 0.0
        %2449 = vmatmul.mubr.f32.gmra.mrb[0].mxu0 %v2332
        %v2450 = vpop.f32.mrb[0].mxu0
        %v2451 = vadd.f32 0.0, %v2450
        %v2452 = vpop.f32.mrb[0].mxu0
        %2453 = vmatprep.mubr.f32.mxu0 0.0
        %2454 = vmatmul.mubr.f32.gmra.mrb[0].mxu0 %v2334
        %v2455 = vpop.f32.mrb[0].mxu0
        %v2456 = vadd.f32 0.0, %v2455
        %v2457 = vpop.f32.mrb[0].mxu0
        %2458 = vmatprep.mubr.f32.mxu0 0.0
        %2459 = vmatmul.mubr.f32.gmra.mrb[0].mxu0 %v2336
        %v2460 = vpop.f32.mrb[0].mxu0
        %v2461 = vadd.f32 0.0, %v2460
        %v2462 = vpop.f32.mrb[0].mxu0
        %2463 = vmatprep.mubr.f32.mxu0 0.0
        %2464 = vmatmul.mubr.f32.gmra.mrb[0].mxu0 %v2338
        %v2465 = vpop.f32.mrb[0].mxu0
        %v2466 = vadd.f32 0.0, %v2465
        %v2467 = vpop.f32.mrb[0].mxu0
        %2468 = vmatprep.mubr.f32.mxu0 0.0
        %2469 = vmatmul.mubr.f32.gmra.mrb[0].mxu0 %v2340
        %v2470 = vpop.f32.mrb[0].mxu0
        %v2471 = vadd.f32 0.0, %v2470
        %v2472 = vpop.f32.mrb[0].mxu0
        %2473 = vmatprep.mubr.f32.mxu0 0.0
        %2474 = vmatmul.mubr.f32.gmra.mrb[0].mxu0 %v2342
        %v2475 = vpop.f32.mrb[0].mxu0
        %v2476 = vadd.f32 0.0, %v2475
        %v2477 = vpop.f32.mrb[0].mxu0
        %2478 = vmatprep.mubr.f32.mxu0 0.0
        %2479 = vmatmul.mubr.f32.gmra.mrb[0].mxu0 %v2344
        %v2480 = vpop.f32.mrb[0].mxu0
        %v2481 = vadd.f32 0.0, %v2480
        %v2482 = vpop.f32.mrb[0].mxu0
        %2483 = vmatprep.mubr.f32.mxu0 0.0
        %2484 = vmatmul.mubr.f32.gmra.mrb[0].mxu0 %v2346
        %v2485 = vpop.f32.mrb[0].mxu0
        %v2486 = vadd.f32 0.0, %v2485
        %v2487 = vpop.f32.mrb[0].mxu0
        %2488 = vmatprep.mubr.f32.mxu0 0.0
        %2489 = vmatmul.mubr.f32.gmra.mrb[0].mxu0 %v2348
        %v2490 = vpop.f32.mrb[0].mxu0
        %v2491 = vadd.f32 0.0, %v2490
        %v2492 = vpop.f32.mrb[0].mxu0
        %2493 = vmatprep.mubr.f32.mxu0 0.0
        %2494 = vmatmul.mubr.f32.gmra.mrb[0].mxu0 %v2350
        %v2495 = vpop.f32.mrb[0].mxu0
        %v2496 = vadd.f32 0.0, %v2495
        %v2497 = vpop.f32.mrb[0].mxu0
        %2498 = vmatprep.mubr.f32.mxu0 0.0
        %2499 = vmatmul.mubr.f32.gmra.mrb[0].mxu0 %v2352
        %v2500 = vpop.f32.mrb[0].mxu0
        %v2501 = vadd.f32 0.0, %v2500
        %v2502 = vpop.f32.mrb[0].mxu0
        %2503 = vmatprep.mubr.f32.mxu0 0.0
        %2504 = vmatmul.mubr.f32.gmra.mrb[0].mxu0 %v2354
        %v2505 = vpop.f32.mrb[0].mxu0
        %v2506 = vadd.f32 0.0, %v2505
        %v2507 = vpop.f32.mrb[0].mxu0
        %2508 = vmatprep.mubr.f32.mxu0 0.0
        %2509 = vmatmul.mubr.f32.gmra.mrb[0].mxu0 %v2356
        %v2510 = vpop.f32.mrb[0].mxu0
        %v2511 = vadd.f32 0.0, %v2510
        %v2512 = vpop.f32.mrb[0].mxu0
        %2513 = vmatprep.mubr.f32.mxu0 0.0
        %2514 = vmatmul.mubr.f32.gmra.mrb[0].mxu0 %v2358
        %v2515 = vpop.f32.mrb[0].mxu0
        %v2516 = vadd.f32 0.0, %v2515
        %v2517 = vpop.f32.mrb[0].mxu0
        %2518 = vmatprep.mubr.f32.mxu0 0.0
        %2519 = vmatmul.mubr.f32.gmra.mrb[0].mxu0 %v2360
        %v2520 = vpop.f32.mrb[0].mxu0
        %v2521 = vadd.f32 0.0, %v2520
        %v2522 = vpop.f32.mrb[0].mxu0
        %2523 = vmatprep.mubr.f32.mxu0 0.0
        %2524 = vmatmul.mubr.f32.gmra.mrb[0].mxu0 %v2362
        %v2525 = vpop.f32.mrb[0].mxu0
        %v2526 = vadd.f32 0.0, %v2525
        %v2527 = vpop.f32.mrb[0].mxu0
        %2528 = vmatprep.mubr.f32.mxu0 0.0
        %2529 = vmatmul.mubr.f32.gmra.mrb[0].mxu0 %v2364
        %v2530 = vpop.f32.mrb[0].mxu0
        %v2531 = vadd.f32 0.0, %v2530
        %v2532 = vpop.f32.mrb[0].mxu0
        %2533 = vdwg.mxu0
        %v2534 = vadd.f32 %v2244, %v2436
        %v2535 = vadd.f32 %v2245, %v2441
        %v2536 = vadd.f32 %v2246, %v2446
        %v2537 = vadd.f32 %v2247, %v2451
        %v2538 = vadd.f32 %v2248, %v2456
        %v2539 = vadd.f32 %v2249, %v2461
        %v2540 = vadd.f32 %v2250, %v2466
        %v2541 = vadd.f32 %v2251, %v2471
        %v2542 = vadd.f32 %v2252, %v2476
        %v2543 = vadd.f32 %v2253, %v2481
        %v2544 = vadd.f32 %v2254, %v2486
        %v2545 = vadd.f32 %v2255, %v2491
        %v2546 = vadd.f32 %v2256, %v2496
        %v2547 = vadd.f32 %v2257, %v2501
        %v2548 = vadd.f32 %v2258, %v2506
        %v2549 = vadd.f32 %v2259, %v2511
        %v2550 = vadd.f32 %v2260, %v2516
        %v2551 = vadd.f32 %v2261, %v2521
        %v2552 = vadd.f32 %v2262, %v2526
        %v2553 = vadd.f32 %v2263, %v2531
        %v2554 = vrot.slane %v1984, 2
        %v2555 = vrot.slane %v1985, 2
        %v2556 = vsel %vm847, %v2554, %v2555
        %v2557 = vrot.slane %v1986, 2
        %v2558 = vsel %vm847, %v2555, %v2557
        %v2559 = vrot.slane %v1987, 2
        %v2560 = vrot.slane %v1988, 2
        %v2561 = vsel %vm847, %v2559, %v2560
        %v2562 = vrot.slane %v1989, 2
        %v2563 = vsel %vm847, %v2560, %v2562
        %v2564 = vrot.slane %v1990, 2
        %v2565 = vrot.slane %v1991, 2
        %v2566 = vsel %vm847, %v2564, %v2565
        %v2567 = vrot.slane %v1992, 2
        %v2568 = vsel %vm847, %v2565, %v2567
        %v2569 = vrot.slane %v1993, 2
        %v2570 = vrot.slane %v1994, 2
        %v2571 = vsel %vm847, %v2569, %v2570
        %v2572 = vrot.slane %v1995, 2
        %v2573 = vsel %vm847, %v2570, %v2572
        %v2574 = vrot.slane %v1996, 2
        %v2575 = vrot.slane %v1997, 2
        %v2576 = vsel %vm847, %v2574, %v2575
        %v2577 = vrot.slane %v1998, 2
        %v2578 = vsel %vm847, %v2575, %v2577
        %v2579 = vrot.slane %v1999, 2
        %v2580 = vrot.slane %v2000, 2
        %v2581 = vsel %vm847, %v2579, %v2580
        %v2582 = vrot.slane %v2001, 2
        %v2583 = vsel %vm847, %v2580, %v2582
        %v2584 = vrot.slane %v2002, 2
        %v2585 = vrot.slane %v2003, 2
        %v2586 = vsel %vm847, %v2584, %v2585
        %v2587 = vrot.slane %v2004, 2
        %v2588 = vsel %vm847, %v2585, %v2587
        %v2589 = vrot.slane %v2005, 2
        %v2590 = vrot.slane %v2006, 2
        %v2591 = vsel %vm847, %v2589, %v2590
        %v2592 = vrot.slane %v2007, 2
        %v2593 = vsel %vm847, %v2590, %v2592
        %v2594 = vrot.slane %v2008, 2
        %v2595 = vrot.slane %v2009, 2
        %v2596 = vsel %vm847, %v2594, %v2595
        %v2597 = vrot.slane %v2010, 2
        %v2598 = vsel %vm847, %v2595, %v2597
        %v2599 = vrot.slane %v2011, 2
        %v2600 = vrot.slane %v2012, 2
        %v2601 = vsel %vm847, %v2599, %v2600
        %v2602 = vrot.slane %v2013, 2
        %v2603 = vsel %vm847, %v2600, %v2602
        %s2604 = scalar_lea.vmem [#allocation6], 32
        %v2605 = vld [vmem:[%s2604] sm:$0xf]
        %v2606 = vsel %vm429, %v2556, 0
        %v2608 = vsel %vm429, %v2558, 0
        %v2610 = vsel %vm429, %v2561, 0
        %v2612 = vsel %vm429, %v2563, 0
        %v2614 = vsel %vm429, %v2566, 0
        %v2616 = vsel %vm429, %v2568, 0
        %v2618 = vsel %vm429, %v2571, 0
        %v2620 = vsel %vm429, %v2573, 0
        %v2622 = vsel %vm429, %v2576, 0
        %v2624 = vsel %vm429, %v2578, 0
        %v2626 = vsel %vm429, %v2581, 0
        %v2628 = vsel %vm429, %v2583, 0
        %v2630 = vsel %vm429, %v2586, 0
        %v2632 = vsel %vm429, %v2588, 0
        %v2634 = vsel %vm429, %v2591, 0
        %v2636 = vsel %vm429, %v2593, 0
        %v2638 = vsel %vm429, %v2596, 0
        %v2640 = vsel %vm429, %v2598, 0
        %v2642 = vsel %vm429, %v2601, 0
        %v2644 = vsel %vm429, %v2603, 0
        %v2647 = vsel %vm470, %v2605, 0
        %2649 = vmatprep.subr.mxu0 0.0
        %2650 = vmatpush1.msra.mxu0 %v2647
        %2651 = vmatprep.subr.mxu0 0.0
        %2652 = vmatpush1.msra.mxu0 0.0
        %2653 = vmatprep.subr.mxu0 0.0
        %2654 = vmatpush1.msra.mxu0 0.0
        %2655 = vmatprep.subr.mxu0 0.0
        %2656 = vmatpush1.msra.mxu0 0.0
        %2657 = vmatprep.subr.mxu0 0.0
        %2658 = vmatpush1.msra.mxu0 0.0
        %2659 = vmatprep.subr.mxu0 0.0
        %2660 = vmatpush1.msra.mxu0 0.0
        %2661 = vmatprep.subr.mxu0 0.0
        %2662 = vmatpush1.msra.mxu0 0.0
        %2663 = vmatprep.subr.mxu0 0.0
        %2664 = vmatpush1.msra.mxu0 0.0
        %2665 = vmatprep.subr.mxu0 0.0
        %2666 = vmatpush1.msra.mxu0 0.0
        %2667 = vmatprep.subr.mxu0 0.0
        %2668 = vmatpush1.msra.mxu0 0.0
        %2669 = vmatprep.subr.mxu0 0.0
        %2670 = vmatpush1.msra.mxu0 0.0
        %2671 = vmatprep.subr.mxu0 0.0
        %2672 = vmatpush1.msra.mxu0 0.0
        %2673 = vmatprep.subr.mxu0 0.0
        %2674 = vmatpush1.msra.mxu0 0.0
        %2675 = vmatprep.subr.mxu0 0.0
        %2676 = vmatpush1.msra.mxu0 0.0
        %2677 = vmatprep.subr.mxu0 0.0
        %2678 = vmatpush1.msra.mxu0 0.0
        %2679 = vmatprep.subr.mxu0 0.0
        %2680 = vmatpush1.msra.mxu0 0.0
        %2681 = vmatprep.subr.mxu0 0.0
        %2682 = vmatpush1.msra.mxu0 0.0
        %2683 = vmatprep.subr.mxu0 0.0
        %2684 = vmatpush1.msra.mxu0 0.0
        %2685 = vmatprep.subr.mxu0 0.0
        %2686 = vmatpush1.msra.mxu0 0.0
        %2687 = vmatprep.subr.mxu0 0.0
        %2688 = vmatpush1.msra.mxu0 0.0
        %2689 = vmatprep.subr.mxu0 0.0
        %2690 = vmatpush1.msra.mxu0 0.0
        %2691 = vmatprep.subr.mxu0 0.0
        %2692 = vmatpush1.msra.mxu0 0.0
        %2693 = vmatprep.subr.mxu0 0.0
        %2694 = vmatpush1.msra.mxu0 0.0
        %2695 = vmatprep.subr.mxu0 0.0
        %2696 = vmatpush1.msra.mxu0 0.0
        %2697 = vmatprep.subr.mxu0 0.0
        %2698 = vmatpush1.msra.mxu0 0.0
        %2699 = vmatprep.subr.mxu0 0.0
        %2700 = vmatpush1.msra.mxu0 0.0
        %2701 = vmatprep.subr.mxu0 0.0
        %2702 = vmatpush1.msra.mxu0 0.0
        %2703 = vmatprep.subr.mxu0 0.0
        %2704 = vmatpush1.msra.mxu0 0.0
        %2705 = vmatprep.subr.mxu0 0.0
        %2706 = vmatpush1.msra.mxu0 0.0
        %2707 = vmatprep.subr.mxu0 0.0
        %2708 = vmatpush1.msra.mxu0 0.0
        %2709 = vmatprep.subr.mxu0 0.0
        %2710 = vmatpush1.msra.mxu0 0.0
        %2711 = vmatprep.subr.mxu0 0.0
        %2712 = vmatpush1.msra.mxu0 0.0
        %2713 = vmatprep.mubr.f32.mxu0 0.0
        %2714 = vmatmul.mubr.f32.gmra.mrb[0].mxu0 %v2606
        %v2715 = vpop.f32.mrb[0].mxu0
        %v2716 = vadd.f32 0.0, %v2715
        %v2717 = vpop.f32.mrb[0].mxu0
        %2718 = vmatprep.mubr.f32.mxu0 0.0
        %2719 = vmatmul.mubr.f32.gmra.mrb[0].mxu0 %v2608
        %v2720 = vpop.f32.mrb[0].mxu0
        %v2721 = vadd.f32 0.0, %v2720
        %v2722 = vpop.f32.mrb[0].mxu0
        %2723 = vmatprep.mubr.f32.mxu0 0.0
        %2724 = vmatmul.mubr.f32.gmra.mrb[0].mxu0 %v2610
        %v2725 = vpop.f32.mrb[0].mxu0
        %v2726 = vadd.f32 0.0, %v2725
        %v2727 = vpop.f32.mrb[0].mxu0
        %2728 = vmatprep.mubr.f32.mxu0 0.0
        %2729 = vmatmul.mubr.f32.gmra.mrb[0].mxu0 %v2612
        %v2730 = vpop.f32.mrb[0].mxu0
        %v2731 = vadd.f32 0.0, %v2730
        %v2732 = vpop.f32.mrb[0].mxu0
        %2733 = vmatprep.mubr.f32.mxu0 0.0
        %2734 = vmatmul.mubr.f32.gmra.mrb[0].mxu0 %v2614
        %v2735 = vpop.f32.mrb[0].mxu0
        %v2736 = vadd.f32 0.0, %v2735
        %v2737 = vpop.f32.mrb[0].mxu0
        %2738 = vmatprep.mubr.f32.mxu0 0.0
        %2739 = vmatmul.mubr.f32.gmra.mrb[0].mxu0 %v2616
        %v2740 = vpop.f32.mrb[0].mxu0
        %v2741 = vadd.f32 0.0, %v2740
        %v2742 = vpop.f32.mrb[0].mxu0
        %2743 = vmatprep.mubr.f32.mxu0 0.0
        %2744 = vmatmul.mubr.f32.gmra.mrb[0].mxu0 %v2618
        %v2745 = vpop.f32.mrb[0].mxu0
        %v2746 = vadd.f32 0.0, %v2745
        %v2747 = vpop.f32.mrb[0].mxu0
        %2748 = vmatprep.mubr.f32.mxu0 0.0
        %2749 = vmatmul.mubr.f32.gmra.mrb[0].mxu0 %v2620
        %v2750 = vpop.f32.mrb[0].mxu0
        %v2751 = vadd.f32 0.0, %v2750
        %v2752 = vpop.f32.mrb[0].mxu0
        %2753 = vmatprep.mubr.f32.mxu0 0.0
        %2754 = vmatmul.mubr.f32.gmra.mrb[0].mxu0 %v2622
        %v2755 = vpop.f32.mrb[0].mxu0
        %v2756 = vadd.f32 0.0, %v2755
        %v2757 = vpop.f32.mrb[0].mxu0
        %2758 = vmatprep.mubr.f32.mxu0 0.0
        %2759 = vmatmul.mubr.f32.gmra.mrb[0].mxu0 %v2624
        %v2760 = vpop.f32.mrb[0].mxu0
        %v2761 = vadd.f32 0.0, %v2760
        %v2762 = vpop.f32.mrb[0].mxu0
        %2763 = vmatprep.mubr.f32.mxu0 0.0
        %2764 = vmatmul.mubr.f32.gmra.mrb[0].mxu0 %v2626
        %v2765 = vpop.f32.mrb[0].mxu0
        %v2766 = vadd.f32 0.0, %v2765
        %v2767 = vpop.f32.mrb[0].mxu0
        %2768 = vmatprep.mubr.f32.mxu0 0.0
        %2769 = vmatmul.mubr.f32.gmra.mrb[0].mxu0 %v2628
        %v2770 = vpop.f32.mrb[0].mxu0
        %v2771 = vadd.f32 0.0, %v2770
        %v2772 = vpop.f32.mrb[0].mxu0
        %2773 = vmatprep.mubr.f32.mxu0 0.0
        %2774 = vmatmul.mubr.f32.gmra.mrb[0].mxu0 %v2630
        %v2775 = vpop.f32.mrb[0].mxu0
        %v2776 = vadd.f32 0.0, %v2775
        %v2777 = vpop.f32.mrb[0].mxu0
        %2778 = vmatprep.mubr.f32.mxu0 0.0
        %2779 = vmatmul.mubr.f32.gmra.mrb[0].mxu0 %v2632
        %v2780 = vpop.f32.mrb[0].mxu0
        %v2781 = vadd.f32 0.0, %v2780
        %v2782 = vpop.f32.mrb[0].mxu0
        %2783 = vmatprep.mubr.f32.mxu0 0.0
        %2784 = vmatmul.mubr.f32.gmra.mrb[0].mxu0 %v2634
        %v2785 = vpop.f32.mrb[0].mxu0
        %v2786 = vadd.f32 0.0, %v2785
        %v2787 = vpop.f32.mrb[0].mxu0
        %2788 = vmatprep.mubr.f32.mxu0 0.0
        %2789 = vmatmul.mubr.f32.gmra.mrb[0].mxu0 %v2636
        %v2790 = vpop.f32.mrb[0].mxu0
        %v2791 = vadd.f32 0.0, %v2790
        %v2792 = vpop.f32.mrb[0].mxu0
        %2793 = vmatprep.mubr.f32.mxu0 0.0
        %2794 = vmatmul.mubr.f32.gmra.mrb[0].mxu0 %v2638
        %v2795 = vpop.f32.mrb[0].mxu0
        %v2796 = vadd.f32 0.0, %v2795
        %v2797 = vpop.f32.mrb[0].mxu0
        %2798 = vmatprep.mubr.f32.mxu0 0.0
        %2799 = vmatmul.mubr.f32.gmra.mrb[0].mxu0 %v2640
        %v2800 = vpop.f32.mrb[0].mxu0
        %v2801 = vadd.f32 0.0, %v2800
        %v2802 = vpop.f32.mrb[0].mxu0
        %2803 = vmatprep.mubr.f32.mxu0 0.0
        %2804 = vmatmul.mubr.f32.gmra.mrb[0].mxu0 %v2642
        %v2805 = vpop.f32.mrb[0].mxu0
        %v2806 = vadd.f32 0.0, %v2805
        %v2807 = vpop.f32.mrb[0].mxu0
        %2808 = vmatprep.mubr.f32.mxu0 0.0
        %2809 = vmatmul.mubr.f32.gmra.mrb[0].mxu0 %v2644
        %v2810 = vpop.f32.mrb[0].mxu0
        %v2811 = vadd.f32 0.0, %v2810
        %v2812 = vpop.f32.mrb[0].mxu0
        %2813 = vdwg.mxu0
        %v2814 = vadd.f32 %v2534, %v2716
        %v2815 = vadd.f32 %v2535, %v2721
        %v2816 = vadd.f32 %v2536, %v2726
        %v2817 = vadd.f32 %v2537, %v2731
        %v2818 = vadd.f32 %v2538, %v2736
        %v2819 = vadd.f32 %v2539, %v2741
        %v2820 = vadd.f32 %v2540, %v2746
        %v2821 = vadd.f32 %v2541, %v2751
        %v2822 = vadd.f32 %v2542, %v2756
        %v2823 = vadd.f32 %v2543, %v2761
        %v2824 = vadd.f32 %v2544, %v2766
        %v2825 = vadd.f32 %v2545, %v2771
        %v2826 = vadd.f32 %v2546, %v2776
        %v2827 = vadd.f32 %v2547, %v2781
        %v2828 = vadd.f32 %v2548, %v2786
        %v2829 = vadd.f32 %v2549, %v2791
        %v2830 = vadd.f32 %v2550, %v2796
        %v2831 = vadd.f32 %v2551, %v2801
        %v2832 = vadd.f32 %v2552, %v2806
        %v2833 = vadd.f32 %v2553, %v2811
        %v2834 = vld [vmem:[#allocation9] sm:$0x1]
        %v2836 = vlaneseq
        %v2837 = vshrl.u32 %v2836, 7
        %v2838 = vsub.s32 0, %v2837
        %v2839 = vrot.slane %v2834, %v2838
        %v2841 = vadd.f32 %v2814, %v2839
        %v2842 = vadd.f32 %v2815, %v2839
        %v2843 = vadd.f32 %v2816, %v2839
        %v2844 = vadd.f32 %v2817, %v2839
        %v2845 = vadd.f32 %v2818, %v2839
        %v2846 = vadd.f32 %v2819, %v2839
        %v2847 = vadd.f32 %v2820, %v2839
        %v2848 = vadd.f32 %v2821, %v2839
        %v2849 = vadd.f32 %v2822, %v2839
        %v2850 = vadd.f32 %v2823, %v2839
        %v2851 = vadd.f32 %v2824, %v2839
        %v2852 = vadd.f32 %v2825, %v2839
        %v2853 = vadd.f32 %v2826, %v2839
        %v2854 = vadd.f32 %v2827, %v2839
        %v2855 = vadd.f32 %v2828, %v2839
        %v2856 = vadd.f32 %v2829, %v2839
        %v2857 = vadd.f32 %v2830, %v2839
        %v2858 = vadd.f32 %v2831, %v2839
        %v2859 = vadd.f32 %v2832, %v2839
        %v2860 = vadd.f32 %v2833, %v2839
        %v2861 = vmax.f32 %v2841, 0.0
        %v2862 = vmax.f32 %v2842, 0.0
        %v2863 = vmax.f32 %v2843, 0.0
        %v2864 = vmax.f32 %v2844, 0.0
        %v2865 = vmax.f32 %v2845, 0.0
        %v2866 = vmax.f32 %v2846, 0.0
        %v2867 = vmax.f32 %v2847, 0.0
        %v2868 = vmax.f32 %v2848, 0.0
        %v2869 = vmax.f32 %v2849, 0.0
        %v2870 = vmax.f32 %v2850, 0.0
        %v2871 = vmax.f32 %v2851, 0.0
        %v2872 = vmax.f32 %v2852, 0.0
        %v2873 = vmax.f32 %v2853, 0.0
        %v2874 = vmax.f32 %v2854, 0.0
        %v2875 = vmax.f32 %v2855, 0.0
        %v2876 = vmax.f32 %v2856, 0.0
        %v2877 = vmax.f32 %v2857, 0.0
        %v2878 = vmax.f32 %v2858, 0.0
        %v2879 = vmax.f32 %v2859, 0.0
        %v2880 = vmax.f32 %v2860, 0.0
        %2881 = vst.msk [vmem:[#allocation2 + $0x1] sm:$0xff] %vm429, %v2861
        %2882 = vst.msk [vmem:[#allocation2 + $0x9] sm:$0xff] %vm429, %v2862
        %2883 = vst.msk [vmem:[#allocation2 + $0x19] sm:$0xff] %vm429, %v2863
        %2884 = vst.msk [vmem:[#allocation2 + $0x21] sm:$0xff] %vm429, %v2864
        %2885 = vst.msk [vmem:[#allocation2 + $0x31] sm:$0xff] %vm429, %v2865
        %2886 = vst.msk [vmem:[#allocation2 + $0x39] sm:$0xff] %vm429, %v2866
        %2887 = vst.msk [vmem:[#allocation2 + $0x49] sm:$0xff] %vm429, %v2867
        %2888 = vst.msk [vmem:[#allocation2 + $0x51] sm:$0xff] %vm429, %v2868
        %2889 = vst.msk [vmem:[#allocation2 + $0x61] sm:$0xff] %vm429, %v2869
        %2890 = vst.msk [vmem:[#allocation2 + $0x69] sm:$0xff] %vm429, %v2870
        %2891 = vst.msk [vmem:[#allocation2 + $0x79] sm:$0xff] %vm429, %v2871
        %2892 = vst.msk [vmem:[#allocation2 + $0x81] sm:$0xff] %vm429, %v2872
        %2893 = vst.msk [vmem:[#allocation2 + $0x91] sm:$0xff] %vm429, %v2873
        %2894 = vst.msk [vmem:[#allocation2 + $0x99] sm:$0xff] %vm429, %v2874
        %2895 = vst.msk [vmem:[#allocation2 + $0xa9] sm:$0xff] %vm429, %v2875
        %2896 = vst.msk [vmem:[#allocation2 + $0xb1] sm:$0xff] %vm429, %v2876
        %2897 = vst.msk [vmem:[#allocation2 + $0xc1] sm:$0xff] %vm429, %v2877
        %2898 = vst.msk [vmem:[#allocation2 + $0xc9] sm:$0xff] %vm429, %v2878
        %2899 = vst.msk [vmem:[#allocation2 + $0xd9] sm:$0xff] %vm429, %v2879
        %2900 = vst.msk [vmem:[#allocation2 + $0xe1] sm:$0xff] %vm429, %v2880
        %vm2901 = vcmask 24576
        %2902 = vst.msk [vmem:[#allocation2] sm:$0x1] %vm2901, 0.0
        %2903 = vst.msk [vmem:[#allocation2 + $0x18] sm:$0x1] %vm2901, 0.0
        %2904 = vst.msk [vmem:[#allocation2 + $0x30] sm:$0x1] %vm2901, 0.0
        %2905 = vst.msk [vmem:[#allocation2 + $0x48] sm:$0x1] %vm2901, 0.0
        %2906 = vst.msk [vmem:[#allocation2 + $0x60] sm:$0x1] %vm2901, 0.0
        %2907 = vst.msk [vmem:[#allocation2 + $0x78] sm:$0x1] %vm2901, 0.0
        %2908 = vst.msk [vmem:[#allocation2 + $0x90] sm:$0x1] %vm2901, 0.0
        %2909 = vst.msk [vmem:[#allocation2 + $0xa8] sm:$0x1] %vm2901, 0.0
        %2910 = vst.msk [vmem:[#allocation2 + $0xc0] sm:$0x1] %vm2901, 0.0
        %2911 = vst.msk [vmem:[#allocation2 + $0xd8] sm:$0x1] %vm2901, 0.0
        %2912 = vst.msk [vmem:[#allocation2 + $0x11] sm:$0x1] %vm2901, 0.0
        %2913 = vst.msk [vmem:[#allocation2 + $0x29] sm:$0x1] %vm2901, 0.0
        %2914 = vst.msk [vmem:[#allocation2 + $0x41] sm:$0x1] %vm2901, 0.0
        %2915 = vst.msk [vmem:[#allocation2 + $0x59] sm:$0x1] %vm2901, 0.0
        %2916 = vst.msk [vmem:[#allocation2 + $0x71] sm:$0x1] %vm2901, 0.0
        %2917 = vst.msk [vmem:[#allocation2 + $0x89] sm:$0x1] %vm2901, 0.0
        %2918 = vst.msk [vmem:[#allocation2 + $0xa1] sm:$0x1] %vm2901, 0.0
        %2919 = vst.msk [vmem:[#allocation2 + $0xb9] sm:$0x1] %vm2901, 0.0
        %2920 = vst.msk [vmem:[#allocation2 + $0xd1] sm:$0x1] %vm2901, 0.0
        %2921 = vst.msk [vmem:[#allocation2 + $0xe9] sm:$0x1] %vm2901, 0.0
        %p2922 = scmp.eq.s32.totalorder %s29, 0
        // Predicated region
        $region61: #{tpu_custom_call.1} parent=39 // pred_check
          %p2923 = pneg %p2922
        $region62: #{tpu_custom_call.1} parent=39 // pred_check_branch
          %2925 = sbr.rel (%p2923) target = $region64
        $region63: #{tpu_custom_call.1} parent=39 // pred_region
          %2926 = vst.msk [vmem:[#allocation2 + $0x1] sm:$0xff] %vm429, 0.0
          %2927 = vst.msk [vmem:[#allocation2 + $0x9] sm:$0xff] %vm429, 0.0
        $region64: #{tpu_custom_call.1} parent=39 // pred_fallthru
          _
        %p2928 = scmp.eq.s32.totalorder %s29, 1
        // Predicated region
        $region65: #{tpu_custom_call.1} parent=39 // pred_check
          %p2929 = pneg %p2928
        $region66: #{tpu_custom_call.1} parent=39 // pred_check_branch
          %2931 = sbr.rel (%p2929) target = $region68
        $region67: #{tpu_custom_call.1} parent=39 // pred_region
          %s2932 = scalar_lea.vmem [#allocation2], 216
          %2933 = vst.msk [vmem:[%s2932 + $0x1] sm:$0xff] %vm429, 0.0
          %2934 = vst.msk [vmem:[%s2932 + $0x9] sm:$0xff] %vm429, 0.0
        $region68: #{tpu_custom_call.1} parent=39 // pred_fallthru
          _
        %v2935 = vld [vmem:[#allocation2] sm:$0xff]
        %v2936 = vld [vmem:[#allocation2 + $0x8] sm:$0xff]
        %v2937 = vld [vmem:[#allocation2 + $0x10] sm:$0x3]
        %v2938 = vld [vmem:[#allocation2 + $0x18] sm:$0xff]
        %v2939 = vld [vmem:[#allocation2 + $0x20] sm:$0xff]
        %v2940 = vld [vmem:[#allocation2 + $0x28] sm:$0x3]
        %v2941 = vld [vmem:[#allocation2 + $0x30] sm:$0xff]
        %v2942 = vld [vmem:[#allocation2 + $0x38] sm:$0xff]
        %v2943 = vld [vmem:[#allocation2 + $0x40] sm:$0x3]
        %v2944 = vld [vmem:[#allocation2 + $0x48] sm:$0xff]
        %v2945 = vld [vmem:[#allocation2 + $0x50] sm:$0xff]
        %v2946 = vld [vmem:[#allocation2 + $0x58] sm:$0x3]
        %v2947 = vld [vmem:[#allocation2 + $0x60] sm:$0xff]
        %v2948 = vld [vmem:[#allocation2 + $0x68] sm:$0xff]
        %v2949 = vld [vmem:[#allocation2 + $0x70] sm:$0x3]
        %v2950 = vld [vmem:[#allocation2 + $0x78] sm:$0xff]
        %v2951 = vld [vmem:[#allocation2 + $0x80] sm:$0xff]
        %v2952 = vld [vmem:[#allocation2 + $0x88] sm:$0x3]
        %v2953 = vld [vmem:[#allocation2 + $0x90] sm:$0xff]
        %v2954 = vld [vmem:[#allocation2 + $0x98] sm:$0xff]
        %v2955 = vld [vmem:[#allocation2 + $0xa0] sm:$0x3]
        %v2956 = vld [vmem:[#allocation2 + $0xa8] sm:$0xff]
        %v2957 = vld [vmem:[#allocation2 + $0xb0] sm:$0xff]
        %v2958 = vld [vmem:[#allocation2 + $0xb8] sm:$0x3]
        %v2959 = vld [vmem:[#allocation8] sm:$0xf]
        %v2984 = vrot.slane %v2935, 1
        %v2985 = vrot.slane %v2936, 1
        %v2986 = vsel %vm376, %v2984, %v2985
        %v2987 = vrot.slane %v2937, 1
        %v2988 = vsel %vm376, %v2985, %v2987
        %v2989 = vrot.slane %v2938, 1
        %v2990 = vrot.slane %v2939, 1
        %v2991 = vsel %vm376, %v2989, %v2990
        %v2992 = vrot.slane %v2940, 1
        %v2993 = vsel %vm376, %v2990, %v2992
        %v2994 = vrot.slane %v2941, 1
        %v2995 = vrot.slane %v2942, 1
        %v2996 = vsel %vm376, %v2994, %v2995
        %v2997 = vrot.slane %v2943, 1
        %v2998 = vsel %vm376, %v2995, %v2997
        %v2999 = vrot.slane %v2944, 1
        %v3000 = vrot.slane %v2945, 1
        %v3001 = vsel %vm376, %v2999, %v3000
        %v3002 = vrot.slane %v2946, 1
        %v3003 = vsel %vm376, %v3000, %v3002
        %v3004 = vrot.slane %v2947, 1
        %v3005 = vrot.slane %v2948, 1
        %v3006 = vsel %vm376, %v3004, %v3005
        %v3007 = vrot.slane %v2949, 1
        %v3008 = vsel %vm376, %v3005, %v3007
        %v3009 = vrot.slane %v2950, 1
        %v3010 = vrot.slane %v2951, 1
        %v3011 = vsel %vm376, %v3009, %v3010
        %v3012 = vrot.slane %v2952, 1
        %v3013 = vsel %vm376, %v3010, %v3012
        %v3014 = vrot.slane %v2953, 1
        %v3015 = vrot.slane %v2954, 1
        %v3016 = vsel %vm376, %v3014, %v3015
        %v3017 = vrot.slane %v2955, 1
        %v3018 = vsel %vm376, %v3015, %v3017
        %v3019 = vrot.slane %v2956, 1
        %v3020 = vrot.slane %v2957, 1
        %v3021 = vsel %vm376, %v3019, %v3020
        %v3022 = vrot.slane %v2958, 1
        %v3023 = vsel %vm376, %v3020, %v3022
        %s3024 = scalar_lea.vmem [#allocation8], 4
        %v3025 = vld [vmem:[%s3024] sm:$0xf]
        %v3026 = vsel %vm429, %v2986, 0
        %v3028 = vsel %vm429, %v2988, 0
        %v3030 = vsel %vm429, %v2991, 0
        %v3032 = vsel %vm429, %v2993, 0
        %v3034 = vsel %vm429, %v2996, 0
        %v3036 = vsel %vm429, %v2998, 0
        %v3038 = vsel %vm429, %v3001, 0
        %v3040 = vsel %vm429, %v3003, 0
        %v3042 = vsel %vm429, %v3006, 0
        %v3044 = vsel %vm429, %v3008, 0
        %v3046 = vsel %vm429, %v3011, 0
        %v3048 = vsel %vm429, %v3013, 0
        %v3050 = vsel %vm429, %v3016, 0
        %v3052 = vsel %vm429, %v3018, 0
        %v3054 = vsel %vm429, %v3021, 0
        %v3056 = vsel %vm429, %v3023, 0
        %v3059 = vsel %vm470, %v3025, 0
        %3061 = vmatprep.subr.mxu0 0.0
        %3062 = vmatpush1.msra.mxu0 %v3059
        %3063 = vmatprep.subr.mxu0 0.0
        %3064 = vmatpush1.msra.mxu0 0.0
        %3065 = vmatprep.subr.mxu0 0.0
        %3066 = vmatpush1.msra.mxu0 0.0
        %3067 = vmatprep.subr.mxu0 0.0
        %3068 = vmatpush1.msra.mxu0 0.0
        %3069 = vmatprep.subr.mxu0 0.0
        %3070 = vmatpush1.msra.mxu0 0.0
        %3071 = vmatprep.subr.mxu0 0.0
        %3072 = vmatpush1.msra.mxu0 0.0
        %3073 = vmatprep.subr.mxu0 0.0
        %3074 = vmatpush1.msra.mxu0 0.0
        %3075 = vmatprep.subr.mxu0 0.0
        %3076 = vmatpush1.msra.mxu0 0.0
        %3077 = vmatprep.subr.mxu0 0.0
        %3078 = vmatpush1.msra.mxu0 0.0
        %3079 = vmatprep.subr.mxu0 0.0
        %3080 = vmatpush1.msra.mxu0 0.0
        %3081 = vmatprep.subr.mxu0 0.0
        %3082 = vmatpush1.msra.mxu0 0.0
        %3083 = vmatprep.subr.mxu0 0.0
        %3084 = vmatpush1.msra.mxu0 0.0
        %3085 = vmatprep.subr.mxu0 0.0
        %3086 = vmatpush1.msra.mxu0 0.0
        %3087 = vmatprep.subr.mxu0 0.0
        %3088 = vmatpush1.msra.mxu0 0.0
        %3089 = vmatprep.subr.mxu0 0.0
        %3090 = vmatpush1.msra.mxu0 0.0
        %3091 = vmatprep.subr.mxu0 0.0
        %3092 = vmatpush1.msra.mxu0 0.0
        %3093 = vmatprep.subr.mxu0 0.0
        %3094 = vmatpush1.msra.mxu0 0.0
        %3095 = vmatprep.subr.mxu0 0.0
        %3096 = vmatpush1.msra.mxu0 0.0
        %3097 = vmatprep.subr.mxu0 0.0
        %3098 = vmatpush1.msra.mxu0 0.0
        %3099 = vmatprep.subr.mxu0 0.0
        %3100 = vmatpush1.msra.mxu0 0.0
        %3101 = vmatprep.subr.mxu0 0.0
        %3102 = vmatpush1.msra.mxu0 0.0
        %3103 = vmatprep.subr.mxu0 0.0
        %3104 = vmatpush1.msra.mxu0 0.0
        %3105 = vmatprep.subr.mxu0 0.0
        %3106 = vmatpush1.msra.mxu0 0.0
        %3107 = vmatprep.subr.mxu0 0.0
        %3108 = vmatpush1.msra.mxu0 0.0
        %3109 = vmatprep.subr.mxu0 0.0
        %3110 = vmatpush1.msra.mxu0 0.0
        %3111 = vmatprep.subr.mxu0 0.0
        %3112 = vmatpush1.msra.mxu0 0.0
        %3113 = vmatprep.subr.mxu0 0.0
        %3114 = vmatpush1.msra.mxu0 0.0
        %3115 = vmatprep.subr.mxu0 0.0
        %3116 = vmatpush1.msra.mxu0 0.0
        %3117 = vmatprep.subr.mxu0 0.0
        %3118 = vmatpush1.msra.mxu0 0.0
        %3119 = vmatprep.subr.mxu0 0.0
        %3120 = vmatpush1.msra.mxu0 0.0
        %3121 = vmatprep.subr.mxu0 0.0
        %3122 = vmatpush1.msra.mxu0 0.0
        %3123 = vmatprep.subr.mxu0 0.0
        %3124 = vmatpush1.msra.mxu0 0.0
        %3125 = vmatprep.mubr.f32.mxu0 0.0
        %3126 = vmatmul.mubr.f32.gmra.mrb[0].mxu0 %v3026
        %v3127 = vpop.f32.mrb[0].mxu0
        %v3128 = vadd.f32 0.0, %v3127
        %v3129 = vpop.f32.mrb[0].mxu0
        %3130 = vmatprep.mubr.f32.mxu0 0.0
        %3131 = vmatmul.mubr.f32.gmra.mrb[0].mxu0 %v3028
        %v3132 = vpop.f32.mrb[0].mxu0
        %v3133 = vadd.f32 0.0, %v3132
        %v3134 = vpop.f32.mrb[0].mxu0
        %3135 = vmatprep.mubr.f32.mxu0 0.0
        %3136 = vmatmul.mubr.f32.gmra.mrb[0].mxu0 %v3030
        %v3137 = vpop.f32.mrb[0].mxu0
        %v3138 = vadd.f32 0.0, %v3137
        %v3139 = vpop.f32.mrb[0].mxu0
        %3140 = vmatprep.mubr.f32.mxu0 0.0
        %3141 = vmatmul.mubr.f32.gmra.mrb[0].mxu0 %v3032
        %v3142 = vpop.f32.mrb[0].mxu0
        %v3143 = vadd.f32 0.0, %v3142
        %v3144 = vpop.f32.mrb[0].mxu0
        %3145 = vmatprep.mubr.f32.mxu0 0.0
        %3146 = vmatmul.mubr.f32.gmra.mrb[0].mxu0 %v3034
        %v3147 = vpop.f32.mrb[0].mxu0
        %v3148 = vadd.f32 0.0, %v3147
        %v3149 = vpop.f32.mrb[0].mxu0
        %3150 = vmatprep.mubr.f32.mxu0 0.0
        %3151 = vmatmul.mubr.f32.gmra.mrb[0].mxu0 %v3036
        %v3152 = vpop.f32.mrb[0].mxu0
        %v3153 = vadd.f32 0.0, %v3152
        %v3154 = vpop.f32.mrb[0].mxu0
        %3155 = vmatprep.mubr.f32.mxu0 0.0
        %3156 = vmatmul.mubr.f32.gmra.mrb[0].mxu0 %v3038
        %v3157 = vpop.f32.mrb[0].mxu0
        %v3158 = vadd.f32 0.0, %v3157
        %v3159 = vpop.f32.mrb[0].mxu0
        %3160 = vmatprep.mubr.f32.mxu0 0.0
        %3161 = vmatmul.mubr.f32.gmra.mrb[0].mxu0 %v3040
        %v3162 = vpop.f32.mrb[0].mxu0
        %v3163 = vadd.f32 0.0, %v3162
        %v3164 = vpop.f32.mrb[0].mxu0
        %3165 = vmatprep.mubr.f32.mxu0 0.0
        %3166 = vmatmul.mubr.f32.gmra.mrb[0].mxu0 %v3042
        %v3167 = vpop.f32.mrb[0].mxu0
        %v3168 = vadd.f32 0.0, %v3167
        %v3169 = vpop.f32.mrb[0].mxu0
        %3170 = vmatprep.mubr.f32.mxu0 0.0
        %3171 = vmatmul.mubr.f32.gmra.mrb[0].mxu0 %v3044
        %v3172 = vpop.f32.mrb[0].mxu0
        %v3173 = vadd.f32 0.0, %v3172
        %v3174 = vpop.f32.mrb[0].mxu0
        %3175 = vmatprep.mubr.f32.mxu0 0.0
        %3176 = vmatmul.mubr.f32.gmra.mrb[0].mxu0 %v3046
        %v3177 = vpop.f32.mrb[0].mxu0
        %v3178 = vadd.f32 0.0, %v3177
        %v3179 = vpop.f32.mrb[0].mxu0
        %3180 = vmatprep.mubr.f32.mxu0 0.0
        %3181 = vmatmul.mubr.f32.gmra.mrb[0].mxu0 %v3048
        %v3182 = vpop.f32.mrb[0].mxu0
        %v3183 = vadd.f32 0.0, %v3182
        %v3184 = vpop.f32.mrb[0].mxu0
        %3185 = vmatprep.mubr.f32.mxu0 0.0
        %3186 = vmatmul.mubr.f32.gmra.mrb[0].mxu0 %v3050
        %v3187 = vpop.f32.mrb[0].mxu0
        %v3188 = vadd.f32 0.0, %v3187
        %v3189 = vpop.f32.mrb[0].mxu0
        %3190 = vmatprep.mubr.f32.mxu0 0.0
        %3191 = vmatmul.mubr.f32.gmra.mrb[0].mxu0 %v3052
        %v3192 = vpop.f32.mrb[0].mxu0
        %v3193 = vadd.f32 0.0, %v3192
        %v3194 = vpop.f32.mrb[0].mxu0
        %3195 = vmatprep.mubr.f32.mxu0 0.0
        %3196 = vmatmul.mubr.f32.gmra.mrb[0].mxu0 %v3054
        %v3197 = vpop.f32.mrb[0].mxu0
        %v3198 = vadd.f32 0.0, %v3197
        %v3199 = vpop.f32.mrb[0].mxu0
        %3200 = vmatprep.mubr.f32.mxu0 0.0
        %3201 = vmatmul.mubr.f32.gmra.mrb[0].mxu0 %v3056
        %v3202 = vpop.f32.mrb[0].mxu0
        %v3203 = vadd.f32 0.0, %v3202
        %v3204 = vpop.f32.mrb[0].mxu0
        %3205 = vdwg.mxu0
        %v3206 = vsel %vm429, %v2935, 0
        %v3208 = vsel %vm429, %v2936, 0
        %v3210 = vsel %vm429, %v2938, 0
        %v3212 = vsel %vm429, %v2939, 0
        %v3214 = vsel %vm429, %v2941, 0
        %v3216 = vsel %vm429, %v2942, 0
        %v3218 = vsel %vm429, %v2944, 0
        %v3220 = vsel %vm429, %v2945, 0
        %v3222 = vsel %vm429, %v2947, 0
        %v3224 = vsel %vm429, %v2948, 0
        %v3226 = vsel %vm429, %v2950, 0
        %v3228 = vsel %vm429, %v2951, 0
        %v3230 = vsel %vm429, %v2953, 0
        %v3232 = vsel %vm429, %v2954, 0
        %v3234 = vsel %vm429, %v2956, 0
        %v3236 = vsel %vm429, %v2957, 0
        %v3239 = vsel %vm470, %v2959, 0
        %3241 = vmatprep.subr.mxu0 0.0
        %3242 = vmatpush1.msra.mxu0 %v3239
        %3243 = vmatprep.subr.mxu0 0.0
        %3244 = vmatpush1.msra.mxu0 0.0
        %3245 = vmatprep.subr.mxu0 0.0
        %3246 = vmatpush1.msra.mxu0 0.0
        %3247 = vmatprep.subr.mxu0 0.0
        %3248 = vmatpush1.msra.mxu0 0.0
        %3249 = vmatprep.subr.mxu0 0.0
        %3250 = vmatpush1.msra.mxu0 0.0
        %3251 = vmatprep.subr.mxu0 0.0
        %3252 = vmatpush1.msra.mxu0 0.0
        %3253 = vmatprep.subr.mxu0 0.0
        %3254 = vmatpush1.msra.mxu0 0.0
        %3255 = vmatprep.subr.mxu0 0.0
        %3256 = vmatpush1.msra.mxu0 0.0
        %3257 = vmatprep.subr.mxu0 0.0
        %3258 = vmatpush1.msra.mxu0 0.0
        %3259 = vmatprep.subr.mxu0 0.0
        %3260 = vmatpush1.msra.mxu0 0.0
        %3261 = vmatprep.subr.mxu0 0.0
        %3262 = vmatpush1.msra.mxu0 0.0
        %3263 = vmatprep.subr.mxu0 0.0
        %3264 = vmatpush1.msra.mxu0 0.0
        %3265 = vmatprep.subr.mxu0 0.0
        %3266 = vmatpush1.msra.mxu0 0.0
        %3267 = vmatprep.subr.mxu0 0.0
        %3268 = vmatpush1.msra.mxu0 0.0
        %3269 = vmatprep.subr.mxu0 0.0
        %3270 = vmatpush1.msra.mxu0 0.0
        %3271 = vmatprep.subr.mxu0 0.0
        %3272 = vmatpush1.msra.mxu0 0.0
        %3273 = vmatprep.subr.mxu0 0.0
        %3274 = vmatpush1.msra.mxu0 0.0
        %3275 = vmatprep.subr.mxu0 0.0
        %3276 = vmatpush1.msra.mxu0 0.0
        %3277 = vmatprep.subr.mxu0 0.0
        %3278 = vmatpush1.msra.mxu0 0.0
        %3279 = vmatprep.subr.mxu0 0.0
        %3280 = vmatpush1.msra.mxu0 0.0
        %3281 = vmatprep.subr.mxu0 0.0
        %3282 = vmatpush1.msra.mxu0 0.0
        %3283 = vmatprep.subr.mxu0 0.0
        %3284 = vmatpush1.msra.mxu0 0.0
        %3285 = vmatprep.subr.mxu0 0.0
        %3286 = vmatpush1.msra.mxu0 0.0
        %3287 = vmatprep.subr.mxu0 0.0
        %3288 = vmatpush1.msra.mxu0 0.0
        %3289 = vmatprep.subr.mxu0 0.0
        %3290 = vmatpush1.msra.mxu0 0.0
        %3291 = vmatprep.subr.mxu0 0.0
        %3292 = vmatpush1.msra.mxu0 0.0
        %3293 = vmatprep.subr.mxu0 0.0
        %3294 = vmatpush1.msra.mxu0 0.0
        %3295 = vmatprep.subr.mxu0 0.0
        %3296 = vmatpush1.msra.mxu0 0.0
        %3297 = vmatprep.subr.mxu0 0.0
        %3298 = vmatpush1.msra.mxu0 0.0
        %3299 = vmatprep.subr.mxu0 0.0
        %3300 = vmatpush1.msra.mxu0 0.0
        %3301 = vmatprep.subr.mxu0 0.0
        %3302 = vmatpush1.msra.mxu0 0.0
        %3303 = vmatprep.subr.mxu0 0.0
        %3304 = vmatpush1.msra.mxu0 0.0
        %3305 = vmatprep.mubr.f32.mxu0 0.0
        %3306 = vmatmul.mubr.f32.gmra.mrb[0].mxu0 %v3206
        %v3307 = vpop.f32.mrb[0].mxu0
        %v3308 = vadd.f32 %v3128, %v3307
        %v3309 = vpop.f32.mrb[0].mxu0
        %3310 = vmatprep.mubr.f32.mxu0 0.0
        %3311 = vmatmul.mubr.f32.gmra.mrb[0].mxu0 %v3208
        %v3312 = vpop.f32.mrb[0].mxu0
        %v3313 = vadd.f32 %v3133, %v3312
        %v3314 = vpop.f32.mrb[0].mxu0
        %3315 = vmatprep.mubr.f32.mxu0 0.0
        %3316 = vmatmul.mubr.f32.gmra.mrb[0].mxu0 %v3210
        %v3317 = vpop.f32.mrb[0].mxu0
        %v3318 = vadd.f32 %v3138, %v3317
        %v3319 = vpop.f32.mrb[0].mxu0
        %3320 = vmatprep.mubr.f32.mxu0 0.0
        %3321 = vmatmul.mubr.f32.gmra.mrb[0].mxu0 %v3212
        %v3322 = vpop.f32.mrb[0].mxu0
        %v3323 = vadd.f32 %v3143, %v3322
        %v3324 = vpop.f32.mrb[0].mxu0
        %3325 = vmatprep.mubr.f32.mxu0 0.0
        %3326 = vmatmul.mubr.f32.gmra.mrb[0].mxu0 %v3214
        %v3327 = vpop.f32.mrb[0].mxu0
        %v3328 = vadd.f32 %v3148, %v3327
        %v3329 = vpop.f32.mrb[0].mxu0
        %3330 = vmatprep.mubr.f32.mxu0 0.0
        %3331 = vmatmul.mubr.f32.gmra.mrb[0].mxu0 %v3216
        %v3332 = vpop.f32.mrb[0].mxu0
        %v3333 = vadd.f32 %v3153, %v3332
        %v3334 = vpop.f32.mrb[0].mxu0
        %3335 = vmatprep.mubr.f32.mxu0 0.0
        %3336 = vmatmul.mubr.f32.gmra.mrb[0].mxu0 %v3218
        %v3337 = vpop.f32.mrb[0].mxu0
        %v3338 = vadd.f32 %v3158, %v3337
        %v3339 = vpop.f32.mrb[0].mxu0
        %3340 = vmatprep.mubr.f32.mxu0 0.0
        %3341 = vmatmul.mubr.f32.gmra.mrb[0].mxu0 %v3220
        %v3342 = vpop.f32.mrb[0].mxu0
        %v3343 = vadd.f32 %v3163, %v3342
        %v3344 = vpop.f32.mrb[0].mxu0
        %3345 = vmatprep.mubr.f32.mxu0 0.0
        %3346 = vmatmul.mubr.f32.gmra.mrb[0].mxu0 %v3222
        %v3347 = vpop.f32.mrb[0].mxu0
        %v3348 = vadd.f32 %v3168, %v3347
        %v3349 = vpop.f32.mrb[0].mxu0
        %3350 = vmatprep.mubr.f32.mxu0 0.0
        %3351 = vmatmul.mubr.f32.gmra.mrb[0].mxu0 %v3224
        %v3352 = vpop.f32.mrb[0].mxu0
        %v3353 = vadd.f32 %v3173, %v3352
        %v3354 = vpop.f32.mrb[0].mxu0
        %3355 = vmatprep.mubr.f32.mxu0 0.0
        %3356 = vmatmul.mubr.f32.gmra.mrb[0].mxu0 %v3226
        %v3357 = vpop.f32.mrb[0].mxu0
        %v3358 = vadd.f32 %v3178, %v3357
        %v3359 = vpop.f32.mrb[0].mxu0
        %3360 = vmatprep.mubr.f32.mxu0 0.0
        %3361 = vmatmul.mubr.f32.gmra.mrb[0].mxu0 %v3228
        %v3362 = vpop.f32.mrb[0].mxu0
        %v3363 = vadd.f32 %v3183, %v3362
        %v3364 = vpop.f32.mrb[0].mxu0
        %3365 = vmatprep.mubr.f32.mxu0 0.0
        %3366 = vmatmul.mubr.f32.gmra.mrb[0].mxu0 %v3230
        %v3367 = vpop.f32.mrb[0].mxu0
        %v3368 = vadd.f32 %v3188, %v3367
        %v3369 = vpop.f32.mrb[0].mxu0
        %3370 = vmatprep.mubr.f32.mxu0 0.0
        %3371 = vmatmul.mubr.f32.gmra.mrb[0].mxu0 %v3232
        %v3372 = vpop.f32.mrb[0].mxu0
        %v3373 = vadd.f32 %v3193, %v3372
        %v3374 = vpop.f32.mrb[0].mxu0
        %3375 = vmatprep.mubr.f32.mxu0 0.0
        %3376 = vmatmul.mubr.f32.gmra.mrb[0].mxu0 %v3234
        %v3377 = vpop.f32.mrb[0].mxu0
        %v3378 = vadd.f32 %v3198, %v3377
        %v3379 = vpop.f32.mrb[0].mxu0
        %3380 = vmatprep.mubr.f32.mxu0 0.0
        %3381 = vmatmul.mubr.f32.gmra.mrb[0].mxu0 %v3236
        %v3382 = vpop.f32.mrb[0].mxu0
        %v3383 = vadd.f32 %v3203, %v3382
        %v3384 = vpop.f32.mrb[0].mxu0
        %3385 = vdwg.mxu0
        %v3386 = vrot.slane %v2935, 2
        %v3387 = vrot.slane %v2936, 2
        %v3388 = vsel %vm847, %v3386, %v3387
        %v3389 = vrot.slane %v2937, 2
        %v3390 = vsel %vm847, %v3387, %v3389
        %v3391 = vrot.slane %v2938, 2
        %v3392 = vrot.slane %v2939, 2
        %v3393 = vsel %vm847, %v3391, %v3392
        %v3394 = vrot.slane %v2940, 2
        %v3395 = vsel %vm847, %v3392, %v3394
        %v3396 = vrot.slane %v2941, 2
        %v3397 = vrot.slane %v2942, 2
        %v3398 = vsel %vm847, %v3396, %v3397
        %v3399 = vrot.slane %v2943, 2
        %v3400 = vsel %vm847, %v3397, %v3399
        %v3401 = vrot.slane %v2944, 2
        %v3402 = vrot.slane %v2945, 2
        %v3403 = vsel %vm847, %v3401, %v3402
        %v3404 = vrot.slane %v2946, 2
        %v3405 = vsel %vm847, %v3402, %v3404
        %v3406 = vrot.slane %v2947, 2
        %v3407 = vrot.slane %v2948, 2
        %v3408 = vsel %vm847, %v3406, %v3407
        %v3409 = vrot.slane %v2949, 2
        %v3410 = vsel %vm847, %v3407, %v3409
        %v3411 = vrot.slane %v2950, 2
        %v3412 = vrot.slane %v2951, 2
        %v3413 = vsel %vm847, %v3411, %v3412
        %v3414 = vrot.slane %v2952, 2
        %v3415 = vsel %vm847, %v3412, %v3414
        %v3416 = vrot.slane %v2953, 2
        %v3417 = vrot.slane %v2954, 2
        %v3418 = vsel %vm847, %v3416, %v3417
        %v3419 = vrot.slane %v2955, 2
        %v3420 = vsel %vm847, %v3417, %v3419
        %v3421 = vrot.slane %v2956, 2
        %v3422 = vrot.slane %v2957, 2
        %v3423 = vsel %vm847, %v3421, %v3422
        %v3424 = vrot.slane %v2958, 2
        %v3425 = vsel %vm847, %v3422, %v3424
        %s3426 = scalar_lea.vmem [#allocation8], 8
        %v3427 = vld [vmem:[%s3426] sm:$0xf]
        %v3428 = vsel %vm429, %v3388, 0
        %v3430 = vsel %vm429, %v3390, 0
        %v3432 = vsel %vm429, %v3393, 0
        %v3434 = vsel %vm429, %v3395, 0
        %v3436 = vsel %vm429, %v3398, 0
        %v3438 = vsel %vm429, %v3400, 0
        %v3440 = vsel %vm429, %v3403, 0
        %v3442 = vsel %vm429, %v3405, 0
        %v3444 = vsel %vm429, %v3408, 0
        %v3446 = vsel %vm429, %v3410, 0
        %v3448 = vsel %vm429, %v3413, 0
        %v3450 = vsel %vm429, %v3415, 0
        %v3452 = vsel %vm429, %v3418, 0
        %v3454 = vsel %vm429, %v3420, 0
        %v3456 = vsel %vm429, %v3423, 0
        %v3458 = vsel %vm429, %v3425, 0
        %v3461 = vsel %vm470, %v3427, 0
        %3463 = vmatprep.subr.mxu0 0.0
        %3464 = vmatpush1.msra.mxu0 %v3461
        %3465 = vmatprep.subr.mxu0 0.0
        %3466 = vmatpush1.msra.mxu0 0.0
        %3467 = vmatprep.subr.mxu0 0.0
        %3468 = vmatpush1.msra.mxu0 0.0
        %3469 = vmatprep.subr.mxu0 0.0
        %3470 = vmatpush1.msra.mxu0 0.0
        %3471 = vmatprep.subr.mxu0 0.0
        %3472 = vmatpush1.msra.mxu0 0.0
        %3473 = vmatprep.subr.mxu0 0.0
        %3474 = vmatpush1.msra.mxu0 0.0
        %3475 = vmatprep.subr.mxu0 0.0
        %3476 = vmatpush1.msra.mxu0 0.0
        %3477 = vmatprep.subr.mxu0 0.0
        %3478 = vmatpush1.msra.mxu0 0.0
        %3479 = vmatprep.subr.mxu0 0.0
        %3480 = vmatpush1.msra.mxu0 0.0
        %3481 = vmatprep.subr.mxu0 0.0
        %3482 = vmatpush1.msra.mxu0 0.0
        %3483 = vmatprep.subr.mxu0 0.0
        %3484 = vmatpush1.msra.mxu0 0.0
        %3485 = vmatprep.subr.mxu0 0.0
        %3486 = vmatpush1.msra.mxu0 0.0
        %3487 = vmatprep.subr.mxu0 0.0
        %3488 = vmatpush1.msra.mxu0 0.0
        %3489 = vmatprep.subr.mxu0 0.0
        %3490 = vmatpush1.msra.mxu0 0.0
        %3491 = vmatprep.subr.mxu0 0.0
        %3492 = vmatpush1.msra.mxu0 0.0
        %3493 = vmatprep.subr.mxu0 0.0
        %3494 = vmatpush1.msra.mxu0 0.0
        %3495 = vmatprep.subr.mxu0 0.0
        %3496 = vmatpush1.msra.mxu0 0.0
        %3497 = vmatprep.subr.mxu0 0.0
        %3498 = vmatpush1.msra.mxu0 0.0
        %3499 = vmatprep.subr.mxu0 0.0
        %3500 = vmatpush1.msra.mxu0 0.0
        %3501 = vmatprep.subr.mxu0 0.0
        %3502 = vmatpush1.msra.mxu0 0.0
        %3503 = vmatprep.subr.mxu0 0.0
        %3504 = vmatpush1.msra.mxu0 0.0
        %3505 = vmatprep.subr.mxu0 0.0
        %3506 = vmatpush1.msra.mxu0 0.0
        %3507 = vmatprep.subr.mxu0 0.0
        %3508 = vmatpush1.msra.mxu0 0.0
        %3509 = vmatprep.subr.mxu0 0.0
        %3510 = vmatpush1.msra.mxu0 0.0
        %3511 = vmatprep.subr.mxu0 0.0
        %3512 = vmatpush1.msra.mxu0 0.0
        %3513 = vmatprep.subr.mxu0 0.0
        %3514 = vmatpush1.msra.mxu0 0.0
        %3515 = vmatprep.subr.mxu0 0.0
        %3516 = vmatpush1.msra.mxu0 0.0
        %3517 = vmatprep.subr.mxu0 0.0
        %3518 = vmatpush1.msra.mxu0 0.0
        %3519 = vmatprep.subr.mxu0 0.0
        %3520 = vmatpush1.msra.mxu0 0.0
        %3521 = vmatprep.subr.mxu0 0.0
        %3522 = vmatpush1.msra.mxu0 0.0
        %3523 = vmatprep.subr.mxu0 0.0
        %3524 = vmatpush1.msra.mxu0 0.0
        %3525 = vmatprep.subr.mxu0 0.0
        %3526 = vmatpush1.msra.mxu0 0.0
        %3527 = vmatprep.mubr.f32.mxu0 0.0
        %3528 = vmatmul.mubr.f32.gmra.mrb[0].mxu0 %v3428
        %v3529 = vpop.f32.mrb[0].mxu0
        %v3530 = vadd.f32 0.0, %v3529
        %v3531 = vpop.f32.mrb[0].mxu0
        %3532 = vmatprep.mubr.f32.mxu0 0.0
        %3533 = vmatmul.mubr.f32.gmra.mrb[0].mxu0 %v3430
        %v3534 = vpop.f32.mrb[0].mxu0
        %v3535 = vadd.f32 0.0, %v3534
        %v3536 = vpop.f32.mrb[0].mxu0
        %3537 = vmatprep.mubr.f32.mxu0 0.0
        %3538 = vmatmul.mubr.f32.gmra.mrb[0].mxu0 %v3432
        %v3539 = vpop.f32.mrb[0].mxu0
        %v3540 = vadd.f32 0.0, %v3539
        %v3541 = vpop.f32.mrb[0].mxu0
        %3542 = vmatprep.mubr.f32.mxu0 0.0
        %3543 = vmatmul.mubr.f32.gmra.mrb[0].mxu0 %v3434
        %v3544 = vpop.f32.mrb[0].mxu0
        %v3545 = vadd.f32 0.0, %v3544
        %v3546 = vpop.f32.mrb[0].mxu0
        %3547 = vmatprep.mubr.f32.mxu0 0.0
        %3548 = vmatmul.mubr.f32.gmra.mrb[0].mxu0 %v3436
        %v3549 = vpop.f32.mrb[0].mxu0
        %v3550 = vadd.f32 0.0, %v3549
        %v3551 = vpop.f32.mrb[0].mxu0
        %3552 = vmatprep.mubr.f32.mxu0 0.0
        %3553 = vmatmul.mubr.f32.gmra.mrb[0].mxu0 %v3438
        %v3554 = vpop.f32.mrb[0].mxu0
        %v3555 = vadd.f32 0.0, %v3554
        %v3556 = vpop.f32.mrb[0].mxu0
        %3557 = vmatprep.mubr.f32.mxu0 0.0
        %3558 = vmatmul.mubr.f32.gmra.mrb[0].mxu0 %v3440
        %v3559 = vpop.f32.mrb[0].mxu0
        %v3560 = vadd.f32 0.0, %v3559
        %v3561 = vpop.f32.mrb[0].mxu0
        %3562 = vmatprep.mubr.f32.mxu0 0.0
        %3563 = vmatmul.mubr.f32.gmra.mrb[0].mxu0 %v3442
        %v3564 = vpop.f32.mrb[0].mxu0
        %v3565 = vadd.f32 0.0, %v3564
        %v3566 = vpop.f32.mrb[0].mxu0
        %3567 = vmatprep.mubr.f32.mxu0 0.0
        %3568 = vmatmul.mubr.f32.gmra.mrb[0].mxu0 %v3444
        %v3569 = vpop.f32.mrb[0].mxu0
        %v3570 = vadd.f32 0.0, %v3569
        %v3571 = vpop.f32.mrb[0].mxu0
        %3572 = vmatprep.mubr.f32.mxu0 0.0
        %3573 = vmatmul.mubr.f32.gmra.mrb[0].mxu0 %v3446
        %v3574 = vpop.f32.mrb[0].mxu0
        %v3575 = vadd.f32 0.0, %v3574
        %v3576 = vpop.f32.mrb[0].mxu0
        %3577 = vmatprep.mubr.f32.mxu0 0.0
        %3578 = vmatmul.mubr.f32.gmra.mrb[0].mxu0 %v3448
        %v3579 = vpop.f32.mrb[0].mxu0
        %v3580 = vadd.f32 0.0, %v3579
        %v3581 = vpop.f32.mrb[0].mxu0
        %3582 = vmatprep.mubr.f32.mxu0 0.0
        %3583 = vmatmul.mubr.f32.gmra.mrb[0].mxu0 %v3450
        %v3584 = vpop.f32.mrb[0].mxu0
        %v3585 = vadd.f32 0.0, %v3584
        %v3586 = vpop.f32.mrb[0].mxu0
        %3587 = vmatprep.mubr.f32.mxu0 0.0
        %3588 = vmatmul.mubr.f32.gmra.mrb[0].mxu0 %v3452
        %v3589 = vpop.f32.mrb[0].mxu0
        %v3590 = vadd.f32 0.0, %v3589
        %v3591 = vpop.f32.mrb[0].mxu0
        %3592 = vmatprep.mubr.f32.mxu0 0.0
        %3593 = vmatmul.mubr.f32.gmra.mrb[0].mxu0 %v3454
        %v3594 = vpop.f32.mrb[0].mxu0
        %v3595 = vadd.f32 0.0, %v3594
        %v3596 = vpop.f32.mrb[0].mxu0
        %3597 = vmatprep.mubr.f32.mxu0 0.0
        %3598 = vmatmul.mubr.f32.gmra.mrb[0].mxu0 %v3456
        %v3599 = vpop.f32.mrb[0].mxu0
        %v3600 = vadd.f32 0.0, %v3599
        %v3601 = vpop.f32.mrb[0].mxu0
        %3602 = vmatprep.mubr.f32.mxu0 0.0
        %3603 = vmatmul.mubr.f32.gmra.mrb[0].mxu0 %v3458
        %v3604 = vpop.f32.mrb[0].mxu0
        %v3605 = vadd.f32 0.0, %v3604
        %v3606 = vpop.f32.mrb[0].mxu0
        %3607 = vdwg.mxu0
        %v3608 = vadd.f32 %v3308, %v3530
        %v3609 = vadd.f32 %v3313, %v3535
        %v3610 = vadd.f32 %v3318, %v3540
        %v3611 = vadd.f32 %v3323, %v3545
        %v3612 = vadd.f32 %v3328, %v3550
        %v3613 = vadd.f32 %v3333, %v3555
        %v3614 = vadd.f32 %v3338, %v3560
        %v3615 = vadd.f32 %v3343, %v3565
        %v3616 = vadd.f32 %v3348, %v3570
        %v3617 = vadd.f32 %v3353, %v3575
        %v3618 = vadd.f32 %v3358, %v3580
        %v3619 = vadd.f32 %v3363, %v3585
        %v3620 = vadd.f32 %v3368, %v3590
        %v3621 = vadd.f32 %v3373, %v3595
        %v3622 = vadd.f32 %v3378, %v3600
        %v3623 = vadd.f32 %v3383, %v3605
        %s3624 = scalar_lea.vmem [#allocation2], 24
        %v3625 = vld [vmem:[%s3624] sm:$0xff]
        %v3626 = vld [vmem:[%s3624 + $0x8] sm:$0xff]
        %v3627 = vld [vmem:[%s3624 + $0x10] sm:$0x3]
        %v3628 = vld [vmem:[%s3624 + $0x18] sm:$0xff]
        %v3629 = vld [vmem:[%s3624 + $0x20] sm:$0xff]
        %v3630 = vld [vmem:[%s3624 + $0x28] sm:$0x3]
        %v3631 = vld [vmem:[%s3624 + $0x30] sm:$0xff]
        %v3632 = vld [vmem:[%s3624 + $0x38] sm:$0xff]
        %v3633 = vld [vmem:[%s3624 + $0x40] sm:$0x3]
        %v3634 = vld [vmem:[%s3624 + $0x48] sm:$0xff]
        %v3635 = vld [vmem:[%s3624 + $0x50] sm:$0xff]
        %v3636 = vld [vmem:[%s3624 + $0x58] sm:$0x3]
        %v3637 = vld [vmem:[%s3624 + $0x60] sm:$0xff]
        %v3638 = vld [vmem:[%s3624 + $0x68] sm:$0xff]
        %v3639 = vld [vmem:[%s3624 + $0x70] sm:$0x3]
        %v3640 = vld [vmem:[%s3624 + $0x78] sm:$0xff]
        %v3641 = vld [vmem:[%s3624 + $0x80] sm:$0xff]
        %v3642 = vld [vmem:[%s3624 + $0x88] sm:$0x3]
        %v3643 = vld [vmem:[%s3624 + $0x90] sm:$0xff]
        %v3644 = vld [vmem:[%s3624 + $0x98] sm:$0xff]
        %v3645 = vld [vmem:[%s3624 + $0xa0] sm:$0x3]
        %v3646 = vld [vmem:[%s3624 + $0xa8] sm:$0xff]
        %v3647 = vld [vmem:[%s3624 + $0xb0] sm:$0xff]
        %v3648 = vld [vmem:[%s3624 + $0xb8] sm:$0x3]
        %s3649 = scalar_lea.vmem [#allocation8], 12
        %v3650 = vld [vmem:[%s3649] sm:$0xf]
        %v3652 = vsel %vm429, %v3625, 0
        %v3655 = vsel %vm429, %v3626, 0
        %v3658 = vsel %vm429, %v3628, 0
        %v3661 = vsel %vm429, %v3629, 0
        %v3664 = vsel %vm429, %v3631, 0
        %v3667 = vsel %vm429, %v3632, 0
        %v3670 = vsel %vm429, %v3634, 0
        %v3673 = vsel %vm429, %v3635, 0
        %v3676 = vsel %vm429, %v3637, 0
        %v3679 = vsel %vm429, %v3638, 0
        %v3682 = vsel %vm429, %v3640, 0
        %v3685 = vsel %vm429, %v3641, 0
        %v3688 = vsel %vm429, %v3643, 0
        %v3691 = vsel %vm429, %v3644, 0
        %v3694 = vsel %vm429, %v3646, 0
        %v3697 = vsel %vm429, %v3647, 0
        %v3700 = vsel %vm470, %v3650, 0
        %3702 = vmatprep.subr.mxu0 0.0
        %3703 = vmatpush1.msra.mxu0 %v3700
        %3704 = vmatprep.subr.mxu0 0.0
        %3705 = vmatpush1.msra.mxu0 0.0
        %3706 = vmatprep.subr.mxu0 0.0
        %3707 = vmatpush1.msra.mxu0 0.0
        %3708 = vmatprep.subr.mxu0 0.0
        %3709 = vmatpush1.msra.mxu0 0.0
        %3710 = vmatprep.subr.mxu0 0.0
        %3711 = vmatpush1.msra.mxu0 0.0
        %3712 = vmatprep.subr.mxu0 0.0
        %3713 = vmatpush1.msra.mxu0 0.0
        %3714 = vmatprep.subr.mxu0 0.0
        %3715 = vmatpush1.msra.mxu0 0.0
        %3716 = vmatprep.subr.mxu0 0.0
        %3717 = vmatpush1.msra.mxu0 0.0
        %3718 = vmatprep.subr.mxu0 0.0
        %3719 = vmatpush1.msra.mxu0 0.0
        %3720 = vmatprep.subr.mxu0 0.0
        %3721 = vmatpush1.msra.mxu0 0.0
        %3722 = vmatprep.subr.mxu0 0.0
        %3723 = vmatpush1.msra.mxu0 0.0
        %3724 = vmatprep.subr.mxu0 0.0
        %3725 = vmatpush1.msra.mxu0 0.0
        %3726 = vmatprep.subr.mxu0 0.0
        %3727 = vmatpush1.msra.mxu0 0.0
        %3728 = vmatprep.subr.mxu0 0.0
        %3729 = vmatpush1.msra.mxu0 0.0
        %3730 = vmatprep.subr.mxu0 0.0
        %3731 = vmatpush1.msra.mxu0 0.0
        %3732 = vmatprep.subr.mxu0 0.0
        %3733 = vmatpush1.msra.mxu0 0.0
        %3734 = vmatprep.subr.mxu0 0.0
        %3735 = vmatpush1.msra.mxu0 0.0
        %3736 = vmatprep.subr.mxu0 0.0
        %3737 = vmatpush1.msra.mxu0 0.0
        %3738 = vmatprep.subr.mxu0 0.0
        %3739 = vmatpush1.msra.mxu0 0.0
        %3740 = vmatprep.subr.mxu0 0.0
        %3741 = vmatpush1.msra.mxu0 0.0
        %3742 = vmatprep.subr.mxu0 0.0
        %3743 = vmatpush1.msra.mxu0 0.0
        %3744 = vmatprep.subr.mxu0 0.0
        %3745 = vmatpush1.msra.mxu0 0.0
        %3746 = vmatprep.subr.mxu0 0.0
        %3747 = vmatpush1.msra.mxu0 0.0
        %3748 = vmatprep.subr.mxu0 0.0
        %3749 = vmatpush1.msra.mxu0 0.0
        %3750 = vmatprep.subr.mxu0 0.0
        %3751 = vmatpush1.msra.mxu0 0.0
        %3752 = vmatprep.subr.mxu0 0.0
        %3753 = vmatpush1.msra.mxu0 0.0
        %3754 = vmatprep.subr.mxu0 0.0
        %3755 = vmatpush1.msra.mxu0 0.0
        %3756 = vmatprep.subr.mxu0 0.0
        %3757 = vmatpush1.msra.mxu0 0.0
        %3758 = vmatprep.subr.mxu0 0.0
        %3759 = vmatpush1.msra.mxu0 0.0
        %3760 = vmatprep.subr.mxu0 0.0
        %3761 = vmatpush1.msra.mxu0 0.0
        %3762 = vmatprep.subr.mxu0 0.0
        %3763 = vmatpush1.msra.mxu0 0.0
        %3764 = vmatprep.subr.mxu0 0.0
        %3765 = vmatpush1.msra.mxu0 0.0
        %3766 = vmatprep.mubr.f32.mxu0 0.0
        %3767 = vmatmul.mubr.f32.gmra.mrb[0].mxu0 %v3652
        %v3768 = vpop.f32.mrb[0].mxu0
        %v3769 = vadd.f32 0.0, %v3768
        %v3770 = vpop.f32.mrb[0].mxu0
        %3771 = vmatprep.mubr.f32.mxu0 0.0
        %3772 = vmatmul.mubr.f32.gmra.mrb[0].mxu0 %v3655
        %v3773 = vpop.f32.mrb[0].mxu0
        %v3774 = vadd.f32 0.0, %v3773
        %v3775 = vpop.f32.mrb[0].mxu0
        %3776 = vmatprep.mubr.f32.mxu0 0.0
        %3777 = vmatmul.mubr.f32.gmra.mrb[0].mxu0 %v3658
        %v3778 = vpop.f32.mrb[0].mxu0
        %v3779 = vadd.f32 0.0, %v3778
        %v3780 = vpop.f32.mrb[0].mxu0
        %3781 = vmatprep.mubr.f32.mxu0 0.0
        %3782 = vmatmul.mubr.f32.gmra.mrb[0].mxu0 %v3661
        %v3783 = vpop.f32.mrb[0].mxu0
        %v3784 = vadd.f32 0.0, %v3783
        %v3785 = vpop.f32.mrb[0].mxu0
        %3786 = vmatprep.mubr.f32.mxu0 0.0
        %3787 = vmatmul.mubr.f32.gmra.mrb[0].mxu0 %v3664
        %v3788 = vpop.f32.mrb[0].mxu0
        %v3789 = vadd.f32 0.0, %v3788
        %v3790 = vpop.f32.mrb[0].mxu0
        %3791 = vmatprep.mubr.f32.mxu0 0.0
        %3792 = vmatmul.mubr.f32.gmra.mrb[0].mxu0 %v3667
        %v3793 = vpop.f32.mrb[0].mxu0
        %v3794 = vadd.f32 0.0, %v3793
        %v3795 = vpop.f32.mrb[0].mxu0
        %3796 = vmatprep.mubr.f32.mxu0 0.0
        %3797 = vmatmul.mubr.f32.gmra.mrb[0].mxu0 %v3670
        %v3798 = vpop.f32.mrb[0].mxu0
        %v3799 = vadd.f32 0.0, %v3798
        %v3800 = vpop.f32.mrb[0].mxu0
        %3801 = vmatprep.mubr.f32.mxu0 0.0
        %3802 = vmatmul.mubr.f32.gmra.mrb[0].mxu0 %v3673
        %v3803 = vpop.f32.mrb[0].mxu0
        %v3804 = vadd.f32 0.0, %v3803
        %v3805 = vpop.f32.mrb[0].mxu0
        %3806 = vmatprep.mubr.f32.mxu0 0.0
        %3807 = vmatmul.mubr.f32.gmra.mrb[0].mxu0 %v3676
        %v3808 = vpop.f32.mrb[0].mxu0
        %v3809 = vadd.f32 0.0, %v3808
        %v3810 = vpop.f32.mrb[0].mxu0
        %3811 = vmatprep.mubr.f32.mxu0 0.0
        %3812 = vmatmul.mubr.f32.gmra.mrb[0].mxu0 %v3679
        %v3813 = vpop.f32.mrb[0].mxu0
        %v3814 = vadd.f32 0.0, %v3813
        %v3815 = vpop.f32.mrb[0].mxu0
        %3816 = vmatprep.mubr.f32.mxu0 0.0
        %3817 = vmatmul.mubr.f32.gmra.mrb[0].mxu0 %v3682
        %v3818 = vpop.f32.mrb[0].mxu0
        %v3819 = vadd.f32 0.0, %v3818
        %v3820 = vpop.f32.mrb[0].mxu0
        %3821 = vmatprep.mubr.f32.mxu0 0.0
        %3822 = vmatmul.mubr.f32.gmra.mrb[0].mxu0 %v3685
        %v3823 = vpop.f32.mrb[0].mxu0
        %v3824 = vadd.f32 0.0, %v3823
        %v3825 = vpop.f32.mrb[0].mxu0
        %3826 = vmatprep.mubr.f32.mxu0 0.0
        %3827 = vmatmul.mubr.f32.gmra.mrb[0].mxu0 %v3688
        %v3828 = vpop.f32.mrb[0].mxu0
        %v3829 = vadd.f32 0.0, %v3828
        %v3830 = vpop.f32.mrb[0].mxu0
        %3831 = vmatprep.mubr.f32.mxu0 0.0
        %3832 = vmatmul.mubr.f32.gmra.mrb[0].mxu0 %v3691
        %v3833 = vpop.f32.mrb[0].mxu0
        %v3834 = vadd.f32 0.0, %v3833
        %v3835 = vpop.f32.mrb[0].mxu0
        %3836 = vmatprep.mubr.f32.mxu0 0.0
        %3837 = vmatmul.mubr.f32.gmra.mrb[0].mxu0 %v3694
        %v3838 = vpop.f32.mrb[0].mxu0
        %v3839 = vadd.f32 0.0, %v3838
        %v3840 = vpop.f32.mrb[0].mxu0
        %3841 = vmatprep.mubr.f32.mxu0 0.0
        %3842 = vmatmul.mubr.f32.gmra.mrb[0].mxu0 %v3697
        %v3843 = vpop.f32.mrb[0].mxu0
        %v3844 = vadd.f32 0.0, %v3843
        %v3845 = vpop.f32.mrb[0].mxu0
        %3846 = vdwg.mxu0
        %v3847 = vadd.f32 %v3608, %v3769
        %v3848 = vadd.f32 %v3609, %v3774
        %v3849 = vadd.f32 %v3610, %v3779
        %v3850 = vadd.f32 %v3611, %v3784
        %v3851 = vadd.f32 %v3612, %v3789
        %v3852 = vadd.f32 %v3613, %v3794
        %v3853 = vadd.f32 %v3614, %v3799
        %v3854 = vadd.f32 %v3615, %v3804
        %v3855 = vadd.f32 %v3616, %v3809
        %v3856 = vadd.f32 %v3617, %v3814
        %v3857 = vadd.f32 %v3618, %v3819
        %v3858 = vadd.f32 %v3619, %v3824
        %v3859 = vadd.f32 %v3620, %v3829
        %v3860 = vadd.f32 %v3621, %v3834
        %v3861 = vadd.f32 %v3622, %v3839
        %v3862 = vadd.f32 %v3623, %v3844
        %v3871 = vrot.slane %v3625, 1
        %v3872 = vrot.slane %v3626, 1
        %v3873 = vsel %vm376, %v3871, %v3872
        %v3874 = vrot.slane %v3627, 1
        %v3875 = vsel %vm376, %v3872, %v3874
        %v3876 = vrot.slane %v3628, 1
        %v3877 = vrot.slane %v3629, 1
        %v3878 = vsel %vm376, %v3876, %v3877
        %v3879 = vrot.slane %v3630, 1
        %v3880 = vsel %vm376, %v3877, %v3879
        %v3881 = vrot.slane %v3631, 1
        %v3882 = vrot.slane %v3632, 1
        %v3883 = vsel %vm376, %v3881, %v3882
        %v3884 = vrot.slane %v3633, 1
        %v3885 = vsel %vm376, %v3882, %v3884
        %v3886 = vrot.slane %v3634, 1
        %v3887 = vrot.slane %v3635, 1
        %v3888 = vsel %vm376, %v3886, %v3887
        %v3889 = vrot.slane %v3636, 1
        %v3890 = vsel %vm376, %v3887, %v3889
        %v3891 = vrot.slane %v3637, 1
        %v3892 = vrot.slane %v3638, 1
        %v3893 = vsel %vm376, %v3891, %v3892
        %v3894 = vrot.slane %v3639, 1
        %v3895 = vsel %vm376, %v3892, %v3894
        %v3896 = vrot.slane %v3640, 1
        %v3897 = vrot.slane %v3641, 1
        %v3898 = vsel %vm376, %v3896, %v3897
        %v3899 = vrot.slane %v3642, 1
        %v3900 = vsel %vm376, %v3897, %v3899
        %v3901 = vrot.slane %v3643, 1
        %v3902 = vrot.slane %v3644, 1
        %v3903 = vsel %vm376, %v3901, %v3902
        %v3904 = vrot.slane %v3645, 1
        %v3905 = vsel %vm376, %v3902, %v3904
        %v3906 = vrot.slane %v3646, 1
        %v3907 = vrot.slane %v3647, 1
        %v3908 = vsel %vm376, %v3906, %v3907
        %v3909 = vrot.slane %v3648, 1
        %v3910 = vsel %vm376, %v3907, %v3909
        %s3911 = scalar_lea.vmem [#allocation8], 16
        %v3912 = vld [vmem:[%s3911] sm:$0xf]
        %v3913 = vsel %vm429, %v3873, 0
        %v3915 = vsel %vm429, %v3875, 0
        %v3917 = vsel %vm429, %v3878, 0
        %v3919 = vsel %vm429, %v3880, 0
        %v3921 = vsel %vm429, %v3883, 0
        %v3923 = vsel %vm429, %v3885, 0
        %v3925 = vsel %vm429, %v3888, 0
        %v3927 = vsel %vm429, %v3890, 0
        %v3929 = vsel %vm429, %v3893, 0
        %v3931 = vsel %vm429, %v3895, 0
        %v3933 = vsel %vm429, %v3898, 0
        %v3935 = vsel %vm429, %v3900, 0
        %v3937 = vsel %vm429, %v3903, 0
        %v3939 = vsel %vm429, %v3905, 0
        %v3941 = vsel %vm429, %v3908, 0
        %v3943 = vsel %vm429, %v3910, 0
        %v3946 = vsel %vm470, %v3912, 0
        %3948 = vmatprep.subr.mxu0 0.0
        %3949 = vmatpush1.msra.mxu0 %v3946
        %3950 = vmatprep.subr.mxu0 0.0
        %3951 = vmatpush1.msra.mxu0 0.0
        %3952 = vmatprep.subr.mxu0 0.0
        %3953 = vmatpush1.msra.mxu0 0.0
        %3954 = vmatprep.subr.mxu0 0.0
        %3955 = vmatpush1.msra.mxu0 0.0
        %3956 = vmatprep.subr.mxu0 0.0
        %3957 = vmatpush1.msra.mxu0 0.0
        %3958 = vmatprep.subr.mxu0 0.0
        %3959 = vmatpush1.msra.mxu0 0.0
        %3960 = vmatprep.subr.mxu0 0.0
        %3961 = vmatpush1.msra.mxu0 0.0
        %3962 = vmatprep.subr.mxu0 0.0
        %3963 = vmatpush1.msra.mxu0 0.0
        %3964 = vmatprep.subr.mxu0 0.0
        %3965 = vmatpush1.msra.mxu0 0.0
        %3966 = vmatprep.subr.mxu0 0.0
        %3967 = vmatpush1.msra.mxu0 0.0
        %3968 = vmatprep.subr.mxu0 0.0
        %3969 = vmatpush1.msra.mxu0 0.0
        %3970 = vmatprep.subr.mxu0 0.0
        %3971 = vmatpush1.msra.mxu0 0.0
        %3972 = vmatprep.subr.mxu0 0.0
        %3973 = vmatpush1.msra.mxu0 0.0
        %3974 = vmatprep.subr.mxu0 0.0
        %3975 = vmatpush1.msra.mxu0 0.0
        %3976 = vmatprep.subr.mxu0 0.0
        %3977 = vmatpush1.msra.mxu0 0.0
        %3978 = vmatprep.subr.mxu0 0.0
        %3979 = vmatpush1.msra.mxu0 0.0
        %3980 = vmatprep.subr.mxu0 0.0
        %3981 = vmatpush1.msra.mxu0 0.0
        %3982 = vmatprep.subr.mxu0 0.0
        %3983 = vmatpush1.msra.mxu0 0.0
        %3984 = vmatprep.subr.mxu0 0.0
        %3985 = vmatpush1.msra.mxu0 0.0
        %3986 = vmatprep.subr.mxu0 0.0
        %3987 = vmatpush1.msra.mxu0 0.0
        %3988 = vmatprep.subr.mxu0 0.0
        %3989 = vmatpush1.msra.mxu0 0.0
        %3990 = vmatprep.subr.mxu0 0.0
        %3991 = vmatpush1.msra.mxu0 0.0
        %3992 = vmatprep.subr.mxu0 0.0
        %3993 = vmatpush1.msra.mxu0 0.0
        %3994 = vmatprep.subr.mxu0 0.0
        %3995 = vmatpush1.msra.mxu0 0.0
        %3996 = vmatprep.subr.mxu0 0.0
        %3997 = vmatpush1.msra.mxu0 0.0
        %3998 = vmatprep.subr.mxu0 0.0
        %3999 = vmatpush1.msra.mxu0 0.0
        %4000 = vmatprep.subr.mxu0 0.0
        %4001 = vmatpush1.msra.mxu0 0.0
        %4002 = vmatprep.subr.mxu0 0.0
        %4003 = vmatpush1.msra.mxu0 0.0
        %4004 = vmatprep.subr.mxu0 0.0
        %4005 = vmatpush1.msra.mxu0 0.0
        %4006 = vmatprep.subr.mxu0 0.0
        %4007 = vmatpush1.msra.mxu0 0.0
        %4008 = vmatprep.subr.mxu0 0.0
        %4009 = vmatpush1.msra.mxu0 0.0
        %4010 = vmatprep.subr.mxu0 0.0
        %4011 = vmatpush1.msra.mxu0 0.0
        %4012 = vmatprep.mubr.f32.mxu0 0.0
        %4013 = vmatmul.mubr.f32.gmra.mrb[0].mxu0 %v3913
        %v4014 = vpop.f32.mrb[0].mxu0
        %v4015 = vadd.f32 0.0, %v4014
        %v4016 = vpop.f32.mrb[0].mxu0
        %4017 = vmatprep.mubr.f32.mxu0 0.0
        %4018 = vmatmul.mubr.f32.gmra.mrb[0].mxu0 %v3915
        %v4019 = vpop.f32.mrb[0].mxu0
        %v4020 = vadd.f32 0.0, %v4019
        %v4021 = vpop.f32.mrb[0].mxu0
        %4022 = vmatprep.mubr.f32.mxu0 0.0
        %4023 = vmatmul.mubr.f32.gmra.mrb[0].mxu0 %v3917
        %v4024 = vpop.f32.mrb[0].mxu0
        %v4025 = vadd.f32 0.0, %v4024
        %v4026 = vpop.f32.mrb[0].mxu0
        %4027 = vmatprep.mubr.f32.mxu0 0.0
        %4028 = vmatmul.mubr.f32.gmra.mrb[0].mxu0 %v3919
        %v4029 = vpop.f32.mrb[0].mxu0
        %v4030 = vadd.f32 0.0, %v4029
        %v4031 = vpop.f32.mrb[0].mxu0
        %4032 = vmatprep.mubr.f32.mxu0 0.0
        %4033 = vmatmul.mubr.f32.gmra.mrb[0].mxu0 %v3921
        %v4034 = vpop.f32.mrb[0].mxu0
        %v4035 = vadd.f32 0.0, %v4034
        %v4036 = vpop.f32.mrb[0].mxu0
        %4037 = vmatprep.mubr.f32.mxu0 0.0
        %4038 = vmatmul.mubr.f32.gmra.mrb[0].mxu0 %v3923
        %v4039 = vpop.f32.mrb[0].mxu0
        %v4040 = vadd.f32 0.0, %v4039
        %v4041 = vpop.f32.mrb[0].mxu0
        %4042 = vmatprep.mubr.f32.mxu0 0.0
        %4043 = vmatmul.mubr.f32.gmra.mrb[0].mxu0 %v3925
        %v4044 = vpop.f32.mrb[0].mxu0
        %v4045 = vadd.f32 0.0, %v4044
        %v4046 = vpop.f32.mrb[0].mxu0
        %4047 = vmatprep.mubr.f32.mxu0 0.0
        %4048 = vmatmul.mubr.f32.gmra.mrb[0].mxu0 %v3927
        %v4049 = vpop.f32.mrb[0].mxu0
        %v4050 = vadd.f32 0.0, %v4049
        %v4051 = vpop.f32.mrb[0].mxu0
        %4052 = vmatprep.mubr.f32.mxu0 0.0
        %4053 = vmatmul.mubr.f32.gmra.mrb[0].mxu0 %v3929
        %v4054 = vpop.f32.mrb[0].mxu0
        %v4055 = vadd.f32 0.0, %v4054
        %v4056 = vpop.f32.mrb[0].mxu0
        %4057 = vmatprep.mubr.f32.mxu0 0.0
        %4058 = vmatmul.mubr.f32.gmra.mrb[0].mxu0 %v3931
        %v4059 = vpop.f32.mrb[0].mxu0
        %v4060 = vadd.f32 0.0, %v4059
        %v4061 = vpop.f32.mrb[0].mxu0
        %4062 = vmatprep.mubr.f32.mxu0 0.0
        %4063 = vmatmul.mubr.f32.gmra.mrb[0].mxu0 %v3933
        %v4064 = vpop.f32.mrb[0].mxu0
        %v4065 = vadd.f32 0.0, %v4064
        %v4066 = vpop.f32.mrb[0].mxu0
        %4067 = vmatprep.mubr.f32.mxu0 0.0
        %4068 = vmatmul.mubr.f32.gmra.mrb[0].mxu0 %v3935
        %v4069 = vpop.f32.mrb[0].mxu0
        %v4070 = vadd.f32 0.0, %v4069
        %v4071 = vpop.f32.mrb[0].mxu0
        %4072 = vmatprep.mubr.f32.mxu0 0.0
        %4073 = vmatmul.mubr.f32.gmra.mrb[0].mxu0 %v3937
        %v4074 = vpop.f32.mrb[0].mxu0
        %v4075 = vadd.f32 0.0, %v4074
        %v4076 = vpop.f32.mrb[0].mxu0
        %4077 = vmatprep.mubr.f32.mxu0 0.0
        %4078 = vmatmul.mubr.f32.gmra.mrb[0].mxu0 %v3939
        %v4079 = vpop.f32.mrb[0].mxu0
        %v4080 = vadd.f32 0.0, %v4079
        %v4081 = vpop.f32.mrb[0].mxu0
        %4082 = vmatprep.mubr.f32.mxu0 0.0
        %4083 = vmatmul.mubr.f32.gmra.mrb[0].mxu0 %v3941
        %v4084 = vpop.f32.mrb[0].mxu0
        %v4085 = vadd.f32 0.0, %v4084
        %v4086 = vpop.f32.mrb[0].mxu0
        %4087 = vmatprep.mubr.f32.mxu0 0.0
        %4088 = vmatmul.mubr.f32.gmra.mrb[0].mxu0 %v3943
        %v4089 = vpop.f32.mrb[0].mxu0
        %v4090 = vadd.f32 0.0, %v4089
        %v4091 = vpop.f32.mrb[0].mxu0
        %4092 = vdwg.mxu0
        %v4093 = vadd.f32 %v3847, %v4015
        %v4094 = vadd.f32 %v3848, %v4020
        %v4095 = vadd.f32 %v3849, %v4025
        %v4096 = vadd.f32 %v3850, %v4030
        %v4097 = vadd.f32 %v3851, %v4035
        %v4098 = vadd.f32 %v3852, %v4040
        %v4099 = vadd.f32 %v3853, %v4045
        %v4100 = vadd.f32 %v3854, %v4050
        %v4101 = vadd.f32 %v3855, %v4055
        %v4102 = vadd.f32 %v3856, %v4060
        %v4103 = vadd.f32 %v3857, %v4065
        %v4104 = vadd.f32 %v3858, %v4070
        %v4105 = vadd.f32 %v3859, %v4075
        %v4106 = vadd.f32 %v3860, %v4080
        %v4107 = vadd.f32 %v3861, %v4085
        %v4108 = vadd.f32 %v3862, %v4090
        %v4109 = vrot.slane %v3625, 2
        %v4110 = vrot.slane %v3626, 2
        %v4111 = vsel %vm847, %v4109, %v4110
        %v4112 = vrot.slane %v3627, 2
        %v4113 = vsel %vm847, %v4110, %v4112
        %v4114 = vrot.slane %v3628, 2
        %v4115 = vrot.slane %v3629, 2
        %v4116 = vsel %vm847, %v4114, %v4115
        %v4117 = vrot.slane %v3630, 2
        %v4118 = vsel %vm847, %v4115, %v4117
        %v4119 = vrot.slane %v3631, 2
        %v4120 = vrot.slane %v3632, 2
        %v4121 = vsel %vm847, %v4119, %v4120
        %v4122 = vrot.slane %v3633, 2
        %v4123 = vsel %vm847, %v4120, %v4122
        %v4124 = vrot.slane %v3634, 2
        %v4125 = vrot.slane %v3635, 2
        %v4126 = vsel %vm847, %v4124, %v4125
        %v4127 = vrot.slane %v3636, 2
        %v4128 = vsel %vm847, %v4125, %v4127
        %v4129 = vrot.slane %v3637, 2
        %v4130 = vrot.slane %v3638, 2
        %v4131 = vsel %vm847, %v4129, %v4130
        %v4132 = vrot.slane %v3639, 2
        %v4133 = vsel %vm847, %v4130, %v4132
        %v4134 = vrot.slane %v3640, 2
        %v4135 = vrot.slane %v3641, 2
        %v4136 = vsel %vm847, %v4134, %v4135
        %v4137 = vrot.slane %v3642, 2
        %v4138 = vsel %vm847, %v4135, %v4137
        %v4139 = vrot.slane %v3643, 2
        %v4140 = vrot.slane %v3644, 2
        %v4141 = vsel %vm847, %v4139, %v4140
        %v4142 = vrot.slane %v3645, 2
        %v4143 = vsel %vm847, %v4140, %v4142
        %v4144 = vrot.slane %v3646, 2
        %v4145 = vrot.slane %v3647, 2
        %v4146 = vsel %vm847, %v4144, %v4145
        %v4147 = vrot.slane %v3648, 2
        %v4148 = vsel %vm847, %v4145, %v4147
        %s4149 = scalar_lea.vmem [#allocation8], 20
        %v4150 = vld [vmem:[%s4149] sm:$0xf]
        %v4151 = vsel %vm429, %v4111, 0
        %v4153 = vsel %vm429, %v4113, 0
        %v4155 = vsel %vm429, %v4116, 0
        %v4157 = vsel %vm429, %v4118, 0
        %v4159 = vsel %vm429, %v4121, 0
        %v4161 = vsel %vm429, %v4123, 0
        %v4163 = vsel %vm429, %v4126, 0
        %v4165 = vsel %vm429, %v4128, 0
        %v4167 = vsel %vm429, %v4131, 0
        %v4169 = vsel %vm429, %v4133, 0
        %v4171 = vsel %vm429, %v4136, 0
        %v4173 = vsel %vm429, %v4138, 0
        %v4175 = vsel %vm429, %v4141, 0
        %v4177 = vsel %vm429, %v4143, 0
        %v4179 = vsel %vm429, %v4146, 0
        %v4181 = vsel %vm429, %v4148, 0
        %v4184 = vsel %vm470, %v4150, 0
        %4186 = vmatprep.subr.mxu0 0.0
        %4187 = vmatpush1.msra.mxu0 %v4184
        %4188 = vmatprep.subr.mxu0 0.0
        %4189 = vmatpush1.msra.mxu0 0.0
        %4190 = vmatprep.subr.mxu0 0.0
        %4191 = vmatpush1.msra.mxu0 0.0
        %4192 = vmatprep.subr.mxu0 0.0
        %4193 = vmatpush1.msra.mxu0 0.0
        %4194 = vmatprep.subr.mxu0 0.0
        %4195 = vmatpush1.msra.mxu0 0.0
        %4196 = vmatprep.subr.mxu0 0.0
        %4197 = vmatpush1.msra.mxu0 0.0
        %4198 = vmatprep.subr.mxu0 0.0
        %4199 = vmatpush1.msra.mxu0 0.0
        %4200 = vmatprep.subr.mxu0 0.0
        %4201 = vmatpush1.msra.mxu0 0.0
        %4202 = vmatprep.subr.mxu0 0.0
        %4203 = vmatpush1.msra.mxu0 0.0
        %4204 = vmatprep.subr.mxu0 0.0
        %4205 = vmatpush1.msra.mxu0 0.0
        %4206 = vmatprep.subr.mxu0 0.0
        %4207 = vmatpush1.msra.mxu0 0.0
        %4208 = vmatprep.subr.mxu0 0.0
        %4209 = vmatpush1.msra.mxu0 0.0
        %4210 = vmatprep.subr.mxu0 0.0
        %4211 = vmatpush1.msra.mxu0 0.0
        %4212 = vmatprep.subr.mxu0 0.0
        %4213 = vmatpush1.msra.mxu0 0.0
        %4214 = vmatprep.subr.mxu0 0.0
        %4215 = vmatpush1.msra.mxu0 0.0
        %4216 = vmatprep.subr.mxu0 0.0
        %4217 = vmatpush1.msra.mxu0 0.0
        %4218 = vmatprep.subr.mxu0 0.0
        %4219 = vmatpush1.msra.mxu0 0.0
        %4220 = vmatprep.subr.mxu0 0.0
        %4221 = vmatpush1.msra.mxu0 0.0
        %4222 = vmatprep.subr.mxu0 0.0
        %4223 = vmatpush1.msra.mxu0 0.0
        %4224 = vmatprep.subr.mxu0 0.0
        %4225 = vmatpush1.msra.mxu0 0.0
        %4226 = vmatprep.subr.mxu0 0.0
        %4227 = vmatpush1.msra.mxu0 0.0
        %4228 = vmatprep.subr.mxu0 0.0
        %4229 = vmatpush1.msra.mxu0 0.0
        %4230 = vmatprep.subr.mxu0 0.0
        %4231 = vmatpush1.msra.mxu0 0.0
        %4232 = vmatprep.subr.mxu0 0.0
        %4233 = vmatpush1.msra.mxu0 0.0
        %4234 = vmatprep.subr.mxu0 0.0
        %4235 = vmatpush1.msra.mxu0 0.0
        %4236 = vmatprep.subr.mxu0 0.0
        %4237 = vmatpush1.msra.mxu0 0.0
        %4238 = vmatprep.subr.mxu0 0.0
        %4239 = vmatpush1.msra.mxu0 0.0
        %4240 = vmatprep.subr.mxu0 0.0
        %4241 = vmatpush1.msra.mxu0 0.0
        %4242 = vmatprep.subr.mxu0 0.0
        %4243 = vmatpush1.msra.mxu0 0.0
        %4244 = vmatprep.subr.mxu0 0.0
        %4245 = vmatpush1.msra.mxu0 0.0
        %4246 = vmatprep.subr.mxu0 0.0
        %4247 = vmatpush1.msra.mxu0 0.0
        %4248 = vmatprep.subr.mxu0 0.0
        %4249 = vmatpush1.msra.mxu0 0.0
        %4250 = vmatprep.mubr.f32.mxu0 0.0
        %4251 = vmatmul.mubr.f32.gmra.mrb[0].mxu0 %v4151
        %v4252 = vpop.f32.mrb[0].mxu0
        %v4253 = vadd.f32 0.0, %v4252
        %v4254 = vpop.f32.mrb[0].mxu0
        %4255 = vmatprep.mubr.f32.mxu0 0.0
        %4256 = vmatmul.mubr.f32.gmra.mrb[0].mxu0 %v4153
        %v4257 = vpop.f32.mrb[0].mxu0
        %v4258 = vadd.f32 0.0, %v4257
        %v4259 = vpop.f32.mrb[0].mxu0
        %4260 = vmatprep.mubr.f32.mxu0 0.0
        %4261 = vmatmul.mubr.f32.gmra.mrb[0].mxu0 %v4155
        %v4262 = vpop.f32.mrb[0].mxu0
        %v4263 = vadd.f32 0.0, %v4262
        %v4264 = vpop.f32.mrb[0].mxu0
        %4265 = vmatprep.mubr.f32.mxu0 0.0
        %4266 = vmatmul.mubr.f32.gmra.mrb[0].mxu0 %v4157
        %v4267 = vpop.f32.mrb[0].mxu0
        %v4268 = vadd.f32 0.0, %v4267
        %v4269 = vpop.f32.mrb[0].mxu0
        %4270 = vmatprep.mubr.f32.mxu0 0.0
        %4271 = vmatmul.mubr.f32.gmra.mrb[0].mxu0 %v4159
        %v4272 = vpop.f32.mrb[0].mxu0
        %v4273 = vadd.f32 0.0, %v4272
        %v4274 = vpop.f32.mrb[0].mxu0
        %4275 = vmatprep.mubr.f32.mxu0 0.0
        %4276 = vmatmul.mubr.f32.gmra.mrb[0].mxu0 %v4161
        %v4277 = vpop.f32.mrb[0].mxu0
        %v4278 = vadd.f32 0.0, %v4277
        %v4279 = vpop.f32.mrb[0].mxu0
        %4280 = vmatprep.mubr.f32.mxu0 0.0
        %4281 = vmatmul.mubr.f32.gmra.mrb[0].mxu0 %v4163
        %v4282 = vpop.f32.mrb[0].mxu0
        %v4283 = vadd.f32 0.0, %v4282
        %v4284 = vpop.f32.mrb[0].mxu0
        %4285 = vmatprep.mubr.f32.mxu0 0.0
        %4286 = vmatmul.mubr.f32.gmra.mrb[0].mxu0 %v4165
        %v4287 = vpop.f32.mrb[0].mxu0
        %v4288 = vadd.f32 0.0, %v4287
        %v4289 = vpop.f32.mrb[0].mxu0
        %4290 = vmatprep.mubr.f32.mxu0 0.0
        %4291 = vmatmul.mubr.f32.gmra.mrb[0].mxu0 %v4167
        %v4292 = vpop.f32.mrb[0].mxu0
        %v4293 = vadd.f32 0.0, %v4292
        %v4294 = vpop.f32.mrb[0].mxu0
        %4295 = vmatprep.mubr.f32.mxu0 0.0
        %4296 = vmatmul.mubr.f32.gmra.mrb[0].mxu0 %v4169
        %v4297 = vpop.f32.mrb[0].mxu0
        %v4298 = vadd.f32 0.0, %v4297
        %v4299 = vpop.f32.mrb[0].mxu0
        %4300 = vmatprep.mubr.f32.mxu0 0.0
        %4301 = vmatmul.mubr.f32.gmra.mrb[0].mxu0 %v4171
        %v4302 = vpop.f32.mrb[0].mxu0
        %v4303 = vadd.f32 0.0, %v4302
        %v4304 = vpop.f32.mrb[0].mxu0
        %4305 = vmatprep.mubr.f32.mxu0 0.0
        %4306 = vmatmul.mubr.f32.gmra.mrb[0].mxu0 %v4173
        %v4307 = vpop.f32.mrb[0].mxu0
        %v4308 = vadd.f32 0.0, %v4307
        %v4309 = vpop.f32.mrb[0].mxu0
        %4310 = vmatprep.mubr.f32.mxu0 0.0
        %4311 = vmatmul.mubr.f32.gmra.mrb[0].mxu0 %v4175
        %v4312 = vpop.f32.mrb[0].mxu0
        %v4313 = vadd.f32 0.0, %v4312
        %v4314 = vpop.f32.mrb[0].mxu0
        %4315 = vmatprep.mubr.f32.mxu0 0.0
        %4316 = vmatmul.mubr.f32.gmra.mrb[0].mxu0 %v4177
        %v4317 = vpop.f32.mrb[0].mxu0
        %v4318 = vadd.f32 0.0, %v4317
        %v4319 = vpop.f32.mrb[0].mxu0
        %4320 = vmatprep.mubr.f32.mxu0 0.0
        %4321 = vmatmul.mubr.f32.gmra.mrb[0].mxu0 %v4179
        %v4322 = vpop.f32.mrb[0].mxu0
        %v4323 = vadd.f32 0.0, %v4322
        %v4324 = vpop.f32.mrb[0].mxu0
        %4325 = vmatprep.mubr.f32.mxu0 0.0
        %4326 = vmatmul.mubr.f32.gmra.mrb[0].mxu0 %v4181
        %v4327 = vpop.f32.mrb[0].mxu0
        %v4328 = vadd.f32 0.0, %v4327
        %v4329 = vpop.f32.mrb[0].mxu0
        %4330 = vdwg.mxu0
        %v4331 = vadd.f32 %v4093, %v4253
        %v4332 = vadd.f32 %v4094, %v4258
        %v4333 = vadd.f32 %v4095, %v4263
        %v4334 = vadd.f32 %v4096, %v4268
        %v4335 = vadd.f32 %v4097, %v4273
        %v4336 = vadd.f32 %v4098, %v4278
        %v4337 = vadd.f32 %v4099, %v4283
        %v4338 = vadd.f32 %v4100, %v4288
        %v4339 = vadd.f32 %v4101, %v4293
        %v4340 = vadd.f32 %v4102, %v4298
        %v4341 = vadd.f32 %v4103, %v4303
        %v4342 = vadd.f32 %v4104, %v4308
        %v4343 = vadd.f32 %v4105, %v4313
        %v4344 = vadd.f32 %v4106, %v4318
        %v4345 = vadd.f32 %v4107, %v4323
        %v4346 = vadd.f32 %v4108, %v4328
        %s4347 = scalar_lea.vmem [#allocation2], 48
        %v4348 = vld [vmem:[%s4347] sm:$0xff]
        %v4349 = vld [vmem:[%s4347 + $0x8] sm:$0xff]
        %v4350 = vld [vmem:[%s4347 + $0x10] sm:$0x3]
        %v4351 = vld [vmem:[%s4347 + $0x18] sm:$0xff]
        %v4352 = vld [vmem:[%s4347 + $0x20] sm:$0xff]
        %v4353 = vld [vmem:[%s4347 + $0x28] sm:$0x3]
        %v4354 = vld [vmem:[%s4347 + $0x30] sm:$0xff]
        %v4355 = vld [vmem:[%s4347 + $0x38] sm:$0xff]
        %v4356 = vld [vmem:[%s4347 + $0x40] sm:$0x3]
        %v4357 = vld [vmem:[%s4347 + $0x48] sm:$0xff]
        %v4358 = vld [vmem:[%s4347 + $0x50] sm:$0xff]
        %v4359 = vld [vmem:[%s4347 + $0x58] sm:$0x3]
        %v4360 = vld [vmem:[%s4347 + $0x60] sm:$0xff]
        %v4361 = vld [vmem:[%s4347 + $0x68] sm:$0xff]
        %v4362 = vld [vmem:[%s4347 + $0x70] sm:$0x3]
        %v4363 = vld [vmem:[%s4347 + $0x78] sm:$0xff]
        %v4364 = vld [vmem:[%s4347 + $0x80] sm:$0xff]
        %v4365 = vld [vmem:[%s4347 + $0x88] sm:$0x3]
        %v4366 = vld [vmem:[%s4347 + $0x90] sm:$0xff]
        %v4367 = vld [vmem:[%s4347 + $0x98] sm:$0xff]
        %v4368 = vld [vmem:[%s4347 + $0xa0] sm:$0x3]
        %v4369 = vld [vmem:[%s4347 + $0xa8] sm:$0xff]
        %v4370 = vld [vmem:[%s4347 + $0xb0] sm:$0xff]
        %v4371 = vld [vmem:[%s4347 + $0xb8] sm:$0x3]
        %s4372 = scalar_lea.vmem [#allocation8], 24
        %v4373 = vld [vmem:[%s4372] sm:$0xf]
        %v4375 = vsel %vm429, %v4348, 0
        %v4378 = vsel %vm429, %v4349, 0
        %v4381 = vsel %vm429, %v4351, 0
        %v4384 = vsel %vm429, %v4352, 0
        %v4387 = vsel %vm429, %v4354, 0
        %v4390 = vsel %vm429, %v4355, 0
        %v4393 = vsel %vm429, %v4357, 0
        %v4396 = vsel %vm429, %v4358, 0
        %v4399 = vsel %vm429, %v4360, 0
        %v4402 = vsel %vm429, %v4361, 0
        %v4405 = vsel %vm429, %v4363, 0
        %v4408 = vsel %vm429, %v4364, 0
        %v4411 = vsel %vm429, %v4366, 0
        %v4414 = vsel %vm429, %v4367, 0
        %v4417 = vsel %vm429, %v4369, 0
        %v4420 = vsel %vm429, %v4370, 0
        %v4423 = vsel %vm470, %v4373, 0
        %4425 = vmatprep.subr.mxu0 0.0
        %4426 = vmatpush1.msra.mxu0 %v4423
        %4427 = vmatprep.subr.mxu0 0.0
        %4428 = vmatpush1.msra.mxu0 0.0
        %4429 = vmatprep.subr.mxu0 0.0
        %4430 = vmatpush1.msra.mxu0 0.0
        %4431 = vmatprep.subr.mxu0 0.0
        %4432 = vmatpush1.msra.mxu0 0.0
        %4433 = vmatprep.subr.mxu0 0.0
        %4434 = vmatpush1.msra.mxu0 0.0
        %4435 = vmatprep.subr.mxu0 0.0
        %4436 = vmatpush1.msra.mxu0 0.0
        %4437 = vmatprep.subr.mxu0 0.0
        %4438 = vmatpush1.msra.mxu0 0.0
        %4439 = vmatprep.subr.mxu0 0.0
        %4440 = vmatpush1.msra.mxu0 0.0
        %4441 = vmatprep.subr.mxu0 0.0
        %4442 = vmatpush1.msra.mxu0 0.0
        %4443 = vmatprep.subr.mxu0 0.0
        %4444 = vmatpush1.msra.mxu0 0.0
        %4445 = vmatprep.subr.mxu0 0.0
        %4446 = vmatpush1.msra.mxu0 0.0
        %4447 = vmatprep.subr.mxu0 0.0
        %4448 = vmatpush1.msra.mxu0 0.0
        %4449 = vmatprep.subr.mxu0 0.0
        %4450 = vmatpush1.msra.mxu0 0.0
        %4451 = vmatprep.subr.mxu0 0.0
        %4452 = vmatpush1.msra.mxu0 0.0
        %4453 = vmatprep.subr.mxu0 0.0
        %4454 = vmatpush1.msra.mxu0 0.0
        %4455 = vmatprep.subr.mxu0 0.0
        %4456 = vmatpush1.msra.mxu0 0.0
        %4457 = vmatprep.subr.mxu0 0.0
        %4458 = vmatpush1.msra.mxu0 0.0
        %4459 = vmatprep.subr.mxu0 0.0
        %4460 = vmatpush1.msra.mxu0 0.0
        %4461 = vmatprep.subr.mxu0 0.0
        %4462 = vmatpush1.msra.mxu0 0.0
        %4463 = vmatprep.subr.mxu0 0.0
        %4464 = vmatpush1.msra.mxu0 0.0
        %4465 = vmatprep.subr.mxu0 0.0
        %4466 = vmatpush1.msra.mxu0 0.0
        %4467 = vmatprep.subr.mxu0 0.0
        %4468 = vmatpush1.msra.mxu0 0.0
        %4469 = vmatprep.subr.mxu0 0.0
        %4470 = vmatpush1.msra.mxu0 0.0
        %4471 = vmatprep.subr.mxu0 0.0
        %4472 = vmatpush1.msra.mxu0 0.0
        %4473 = vmatprep.subr.mxu0 0.0
        %4474 = vmatpush1.msra.mxu0 0.0
        %4475 = vmatprep.subr.mxu0 0.0
        %4476 = vmatpush1.msra.mxu0 0.0
        %4477 = vmatprep.subr.mxu0 0.0
        %4478 = vmatpush1.msra.mxu0 0.0
        %4479 = vmatprep.subr.mxu0 0.0
        %4480 = vmatpush1.msra.mxu0 0.0
        %4481 = vmatprep.subr.mxu0 0.0
        %4482 = vmatpush1.msra.mxu0 0.0
        %4483 = vmatprep.subr.mxu0 0.0
        %4484 = vmatpush1.msra.mxu0 0.0
        %4485 = vmatprep.subr.mxu0 0.0
        %4486 = vmatpush1.msra.mxu0 0.0
        %4487 = vmatprep.subr.mxu0 0.0
        %4488 = vmatpush1.msra.mxu0 0.0
        %4489 = vmatprep.mubr.f32.mxu0 0.0
        %4490 = vmatmul.mubr.f32.gmra.mrb[0].mxu0 %v4375
        %v4491 = vpop.f32.mrb[0].mxu0
        %v4492 = vadd.f32 0.0, %v4491
        %v4493 = vpop.f32.mrb[0].mxu0
        %4494 = vmatprep.mubr.f32.mxu0 0.0
        %4495 = vmatmul.mubr.f32.gmra.mrb[0].mxu0 %v4378
        %v4496 = vpop.f32.mrb[0].mxu0
        %v4497 = vadd.f32 0.0, %v4496
        %v4498 = vpop.f32.mrb[0].mxu0
        %4499 = vmatprep.mubr.f32.mxu0 0.0
        %4500 = vmatmul.mubr.f32.gmra.mrb[0].mxu0 %v4381
        %v4501 = vpop.f32.mrb[0].mxu0
        %v4502 = vadd.f32 0.0, %v4501
        %v4503 = vpop.f32.mrb[0].mxu0
        %4504 = vmatprep.mubr.f32.mxu0 0.0
        %4505 = vmatmul.mubr.f32.gmra.mrb[0].mxu0 %v4384
        %v4506 = vpop.f32.mrb[0].mxu0
        %v4507 = vadd.f32 0.0, %v4506
        %v4508 = vpop.f32.mrb[0].mxu0
        %4509 = vmatprep.mubr.f32.mxu0 0.0
        %4510 = vmatmul.mubr.f32.gmra.mrb[0].mxu0 %v4387
        %v4511 = vpop.f32.mrb[0].mxu0
        %v4512 = vadd.f32 0.0, %v4511
        %v4513 = vpop.f32.mrb[0].mxu0
        %4514 = vmatprep.mubr.f32.mxu0 0.0
        %4515 = vmatmul.mubr.f32.gmra.mrb[0].mxu0 %v4390
        %v4516 = vpop.f32.mrb[0].mxu0
        %v4517 = vadd.f32 0.0, %v4516
        %v4518 = vpop.f32.mrb[0].mxu0
        %4519 = vmatprep.mubr.f32.mxu0 0.0
        %4520 = vmatmul.mubr.f32.gmra.mrb[0].mxu0 %v4393
        %v4521 = vpop.f32.mrb[0].mxu0
        %v4522 = vadd.f32 0.0, %v4521
        %v4523 = vpop.f32.mrb[0].mxu0
        %4524 = vmatprep.mubr.f32.mxu0 0.0
        %4525 = vmatmul.mubr.f32.gmra.mrb[0].mxu0 %v4396
        %v4526 = vpop.f32.mrb[0].mxu0
        %v4527 = vadd.f32 0.0, %v4526
        %v4528 = vpop.f32.mrb[0].mxu0
        %4529 = vmatprep.mubr.f32.mxu0 0.0
        %4530 = vmatmul.mubr.f32.gmra.mrb[0].mxu0 %v4399
        %v4531 = vpop.f32.mrb[0].mxu0
        %v4532 = vadd.f32 0.0, %v4531
        %v4533 = vpop.f32.mrb[0].mxu0
        %4534 = vmatprep.mubr.f32.mxu0 0.0
        %4535 = vmatmul.mubr.f32.gmra.mrb[0].mxu0 %v4402
        %v4536 = vpop.f32.mrb[0].mxu0
        %v4537 = vadd.f32 0.0, %v4536
        %v4538 = vpop.f32.mrb[0].mxu0
        %4539 = vmatprep.mubr.f32.mxu0 0.0
        %4540 = vmatmul.mubr.f32.gmra.mrb[0].mxu0 %v4405
        %v4541 = vpop.f32.mrb[0].mxu0
        %v4542 = vadd.f32 0.0, %v4541
        %v4543 = vpop.f32.mrb[0].mxu0
        %4544 = vmatprep.mubr.f32.mxu0 0.0
        %4545 = vmatmul.mubr.f32.gmra.mrb[0].mxu0 %v4408
        %v4546 = vpop.f32.mrb[0].mxu0
        %v4547 = vadd.f32 0.0, %v4546
        %v4548 = vpop.f32.mrb[0].mxu0
        %4549 = vmatprep.mubr.f32.mxu0 0.0
        %4550 = vmatmul.mubr.f32.gmra.mrb[0].mxu0 %v4411
        %v4551 = vpop.f32.mrb[0].mxu0
        %v4552 = vadd.f32 0.0, %v4551
        %v4553 = vpop.f32.mrb[0].mxu0
        %4554 = vmatprep.mubr.f32.mxu0 0.0
        %4555 = vmatmul.mubr.f32.gmra.mrb[0].mxu0 %v4414
        %v4556 = vpop.f32.mrb[0].mxu0
        %v4557 = vadd.f32 0.0, %v4556
        %v4558 = vpop.f32.mrb[0].mxu0
        %4559 = vmatprep.mubr.f32.mxu0 0.0
        %4560 = vmatmul.mubr.f32.gmra.mrb[0].mxu0 %v4417
        %v4561 = vpop.f32.mrb[0].mxu0
        %v4562 = vadd.f32 0.0, %v4561
        %v4563 = vpop.f32.mrb[0].mxu0
        %4564 = vmatprep.mubr.f32.mxu0 0.0
        %4565 = vmatmul.mubr.f32.gmra.mrb[0].mxu0 %v4420
        %v4566 = vpop.f32.mrb[0].mxu0
        %v4567 = vadd.f32 0.0, %v4566
        %v4568 = vpop.f32.mrb[0].mxu0
        %4569 = vdwg.mxu0
        %v4570 = vadd.f32 %v4331, %v4492
        %v4571 = vadd.f32 %v4332, %v4497
        %v4572 = vadd.f32 %v4333, %v4502
        %v4573 = vadd.f32 %v4334, %v4507
        %v4574 = vadd.f32 %v4335, %v4512
        %v4575 = vadd.f32 %v4336, %v4517
        %v4576 = vadd.f32 %v4337, %v4522
        %v4577 = vadd.f32 %v4338, %v4527
        %v4578 = vadd.f32 %v4339, %v4532
        %v4579 = vadd.f32 %v4340, %v4537
        %v4580 = vadd.f32 %v4341, %v4542
        %v4581 = vadd.f32 %v4342, %v4547
        %v4582 = vadd.f32 %v4343, %v4552
        %v4583 = vadd.f32 %v4344, %v4557
        %v4584 = vadd.f32 %v4345, %v4562
        %v4585 = vadd.f32 %v4346, %v4567
        %v4594 = vrot.slane %v4348, 1
        %v4595 = vrot.slane %v4349, 1
        %v4596 = vsel %vm376, %v4594, %v4595
        %v4597 = vrot.slane %v4350, 1
        %v4598 = vsel %vm376, %v4595, %v4597
        %v4599 = vrot.slane %v4351, 1
        %v4600 = vrot.slane %v4352, 1
        %v4601 = vsel %vm376, %v4599, %v4600
        %v4602 = vrot.slane %v4353, 1
        %v4603 = vsel %vm376, %v4600, %v4602
        %v4604 = vrot.slane %v4354, 1
        %v4605 = vrot.slane %v4355, 1
        %v4606 = vsel %vm376, %v4604, %v4605
        %v4607 = vrot.slane %v4356, 1
        %v4608 = vsel %vm376, %v4605, %v4607
        %v4609 = vrot.slane %v4357, 1
        %v4610 = vrot.slane %v4358, 1
        %v4611 = vsel %vm376, %v4609, %v4610
        %v4612 = vrot.slane %v4359, 1
        %v4613 = vsel %vm376, %v4610, %v4612
        %v4614 = vrot.slane %v4360, 1
        %v4615 = vrot.slane %v4361, 1
        %v4616 = vsel %vm376, %v4614, %v4615
        %v4617 = vrot.slane %v4362, 1
        %v4618 = vsel %vm376, %v4615, %v4617
        %v4619 = vrot.slane %v4363, 1
        %v4620 = vrot.slane %v4364, 1
        %v4621 = vsel %vm376, %v4619, %v4620
        %v4622 = vrot.slane %v4365, 1
        %v4623 = vsel %vm376, %v4620, %v4622
        %v4624 = vrot.slane %v4366, 1
        %v4625 = vrot.slane %v4367, 1
        %v4626 = vsel %vm376, %v4624, %v4625
        %v4627 = vrot.slane %v4368, 1
        %v4628 = vsel %vm376, %v4625, %v4627
        %v4629 = vrot.slane %v4369, 1
        %v4630 = vrot.slane %v4370, 1
        %v4631 = vsel %vm376, %v4629, %v4630
        %v4632 = vrot.slane %v4371, 1
        %v4633 = vsel %vm376, %v4630, %v4632
        %s4634 = scalar_lea.vmem [#allocation8], 28
        %v4635 = vld [vmem:[%s4634] sm:$0xf]
        %v4636 = vsel %vm429, %v4596, 0
        %v4638 = vsel %vm429, %v4598, 0
        %v4640 = vsel %vm429, %v4601, 0
        %v4642 = vsel %vm429, %v4603, 0
        %v4644 = vsel %vm429, %v4606, 0
        %v4646 = vsel %vm429, %v4608, 0
        %v4648 = vsel %vm429, %v4611, 0
        %v4650 = vsel %vm429, %v4613, 0
        %v4652 = vsel %vm429, %v4616, 0
        %v4654 = vsel %vm429, %v4618, 0
        %v4656 = vsel %vm429, %v4621, 0
        %v4658 = vsel %vm429, %v4623, 0
        %v4660 = vsel %vm429, %v4626, 0
        %v4662 = vsel %vm429, %v4628, 0
        %v4664 = vsel %vm429, %v4631, 0
        %v4666 = vsel %vm429, %v4633, 0
        %v4669 = vsel %vm470, %v4635, 0
        %4671 = vmatprep.subr.mxu0 0.0
        %4672 = vmatpush1.msra.mxu0 %v4669
        %4673 = vmatprep.subr.mxu0 0.0
        %4674 = vmatpush1.msra.mxu0 0.0
        %4675 = vmatprep.subr.mxu0 0.0
        %4676 = vmatpush1.msra.mxu0 0.0
        %4677 = vmatprep.subr.mxu0 0.0
        %4678 = vmatpush1.msra.mxu0 0.0
        %4679 = vmatprep.subr.mxu0 0.0
        %4680 = vmatpush1.msra.mxu0 0.0
        %4681 = vmatprep.subr.mxu0 0.0
        %4682 = vmatpush1.msra.mxu0 0.0
        %4683 = vmatprep.subr.mxu0 0.0
        %4684 = vmatpush1.msra.mxu0 0.0
        %4685 = vmatprep.subr.mxu0 0.0
        %4686 = vmatpush1.msra.mxu0 0.0
        %4687 = vmatprep.subr.mxu0 0.0
        %4688 = vmatpush1.msra.mxu0 0.0
        %4689 = vmatprep.subr.mxu0 0.0
        %4690 = vmatpush1.msra.mxu0 0.0
        %4691 = vmatprep.subr.mxu0 0.0
        %4692 = vmatpush1.msra.mxu0 0.0
        %4693 = vmatprep.subr.mxu0 0.0
        %4694 = vmatpush1.msra.mxu0 0.0
        %4695 = vmatprep.subr.mxu0 0.0
        %4696 = vmatpush1.msra.mxu0 0.0
        %4697 = vmatprep.subr.mxu0 0.0
        %4698 = vmatpush1.msra.mxu0 0.0
        %4699 = vmatprep.subr.mxu0 0.0
        %4700 = vmatpush1.msra.mxu0 0.0
        %4701 = vmatprep.subr.mxu0 0.0
        %4702 = vmatpush1.msra.mxu0 0.0
        %4703 = vmatprep.subr.mxu0 0.0
        %4704 = vmatpush1.msra.mxu0 0.0
        %4705 = vmatprep.subr.mxu0 0.0
        %4706 = vmatpush1.msra.mxu0 0.0
        %4707 = vmatprep.subr.mxu0 0.0
        %4708 = vmatpush1.msra.mxu0 0.0
        %4709 = vmatprep.subr.mxu0 0.0
        %4710 = vmatpush1.msra.mxu0 0.0
        %4711 = vmatprep.subr.mxu0 0.0
        %4712 = vmatpush1.msra.mxu0 0.0
        %4713 = vmatprep.subr.mxu0 0.0
        %4714 = vmatpush1.msra.mxu0 0.0
        %4715 = vmatprep.subr.mxu0 0.0
        %4716 = vmatpush1.msra.mxu0 0.0
        %4717 = vmatprep.subr.mxu0 0.0
        %4718 = vmatpush1.msra.mxu0 0.0
        %4719 = vmatprep.subr.mxu0 0.0
        %4720 = vmatpush1.msra.mxu0 0.0
        %4721 = vmatprep.subr.mxu0 0.0
        %4722 = vmatpush1.msra.mxu0 0.0
        %4723 = vmatprep.subr.mxu0 0.0
        %4724 = vmatpush1.msra.mxu0 0.0
        %4725 = vmatprep.subr.mxu0 0.0
        %4726 = vmatpush1.msra.mxu0 0.0
        %4727 = vmatprep.subr.mxu0 0.0
        %4728 = vmatpush1.msra.mxu0 0.0
        %4729 = vmatprep.subr.mxu0 0.0
        %4730 = vmatpush1.msra.mxu0 0.0
        %4731 = vmatprep.subr.mxu0 0.0
        %4732 = vmatpush1.msra.mxu0 0.0
        %4733 = vmatprep.subr.mxu0 0.0
        %4734 = vmatpush1.msra.mxu0 0.0
        %4735 = vmatprep.mubr.f32.mxu0 0.0
        %4736 = vmatmul.mubr.f32.gmra.mrb[0].mxu0 %v4636
        %v4737 = vpop.f32.mrb[0].mxu0
        %v4738 = vadd.f32 0.0, %v4737
        %v4739 = vpop.f32.mrb[0].mxu0
        %4740 = vmatprep.mubr.f32.mxu0 0.0
        %4741 = vmatmul.mubr.f32.gmra.mrb[0].mxu0 %v4638
        %v4742 = vpop.f32.mrb[0].mxu0
        %v4743 = vadd.f32 0.0, %v4742
        %v4744 = vpop.f32.mrb[0].mxu0
        %4745 = vmatprep.mubr.f32.mxu0 0.0
        %4746 = vmatmul.mubr.f32.gmra.mrb[0].mxu0 %v4640
        %v4747 = vpop.f32.mrb[0].mxu0
        %v4748 = vadd.f32 0.0, %v4747
        %v4749 = vpop.f32.mrb[0].mxu0
        %4750 = vmatprep.mubr.f32.mxu0 0.0
        %4751 = vmatmul.mubr.f32.gmra.mrb[0].mxu0 %v4642
        %v4752 = vpop.f32.mrb[0].mxu0
        %v4753 = vadd.f32 0.0, %v4752
        %v4754 = vpop.f32.mrb[0].mxu0
        %4755 = vmatprep.mubr.f32.mxu0 0.0
        %4756 = vmatmul.mubr.f32.gmra.mrb[0].mxu0 %v4644
        %v4757 = vpop.f32.mrb[0].mxu0
        %v4758 = vadd.f32 0.0, %v4757
        %v4759 = vpop.f32.mrb[0].mxu0
        %4760 = vmatprep.mubr.f32.mxu0 0.0
        %4761 = vmatmul.mubr.f32.gmra.mrb[0].mxu0 %v4646
        %v4762 = vpop.f32.mrb[0].mxu0
        %v4763 = vadd.f32 0.0, %v4762
        %v4764 = vpop.f32.mrb[0].mxu0
        %4765 = vmatprep.mubr.f32.mxu0 0.0
        %4766 = vmatmul.mubr.f32.gmra.mrb[0].mxu0 %v4648
        %v4767 = vpop.f32.mrb[0].mxu0
        %v4768 = vadd.f32 0.0, %v4767
        %v4769 = vpop.f32.mrb[0].mxu0
        %4770 = vmatprep.mubr.f32.mxu0 0.0
        %4771 = vmatmul.mubr.f32.gmra.mrb[0].mxu0 %v4650
        %v4772 = vpop.f32.mrb[0].mxu0
        %v4773 = vadd.f32 0.0, %v4772
        %v4774 = vpop.f32.mrb[0].mxu0
        %4775 = vmatprep.mubr.f32.mxu0 0.0
        %4776 = vmatmul.mubr.f32.gmra.mrb[0].mxu0 %v4652
        %v4777 = vpop.f32.mrb[0].mxu0
        %v4778 = vadd.f32 0.0, %v4777
        %v4779 = vpop.f32.mrb[0].mxu0
        %4780 = vmatprep.mubr.f32.mxu0 0.0
        %4781 = vmatmul.mubr.f32.gmra.mrb[0].mxu0 %v4654
        %v4782 = vpop.f32.mrb[0].mxu0
        %v4783 = vadd.f32 0.0, %v4782
        %v4784 = vpop.f32.mrb[0].mxu0
        %4785 = vmatprep.mubr.f32.mxu0 0.0
        %4786 = vmatmul.mubr.f32.gmra.mrb[0].mxu0 %v4656
        %v4787 = vpop.f32.mrb[0].mxu0
        %v4788 = vadd.f32 0.0, %v4787
        %v4789 = vpop.f32.mrb[0].mxu0
        %4790 = vmatprep.mubr.f32.mxu0 0.0
        %4791 = vmatmul.mubr.f32.gmra.mrb[0].mxu0 %v4658
        %v4792 = vpop.f32.mrb[0].mxu0
        %v4793 = vadd.f32 0.0, %v4792
        %v4794 = vpop.f32.mrb[0].mxu0
        %4795 = vmatprep.mubr.f32.mxu0 0.0
        %4796 = vmatmul.mubr.f32.gmra.mrb[0].mxu0 %v4660
        %v4797 = vpop.f32.mrb[0].mxu0
        %v4798 = vadd.f32 0.0, %v4797
        %v4799 = vpop.f32.mrb[0].mxu0
        %4800 = vmatprep.mubr.f32.mxu0 0.0
        %4801 = vmatmul.mubr.f32.gmra.mrb[0].mxu0 %v4662
        %v4802 = vpop.f32.mrb[0].mxu0
        %v4803 = vadd.f32 0.0, %v4802
        %v4804 = vpop.f32.mrb[0].mxu0
        %4805 = vmatprep.mubr.f32.mxu0 0.0
        %4806 = vmatmul.mubr.f32.gmra.mrb[0].mxu0 %v4664
        %v4807 = vpop.f32.mrb[0].mxu0
        %v4808 = vadd.f32 0.0, %v4807
        %v4809 = vpop.f32.mrb[0].mxu0
        %4810 = vmatprep.mubr.f32.mxu0 0.0
        %4811 = vmatmul.mubr.f32.gmra.mrb[0].mxu0 %v4666
        %v4812 = vpop.f32.mrb[0].mxu0
        %v4813 = vadd.f32 0.0, %v4812
        %v4814 = vpop.f32.mrb[0].mxu0
        %4815 = vdwg.mxu0
        %v4816 = vadd.f32 %v4570, %v4738
        %v4817 = vadd.f32 %v4571, %v4743
        %v4818 = vadd.f32 %v4572, %v4748
        %v4819 = vadd.f32 %v4573, %v4753
        %v4820 = vadd.f32 %v4574, %v4758
        %v4821 = vadd.f32 %v4575, %v4763
        %v4822 = vadd.f32 %v4576, %v4768
        %v4823 = vadd.f32 %v4577, %v4773
        %v4824 = vadd.f32 %v4578, %v4778
        %v4825 = vadd.f32 %v4579, %v4783
        %v4826 = vadd.f32 %v4580, %v4788
        %v4827 = vadd.f32 %v4581, %v4793
        %v4828 = vadd.f32 %v4582, %v4798
        %v4829 = vadd.f32 %v4583, %v4803
        %v4830 = vadd.f32 %v4584, %v4808
        %v4831 = vadd.f32 %v4585, %v4813
        %v4832 = vrot.slane %v4348, 2
        %v4833 = vrot.slane %v4349, 2
        %v4834 = vsel %vm847, %v4832, %v4833
        %v4835 = vrot.slane %v4350, 2
        %v4836 = vsel %vm847, %v4833, %v4835
        %v4837 = vrot.slane %v4351, 2
        %v4838 = vrot.slane %v4352, 2
        %v4839 = vsel %vm847, %v4837, %v4838
        %v4840 = vrot.slane %v4353, 2
        %v4841 = vsel %vm847, %v4838, %v4840
        %v4842 = vrot.slane %v4354, 2
        %v4843 = vrot.slane %v4355, 2
        %v4844 = vsel %vm847, %v4842, %v4843
        %v4845 = vrot.slane %v4356, 2
        %v4846 = vsel %vm847, %v4843, %v4845
        %v4847 = vrot.slane %v4357, 2
        %v4848 = vrot.slane %v4358, 2
        %v4849 = vsel %vm847, %v4847, %v4848
        %v4850 = vrot.slane %v4359, 2
        %v4851 = vsel %vm847, %v4848, %v4850
        %v4852 = vrot.slane %v4360, 2
        %v4853 = vrot.slane %v4361, 2
        %v4854 = vsel %vm847, %v4852, %v4853
        %v4855 = vrot.slane %v4362, 2
        %v4856 = vsel %vm847, %v4853, %v4855
        %v4857 = vrot.slane %v4363, 2
        %v4858 = vrot.slane %v4364, 2
        %v4859 = vsel %vm847, %v4857, %v4858
        %v4860 = vrot.slane %v4365, 2
        %v4861 = vsel %vm847, %v4858, %v4860
        %v4862 = vrot.slane %v4366, 2
        %v4863 = vrot.slane %v4367, 2
        %v4864 = vsel %vm847, %v4862, %v4863
        %v4865 = vrot.slane %v4368, 2
        %v4866 = vsel %vm847, %v4863, %v4865
        %v4867 = vrot.slane %v4369, 2
        %v4868 = vrot.slane %v4370, 2
        %v4869 = vsel %vm847, %v4867, %v4868
        %v4870 = vrot.slane %v4371, 2
        %v4871 = vsel %vm847, %v4868, %v4870
        %s4872 = scalar_lea.vmem [#allocation8], 32
        %v4873 = vld [vmem:[%s4872] sm:$0xf]
        %v4874 = vsel %vm429, %v4834, 0
        %v4876 = vsel %vm429, %v4836, 0
        %v4878 = vsel %vm429, %v4839, 0
        %v4880 = vsel %vm429, %v4841, 0
        %v4882 = vsel %vm429, %v4844, 0
        %v4884 = vsel %vm429, %v4846, 0
        %v4886 = vsel %vm429, %v4849, 0
        %v4888 = vsel %vm429, %v4851, 0
        %v4890 = vsel %vm429, %v4854, 0
        %v4892 = vsel %vm429, %v4856, 0
        %v4894 = vsel %vm429, %v4859, 0
        %v4896 = vsel %vm429, %v4861, 0
        %v4898 = vsel %vm429, %v4864, 0
        %v4900 = vsel %vm429, %v4866, 0
        %v4902 = vsel %vm429, %v4869, 0
        %v4904 = vsel %vm429, %v4871, 0
        %v4907 = vsel %vm470, %v4873, 0
        %4909 = vmatprep.subr.mxu0 0.0
        %4910 = vmatpush1.msra.mxu0 %v4907
        %4911 = vmatprep.subr.mxu0 0.0
        %4912 = vmatpush1.msra.mxu0 0.0
        %4913 = vmatprep.subr.mxu0 0.0
        %4914 = vmatpush1.msra.mxu0 0.0
        %4915 = vmatprep.subr.mxu0 0.0
        %4916 = vmatpush1.msra.mxu0 0.0
        %4917 = vmatprep.subr.mxu0 0.0
        %4918 = vmatpush1.msra.mxu0 0.0
        %4919 = vmatprep.subr.mxu0 0.0
        %4920 = vmatpush1.msra.mxu0 0.0
        %4921 = vmatprep.subr.mxu0 0.0
        %4922 = vmatpush1.msra.mxu0 0.0
        %4923 = vmatprep.subr.mxu0 0.0
        %4924 = vmatpush1.msra.mxu0 0.0
        %4925 = vmatprep.subr.mxu0 0.0
        %4926 = vmatpush1.msra.mxu0 0.0
        %4927 = vmatprep.subr.mxu0 0.0
        %4928 = vmatpush1.msra.mxu0 0.0
        %4929 = vmatprep.subr.mxu0 0.0
        %4930 = vmatpush1.msra.mxu0 0.0
        %4931 = vmatprep.subr.mxu0 0.0
        %4932 = vmatpush1.msra.mxu0 0.0
        %4933 = vmatprep.subr.mxu0 0.0
        %4934 = vmatpush1.msra.mxu0 0.0
        %4935 = vmatprep.subr.mxu0 0.0
        %4936 = vmatpush1.msra.mxu0 0.0
        %4937 = vmatprep.subr.mxu0 0.0
        %4938 = vmatpush1.msra.mxu0 0.0
        %4939 = vmatprep.subr.mxu0 0.0
        %4940 = vmatpush1.msra.mxu0 0.0
        %4941 = vmatprep.subr.mxu0 0.0
        %4942 = vmatpush1.msra.mxu0 0.0
        %4943 = vmatprep.subr.mxu0 0.0
        %4944 = vmatpush1.msra.mxu0 0.0
        %4945 = vmatprep.subr.mxu0 0.0
        %4946 = vmatpush1.msra.mxu0 0.0
        %4947 = vmatprep.subr.mxu0 0.0
        %4948 = vmatpush1.msra.mxu0 0.0
        %4949 = vmatprep.subr.mxu0 0.0
        %4950 = vmatpush1.msra.mxu0 0.0
        %4951 = vmatprep.subr.mxu0 0.0
        %4952 = vmatpush1.msra.mxu0 0.0
        %4953 = vmatprep.subr.mxu0 0.0
        %4954 = vmatpush1.msra.mxu0 0.0
        %4955 = vmatprep.subr.mxu0 0.0
        %4956 = vmatpush1.msra.mxu0 0.0
        %4957 = vmatprep.subr.mxu0 0.0
        %4958 = vmatpush1.msra.mxu0 0.0
        %4959 = vmatprep.subr.mxu0 0.0
        %4960 = vmatpush1.msra.mxu0 0.0
        %4961 = vmatprep.subr.mxu0 0.0
        %4962 = vmatpush1.msra.mxu0 0.0
        %4963 = vmatprep.subr.mxu0 0.0
        %4964 = vmatpush1.msra.mxu0 0.0
        %4965 = vmatprep.subr.mxu0 0.0
        %4966 = vmatpush1.msra.mxu0 0.0
        %4967 = vmatprep.subr.mxu0 0.0
        %4968 = vmatpush1.msra.mxu0 0.0
        %4969 = vmatprep.subr.mxu0 0.0
        %4970 = vmatpush1.msra.mxu0 0.0
        %4971 = vmatprep.subr.mxu0 0.0
        %4972 = vmatpush1.msra.mxu0 0.0
        %4973 = vmatprep.mubr.f32.mxu0 0.0
        %4974 = vmatmul.mubr.f32.gmra.mrb[0].mxu0 %v4874
        %v4975 = vpop.f32.mrb[0].mxu0
        %v4976 = vadd.f32 0.0, %v4975
        %v4977 = vpop.f32.mrb[0].mxu0
        %4978 = vmatprep.mubr.f32.mxu0 0.0
        %4979 = vmatmul.mubr.f32.gmra.mrb[0].mxu0 %v4876
        %v4980 = vpop.f32.mrb[0].mxu0
        %v4981 = vadd.f32 0.0, %v4980
        %v4982 = vpop.f32.mrb[0].mxu0
        %4983 = vmatprep.mubr.f32.mxu0 0.0
        %4984 = vmatmul.mubr.f32.gmra.mrb[0].mxu0 %v4878
        %v4985 = vpop.f32.mrb[0].mxu0
        %v4986 = vadd.f32 0.0, %v4985
        %v4987 = vpop.f32.mrb[0].mxu0
        %4988 = vmatprep.mubr.f32.mxu0 0.0
        %4989 = vmatmul.mubr.f32.gmra.mrb[0].mxu0 %v4880
        %v4990 = vpop.f32.mrb[0].mxu0
        %v4991 = vadd.f32 0.0, %v4990
        %v4992 = vpop.f32.mrb[0].mxu0
        %4993 = vmatprep.mubr.f32.mxu0 0.0
        %4994 = vmatmul.mubr.f32.gmra.mrb[0].mxu0 %v4882
        %v4995 = vpop.f32.mrb[0].mxu0
        %v4996 = vadd.f32 0.0, %v4995
        %v4997 = vpop.f32.mrb[0].mxu0
        %4998 = vmatprep.mubr.f32.mxu0 0.0
        %4999 = vmatmul.mubr.f32.gmra.mrb[0].mxu0 %v4884
        %v5000 = vpop.f32.mrb[0].mxu0
        %v5001 = vadd.f32 0.0, %v5000
        %v5002 = vpop.f32.mrb[0].mxu0
        %5003 = vmatprep.mubr.f32.mxu0 0.0
        %5004 = vmatmul.mubr.f32.gmra.mrb[0].mxu0 %v4886
        %v5005 = vpop.f32.mrb[0].mxu0
        %v5006 = vadd.f32 0.0, %v5005
        %v5007 = vpop.f32.mrb[0].mxu0
        %5008 = vmatprep.mubr.f32.mxu0 0.0
        %5009 = vmatmul.mubr.f32.gmra.mrb[0].mxu0 %v4888
        %v5010 = vpop.f32.mrb[0].mxu0
        %v5011 = vadd.f32 0.0, %v5010
        %v5012 = vpop.f32.mrb[0].mxu0
        %5013 = vmatprep.mubr.f32.mxu0 0.0
        %5014 = vmatmul.mubr.f32.gmra.mrb[0].mxu0 %v4890
        %v5015 = vpop.f32.mrb[0].mxu0
        %v5016 = vadd.f32 0.0, %v5015
        %v5017 = vpop.f32.mrb[0].mxu0
        %5018 = vmatprep.mubr.f32.mxu0 0.0
        %5019 = vmatmul.mubr.f32.gmra.mrb[0].mxu0 %v4892
        %v5020 = vpop.f32.mrb[0].mxu0
        %v5021 = vadd.f32 0.0, %v5020
        %v5022 = vpop.f32.mrb[0].mxu0
        %5023 = vmatprep.mubr.f32.mxu0 0.0
        %5024 = vmatmul.mubr.f32.gmra.mrb[0].mxu0 %v4894
        %v5025 = vpop.f32.mrb[0].mxu0
        %v5026 = vadd.f32 0.0, %v5025
        %v5027 = vpop.f32.mrb[0].mxu0
        %5028 = vmatprep.mubr.f32.mxu0 0.0
        %5029 = vmatmul.mubr.f32.gmra.mrb[0].mxu0 %v4896
        %v5030 = vpop.f32.mrb[0].mxu0
        %v5031 = vadd.f32 0.0, %v5030
        %v5032 = vpop.f32.mrb[0].mxu0
        %5033 = vmatprep.mubr.f32.mxu0 0.0
        %5034 = vmatmul.mubr.f32.gmra.mrb[0].mxu0 %v4898
        %v5035 = vpop.f32.mrb[0].mxu0
        %v5036 = vadd.f32 0.0, %v5035
        %v5037 = vpop.f32.mrb[0].mxu0
        %5038 = vmatprep.mubr.f32.mxu0 0.0
        %5039 = vmatmul.mubr.f32.gmra.mrb[0].mxu0 %v4900
        %v5040 = vpop.f32.mrb[0].mxu0
        %v5041 = vadd.f32 0.0, %v5040
        %v5042 = vpop.f32.mrb[0].mxu0
        %5043 = vmatprep.mubr.f32.mxu0 0.0
        %5044 = vmatmul.mubr.f32.gmra.mrb[0].mxu0 %v4902
        %v5045 = vpop.f32.mrb[0].mxu0
        %v5046 = vadd.f32 0.0, %v5045
        %v5047 = vpop.f32.mrb[0].mxu0
        %5048 = vmatprep.mubr.f32.mxu0 0.0
        %5049 = vmatmul.mubr.f32.gmra.mrb[0].mxu0 %v4904
        %v5050 = vpop.f32.mrb[0].mxu0
        %v5051 = vadd.f32 0.0, %v5050
        %v5052 = vpop.f32.mrb[0].mxu0
        %5053 = vdwg.mxu0
        %v5054 = vadd.f32 %v4816, %v4976
        %v5055 = vadd.f32 %v4817, %v4981
        %v5056 = vadd.f32 %v4818, %v4986
        %v5057 = vadd.f32 %v4819, %v4991
        %v5058 = vadd.f32 %v4820, %v4996
        %v5059 = vadd.f32 %v4821, %v5001
        %v5060 = vadd.f32 %v4822, %v5006
        %v5061 = vadd.f32 %v4823, %v5011
        %v5062 = vadd.f32 %v4824, %v5016
        %v5063 = vadd.f32 %v4825, %v5021
        %v5064 = vadd.f32 %v4826, %v5026
        %v5065 = vadd.f32 %v4827, %v5031
        %v5066 = vadd.f32 %v4828, %v5036
        %v5067 = vadd.f32 %v4829, %v5041
        %v5068 = vadd.f32 %v4830, %v5046
        %v5069 = vadd.f32 %v4831, %v5051
        %v5070 = vld [vmem:[%s1983] sm:$0xff]
        %v5071 = vld [vmem:[%s1983 + $0x8] sm:$0xff]
        %v5072 = vld [vmem:[%s1983 + $0x10] sm:$0x3]
        %v5073 = vld [vmem:[%s1983 + $0x18] sm:$0xff]
        %v5074 = vld [vmem:[%s1983 + $0x20] sm:$0xff]
        %v5075 = vld [vmem:[%s1983 + $0x28] sm:$0x3]
        %v5076 = vld [vmem:[%s1983 + $0x30] sm:$0xff]
        %v5077 = vld [vmem:[%s1983 + $0x38] sm:$0xff]
        %v5078 = vld [vmem:[%s1983 + $0x40] sm:$0x3]
        %v5079 = vld [vmem:[%s1983 + $0x48] sm:$0xff]
        %v5080 = vld [vmem:[%s1983 + $0x50] sm:$0xff]
        %v5081 = vld [vmem:[%s1983 + $0x58] sm:$0x3]
        %v5082 = vld [vmem:[%s1983 + $0x60] sm:$0xff]
        %v5083 = vld [vmem:[%s1983 + $0x68] sm:$0xff]
        %v5084 = vld [vmem:[%s1983 + $0x70] sm:$0x3]
        %v5085 = vld [vmem:[%s1983 + $0x78] sm:$0xff]
        %v5086 = vld [vmem:[%s1983 + $0x80] sm:$0xff]
        %v5087 = vld [vmem:[%s1983 + $0x88] sm:$0x3]
        %v5088 = vld [vmem:[%s1983 + $0x90] sm:$0xff]
        %v5089 = vld [vmem:[%s1983 + $0x98] sm:$0xff]
        %v5090 = vld [vmem:[%s1983 + $0xa0] sm:$0x3]
        %v5091 = vld [vmem:[%s1983 + $0xa8] sm:$0xff]
        %v5092 = vld [vmem:[%s1983 + $0xb0] sm:$0xff]
        %v5093 = vld [vmem:[%s1983 + $0xb8] sm:$0x3]
        %v5118 = vrot.slane %v5070, 1
        %v5119 = vrot.slane %v5071, 1
        %v5120 = vsel %vm376, %v5118, %v5119
        %v5121 = vrot.slane %v5072, 1
        %v5122 = vsel %vm376, %v5119, %v5121
        %v5123 = vrot.slane %v5073, 1
        %v5124 = vrot.slane %v5074, 1
        %v5125 = vsel %vm376, %v5123, %v5124
        %v5126 = vrot.slane %v5075, 1
        %v5127 = vsel %vm376, %v5124, %v5126
        %v5128 = vrot.slane %v5076, 1
        %v5129 = vrot.slane %v5077, 1
        %v5130 = vsel %vm376, %v5128, %v5129
        %v5131 = vrot.slane %v5078, 1
        %v5132 = vsel %vm376, %v5129, %v5131
        %v5133 = vrot.slane %v5079, 1
        %v5134 = vrot.slane %v5080, 1
        %v5135 = vsel %vm376, %v5133, %v5134
        %v5136 = vrot.slane %v5081, 1
        %v5137 = vsel %vm376, %v5134, %v5136
        %v5138 = vrot.slane %v5082, 1
        %v5139 = vrot.slane %v5083, 1
        %v5140 = vsel %vm376, %v5138, %v5139
        %v5141 = vrot.slane %v5084, 1
        %v5142 = vsel %vm376, %v5139, %v5141
        %v5143 = vrot.slane %v5085, 1
        %v5144 = vrot.slane %v5086, 1
        %v5145 = vsel %vm376, %v5143, %v5144
        %v5146 = vrot.slane %v5087, 1
        %v5147 = vsel %vm376, %v5144, %v5146
        %v5148 = vrot.slane %v5088, 1
        %v5149 = vrot.slane %v5089, 1
        %v5150 = vsel %vm376, %v5148, %v5149
        %v5151 = vrot.slane %v5090, 1
        %v5152 = vsel %vm376, %v5149, %v5151
        %v5153 = vrot.slane %v5091, 1
        %v5154 = vrot.slane %v5092, 1
        %v5155 = vsel %vm376, %v5153, %v5154
        %v5156 = vrot.slane %v5093, 1
        %v5157 = vsel %vm376, %v5154, %v5156
        %v5174 = vld [vmem:[#allocation11] sm:$0x1]
        %v5176 = vlaneseq
        %v5177 = vshrl.u32 %v5176, 7
        %v5178 = vsub.s32 0, %v5177
        %v5179 = vrot.slane %v5174, %v5178
        %v5181 = vadd.f32 %v5054, %v5179
        %v5182 = vadd.f32 %v5055, %v5179
        %v5183 = vadd.f32 %v5056, %v5179
        %v5184 = vadd.f32 %v5057, %v5179
        %v5185 = vadd.f32 %v5058, %v5179
        %v5186 = vadd.f32 %v5059, %v5179
        %v5187 = vadd.f32 %v5060, %v5179
        %v5188 = vadd.f32 %v5061, %v5179
        %v5189 = vadd.f32 %v5062, %v5179
        %v5190 = vadd.f32 %v5063, %v5179
        %v5191 = vadd.f32 %v5064, %v5179
        %v5192 = vadd.f32 %v5065, %v5179
        %v5193 = vadd.f32 %v5066, %v5179
        %v5194 = vadd.f32 %v5067, %v5179
        %v5195 = vadd.f32 %v5068, %v5179
        %v5196 = vadd.f32 %v5069, %v5179
        %v5197 = vadd.f32 %v5181, %v5120
        %v5198 = vadd.f32 %v5182, %v5122
        %v5199 = vadd.f32 %v5183, %v5125
        %v5200 = vadd.f32 %v5184, %v5127
        %v5201 = vadd.f32 %v5185, %v5130
        %v5202 = vadd.f32 %v5186, %v5132
        %v5203 = vadd.f32 %v5187, %v5135
        %v5204 = vadd.f32 %v5188, %v5137
        %v5205 = vadd.f32 %v5189, %v5140
        %v5206 = vadd.f32 %v5190, %v5142
        %v5207 = vadd.f32 %v5191, %v5145
        %v5208 = vadd.f32 %v5192, %v5147
        %v5209 = vadd.f32 %v5193, %v5150
        %v5210 = vadd.f32 %v5194, %v5152
        %v5211 = vadd.f32 %v5195, %v5155
        %v5212 = vadd.f32 %v5196, %v5157
        %v5213 = vmax.f32 %v5197, 0.0
        %v5214 = vmax.f32 %v5198, 0.0
        %v5215 = vmax.f32 %v5199, 0.0
        %v5216 = vmax.f32 %v5200, 0.0
        %v5217 = vmax.f32 %v5201, 0.0
        %v5218 = vmax.f32 %v5202, 0.0
        %v5219 = vmax.f32 %v5203, 0.0
        %v5220 = vmax.f32 %v5204, 0.0
        %v5221 = vmax.f32 %v5205, 0.0
        %v5222 = vmax.f32 %v5206, 0.0
        %v5223 = vmax.f32 %v5207, 0.0
        %v5224 = vmax.f32 %v5208, 0.0
        %v5225 = vmax.f32 %v5209, 0.0
        %v5226 = vmax.f32 %v5210, 0.0
        %v5227 = vmax.f32 %v5211, 0.0
        %v5228 = vmax.f32 %v5212, 0.0
        %5229 = vst.msk [vmem:[%s310] sm:$0xff] %vm429, %v5213
        %5230 = vst.msk [vmem:[%s310 + $0x8] sm:$0xff] %vm429, %v5214
        %5231 = vst.msk [vmem:[%s310 + $0x10] sm:$0xff] %vm429, %v5215
        %5232 = vst.msk [vmem:[%s310 + $0x18] sm:$0xff] %vm429, %v5216
        %5233 = vst.msk [vmem:[%s310 + $0x20] sm:$0xff] %vm429, %v5217
        %5234 = vst.msk [vmem:[%s310 + $0x28] sm:$0xff] %vm429, %v5218
        %5235 = vst.msk [vmem:[%s310 + $0x30] sm:$0xff] %vm429, %v5219
        %5236 = vst.msk [vmem:[%s310 + $0x38] sm:$0xff] %vm429, %v5220
        %5237 = vst.msk [vmem:[%s310 + $0x40] sm:$0xff] %vm429, %v5221
        %5238 = vst.msk [vmem:[%s310 + $0x48] sm:$0xff] %vm429, %v5222
        %5239 = vst.msk [vmem:[%s310 + $0x50] sm:$0xff] %vm429, %v5223
        %5240 = vst.msk [vmem:[%s310 + $0x58] sm:$0xff] %vm429, %v5224
        %5241 = vst.msk [vmem:[%s310 + $0x60] sm:$0xff] %vm429, %v5225
        %5242 = vst.msk [vmem:[%s310 + $0x68] sm:$0xff] %vm429, %v5226
        %5243 = vst.msk [vmem:[%s310 + $0x70] sm:$0xff] %vm429, %v5227
        %5244 = vst.msk [vmem:[%s310 + $0x78] sm:$0xff] %vm429, %v5228
        %s5245 = sand.u32 %s156, 1
        %s5246 = scalar_lea.sflag [#allocation5], %s5245
        %s5247 = sand.u32 %s156, 1
        %s5248 = smul.addr %s5247, 128
        %s5249 = scalar_lea.vmem [#allocation12], %s5248
        // Predicated region
        $region69: #{tpu_custom_call.1} parent=39 // pred_check
          %p5250 = pneg %p166
        $region70: #{tpu_custom_call.1} parent=39 // pred_check_branch
          %5252 = sbr.rel (%p5250) target = $region72
        $region71: #{tpu_custom_call.1} parent=39 // pred_region
          %s5253 = smul.u32 8, %s29
          %s5255 = ssub.s32 2048, 2048
          %5256 = vsyncadd %s5246, %s5255
          %s5257 = smul.addr %s5253, 2
          %s5258 = smul.addr %s28, 32
          %s5259 = sadd.s32 %s5257, %s5258
          %s5260 = smul.addr %s5259, 128
          %s5261 = scalar_lea.hbm %s5, %s5260
          %s5262 = sshll.u32 %s5249, 4
          %s5263 = int_to_ptr.vmem [resolvable:$true] %s5262
          %5268 = dma.vmem_to_hbm [thread:$0]  %s5263, 2048, %s5261, %s5246, 128, 128, 8
        $region72: #{tpu_custom_call.1} parent=39 // pred_fallthru
          _
      $region40: #{tpu_custom_call.1} parent=5 // pred_fallthru
        _
      %p5269 = scmp.le.s32.totalorder 2, %s19
      // Predicated region
      $region73: #{tpu_custom_call.1} parent=5 // pred_check
        %p5270 = pneg %p5269
      $region74: #{tpu_custom_call.1} parent=5 // pred_check_branch
        %5272 = sbr.rel (%p5270) target = $region76
      $region75: #{tpu_custom_call.1} parent=5 // pred_region
        %s5273 = ssub.s32 %s19, 2
        // Predicated region
        $region77: #{tpu_custom_call.1} parent=75 // pred_check
          %p5274 = pneg %p172
        $region78: #{tpu_custom_call.1} parent=75 // pred_check_branch
          %5276 = sbr.rel (%p5274) target = $region80
        $region79: #{tpu_custom_call.1} parent=75 // pred_region
          %s5277 = sand.u32 %s157, 1
          %s5278 = scalar_lea.sflag [#allocation5], %s5277
          %s5279 = sand.u32 %s157, 1
          %s5280 = smul.addr %s5279, 128
          %s5281 = scalar_lea.vmem [#allocation12], %s5280
          %5282 = dma.done %s5278, 2048
        $region80: #{tpu_custom_call.1} parent=75 // pred_fallthru
          _
      $region76: #{tpu_custom_call.1} parent=5 // pred_fallthru
        _
    $region6: #{tpu_custom_call.1} parent=1 // loop_footer
      %s23 = sadd.s32 1, %s19
    $region7: #{tpu_custom_call.1} parent=1 // loop_footer_branch
      %18 = sbr.rel target = $region3
    $region8: #{tpu_custom_call.1} parent=1 // loop_exit
      _
    %5283 = vsyncpa [#allocation4], 1
    %s5284 = scalar_lea.sflag [#allocation4], 1
    %5285 = vsyncpa %s5284, 1
    %5286 = vsyncpa [#allocation7], 1
    %5287 = vsyncpa [#allocation10], 1
    %5288 = vsyncpa [#allocation5], 1
    %s5289 = scalar_lea.sflag [#allocation5], 1
    %5290 = vsyncpa %s5289, 1

// kernel: tpu_custom_call.1
$region0: #{tpu_custom_call.1}
  #allocation0 [shape = 'u32[]', space=smem, size = 0x4, offset = 0x4, fixed_abs, tag = 'smem constant byte address 0x4 - core index']
  #allocation1 [shape = 'u32[144,128]{1,0:T(1,128)}', space=vmem, size = 0x12000, scoped, tag = 'internal scratch']
  #allocation2 [shape = 'f32[10,18,4]{2,1,0:T(8,128)}', space=vmem, size = 0x1e000, scoped, tag = 'scratch operand']
  %s0 = inlined_call_operand.hbm [shape: f32[2,20,18,4], index: 0, kind: input, shape index: {}]
  %s1 = inlined_call_operand.hbm [shape: f32[9,4,4], index: 1, kind: input, shape index: {}]
  %s2 = inlined_call_operand.hbm [shape: f32[9,4,4], index: 2, kind: input, shape index: {}]
  %s3 = inlined_call_operand.hbm [shape: f32[1,4], index: 3, kind: input, shape index: {}]
  %s4 = inlined_call_operand.hbm [shape: f32[1,4], index: 4, kind: input, shape index: {}]
  %s5 = inlined_call_operand.hbm [shape: f32[2,16,16,4], index: 5, kind: output, shape index: {}]
  %s6 = sld [smem:[#allocation0]]
  $region81: #{tpu_custom_call.1} parent=0
    _
  %s8 = ssub.s32 1, %s6
  %s9 = scalar_select 0, %s8, %s6
  $region1: #{tpu_custom_call.1} parent=0
    #allocation3 [shape = 'u8[491520]{0}', space=vmem, size = 0x78000, scoped, tag = 'input window, operand 0']
    #allocation4 [shape = 's32[2]{0}', space=sflag, size = 0x8, scoped, tag = 'scoped memory for tpu_custom_call.1']
    #allocation5 [shape = 's32[2]{0}', space=sflag, size = 0x8, scoped, tag = 'scoped memory for tpu_custom_call.1']
    #allocation6 [shape = 'u8[18432]{0}', space=vmem, size = 0x4800, scoped, tag = 'input window, operand 1, single buffered']
    #allocation7 [shape = 's32[1]{0}', space=sflag, size = 0x4, scoped, tag = 'scoped memory for tpu_custom_call.1']
    #allocation8 [shape = 'u8[18432]{0}', space=vmem, size = 0x4800, scoped, tag = 'input window, operand 2, single buffered']
    #allocation9 [shape = 'u8[512]{0}', space=vmem, size = 0x400, scoped, tag = 'input window, operand 3, single buffered']
    #allocation10 [shape = 's32[1]{0}', space=sflag, size = 0x4, scoped, tag = 'scoped memory for tpu_custom_call.1']
    #allocation11 [shape = 'u8[512]{0}', space=vmem, size = 0x400, scoped, tag = 'input window, operand 4, single buffered']
    #allocation12 [shape = 'u8[131072]{0}', space=vmem, size = 0x20000, scoped, tag = 'output window, operand 0']
    %10 = vsyncpa [#allocation4], 0
    %s11 = scalar_lea.sflag [#allocation4], 1
    %12 = vsyncpa %s11, 0
    %13 = vsyncpa [#allocation7], 0
    %14 = vsyncpa [#allocation10], 0
    %15 = vsyncpa [#allocation5], 0
    %s16 = scalar_lea.sflag [#allocation5], 1
    %17 = vsyncpa %s16, 0
    loop: start=0, step=1, limit=6
    $region2: #{tpu_custom_call.1} parent=1 // loop_pre_header
      _
    $region3: #{tpu_custom_call.1} parent=1 // loop_header
      %s19 = sphi 0, %s23
      %p20 = scmp.ge.s32.totalorder %s19, 6
      %s26 = sphi 0, %s38
      %s27 = sphi 0, %s34
      %s28 = sphi 0, %s26
      %s29 = sphi 0, %s27
      %s30 = sphi 0, %s28
      %s31 = sphi 0, %s29
      %s41 = sphi 0, %s43
      %s44 = sphi 0, %s41
      %s45 = sphi 0, %s44
      %s61 = sphi 0, %s45
      %s65 = sphi 0, %s65
      %s67 = sphi 0, %s65
      %s68 = sphi 0, %s67
      %s82 = sphi 0, %s68
      %s86 = sphi 0, %s86
      %s88 = sphi 0, %s86
      %s89 = sphi 0, %s88
      %s103 = sphi 0, %s89
      %s107 = sphi 0, %s107
      %s109 = sphi 0, %s107
      %s110 = sphi 0, %s109
      %s124 = sphi 0, %s110
      %s128 = sphi 0, %s128
      %s130 = sphi 0, %s128
      %s131 = sphi 0, %s130
      %s145 = sphi 0, %s131
      %s153 = sphi 0, %s155
      %s156 = sphi 0, %s153
      %s157 = sphi 0, %s156
      %s173 = sphi 0, %s157
    $region4: #{tpu_custom_call.1} parent=1 // loop_header_branch
      %22 = sbr.rel (%p20) target = $region8
    $region5: #{tpu_custom_call.1} parent=1 // loop_body
      %s24 = ssub.s32 %s19, 1
      %s25 = ssub.s32 %s19, 2
      %s32 = sadd.s32 1, %s27
      %p33 = scmp.ge.s32.totalorder %s32, 2
      %s34 = scalar_select %p33, 0, %s32
      %s35 = sadd.s32 1, %s26
      %s36 = scalar_select %p33, %s35, %s26
      %p37 = scmp.ge.s32.totalorder %s36, 2
      %s38 = scalar_select %p37, 0, %s36
      %s39 = ssub.s32 %s26, %s38
      %p40 = scmp.eq.s32.totalorder %s39, 0
      %s42 = sadd.s32 %s41, 1
      %s43 = scalar_select %p40, %s41, %s42
      %p46 = pneg %p40
      %p47 = scmp.eq.s32.totalorder %s19, 3
      %p48 = por %p46, %p47
      %p49 = scmp.ne.s32.totalorder %s41, %s44
      %p50 = scmp.eq.s32.totalorder %s19, 0
      %p51 = por %p49, %p50
      %p52 = scmp.ne.s32.totalorder %s41, %s44
      %p53 = scmp.eq.s32.totalorder %s24, 3
      %p54 = por %p52, %p53
      %p55 = scmp.ne.s32.totalorder %s44, %s45
      %p56 = scmp.eq.s32.totalorder %s24, 0
      %p57 = por %p55, %p56
      %p58 = scmp.ne.s32.totalorder %s44, %s45
      %p59 = scmp.eq.s32.totalorder %s25, 3
      %p60 = por %p58, %p59
      %p62 = scmp.ne.s32.totalorder %s45, %s61
      %p63 = scmp.eq.s32.totalorder %s25, 0
      %p64 = por %p62, %p63
      %s66 = sadd.s32 %s65, 1
      %p69 = scmp.eq.s32.totalorder %s19, 3
      %p70 = scmp.ne.s32.totalorder %s65, %s67
      %p71 = scmp.eq.s32.totalorder %s19, 0
      %p72 = por %p70, %p71
      %p73 = scmp.ne.s32.totalorder %s65, %s67
      %p74 = scmp.eq.s32.totalorder %s24, 3
      %p75 = por %p73, %p74
      %p76 = scmp.ne.s32.totalorder %s67, %s68
      %p77 = scmp.eq.s32.totalorder %s24, 0
      %p78 = por %p76, %p77
      %p79 = scmp.ne.s32.totalorder %s67, %s68
      %p80 = scmp.eq.s32.totalorder %s25, 3
      %p81 = por %p79, %p80
      %p83 = scmp.ne.s32.totalorder %s68, %s82
      %p84 = scmp.eq.s32.totalorder %s25, 0
      %p85 = por %p83, %p84
      %s87 = sadd.s32 %s86, 1
      %p90 = scmp.eq.s32.totalorder %s19, 3
      %p91 = scmp.ne.s32.totalorder %s86, %s88
      %p92 = scmp.eq.s32.totalorder %s19, 0
      %p93 = por %p91, %p92
      %p94 = scmp.ne.s32.totalorder %s86, %s88
      %p95 = scmp.eq.s32.totalorder %s24, 3
      %p96 = por %p94, %p95
      %p97 = scmp.ne.s32.totalorder %s88, %s89
      %p98 = scmp.eq.s32.totalorder %s24, 0
      %p99 = por %p97, %p98
      %p100 = scmp.ne.s32.totalorder %s88, %s89
      %p101 = scmp.eq.s32.totalorder %s25, 3
      %p102 = por %p100, %p101
      %p104 = scmp.ne.s32.totalorder %s89, %s103
      %p105 = scmp.eq.s32.totalorder %s25, 0
      %p106 = por %p104, %p105
      %s108 = sadd.s32 %s107, 1
      %p111 = scmp.eq.s32.totalorder %s19, 3
      %p112 = scmp.ne.s32.totalorder %s107, %s109
      %p113 = scmp.eq.s32.totalorder %s19, 0
      %p114 = por %p112, %p113
      %p115 = scmp.ne.s32.totalorder %s107, %s109
      %p116 = scmp.eq.s32.totalorder %s24, 3
      %p117 = por %p115, %p116
      %p118 = scmp.ne.s32.totalorder %s109, %s110
      %p119 = scmp.eq.s32.totalorder %s24, 0
      %p120 = por %p118, %p119
      %p121 = scmp.ne.s32.totalorder %s109, %s110
      %p122 = scmp.eq.s32.totalorder %s25, 3
      %p123 = por %p121, %p122
      %p125 = scmp.ne.s32.totalorder %s110, %s124
      %p126 = scmp.eq.s32.totalorder %s25, 0
      %p127 = por %p125, %p126
      %s129 = sadd.s32 %s128, 1
      %p132 = scmp.eq.s32.totalorder %s19, 3
      %p133 = scmp.ne.s32.totalorder %s128, %s130
      %p134 = scmp.eq.s32.totalorder %s19, 0
      %p135 = por %p133, %p134
      %p136 = scmp.ne.s32.totalorder %s128, %s130
      %p137 = scmp.eq.s32.totalorder %s24, 3
      %p138 = por %p136, %p137
      %p139 = scmp.ne.s32.totalorder %s130, %s131
      %p140 = scmp.eq.s32.totalorder %s24, 0
      %p141 = por %p139, %p140
      %p142 = scmp.ne.s32.totalorder %s130, %s131
      %p143 = scmp.eq.s32.totalorder %s25, 3
      %p144 = por %p142, %p143
      %p146 = scmp.ne.s32.totalorder %s131, %s145
      %p147 = scmp.eq.s32.totalorder %s25, 0
      %p148 = por %p146, %p147
      %s149 = ssub.s32 %s26, %s38
      %s150 = ssub.s32 %s27, %s34
      %s151 = sor.u32 %s149, %s150
      %p152 = scmp.eq.s32.totalorder %s151, 0
      %s154 = sadd.s32 %s153, 1
      %s155 = scalar_select %p152, %s153, %s154
      %p158 = pneg %p152
      %p159 = scmp.eq.s32.totalorder %s19, 3
      %p160 = por %p158, %p159
      %p161 = scmp.ne.s32.totalorder %s153, %s156
      %p162 = scmp.eq.s32.totalorder %s19, 0
      %p163 = por %p161, %p162
      %p164 = scmp.ne.s32.totalorder %s153, %s156
      %p165 = scmp.eq.s32.totalorder %s24, 3
      %p166 = por %p164, %p165
      %p167 = scmp.ne.s32.totalorder %s156, %s157
      %p168 = scmp.eq.s32.totalorder %s24, 0
      %p169 = por %p167, %p168
      %p170 = scmp.ne.s32.totalorder %s156, %s157
      %p171 = scmp.eq.s32.totalorder %s25, 3
      %p172 = por %p170, %p171
      %p174 = scmp.ne.s32.totalorder %s157, %s173
      %p175 = scmp.eq.s32.totalorder %s25, 0
      %p176 = por %p174, %p175
      %p177 = scmp.le.s32.totalorder 1, %s19
      %p178 = scmp.lt.s32.totalorder %s19, 5
      %p179 = pnand %p177, %p178
      %p180 = pneg %p179
      // Predicated region
      $region9: #{tpu_custom_call.1} parent=5 // pred_check
        _
      $region10: #{tpu_custom_call.1} parent=5 // pred_check_branch
        %182 = sbr.rel (%p179) target = $region12
      $region11: #{tpu_custom_call.1} parent=5 // pred_region
        %s183 = ssub.s32 %s19, 1
        // Predicated region
        $region13: #{tpu_custom_call.1} parent=11 // pred_check
          %p184 = pneg %p78
        $region14: #{tpu_custom_call.1} parent=11 // pred_check_branch
          %186 = sbr.rel (%p184) target = $region16
        $region15: #{tpu_custom_call.1} parent=11 // pred_region
          %s188 = ssub.s32 576, 576
          %189 = vsyncadd [#allocation7], %s188
          %s190 = sshll.u32 [#allocation6], 4
          %s191 = int_to_ptr.vmem [resolvable:$true] %s190
          %196 = dma.hbm_to_vmem [thread:$0]  %s1, 576, %s191, [#allocation7], 64, 64, 4
        $region16: #{tpu_custom_call.1} parent=11 // pred_fallthru
          _
        // Predicated region
        $region17: #{tpu_custom_call.1} parent=11 // pred_check
          %p197 = pneg %p99
        $region18: #{tpu_custom_call.1} parent=11 // pred_check_branch
          %199 = sbr.rel (%p197) target = $region20
        $region19: #{tpu_custom_call.1} parent=11 // pred_region
          %s201 = ssub.s32 576, 576
          %202 = vsyncadd [#allocation7], %s201
          %s203 = sshll.u32 [#allocation8], 4
          %s204 = int_to_ptr.vmem [resolvable:$true] %s203
          %209 = dma.hbm_to_vmem [thread:$0]  %s2, 576, %s204, [#allocation7], 64, 64, 4
        $region20: #{tpu_custom_call.1} parent=11 // pred_fallthru
          _
        // Predicated region
        $region21: #{tpu_custom_call.1} parent=11 // pred_check
          %p210 = pneg %p120
        $region22: #{tpu_custom_call.1} parent=11 // pred_check_branch
          %212 = sbr.rel (%p210) target = $region24
        $region23: #{tpu_custom_call.1} parent=11 // pred_region
          %s214 = ssub.s32 16, 16
          %215 = vsyncadd [#allocation10], %s214
          %s217 = sshll.u32 [#allocation9], 4
          %s218 = int_to_ptr.vmem [resolvable:$true] %s217
          %220 = dma.hbm_to_vmem [thread:$0]  %s3, 16, %s218, [#allocation10]
        $region24: #{tpu_custom_call.1} parent=11 // pred_fallthru
          _
        // Predicated region
        $region25: #{tpu_custom_call.1} parent=11 // pred_check
          %p221 = pneg %p141
        $region26: #{tpu_custom_call.1} parent=11 // pred_check_branch
          %223 = sbr.rel (%p221) target = $region28
        $region27: #{tpu_custom_call.1} parent=11 // pred_region
          %s225 = ssub.s32 16, 16
          %226 = vsyncadd [#allocation10], %s225
          %s228 = sshll.u32 [#allocation11], 4
          %s229 = int_to_ptr.vmem [resolvable:$true] %s228
          %231 = dma.hbm_to_vmem [thread:$0]  %s4, 16, %s229, [#allocation10]
        $region28: #{tpu_custom_call.1} parent=11 // pred_fallthru
          _
      $region12: #{tpu_custom_call.1} parent=5 // pred_fallthru
        _
      %p232 = scmp.lt.s32.totalorder %s19, 4
      // Predicated region
      $region29: #{tpu_custom_call.1} parent=5 // pred_check
        %p233 = pneg %p232
      $region30: #{tpu_custom_call.1} parent=5 // pred_check_branch
        %235 = sbr.rel (%p233) target = $region32
      $region31: #{tpu_custom_call.1} parent=5 // pred_region
        // Predicated region
        $region33: #{tpu_custom_call.1} parent=31 // pred_check
          %p236 = pneg %p51
        $region34: #{tpu_custom_call.1} parent=31 // pred_check_branch
          %238 = sbr.rel (%p236) target = $region36
        $region35: #{tpu_custom_call.1} parent=31 // pred_region
          %s239 = sand.u32 %s41, 1
          %s240 = scalar_lea.sflag [#allocation4], %s239
          %s241 = sand.u32 %s41, 1
          %s242 = smul.addr %s241, 480
          %s243 = scalar_lea.vmem [#allocation3], %s242
          %s245 = ssub.s32 7680, 7680
          %246 = vsyncadd %s240, %s245
          %s247 = smul.addr %s26, 60
          %s248 = smul.addr %s247, 128
          %s249 = scalar_lea.hbm %s0, %s248
          %s250 = sshll.u32 %s243, 4
          %s251 = int_to_ptr.vmem [resolvable:$true] %s250
          %256 = dma.hbm_to_vmem [thread:$0]  %s249, 7680, %s251, %s240, 128, 128, 8
        $region36: #{tpu_custom_call.1} parent=31 // pred_fallthru
          _
      $region32: #{tpu_custom_call.1} parent=5 // pred_fallthru
        _
      %p257 = scmp.le.s32.totalorder 1, %s19
      %p258 = scmp.lt.s32.totalorder %s19, 5
      %p259 = pnand %p257, %p258
      %p260 = pneg %p259
      // Predicated region
      $region37: #{tpu_custom_call.1} parent=5 // pred_check
        _
      $region38: #{tpu_custom_call.1} parent=5 // pred_check_branch
        %262 = sbr.rel (%p259) target = $region40
      $region39: #{tpu_custom_call.1} parent=5 // pred_region
        %s263 = ssub.s32 %s19, 1
        %s264 = sand.u32 %s44, 1
        %s265 = scalar_lea.sflag [#allocation4], %s264
        %s266 = sand.u32 %s44, 1
        %s267 = smul.addr %s266, 480
        %s268 = scalar_lea.vmem [#allocation3], %s267
        // Predicated region
        $region41: #{tpu_custom_call.1} parent=39 // pred_check
          %p269 = pneg %p57
        $region42: #{tpu_custom_call.1} parent=39 // pred_check_branch
          %271 = sbr.rel (%p269) target = $region44
        $region43: #{tpu_custom_call.1} parent=39 // pred_region
          %272 = dma.done %s265, 7680
        $region44: #{tpu_custom_call.1} parent=39 // pred_fallthru
          _
        // Predicated region
        $region45: #{tpu_custom_call.1} parent=39 // pred_check
          %p273 = pneg %p78
        $region46: #{tpu_custom_call.1} parent=39 // pred_check_branch
          %275 = sbr.rel (%p273) target = $region48
        $region47: #{tpu_custom_call.1} parent=39 // pred_region
          %276 = dma.done [#allocation7], 576
        $region48: #{tpu_custom_call.1} parent=39 // pred_fallthru
          _
        // Predicated region
        $region49: #{tpu_custom_call.1} parent=39 // pred_check
          %p277 = pneg %p99
        $region50: #{tpu_custom_call.1} parent=39 // pred_check_branch
          %279 = sbr.rel (%p277) target = $region52
        $region51: #{tpu_custom_call.1} parent=39 // pred_region
          %280 = dma.done [#allocation7], 576
        $region52: #{tpu_custom_call.1} parent=39 // pred_fallthru
          _
        // Predicated region
        $region53: #{tpu_custom_call.1} parent=39 // pred_check
          %p281 = pneg %p120
        $region54: #{tpu_custom_call.1} parent=39 // pred_check_branch
          %283 = sbr.rel (%p281) target = $region56
        $region55: #{tpu_custom_call.1} parent=39 // pred_region
          %284 = dma.done [#allocation10], 16
        $region56: #{tpu_custom_call.1} parent=39 // pred_fallthru
          _
        // Predicated region
        $region57: #{tpu_custom_call.1} parent=39 // pred_check
          %p285 = pneg %p141
        $region58: #{tpu_custom_call.1} parent=39 // pred_check_branch
          %287 = sbr.rel (%p285) target = $region60
        $region59: #{tpu_custom_call.1} parent=39 // pred_region
          %288 = dma.done [#allocation10], 16
        $region60: #{tpu_custom_call.1} parent=39 // pred_fallthru
          _
        %s289 = sand.u32 %s44, 1
        %s290 = scalar_lea.sflag [#allocation4], %s289
        %s291 = sand.u32 %s44, 1
        %s292 = smul.addr %s291, 480
        %s293 = scalar_lea.vmem [#allocation3], %s292
        %p294 = pneg %p57
        %p295 = pneg %p54
        %p296 = pneg %p78
        %p297 = pneg %p75
        %p298 = pneg %p99
        %p299 = pneg %p96
        %p300 = pneg %p120
        %p301 = pneg %p117
        %p302 = pneg %p141
        %p303 = pneg %p138
        %p304 = pneg %p169
        %p305 = pneg %p166
        %s306 = sand.u32 %s156, 1
        %s307 = scalar_lea.sflag [#allocation5], %s306
        %s308 = sand.u32 %s156, 1
        %s309 = smul.addr %s308, 128
        %s310 = scalar_lea.vmem [#allocation12], %s309
        %s311 = smul.u32 8, %s29
        %s312 = smul.u32 %s29, 8
        %s313 = smul.u32 %s312, 24
        %s314 = scalar_lea.vmem %s268, %s313 [#allocation3]
        %v315 = vld [vmem:[%s314] sm:$0xff]
        %v316 = vld [vmem:[%s314 + $0x8] sm:$0xff]
        %v317 = vld [vmem:[%s314 + $0x10] sm:$0x3]
        %v318 = vld [vmem:[%s314 + $0x18] sm:$0xff]
        %v319 = vld [vmem:[%s314 + $0x20] sm:$0xff]
        %v320 = vld [vmem:[%s314 + $0x28] sm:$0x3]
        %v321 = vld [vmem:[%s314 + $0x30] sm:$0xff]
        %v322 = vld [vmem:[%s314 + $0x38] sm:$0xff]
        %v323 = vld [vmem:[%s314 + $0x40] sm:$0x3]
        %v324 = vld [vmem:[%s314 + $0x48] sm:$0xff]
        %v325 = vld [vmem:[%s314 + $0x50] sm:$0xff]
        %v326 = vld [vmem:[%s314 + $0x58] sm:$0x3]
        %v327 = vld [vmem:[%s314 + $0x60] sm:$0xff]
        %v328 = vld [vmem:[%s314 + $0x68] sm:$0xff]
        %v329 = vld [vmem:[%s314 + $0x70] sm:$0x3]
        %v330 = vld [vmem:[%s314 + $0x78] sm:$0xff]
        %v331 = vld [vmem:[%s314 + $0x80] sm:$0xff]
        %v332 = vld [vmem:[%s314 + $0x88] sm:$0x3]
        %v333 = vld [vmem:[%s314 + $0x90] sm:$0xff]
        %v334 = vld [vmem:[%s314 + $0x98] sm:$0xff]
        %v335 = vld [vmem:[%s314 + $0xa0] sm:$0x3]
        %v336 = vld [vmem:[%s314 + $0xa8] sm:$0xff]
        %v337 = vld [vmem:[%s314 + $0xb0] sm:$0xff]
        %v338 = vld [vmem:[%s314 + $0xb8] sm:$0x3]
        %v339 = vld [vmem:[%s314 + $0xc0] sm:$0xff]
        %v340 = vld [vmem:[%s314 + $0xc8] sm:$0xff]
        %v341 = vld [vmem:[%s314 + $0xd0] sm:$0x3]
        %v342 = vld [vmem:[%s314 + $0xd8] sm:$0xff]
        %v343 = vld [vmem:[%s314 + $0xe0] sm:$0xff]
        %v344 = vld [vmem:[%s314 + $0xe8] sm:$0x3]
        %v345 = vld [vmem:[#allocation6] sm:$0xf]
        %vm376 = vcmask 1046528
        %v377 = vrot.slane %v315, 1
        %v378 = vrot.slane %v316, 1
        %v379 = vsel %vm376, %v377, %v378
        %v380 = vrot.slane %v317, 1
        %v381 = vsel %vm376, %v378, %v380
        %v382 = vrot.slane %v318, 1
        %v383 = vrot.slane %v319, 1
        %v384 = vsel %vm376, %v382, %v383
        %v385 = vrot.slane %v320, 1
        %v386 = vsel %vm376, %v383, %v385
        %v387 = vrot.slane %v321, 1
        %v388 = vrot.slane %v322, 1
        %v389 = vsel %vm376, %v387, %v388
        %v390 = vrot.slane %v323, 1
        %v391 = vsel %vm376, %v388, %v390
        %v392 = vrot.slane %v324, 1
        %v393 = vrot.slane %v325, 1
        %v394 = vsel %vm376, %v392, %v393
        %v395 = vrot.slane %v326, 1
        %v396 = vsel %vm376, %v393, %v395
        %v397 = vrot.slane %v327, 1
        %v398 = vrot.slane %v328, 1
        %v399 = vsel %vm376, %v397, %v398
        %v400 = vrot.slane %v329, 1
        %v401 = vsel %vm376, %v398, %v400
        %v402 = vrot.slane %v330, 1
        %v403 = vrot.slane %v331, 1
        %v404 = vsel %vm376, %v402, %v403
        %v405 = vrot.slane %v332, 1
        %v406 = vsel %vm376, %v403, %v405
        %v407 = vrot.slane %v333, 1
        %v408 = vrot.slane %v334, 1
        %v409 = vsel %vm376, %v407, %v408
        %v410 = vrot.slane %v335, 1
        %v411 = vsel %vm376, %v408, %v410
        %v412 = vrot.slane %v336, 1
        %v413 = vrot.slane %v337, 1
        %v414 = vsel %vm376, %v412, %v413
        %v415 = vrot.slane %v338, 1
        %v416 = vsel %vm376, %v413, %v415
        %v417 = vrot.slane %v339, 1
        %v418 = vrot.slane %v340, 1
        %v419 = vsel %vm376, %v417, %v418
        %v420 = vrot.slane %v341, 1
        %v421 = vsel %vm376, %v418, %v420
        %v422 = vrot.slane %v342, 1
        %v423 = vrot.slane %v343, 1
        %v424 = vsel %vm376, %v422, %v423
        %v425 = vrot.slane %v344, 1
        %v426 = vsel %vm376, %v423, %v425
        %s427 = scalar_lea.vmem [#allocation6], 4
        %v428 = vld [vmem:[%s427] sm:$0xf]
        %vm429 = vcmask 31744
        %v430 = vsel %vm429, %v379, 0
        %v432 = vsel %vm429, %v381, 0
        %v434 = vsel %vm429, %v384, 0
        %v436 = vsel %vm429, %v386, 0
        %v438 = vsel %vm429, %v389, 0
        %v440 = vsel %vm429, %v391, 0
        %v442 = vsel %vm429, %v394, 0
        %v444 = vsel %vm429, %v396, 0
        %v446 = vsel %vm429, %v399, 0
        %v448 = vsel %vm429, %v401, 0
        %v450 = vsel %vm429, %v404, 0
        %v452 = vsel %vm429, %v406, 0
        %v454 = vsel %vm429, %v409, 0
        %v456 = vsel %vm429, %v411, 0
        %v458 = vsel %vm429, %v414, 0
        %v460 = vsel %vm429, %v416, 0
        %v462 = vsel %vm429, %v419, 0
        %v464 = vsel %vm429, %v421, 0
        %v466 = vsel %vm429, %v424, 0
        %v468 = vsel %vm429, %v426, 0
        %vm470 = vcmask 1043456
        %v472 = vsel %vm470, %v428, 0
        %474 = vmatprep.subr.mxu0 0.0
        %475 = vmatpush1.msra.mxu0 %v472
        %476 = vmatprep.subr.mxu0 0.0
        %477 = vmatpush1.msra.mxu0 0.0
        %478 = vmatprep.subr.mxu0 0.0
        %479 = vmatpush1.msra.mxu0 0.0
        %480 = vmatprep.subr.mxu0 0.0
        %481 = vmatpush1.msra.mxu0 0.0
        %482 = vmatprep.subr.mxu0 0.0
        %483 = vmatpush1.msra.mxu0 0.0
        %484 = vmatprep.subr.mxu0 0.0
        %485 = vmatpush1.msra.mxu0 0.0
        %486 = vmatprep.subr.mxu0 0.0
        %487 = vmatpush1.msra.mxu0 0.0
        %488 = vmatprep.subr.mxu0 0.0
        %489 = vmatpush1.msra.mxu0 0.0
        %490 = vmatprep.subr.mxu0 0.0
        %491 = vmatpush1.msra.mxu0 0.0
        %492 = vmatprep.subr.mxu0 0.0
        %493 = vmatpush1.msra.mxu0 0.0
        %494 = vmatprep.subr.mxu0 0.0
        %495 = vmatpush1.msra.mxu0 0.0
        %496 = vmatprep.subr.mxu0 0.0
        %497 = vmatpush1.msra.mxu0 0.0
        %498 = vmatprep.subr.mxu0 0.0
        %499 = vmatpush1.msra.mxu0 0.0
        %500 = vmatprep.subr.mxu0 0.0
        %501 = vmatpush1.msra.mxu0 0.0
        %502 = vmatprep.subr.mxu0 0.0
        %503 = vmatpush1.msra.mxu0 0.0
        %504 = vmatprep.subr.mxu0 0.0
        %505 = vmatpush1.msra.mxu0 0.0
        %506 = vmatprep.subr.mxu0 0.0
        %507 = vmatpush1.msra.mxu0 0.0
        %508 = vmatprep.subr.mxu0 0.0
        %509 = vmatpush1.msra.mxu0 0.0
        %510 = vmatprep.subr.mxu0 0.0
        %511 = vmatpush1.msra.mxu0 0.0
        %512 = vmatprep.subr.mxu0 0.0
        %513 = vmatpush1.msra.mxu0 0.0
        %514 = vmatprep.subr.mxu0 0.0
        %515 = vmatpush1.msra.mxu0 0.0
        %516 = vmatprep.subr.mxu0 0.0
        %517 = vmatpush1.msra.mxu0 0.0
        %518 = vmatprep.subr.mxu0 0.0
        %519 = vmatpush1.msra.mxu0 0.0
        %520 = vmatprep.subr.mxu0 0.0
        %521 = vmatpush1.msra.mxu0 0.0
        %522 = vmatprep.subr.mxu0 0.0
        %523 = vmatpush1.msra.mxu0 0.0
        %524 = vmatprep.subr.mxu0 0.0
        %525 = vmatpush1.msra.mxu0 0.0
        %526 = vmatprep.subr.mxu0 0.0
        %527 = vmatpush1.msra.mxu0 0.0
        %528 = vmatprep.subr.mxu0 0.0
        %529 = vmatpush1.msra.mxu0 0.0
        %530 = vmatprep.subr.mxu0 0.0
        %531 = vmatpush1.msra.mxu0 0.0
        %532 = vmatprep.subr.mxu0 0.0
        %533 = vmatpush1.msra.mxu0 0.0
        %534 = vmatprep.subr.mxu0 0.0
        %535 = vmatpush1.msra.mxu0 0.0
        %536 = vmatprep.subr.mxu0 0.0
        %537 = vmatpush1.msra.mxu0 0.0
        %538 = vmatprep.mubr.f32.mxu0 0.0
        %539 = vmatmul.mubr.f32.gmra.mrb[0].mxu0 %v430
        %v540 = vpop.f32.mrb[0].mxu0
        %v541 = vadd.f32 0.0, %v540
        %v542 = vpop.f32.mrb[0].mxu0
        %543 = vmatprep.mubr.f32.mxu0 0.0
        %544 = vmatmul.mubr.f32.gmra.mrb[0].mxu0 %v432
        %v545 = vpop.f32.mrb[0].mxu0
        %v546 = vadd.f32 0.0, %v545
        %v547 = vpop.f32.mrb[0].mxu0
        %548 = vmatprep.mubr.f32.mxu0 0.0
        %549 = vmatmul.mubr.f32.gmra.mrb[0].mxu0 %v434
        %v550 = vpop.f32.mrb[0].mxu0
        %v551 = vadd.f32 0.0, %v550
        %v552 = vpop.f32.mrb[0].mxu0
        %553 = vmatprep.mubr.f32.mxu0 0.0
        %554 = vmatmul.mubr.f32.gmra.mrb[0].mxu0 %v436
        %v555 = vpop.f32.mrb[0].mxu0
        %v556 = vadd.f32 0.0, %v555
        %v557 = vpop.f32.mrb[0].mxu0
        %558 = vmatprep.mubr.f32.mxu0 0.0
        %559 = vmatmul.mubr.f32.gmra.mrb[0].mxu0 %v438
        %v560 = vpop.f32.mrb[0].mxu0
        %v561 = vadd.f32 0.0, %v560
        %v562 = vpop.f32.mrb[0].mxu0
        %563 = vmatprep.mubr.f32.mxu0 0.0
        %564 = vmatmul.mubr.f32.gmra.mrb[0].mxu0 %v440
        %v565 = vpop.f32.mrb[0].mxu0
        %v566 = vadd.f32 0.0, %v565
        %v567 = vpop.f32.mrb[0].mxu0
        %568 = vmatprep.mubr.f32.mxu0 0.0
        %569 = vmatmul.mubr.f32.gmra.mrb[0].mxu0 %v442
        %v570 = vpop.f32.mrb[0].mxu0
        %v571 = vadd.f32 0.0, %v570
        %v572 = vpop.f32.mrb[0].mxu0
        %573 = vmatprep.mubr.f32.mxu0 0.0
        %574 = vmatmul.mubr.f32.gmra.mrb[0].mxu0 %v444
        %v575 = vpop.f32.mrb[0].mxu0
        %v576 = vadd.f32 0.0, %v575
        %v577 = vpop.f32.mrb[0].mxu0
        %578 = vmatprep.mubr.f32.mxu0 0.0
        %579 = vmatmul.mubr.f32.gmra.mrb[0].mxu0 %v446
        %v580 = vpop.f32.mrb[0].mxu0
        %v581 = vadd.f32 0.0, %v580
        %v582 = vpop.f32.mrb[0].mxu0
        %583 = vmatprep.mubr.f32.mxu0 0.0
        %584 = vmatmul.mubr.f32.gmra.mrb[0].mxu0 %v448
        %v585 = vpop.f32.mrb[0].mxu0
        %v586 = vadd.f32 0.0, %v585
        %v587 = vpop.f32.mrb[0].mxu0
        %588 = vmatprep.mubr.f32.mxu0 0.0
        %589 = vmatmul.mubr.f32.gmra.mrb[0].mxu0 %v450
        %v590 = vpop.f32.mrb[0].mxu0
        %v591 = vadd.f32 0.0, %v590
        %v592 = vpop.f32.mrb[0].mxu0
        %593 = vmatprep.mubr.f32.mxu0 0.0
        %594 = vmatmul.mubr.f32.gmra.mrb[0].mxu0 %v452
        %v595 = vpop.f32.mrb[0].mxu0
        %v596 = vadd.f32 0.0, %v595
        %v597 = vpop.f32.mrb[0].mxu0
        %598 = vmatprep.mubr.f32.mxu0 0.0
        %599 = vmatmul.mubr.f32.gmra.mrb[0].mxu0 %v454
        %v600 = vpop.f32.mrb[0].mxu0
        %v601 = vadd.f32 0.0, %v600
        %v602 = vpop.f32.mrb[0].mxu0
        %603 = vmatprep.mubr.f32.mxu0 0.0
        %604 = vmatmul.mubr.f32.gmra.mrb[0].mxu0 %v456
        %v605 = vpop.f32.mrb[0].mxu0
        %v606 = vadd.f32 0.0, %v605
        %v607 = vpop.f32.mrb[0].mxu0
        %608 = vmatprep.mubr.f32.mxu0 0.0
        %609 = vmatmul.mubr.f32.gmra.mrb[0].mxu0 %v458
        %v610 = vpop.f32.mrb[0].mxu0
        %v611 = vadd.f32 0.0, %v610
        %v612 = vpop.f32.mrb[0].mxu0
        %613 = vmatprep.mubr.f32.mxu0 0.0
        %614 = vmatmul.mubr.f32.gmra.mrb[0].mxu0 %v460
        %v615 = vpop.f32.mrb[0].mxu0
        %v616 = vadd.f32 0.0, %v615
        %v617 = vpop.f32.mrb[0].mxu0
        %618 = vmatprep.mubr.f32.mxu0 0.0
        %619 = vmatmul.mubr.f32.gmra.mrb[0].mxu0 %v462
        %v620 = vpop.f32.mrb[0].mxu0
        %v621 = vadd.f32 0.0, %v620
        %v622 = vpop.f32.mrb[0].mxu0
        %623 = vmatprep.mubr.f32.mxu0 0.0
        %624 = vmatmul.mubr.f32.gmra.mrb[0].mxu0 %v464
        %v625 = vpop.f32.mrb[0].mxu0
        %v626 = vadd.f32 0.0, %v625
        %v627 = vpop.f32.mrb[0].mxu0
        %628 = vmatprep.mubr.f32.mxu0 0.0
        %629 = vmatmul.mubr.f32.gmra.mrb[0].mxu0 %v466
        %v630 = vpop.f32.mrb[0].mxu0
        %v631 = vadd.f32 0.0, %v630
        %v632 = vpop.f32.mrb[0].mxu0
        %633 = vmatprep.mubr.f32.mxu0 0.0
        %634 = vmatmul.mubr.f32.gmra.mrb[0].mxu0 %v468
        %v635 = vpop.f32.mrb[0].mxu0
        %v636 = vadd.f32 0.0, %v635
        %v637 = vpop.f32.mrb[0].mxu0
        %638 = vdwg.mxu0
        %v639 = vsel %vm429, %v315, 0
        %v641 = vsel %vm429, %v316, 0
        %v643 = vsel %vm429, %v318, 0
        %v645 = vsel %vm429, %v319, 0
        %v647 = vsel %vm429, %v321, 0
        %v649 = vsel %vm429, %v322, 0
        %v651 = vsel %vm429, %v324, 0
        %v653 = vsel %vm429, %v325, 0
        %v655 = vsel %vm429, %v327, 0
        %v657 = vsel %vm429, %v328, 0
        %v659 = vsel %vm429, %v330, 0
        %v661 = vsel %vm429, %v331, 0
        %v663 = vsel %vm429, %v333, 0
        %v665 = vsel %vm429, %v334, 0
        %v667 = vsel %vm429, %v336, 0
        %v669 = vsel %vm429, %v337, 0
        %v671 = vsel %vm429, %v339, 0
        %v673 = vsel %vm429, %v340, 0
        %v675 = vsel %vm429, %v342, 0
        %v677 = vsel %vm429, %v343, 0
        %v680 = vsel %vm470, %v345, 0
        %682 = vmatprep.subr.mxu0 0.0
        %683 = vmatpush1.msra.mxu0 %v680
        %684 = vmatprep.subr.mxu0 0.0
        %685 = vmatpush1.msra.mxu0 0.0
        %686 = vmatprep.subr.mxu0 0.0
        %687 = vmatpush1.msra.mxu0 0.0
        %688 = vmatprep.subr.mxu0 0.0
        %689 = vmatpush1.msra.mxu0 0.0
        %690 = vmatprep.subr.mxu0 0.0
        %691 = vmatpush1.msra.mxu0 0.0
        %692 = vmatprep.subr.mxu0 0.0
        %693 = vmatpush1.msra.mxu0 0.0
        %694 = vmatprep.subr.mxu0 0.0
        %695 = vmatpush1.msra.mxu0 0.0
        %696 = vmatprep.subr.mxu0 0.0
        %697 = vmatpush1.msra.mxu0 0.0
        %698 = vmatprep.subr.mxu0 0.0
        %699 = vmatpush1.msra.mxu0 0.0
        %700 = vmatprep.subr.mxu0 0.0
        %701 = vmatpush1.msra.mxu0 0.0
        %702 = vmatprep.subr.mxu0 0.0
        %703 = vmatpush1.msra.mxu0 0.0
        %704 = vmatprep.subr.mxu0 0.0
        %705 = vmatpush1.msra.mxu0 0.0
        %706 = vmatprep.subr.mxu0 0.0
        %707 = vmatpush1.msra.mxu0 0.0
        %708 = vmatprep.subr.mxu0 0.0
        %709 = vmatpush1.msra.mxu0 0.0
        %710 = vmatprep.subr.mxu0 0.0
        %711 = vmatpush1.msra.mxu0 0.0
        %712 = vmatprep.subr.mxu0 0.0
        %713 = vmatpush1.msra.mxu0 0.0
        %714 = vmatprep.subr.mxu0 0.0
        %715 = vmatpush1.msra.mxu0 0.0
        %716 = vmatprep.subr.mxu0 0.0
        %717 = vmatpush1.msra.mxu0 0.0
        %718 = vmatprep.subr.mxu0 0.0
        %719 = vmatpush1.msra.mxu0 0.0
        %720 = vmatprep.subr.mxu0 0.0
        %721 = vmatpush1.msra.mxu0 0.0
        %722 = vmatprep.subr.mxu0 0.0
        %723 = vmatpush1.msra.mxu0 0.0
        %724 = vmatprep.subr.mxu0 0.0
        %725 = vmatpush1.msra.mxu0 0.0
        %726 = vmatprep.subr.mxu0 0.0
        %727 = vmatpush1.msra.mxu0 0.0
        %728 = vmatprep.subr.mxu0 0.0
        %729 = vmatpush1.msra.mxu0 0.0
        %730 = vmatprep.subr.mxu0 0.0
        %731 = vmatpush1.msra.mxu0 0.0
        %732 = vmatprep.subr.mxu0 0.0
        %733 = vmatpush1.msra.mxu0 0.0
        %734 = vmatprep.subr.mxu0 0.0
        %735 = vmatpush1.msra.mxu0 0.0
        %736 = vmatprep.subr.mxu0 0.0
        %737 = vmatpush1.msra.mxu0 0.0
        %738 = vmatprep.subr.mxu0 0.0
        %739 = vmatpush1.msra.mxu0 0.0
        %740 = vmatprep.subr.mxu0 0.0
        %741 = vmatpush1.msra.mxu0 0.0
        %742 = vmatprep.subr.mxu0 0.0
        %743 = vmatpush1.msra.mxu0 0.0
        %744 = vmatprep.subr.mxu0 0.0
        %745 = vmatpush1.msra.mxu0 0.0
        %746 = vmatprep.mubr.f32.mxu0 0.0
        %747 = vmatmul.mubr.f32.gmra.mrb[0].mxu0 %v639
        %v748 = vpop.f32.mrb[0].mxu0
        %v749 = vadd.f32 %v541, %v748
        %v750 = vpop.f32.mrb[0].mxu0
        %751 = vmatprep.mubr.f32.mxu0 0.0
        %752 = vmatmul.mubr.f32.gmra.mrb[0].mxu0 %v641
        %v753 = vpop.f32.mrb[0].mxu0
        %v754 = vadd.f32 %v546, %v753
        %v755 = vpop.f32.mrb[0].mxu0
        %756 = vmatprep.mubr.f32.mxu0 0.0
        %757 = vmatmul.mubr.f32.gmra.mrb[0].mxu0 %v643
        %v758 = vpop.f32.mrb[0].mxu0
        %v759 = vadd.f32 %v551, %v758
        %v760 = vpop.f32.mrb[0].mxu0
        %761 = vmatprep.mubr.f32.mxu0 0.0
        %762 = vmatmul.mubr.f32.gmra.mrb[0].mxu0 %v645
        %v763 = vpop.f32.mrb[0].mxu0
        %v764 = vadd.f32 %v556, %v763
        %v765 = vpop.f32.mrb[0].mxu0
        %766 = vmatprep.mubr.f32.mxu0 0.0
        %767 = vmatmul.mubr.f32.gmra.mrb[0].mxu0 %v647
        %v768 = vpop.f32.mrb[0].mxu0
        %v769 = vadd.f32 %v561, %v768
        %v770 = vpop.f32.mrb[0].mxu0
        %771 = vmatprep.mubr.f32.mxu0 0.0
        %772 = vmatmul.mubr.f32.gmra.mrb[0].mxu0 %v649
        %v773 = vpop.f32.mrb[0].mxu0
        %v774 = vadd.f32 %v566, %v773
        %v775 = vpop.f32.mrb[0].mxu0
        %776 = vmatprep.mubr.f32.mxu0 0.0
        %777 = vmatmul.mubr.f32.gmra.mrb[0].mxu0 %v651
        %v778 = vpop.f32.mrb[0].mxu0
        %v779 = vadd.f32 %v571, %v778
        %v780 = vpop.f32.mrb[0].mxu0
        %781 = vmatprep.mubr.f32.mxu0 0.0
        %782 = vmatmul.mubr.f32.gmra.mrb[0].mxu0 %v653
        %v783 = vpop.f32.mrb[0].mxu0
        %v784 = vadd.f32 %v576, %v783
        %v785 = vpop.f32.mrb[0].mxu0
        %786 = vmatprep.mubr.f32.mxu0 0.0
        %787 = vmatmul.mubr.f32.gmra.mrb[0].mxu0 %v655
        %v788 = vpop.f32.mrb[0].mxu0
        %v789 = vadd.f32 %v581, %v788
        %v790 = vpop.f32.mrb[0].mxu0
        %791 = vmatprep.mubr.f32.mxu0 0.0
        %792 = vmatmul.mubr.f32.gmra.mrb[0].mxu0 %v657
        %v793 = vpop.f32.mrb[0].mxu0
        %v794 = vadd.f32 %v586, %v793
        %v795 = vpop.f32.mrb[0].mxu0
        %796 = vmatprep.mubr.f32.mxu0 0.0
        %797 = vmatmul.mubr.f32.gmra.mrb[0].mxu0 %v659
        %v798 = vpop.f32.mrb[0].mxu0
        %v799 = vadd.f32 %v591, %v798
        %v800 = vpop.f32.mrb[0].mxu0
        %801 = vmatprep.mubr.f32.mxu0 0.0
        %802 = vmatmul.mubr.f32.gmra.mrb[0].mxu0 %v661
        %v803 = vpop.f32.mrb[0].mxu0
        %v804 = vadd.f32 %v596, %v803
        %v805 = vpop.f32.mrb[0].mxu0
        %806 = vmatprep.mubr.f32.mxu0 0.0
        %807 = vmatmul.mubr.f32.gmra.mrb[0].mxu0 %v663
        %v808 = vpop.f32.mrb[0].mxu0
        %v809 = vadd.f32 %v601, %v808
        %v810 = vpop.f32.mrb[0].mxu0
        %811 = vmatprep.mubr.f32.mxu0 0.0
        %812 = vmatmul.mubr.f32.gmra.mrb[0].mxu0 %v665
        %v813 = vpop.f32.mrb[0].mxu0
        %v814 = vadd.f32 %v606, %v813
        %v815 = vpop.f32.mrb[0].mxu0
        %816 = vmatprep.mubr.f32.mxu0 0.0
        %817 = vmatmul.mubr.f32.gmra.mrb[0].mxu0 %v667
        %v818 = vpop.f32.mrb[0].mxu0
        %v819 = vadd.f32 %v611, %v818
        %v820 = vpop.f32.mrb[0].mxu0
        %821 = vmatprep.mubr.f32.mxu0 0.0
        %822 = vmatmul.mubr.f32.gmra.mrb[0].mxu0 %v669
        %v823 = vpop.f32.mrb[0].mxu0
        %v824 = vadd.f32 %v616, %v823
        %v825 = vpop.f32.mrb[0].mxu0
        %826 = vmatprep.mubr.f32.mxu0 0.0
        %827 = vmatmul.mubr.f32.gmra.mrb[0].mxu0 %v671
        %v828 = vpop.f32.mrb[0].mxu0
        %v829 = vadd.f32 %v621, %v828
        %v830 = vpop.f32.mrb[0].mxu0
        %831 = vmatprep.mubr.f32.mxu0 0.0
        %832 = vmatmul.mubr.f32.gmra.mrb[0].mxu0 %v673
        %v833 = vpop.f32.mrb[0].mxu0
        %v834 = vadd.f32 %v626, %v833
        %v835 = vpop.f32.mrb[0].mxu0
        %836 = vmatprep.mubr.f32.mxu0 0.0
        %837 = vmatmul.mubr.f32.gmra.mrb[0].mxu0 %v675
        %v838 = vpop.f32.mrb[0].mxu0
        %v839 = vadd.f32 %v631, %v838
        %v840 = vpop.f32.mrb[0].mxu0
        %841 = vmatprep.mubr.f32.mxu0 0.0
        %842 = vmatmul.mubr.f32.gmra.mrb[0].mxu0 %v677
        %v843 = vpop.f32.mrb[0].mxu0
        %v844 = vadd.f32 %v636, %v843
        %v845 = vpop.f32.mrb[0].mxu0
        %846 = vdwg.mxu0
        %vm847 = vcmask 1045504
        %v848 = vrot.slane %v315, 2
        %v849 = vrot.slane %v316, 2
        %v850 = vsel %vm847, %v848, %v849
        %v851 = vrot.slane %v317, 2
        %v852 = vsel %vm847, %v849, %v851
        %v853 = vrot.slane %v318, 2
        %v854 = vrot.slane %v319, 2
        %v855 = vsel %vm847, %v853, %v854
        %v856 = vrot.slane %v320, 2
        %v857 = vsel %vm847, %v854, %v856
        %v858 = vrot.slane %v321, 2
        %v859 = vrot.slane %v322, 2
        %v860 = vsel %vm847, %v858, %v859
        %v861 = vrot.slane %v323, 2
        %v862 = vsel %vm847, %v859, %v861
        %v863 = vrot.slane %v324, 2
        %v864 = vrot.slane %v325, 2
        %v865 = vsel %vm847, %v863, %v864
        %v866 = vrot.slane %v326, 2
        %v867 = vsel %vm847, %v864, %v866
        %v868 = vrot.slane %v327, 2
        %v869 = vrot.slane %v328, 2
        %v870 = vsel %vm847, %v868, %v869
        %v871 = vrot.slane %v329, 2
        %v872 = vsel %vm847, %v869, %v871
        %v873 = vrot.slane %v330, 2
        %v874 = vrot.slane %v331, 2
        %v875 = vsel %vm847, %v873, %v874
        %v876 = vrot.slane %v332, 2
        %v877 = vsel %vm847, %v874, %v876
        %v878 = vrot.slane %v333, 2
        %v879 = vrot.slane %v334, 2
        %v880 = vsel %vm847, %v878, %v879
        %v881 = vrot.slane %v335, 2
        %v882 = vsel %vm847, %v879, %v881
        %v883 = vrot.slane %v336, 2
        %v884 = vrot.slane %v337, 2
        %v885 = vsel %vm847, %v883, %v884
        %v886 = vrot.slane %v338, 2
        %v887 = vsel %vm847, %v884, %v886
        %v888 = vrot.slane %v339, 2
        %v889 = vrot.slane %v340, 2
        %v890 = vsel %vm847, %v888, %v889
        %v891 = vrot.slane %v341, 2
        %v892 = vsel %vm847, %v889, %v891
        %v893 = vrot.slane %v342, 2
        %v894 = vrot.slane %v343, 2
        %v895 = vsel %vm847, %v893, %v894
        %v896 = vrot.slane %v344, 2
        %v897 = vsel %vm847, %v894, %v896
        %s898 = scalar_lea.vmem [#allocation6], 8
        %v899 = vld [vmem:[%s898] sm:$0xf]
        %v900 = vsel %vm429, %v850, 0
        %v902 = vsel %vm429, %v852, 0
        %v904 = vsel %vm429, %v855, 0
        %v906 = vsel %vm429, %v857, 0
        %v908 = vsel %vm429, %v860, 0
        %v910 = vsel %vm429, %v862, 0
        %v912 = vsel %vm429, %v865, 0
        %v914 = vsel %vm429, %v867, 0
        %v916 = vsel %vm429, %v870, 0
        %v918 = vsel %vm429, %v872, 0
        %v920 = vsel %vm429, %v875, 0
        %v922 = vsel %vm429, %v877, 0
        %v924 = vsel %vm429, %v880, 0
        %v926 = vsel %vm429, %v882, 0
        %v928 = vsel %vm429, %v885, 0
        %v930 = vsel %vm429, %v887, 0
        %v932 = vsel %vm429, %v890, 0
        %v934 = vsel %vm429, %v892, 0
        %v936 = vsel %vm429, %v895, 0
        %v938 = vsel %vm429, %v897, 0
        %v941 = vsel %vm470, %v899, 0
        %943 = vmatprep.subr.mxu0 0.0
        %944 = vmatpush1.msra.mxu0 %v941
        %945 = vmatprep.subr.mxu0 0.0
        %946 = vmatpush1.msra.mxu0 0.0
        %947 = vmatprep.subr.mxu0 0.0
        %948 = vmatpush1.msra.mxu0 0.0
        %949 = vmatprep.subr.mxu0 0.0
        %950 = vmatpush1.msra.mxu0 0.0
        %951 = vmatprep.subr.mxu0 0.0
        %952 = vmatpush1.msra.mxu0 0.0
        %953 = vmatprep.subr.mxu0 0.0
        %954 = vmatpush1.msra.mxu0 0.0
        %955 = vmatprep.subr.mxu0 0.0
        %956 = vmatpush1.msra.mxu0 0.0
        %957 = vmatprep.subr.mxu0 0.0
        %958 = vmatpush1.msra.mxu0 0.0
        %959 = vmatprep.subr.mxu0 0.0
        %960 = vmatpush1.msra.mxu0 0.0
        %961 = vmatprep.subr.mxu0 0.0
        %962 = vmatpush1.msra.mxu0 0.0
        %963 = vmatprep.subr.mxu0 0.0
        %964 = vmatpush1.msra.mxu0 0.0
        %965 = vmatprep.subr.mxu0 0.0
        %966 = vmatpush1.msra.mxu0 0.0
        %967 = vmatprep.subr.mxu0 0.0
        %968 = vmatpush1.msra.mxu0 0.0
        %969 = vmatprep.subr.mxu0 0.0
        %970 = vmatpush1.msra.mxu0 0.0
        %971 = vmatprep.subr.mxu0 0.0
        %972 = vmatpush1.msra.mxu0 0.0
        %973 = vmatprep.subr.mxu0 0.0
        %974 = vmatpush1.msra.mxu0 0.0
        %975 = vmatprep.subr.mxu0 0.0
        %976 = vmatpush1.msra.mxu0 0.0
        %977 = vmatprep.subr.mxu0 0.0
        %978 = vmatpush1.msra.mxu0 0.0
        %979 = vmatprep.subr.mxu0 0.0
        %980 = vmatpush1.msra.mxu0 0.0
        %981 = vmatprep.subr.mxu0 0.0
        %982 = vmatpush1.msra.mxu0 0.0
        %983 = vmatprep.subr.mxu0 0.0
        %984 = vmatpush1.msra.mxu0 0.0
        %985 = vmatprep.subr.mxu0 0.0
        %986 = vmatpush1.msra.mxu0 0.0
        %987 = vmatprep.subr.mxu0 0.0
        %988 = vmatpush1.msra.mxu0 0.0
        %989 = vmatprep.subr.mxu0 0.0
        %990 = vmatpush1.msra.mxu0 0.0
        %991 = vmatprep.subr.mxu0 0.0
        %992 = vmatpush1.msra.mxu0 0.0
        %993 = vmatprep.subr.mxu0 0.0
        %994 = vmatpush1.msra.mxu0 0.0
        %995 = vmatprep.subr.mxu0 0.0
        %996 = vmatpush1.msra.mxu0 0.0
        %997 = vmatprep.subr.mxu0 0.0
        %998 = vmatpush1.msra.mxu0 0.0
        %999 = vmatprep.subr.mxu0 0.0
        %1000 = vmatpush1.msra.mxu0 0.0
        %1001 = vmatprep.subr.mxu0 0.0
        %1002 = vmatpush1.msra.mxu0 0.0
        %1003 = vmatprep.subr.mxu0 0.0
        %1004 = vmatpush1.msra.mxu0 0.0
        %1005 = vmatprep.subr.mxu0 0.0
        %1006 = vmatpush1.msra.mxu0 0.0
        %1007 = vmatprep.mubr.f32.mxu0 0.0
        %1008 = vmatmul.mubr.f32.gmra.mrb[0].mxu0 %v900
        %v1009 = vpop.f32.mrb[0].mxu0
        %v1010 = vadd.f32 0.0, %v1009
        %v1011 = vpop.f32.mrb[0].mxu0
        %1012 = vmatprep.mubr.f32.mxu0 0.0
        %1013 = vmatmul.mubr.f32.gmra.mrb[0].mxu0 %v902
        %v1014 = vpop.f32.mrb[0].mxu0
        %v1015 = vadd.f32 0.0, %v1014
        %v1016 = vpop.f32.mrb[0].mxu0
        %1017 = vmatprep.mubr.f32.mxu0 0.0
        %1018 = vmatmul.mubr.f32.gmra.mrb[0].mxu0 %v904
        %v1019 = vpop.f32.mrb[0].mxu0
        %v1020 = vadd.f32 0.0, %v1019
        %v1021 = vpop.f32.mrb[0].mxu0
        %1022 = vmatprep.mubr.f32.mxu0 0.0
        %1023 = vmatmul.mubr.f32.gmra.mrb[0].mxu0 %v906
        %v1024 = vpop.f32.mrb[0].mxu0
        %v1025 = vadd.f32 0.0, %v1024
        %v1026 = vpop.f32.mrb[0].mxu0
        %1027 = vmatprep.mubr.f32.mxu0 0.0
        %1028 = vmatmul.mubr.f32.gmra.mrb[0].mxu0 %v908
        %v1029 = vpop.f32.mrb[0].mxu0
        %v1030 = vadd.f32 0.0, %v1029
        %v1031 = vpop.f32.mrb[0].mxu0
        %1032 = vmatprep.mubr.f32.mxu0 0.0
        %1033 = vmatmul.mubr.f32.gmra.mrb[0].mxu0 %v910
        %v1034 = vpop.f32.mrb[0].mxu0
        %v1035 = vadd.f32 0.0, %v1034
        %v1036 = vpop.f32.mrb[0].mxu0
        %1037 = vmatprep.mubr.f32.mxu0 0.0
        %1038 = vmatmul.mubr.f32.gmra.mrb[0].mxu0 %v912
        %v1039 = vpop.f32.mrb[0].mxu0
        %v1040 = vadd.f32 0.0, %v1039
        %v1041 = vpop.f32.mrb[0].mxu0
        %1042 = vmatprep.mubr.f32.mxu0 0.0
        %1043 = vmatmul.mubr.f32.gmra.mrb[0].mxu0 %v914
        %v1044 = vpop.f32.mrb[0].mxu0
        %v1045 = vadd.f32 0.0, %v1044
        %v1046 = vpop.f32.mrb[0].mxu0
        %1047 = vmatprep.mubr.f32.mxu0 0.0
        %1048 = vmatmul.mubr.f32.gmra.mrb[0].mxu0 %v916
        %v1049 = vpop.f32.mrb[0].mxu0
        %v1050 = vadd.f32 0.0, %v1049
        %v1051 = vpop.f32.mrb[0].mxu0
        %1052 = vmatprep.mubr.f32.mxu0 0.0
        %1053 = vmatmul.mubr.f32.gmra.mrb[0].mxu0 %v918
        %v1054 = vpop.f32.mrb[0].mxu0
        %v1055 = vadd.f32 0.0, %v1054
        %v1056 = vpop.f32.mrb[0].mxu0
        %1057 = vmatprep.mubr.f32.mxu0 0.0
        %1058 = vmatmul.mubr.f32.gmra.mrb[0].mxu0 %v920
        %v1059 = vpop.f32.mrb[0].mxu0
        %v1060 = vadd.f32 0.0, %v1059
        %v1061 = vpop.f32.mrb[0].mxu0
        %1062 = vmatprep.mubr.f32.mxu0 0.0
        %1063 = vmatmul.mubr.f32.gmra.mrb[0].mxu0 %v922
        %v1064 = vpop.f32.mrb[0].mxu0
        %v1065 = vadd.f32 0.0, %v1064
        %v1066 = vpop.f32.mrb[0].mxu0
        %1067 = vmatprep.mubr.f32.mxu0 0.0
        %1068 = vmatmul.mubr.f32.gmra.mrb[0].mxu0 %v924
        %v1069 = vpop.f32.mrb[0].mxu0
        %v1070 = vadd.f32 0.0, %v1069
        %v1071 = vpop.f32.mrb[0].mxu0
        %1072 = vmatprep.mubr.f32.mxu0 0.0
        %1073 = vmatmul.mubr.f32.gmra.mrb[0].mxu0 %v926
        %v1074 = vpop.f32.mrb[0].mxu0
        %v1075 = vadd.f32 0.0, %v1074
        %v1076 = vpop.f32.mrb[0].mxu0
        %1077 = vmatprep.mubr.f32.mxu0 0.0
        %1078 = vmatmul.mubr.f32.gmra.mrb[0].mxu0 %v928
        %v1079 = vpop.f32.mrb[0].mxu0
        %v1080 = vadd.f32 0.0, %v1079
        %v1081 = vpop.f32.mrb[0].mxu0
        %1082 = vmatprep.mubr.f32.mxu0 0.0
        %1083 = vmatmul.mubr.f32.gmra.mrb[0].mxu0 %v930
        %v1084 = vpop.f32.mrb[0].mxu0
        %v1085 = vadd.f32 0.0, %v1084
        %v1086 = vpop.f32.mrb[0].mxu0
        %1087 = vmatprep.mubr.f32.mxu0 0.0
        %1088 = vmatmul.mubr.f32.gmra.mrb[0].mxu0 %v932
        %v1089 = vpop.f32.mrb[0].mxu0
        %v1090 = vadd.f32 0.0, %v1089
        %v1091 = vpop.f32.mrb[0].mxu0
        %1092 = vmatprep.mubr.f32.mxu0 0.0
        %1093 = vmatmul.mubr.f32.gmra.mrb[0].mxu0 %v934
        %v1094 = vpop.f32.mrb[0].mxu0
        %v1095 = vadd.f32 0.0, %v1094
        %v1096 = vpop.f32.mrb[0].mxu0
        %1097 = vmatprep.mubr.f32.mxu0 0.0
        %1098 = vmatmul.mubr.f32.gmra.mrb[0].mxu0 %v936
        %v1099 = vpop.f32.mrb[0].mxu0
        %v1100 = vadd.f32 0.0, %v1099
        %v1101 = vpop.f32.mrb[0].mxu0
        %1102 = vmatprep.mubr.f32.mxu0 0.0
        %1103 = vmatmul.mubr.f32.gmra.mrb[0].mxu0 %v938
        %v1104 = vpop.f32.mrb[0].mxu0
        %v1105 = vadd.f32 0.0, %v1104
        %v1106 = vpop.f32.mrb[0].mxu0
        %1107 = vdwg.mxu0
        %v1108 = vadd.f32 %v749, %v1010
        %v1109 = vadd.f32 %v754, %v1015
        %v1110 = vadd.f32 %v759, %v1020
        %v1111 = vadd.f32 %v764, %v1025
        %v1112 = vadd.f32 %v769, %v1030
        %v1113 = vadd.f32 %v774, %v1035
        %v1114 = vadd.f32 %v779, %v1040
        %v1115 = vadd.f32 %v784, %v1045
        %v1116 = vadd.f32 %v789, %v1050
        %v1117 = vadd.f32 %v794, %v1055
        %v1118 = vadd.f32 %v799, %v1060
        %v1119 = vadd.f32 %v804, %v1065
        %v1120 = vadd.f32 %v809, %v1070
        %v1121 = vadd.f32 %v814, %v1075
        %v1122 = vadd.f32 %v819, %v1080
        %v1123 = vadd.f32 %v824, %v1085
        %v1124 = vadd.f32 %v829, %v1090
        %v1125 = vadd.f32 %v834, %v1095
        %v1126 = vadd.f32 %v839, %v1100
        %v1127 = vadd.f32 %v844, %v1105
        %s1128 = sadd.s32 %s312, 1
        %s1129 = smul.u32 %s1128, 24
        %s1130 = scalar_lea.vmem %s268, %s1129 [#allocation3]
        %v1131 = vld [vmem:[%s1130] sm:$0xff]
        %v1132 = vld [vmem:[%s1130 + $0x8] sm:$0xff]
        %v1133 = vld [vmem:[%s1130 + $0x10] sm:$0x3]
        %v1134 = vld [vmem:[%s1130 + $0x18] sm:$0xff]
        %v1135 = vld [vmem:[%s1130 + $0x20] sm:$0xff]
        %v1136 = vld [vmem:[%s1130 + $0x28] sm:$0x3]
        %v1137 = vld [vmem:[%s1130 + $0x30] sm:$0xff]
        %v1138 = vld [vmem:[%s1130 + $0x38] sm:$0xff]
        %v1139 = vld [vmem:[%s1130 + $0x40] sm:$0x3]
        %v1140 = vld [vmem:[%s1130 + $0x48] sm:$0xff]
        %v1141 = vld [vmem:[%s1130 + $0x50] sm:$0xff]
        %v1142 = vld [vmem:[%s1130 + $0x58] sm:$0x3]
        %v1143 = vld [vmem:[%s1130 + $0x60] sm:$0xff]
        %v1144 = vld [vmem:[%s1130 + $0x68] sm:$0xff]
        %v1145 = vld [vmem:[%s1130 + $0x70] sm:$0x3]
        %v1146 = vld [vmem:[%s1130 + $0x78] sm:$0xff]
        %v1147 = vld [vmem:[%s1130 + $0x80] sm:$0xff]
        %v1148 = vld [vmem:[%s1130 + $0x88] sm:$0x3]
        %v1149 = vld [vmem:[%s1130 + $0x90] sm:$0xff]
        %v1150 = vld [vmem:[%s1130 + $0x98] sm:$0xff]
        %v1151 = vld [vmem:[%s1130 + $0xa0] sm:$0x3]
        %v1152 = vld [vmem:[%s1130 + $0xa8] sm:$0xff]
        %v1153 = vld [vmem:[%s1130 + $0xb0] sm:$0xff]
        %v1154 = vld [vmem:[%s1130 + $0xb8] sm:$0x3]
        %v1155 = vld [vmem:[%s1130 + $0xc0] sm:$0xff]
        %v1156 = vld [vmem:[%s1130 + $0xc8] sm:$0xff]
        %v1157 = vld [vmem:[%s1130 + $0xd0] sm:$0x3]
        %v1158 = vld [vmem:[%s1130 + $0xd8] sm:$0xff]
        %v1159 = vld [vmem:[%s1130 + $0xe0] sm:$0xff]
        %v1160 = vld [vmem:[%s1130 + $0xe8] sm:$0x3]
        %s1161 = scalar_lea.vmem [#allocation6], 12
        %v1162 = vld [vmem:[%s1161] sm:$0xf]
        %v1164 = vsel %vm429, %v1131, 0
        %v1167 = vsel %vm429, %v1132, 0
        %v1170 = vsel %vm429, %v1134, 0
        %v1173 = vsel %vm429, %v1135, 0
        %v1176 = vsel %vm429, %v1137, 0
        %v1179 = vsel %vm429, %v1138, 0
        %v1182 = vsel %vm429, %v1140, 0
        %v1185 = vsel %vm429, %v1141, 0
        %v1188 = vsel %vm429, %v1143, 0
        %v1191 = vsel %vm429, %v1144, 0
        %v1194 = vsel %vm429, %v1146, 0
        %v1197 = vsel %vm429, %v1147, 0
        %v1200 = vsel %vm429, %v1149, 0
        %v1203 = vsel %vm429, %v1150, 0
        %v1206 = vsel %vm429, %v1152, 0
        %v1209 = vsel %vm429, %v1153, 0
        %v1212 = vsel %vm429, %v1155, 0
        %v1215 = vsel %vm429, %v1156, 0
        %v1218 = vsel %vm429, %v1158, 0
        %v1221 = vsel %vm429, %v1159, 0
        %v1224 = vsel %vm470, %v1162, 0
        %1226 = vmatprep.subr.mxu0 0.0
        %1227 = vmatpush1.msra.mxu0 %v1224
        %1228 = vmatprep.subr.mxu0 0.0
        %1229 = vmatpush1.msra.mxu0 0.0
        %1230 = vmatprep.subr.mxu0 0.0
        %1231 = vmatpush1.msra.mxu0 0.0
        %1232 = vmatprep.subr.mxu0 0.0
        %1233 = vmatpush1.msra.mxu0 0.0
        %1234 = vmatprep.subr.mxu0 0.0
        %1235 = vmatpush1.msra.mxu0 0.0
        %1236 = vmatprep.subr.mxu0 0.0
        %1237 = vmatpush1.msra.mxu0 0.0
        %1238 = vmatprep.subr.mxu0 0.0
        %1239 = vmatpush1.msra.mxu0 0.0
        %1240 = vmatprep.subr.mxu0 0.0
        %1241 = vmatpush1.msra.mxu0 0.0
        %1242 = vmatprep.subr.mxu0 0.0
        %1243 = vmatpush1.msra.mxu0 0.0
        %1244 = vmatprep.subr.mxu0 0.0
        %1245 = vmatpush1.msra.mxu0 0.0
        %1246 = vmatprep.subr.mxu0 0.0
        %1247 = vmatpush1.msra.mxu0 0.0
        %1248 = vmatprep.subr.mxu0 0.0
        %1249 = vmatpush1.msra.mxu0 0.0
        %1250 = vmatprep.subr.mxu0 0.0
        %1251 = vmatpush1.msra.mxu0 0.0
        %1252 = vmatprep.subr.mxu0 0.0
        %1253 = vmatpush1.msra.mxu0 0.0
        %1254 = vmatprep.subr.mxu0 0.0
        %1255 = vmatpush1.msra.mxu0 0.0
        %1256 = vmatprep.subr.mxu0 0.0
        %1257 = vmatpush1.msra.mxu0 0.0
        %1258 = vmatprep.subr.mxu0 0.0
        %1259 = vmatpush1.msra.mxu0 0.0
        %1260 = vmatprep.subr.mxu0 0.0
        %1261 = vmatpush1.msra.mxu0 0.0
        %1262 = vmatprep.subr.mxu0 0.0
        %1263 = vmatpush1.msra.mxu0 0.0
        %1264 = vmatprep.subr.mxu0 0.0
        %1265 = vmatpush1.msra.mxu0 0.0
        %1266 = vmatprep.subr.mxu0 0.0
        %1267 = vmatpush1.msra.mxu0 0.0
        %1268 = vmatprep.subr.mxu0 0.0
        %1269 = vmatpush1.msra.mxu0 0.0
        %1270 = vmatprep.subr.mxu0 0.0
        %1271 = vmatpush1.msra.mxu0 0.0
        %1272 = vmatprep.subr.mxu0 0.0
        %1273 = vmatpush1.msra.mxu0 0.0
        %1274 = vmatprep.subr.mxu0 0.0
        %1275 = vmatpush1.msra.mxu0 0.0
        %1276 = vmatprep.subr.mxu0 0.0
        %1277 = vmatpush1.msra.mxu0 0.0
        %1278 = vmatprep.subr.mxu0 0.0
        %1279 = vmatpush1.msra.mxu0 0.0
        %1280 = vmatprep.subr.mxu0 0.0
        %1281 = vmatpush1.msra.mxu0 0.0
        %1282 = vmatprep.subr.mxu0 0.0
        %1283 = vmatpush1.msra.mxu0 0.0
        %1284 = vmatprep.subr.mxu0 0.0
        %1285 = vmatpush1.msra.mxu0 0.0
        %1286 = vmatprep.subr.mxu0 0.0
        %1287 = vmatpush1.msra.mxu0 0.0
        %1288 = vmatprep.subr.mxu0 0.0
        %1289 = vmatpush1.msra.mxu0 0.0
        %1290 = vmatprep.mubr.f32.mxu0 0.0
        %1291 = vmatmul.mubr.f32.gmra.mrb[0].mxu0 %v1164
        %v1292 = vpop.f32.mrb[0].mxu0
        %v1293 = vadd.f32 0.0, %v1292
        %v1294 = vpop.f32.mrb[0].mxu0
        %1295 = vmatprep.mubr.f32.mxu0 0.0
        %1296 = vmatmul.mubr.f32.gmra.mrb[0].mxu0 %v1167
        %v1297 = vpop.f32.mrb[0].mxu0
        %v1298 = vadd.f32 0.0, %v1297
        %v1299 = vpop.f32.mrb[0].mxu0
        %1300 = vmatprep.mubr.f32.mxu0 0.0
        %1301 = vmatmul.mubr.f32.gmra.mrb[0].mxu0 %v1170
        %v1302 = vpop.f32.mrb[0].mxu0
        %v1303 = vadd.f32 0.0, %v1302
        %v1304 = vpop.f32.mrb[0].mxu0
        %1305 = vmatprep.mubr.f32.mxu0 0.0
        %1306 = vmatmul.mubr.f32.gmra.mrb[0].mxu0 %v1173
        %v1307 = vpop.f32.mrb[0].mxu0
        %v1308 = vadd.f32 0.0, %v1307
        %v1309 = vpop.f32.mrb[0].mxu0
        %1310 = vmatprep.mubr.f32.mxu0 0.0
        %1311 = vmatmul.mubr.f32.gmra.mrb[0].mxu0 %v1176
        %v1312 = vpop.f32.mrb[0].mxu0
        %v1313 = vadd.f32 0.0, %v1312
        %v1314 = vpop.f32.mrb[0].mxu0
        %1315 = vmatprep.mubr.f32.mxu0 0.0
        %1316 = vmatmul.mubr.f32.gmra.mrb[0].mxu0 %v1179
        %v1317 = vpop.f32.mrb[0].mxu0
        %v1318 = vadd.f32 0.0, %v1317
        %v1319 = vpop.f32.mrb[0].mxu0
        %1320 = vmatprep.mubr.f32.mxu0 0.0
        %1321 = vmatmul.mubr.f32.gmra.mrb[0].mxu0 %v1182
        %v1322 = vpop.f32.mrb[0].mxu0
        %v1323 = vadd.f32 0.0, %v1322
        %v1324 = vpop.f32.mrb[0].mxu0
        %1325 = vmatprep.mubr.f32.mxu0 0.0
        %1326 = vmatmul.mubr.f32.gmra.mrb[0].mxu0 %v1185
        %v1327 = vpop.f32.mrb[0].mxu0
        %v1328 = vadd.f32 0.0, %v1327
        %v1329 = vpop.f32.mrb[0].mxu0
        %1330 = vmatprep.mubr.f32.mxu0 0.0
        %1331 = vmatmul.mubr.f32.gmra.mrb[0].mxu0 %v1188
        %v1332 = vpop.f32.mrb[0].mxu0
        %v1333 = vadd.f32 0.0, %v1332
        %v1334 = vpop.f32.mrb[0].mxu0
        %1335 = vmatprep.mubr.f32.mxu0 0.0
        %1336 = vmatmul.mubr.f32.gmra.mrb[0].mxu0 %v1191
        %v1337 = vpop.f32.mrb[0].mxu0
        %v1338 = vadd.f32 0.0, %v1337
        %v1339 = vpop.f32.mrb[0].mxu0
        %1340 = vmatprep.mubr.f32.mxu0 0.0
        %1341 = vmatmul.mubr.f32.gmra.mrb[0].mxu0 %v1194
        %v1342 = vpop.f32.mrb[0].mxu0
        %v1343 = vadd.f32 0.0, %v1342
        %v1344 = vpop.f32.mrb[0].mxu0
        %1345 = vmatprep.mubr.f32.mxu0 0.0
        %1346 = vmatmul.mubr.f32.gmra.mrb[0].mxu0 %v1197
        %v1347 = vpop.f32.mrb[0].mxu0
        %v1348 = vadd.f32 0.0, %v1347
        %v1349 = vpop.f32.mrb[0].mxu0
        %1350 = vmatprep.mubr.f32.mxu0 0.0
        %1351 = vmatmul.mubr.f32.gmra.mrb[0].mxu0 %v1200
        %v1352 = vpop.f32.mrb[0].mxu0
        %v1353 = vadd.f32 0.0, %v1352
        %v1354 = vpop.f32.mrb[0].mxu0
        %1355 = vmatprep.mubr.f32.mxu0 0.0
        %1356 = vmatmul.mubr.f32.gmra.mrb[0].mxu0 %v1203
        %v1357 = vpop.f32.mrb[0].mxu0
        %v1358 = vadd.f32 0.0, %v1357
        %v1359 = vpop.f32.mrb[0].mxu0
        %1360 = vmatprep.mubr.f32.mxu0 0.0
        %1361 = vmatmul.mubr.f32.gmra.mrb[0].mxu0 %v1206
        %v1362 = vpop.f32.mrb[0].mxu0
        %v1363 = vadd.f32 0.0, %v1362
        %v1364 = vpop.f32.mrb[0].mxu0
        %1365 = vmatprep.mubr.f32.mxu0 0.0
        %1366 = vmatmul.mubr.f32.gmra.mrb[0].mxu0 %v1209
        %v1367 = vpop.f32.mrb[0].mxu0
        %v1368 = vadd.f32 0.0, %v1367
        %v1369 = vpop.f32.mrb[0].mxu0
        %1370 = vmatprep.mubr.f32.mxu0 0.0
        %1371 = vmatmul.mubr.f32.gmra.mrb[0].mxu0 %v1212
        %v1372 = vpop.f32.mrb[0].mxu0
        %v1373 = vadd.f32 0.0, %v1372
        %v1374 = vpop.f32.mrb[0].mxu0
        %1375 = vmatprep.mubr.f32.mxu0 0.0
        %1376 = vmatmul.mubr.f32.gmra.mrb[0].mxu0 %v1215
        %v1377 = vpop.f32.mrb[0].mxu0
        %v1378 = vadd.f32 0.0, %v1377
        %v1379 = vpop.f32.mrb[0].mxu0
        %1380 = vmatprep.mubr.f32.mxu0 0.0
        %1381 = vmatmul.mubr.f32.gmra.mrb[0].mxu0 %v1218
        %v1382 = vpop.f32.mrb[0].mxu0
        %v1383 = vadd.f32 0.0, %v1382
        %v1384 = vpop.f32.mrb[0].mxu0
        %1385 = vmatprep.mubr.f32.mxu0 0.0
        %1386 = vmatmul.mubr.f32.gmra.mrb[0].mxu0 %v1221
        %v1387 = vpop.f32.mrb[0].mxu0
        %v1388 = vadd.f32 0.0, %v1387
        %v1389 = vpop.f32.mrb[0].mxu0
        %1390 = vdwg.mxu0
        %v1391 = vadd.f32 %v1108, %v1293
        %v1392 = vadd.f32 %v1109, %v1298
        %v1393 = vadd.f32 %v1110, %v1303
        %v1394 = vadd.f32 %v1111, %v1308
        %v1395 = vadd.f32 %v1112, %v1313
        %v1396 = vadd.f32 %v1113, %v1318
        %v1397 = vadd.f32 %v1114, %v1323
        %v1398 = vadd.f32 %v1115, %v1328
        %v1399 = vadd.f32 %v1116, %v1333
        %v1400 = vadd.f32 %v1117, %v1338
        %v1401 = vadd.f32 %v1118, %v1343
        %v1402 = vadd.f32 %v1119, %v1348
        %v1403 = vadd.f32 %v1120, %v1353
        %v1404 = vadd.f32 %v1121, %v1358
        %v1405 = vadd.f32 %v1122, %v1363
        %v1406 = vadd.f32 %v1123, %v1368
        %v1407 = vadd.f32 %v1124, %v1373
        %v1408 = vadd.f32 %v1125, %v1378
        %v1409 = vadd.f32 %v1126, %v1383
        %v1410 = vadd.f32 %v1127, %v1388
        %v1421 = vrot.slane %v1131, 1
        %v1422 = vrot.slane %v1132, 1
        %v1423 = vsel %vm376, %v1421, %v1422
        %v1424 = vrot.slane %v1133, 1
        %v1425 = vsel %vm376, %v1422, %v1424
        %v1426 = vrot.slane %v1134, 1
        %v1427 = vrot.slane %v1135, 1
        %v1428 = vsel %vm376, %v1426, %v1427
        %v1429 = vrot.slane %v1136, 1
        %v1430 = vsel %vm376, %v1427, %v1429
        %v1431 = vrot.slane %v1137, 1
        %v1432 = vrot.slane %v1138, 1
        %v1433 = vsel %vm376, %v1431, %v1432
        %v1434 = vrot.slane %v1139, 1
        %v1435 = vsel %vm376, %v1432, %v1434
        %v1436 = vrot.slane %v1140, 1
        %v1437 = vrot.slane %v1141, 1
        %v1438 = vsel %vm376, %v1436, %v1437
        %v1439 = vrot.slane %v1142, 1
        %v1440 = vsel %vm376, %v1437, %v1439
        %v1441 = vrot.slane %v1143, 1
        %v1442 = vrot.slane %v1144, 1
        %v1443 = vsel %vm376, %v1441, %v1442
        %v1444 = vrot.slane %v1145, 1
        %v1445 = vsel %vm376, %v1442, %v1444
        %v1446 = vrot.slane %v1146, 1
        %v1447 = vrot.slane %v1147, 1
        %v1448 = vsel %vm376, %v1446, %v1447
        %v1449 = vrot.slane %v1148, 1
        %v1450 = vsel %vm376, %v1447, %v1449
        %v1451 = vrot.slane %v1149, 1
        %v1452 = vrot.slane %v1150, 1
        %v1453 = vsel %vm376, %v1451, %v1452
        %v1454 = vrot.slane %v1151, 1
        %v1455 = vsel %vm376, %v1452, %v1454
        %v1456 = vrot.slane %v1152, 1
        %v1457 = vrot.slane %v1153, 1
        %v1458 = vsel %vm376, %v1456, %v1457
        %v1459 = vrot.slane %v1154, 1
        %v1460 = vsel %vm376, %v1457, %v1459
        %v1461 = vrot.slane %v1155, 1
        %v1462 = vrot.slane %v1156, 1
        %v1463 = vsel %vm376, %v1461, %v1462
        %v1464 = vrot.slane %v1157, 1
        %v1465 = vsel %vm376, %v1462, %v1464
        %v1466 = vrot.slane %v1158, 1
        %v1467 = vrot.slane %v1159, 1
        %v1468 = vsel %vm376, %v1466, %v1467
        %v1469 = vrot.slane %v1160, 1
        %v1470 = vsel %vm376, %v1467, %v1469
        %s1471 = scalar_lea.vmem [#allocation6], 16
        %v1472 = vld [vmem:[%s1471] sm:$0xf]
        %v1473 = vsel %vm429, %v1423, 0
        %v1475 = vsel %vm429, %v1425, 0
        %v1477 = vsel %vm429, %v1428, 0
        %v1479 = vsel %vm429, %v1430, 0
        %v1481 = vsel %vm429, %v1433, 0
        %v1483 = vsel %vm429, %v1435, 0
        %v1485 = vsel %vm429, %v1438, 0
        %v1487 = vsel %vm429, %v1440, 0
        %v1489 = vsel %vm429, %v1443, 0
        %v1491 = vsel %vm429, %v1445, 0
        %v1493 = vsel %vm429, %v1448, 0
        %v1495 = vsel %vm429, %v1450, 0
        %v1497 = vsel %vm429, %v1453, 0
        %v1499 = vsel %vm429, %v1455, 0
        %v1501 = vsel %vm429, %v1458, 0
        %v1503 = vsel %vm429, %v1460, 0
        %v1505 = vsel %vm429, %v1463, 0
        %v1507 = vsel %vm429, %v1465, 0
        %v1509 = vsel %vm429, %v1468, 0
        %v1511 = vsel %vm429, %v1470, 0
        %v1514 = vsel %vm470, %v1472, 0
        %1516 = vmatprep.subr.mxu0 0.0
        %1517 = vmatpush1.msra.mxu0 %v1514
        %1518 = vmatprep.subr.mxu0 0.0
        %1519 = vmatpush1.msra.mxu0 0.0
        %1520 = vmatprep.subr.mxu0 0.0
        %1521 = vmatpush1.msra.mxu0 0.0
        %1522 = vmatprep.subr.mxu0 0.0
        %1523 = vmatpush1.msra.mxu0 0.0
        %1524 = vmatprep.subr.mxu0 0.0
        %1525 = vmatpush1.msra.mxu0 0.0
        %1526 = vmatprep.subr.mxu0 0.0
        %1527 = vmatpush1.msra.mxu0 0.0
        %1528 = vmatprep.subr.mxu0 0.0
        %1529 = vmatpush1.msra.mxu0 0.0
        %1530 = vmatprep.subr.mxu0 0.0
        %1531 = vmatpush1.msra.mxu0 0.0
        %1532 = vmatprep.subr.mxu0 0.0
        %1533 = vmatpush1.msra.mxu0 0.0
        %1534 = vmatprep.subr.mxu0 0.0
        %1535 = vmatpush1.msra.mxu0 0.0
        %1536 = vmatprep.subr.mxu0 0.0
        %1537 = vmatpush1.msra.mxu0 0.0
        %1538 = vmatprep.subr.mxu0 0.0
        %1539 = vmatpush1.msra.mxu0 0.0
        %1540 = vmatprep.subr.mxu0 0.0
        %1541 = vmatpush1.msra.mxu0 0.0
        %1542 = vmatprep.subr.mxu0 0.0
        %1543 = vmatpush1.msra.mxu0 0.0
        %1544 = vmatprep.subr.mxu0 0.0
        %1545 = vmatpush1.msra.mxu0 0.0
        %1546 = vmatprep.subr.mxu0 0.0
        %1547 = vmatpush1.msra.mxu0 0.0
        %1548 = vmatprep.subr.mxu0 0.0
        %1549 = vmatpush1.msra.mxu0 0.0
        %1550 = vmatprep.subr.mxu0 0.0
        %1551 = vmatpush1.msra.mxu0 0.0
        %1552 = vmatprep.subr.mxu0 0.0
        %1553 = vmatpush1.msra.mxu0 0.0
        %1554 = vmatprep.subr.mxu0 0.0
        %1555 = vmatpush1.msra.mxu0 0.0
        %1556 = vmatprep.subr.mxu0 0.0
        %1557 = vmatpush1.msra.mxu0 0.0
        %1558 = vmatprep.subr.mxu0 0.0
        %1559 = vmatpush1.msra.mxu0 0.0
        %1560 = vmatprep.subr.mxu0 0.0
        %1561 = vmatpush1.msra.mxu0 0.0
        %1562 = vmatprep.subr.mxu0 0.0
        %1563 = vmatpush1.msra.mxu0 0.0
        %1564 = vmatprep.subr.mxu0 0.0
        %1565 = vmatpush1.msra.mxu0 0.0
        %1566 = vmatprep.subr.mxu0 0.0
        %1567 = vmatpush1.msra.mxu0 0.0
        %1568 = vmatprep.subr.mxu0 0.0
        %1569 = vmatpush1.msra.mxu0 0.0
        %1570 = vmatprep.subr.mxu0 0.0
        %1571 = vmatpush1.msra.mxu0 0.0
        %1572 = vmatprep.subr.mxu0 0.0
        %1573 = vmatpush1.msra.mxu0 0.0
        %1574 = vmatprep.subr.mxu0 0.0
        %1575 = vmatpush1.msra.mxu0 0.0
        %1576 = vmatprep.subr.mxu0 0.0
        %1577 = vmatpush1.msra.mxu0 0.0
        %1578 = vmatprep.subr.mxu0 0.0
        %1579 = vmatpush1.msra.mxu0 0.0
        %1580 = vmatprep.mubr.f32.mxu0 0.0
        %1581 = vmatmul.mubr.f32.gmra.mrb[0].mxu0 %v1473
        %v1582 = vpop.f32.mrb[0].mxu0
        %v1583 = vadd.f32 0.0, %v1582
        %v1584 = vpop.f32.mrb[0].mxu0
        %1585 = vmatprep.mubr.f32.mxu0 0.0
        %1586 = vmatmul.mubr.f32.gmra.mrb[0].mxu0 %v1475
        %v1587 = vpop.f32.mrb[0].mxu0
        %v1588 = vadd.f32 0.0, %v1587
        %v1589 = vpop.f32.mrb[0].mxu0
        %1590 = vmatprep.mubr.f32.mxu0 0.0
        %1591 = vmatmul.mubr.f32.gmra.mrb[0].mxu0 %v1477
        %v1592 = vpop.f32.mrb[0].mxu0
        %v1593 = vadd.f32 0.0, %v1592
        %v1594 = vpop.f32.mrb[0].mxu0
        %1595 = vmatprep.mubr.f32.mxu0 0.0
        %1596 = vmatmul.mubr.f32.gmra.mrb[0].mxu0 %v1479
        %v1597 = vpop.f32.mrb[0].mxu0
        %v1598 = vadd.f32 0.0, %v1597
        %v1599 = vpop.f32.mrb[0].mxu0
        %1600 = vmatprep.mubr.f32.mxu0 0.0
        %1601 = vmatmul.mubr.f32.gmra.mrb[0].mxu0 %v1481
        %v1602 = vpop.f32.mrb[0].mxu0
        %v1603 = vadd.f32 0.0, %v1602
        %v1604 = vpop.f32.mrb[0].mxu0
        %1605 = vmatprep.mubr.f32.mxu0 0.0
        %1606 = vmatmul.mubr.f32.gmra.mrb[0].mxu0 %v1483
        %v1607 = vpop.f32.mrb[0].mxu0
        %v1608 = vadd.f32 0.0, %v1607
        %v1609 = vpop.f32.mrb[0].mxu0
        %1610 = vmatprep.mubr.f32.mxu0 0.0
        %1611 = vmatmul.mubr.f32.gmra.mrb[0].mxu0 %v1485
        %v1612 = vpop.f32.mrb[0].mxu0
        %v1613 = vadd.f32 0.0, %v1612
        %v1614 = vpop.f32.mrb[0].mxu0
        %1615 = vmatprep.mubr.f32.mxu0 0.0
        %1616 = vmatmul.mubr.f32.gmra.mrb[0].mxu0 %v1487
        %v1617 = vpop.f32.mrb[0].mxu0
        %v1618 = vadd.f32 0.0, %v1617
        %v1619 = vpop.f32.mrb[0].mxu0
        %1620 = vmatprep.mubr.f32.mxu0 0.0
        %1621 = vmatmul.mubr.f32.gmra.mrb[0].mxu0 %v1489
        %v1622 = vpop.f32.mrb[0].mxu0
        %v1623 = vadd.f32 0.0, %v1622
        %v1624 = vpop.f32.mrb[0].mxu0
        %1625 = vmatprep.mubr.f32.mxu0 0.0
        %1626 = vmatmul.mubr.f32.gmra.mrb[0].mxu0 %v1491
        %v1627 = vpop.f32.mrb[0].mxu0
        %v1628 = vadd.f32 0.0, %v1627
        %v1629 = vpop.f32.mrb[0].mxu0
        %1630 = vmatprep.mubr.f32.mxu0 0.0
        %1631 = vmatmul.mubr.f32.gmra.mrb[0].mxu0 %v1493
        %v1632 = vpop.f32.mrb[0].mxu0
        %v1633 = vadd.f32 0.0, %v1632
        %v1634 = vpop.f32.mrb[0].mxu0
        %1635 = vmatprep.mubr.f32.mxu0 0.0
        %1636 = vmatmul.mubr.f32.gmra.mrb[0].mxu0 %v1495
        %v1637 = vpop.f32.mrb[0].mxu0
        %v1638 = vadd.f32 0.0, %v1637
        %v1639 = vpop.f32.mrb[0].mxu0
        %1640 = vmatprep.mubr.f32.mxu0 0.0
        %1641 = vmatmul.mubr.f32.gmra.mrb[0].mxu0 %v1497
        %v1642 = vpop.f32.mrb[0].mxu0
        %v1643 = vadd.f32 0.0, %v1642
        %v1644 = vpop.f32.mrb[0].mxu0
        %1645 = vmatprep.mubr.f32.mxu0 0.0
        %1646 = vmatmul.mubr.f32.gmra.mrb[0].mxu0 %v1499
        %v1647 = vpop.f32.mrb[0].mxu0
        %v1648 = vadd.f32 0.0, %v1647
        %v1649 = vpop.f32.mrb[0].mxu0
        %1650 = vmatprep.mubr.f32.mxu0 0.0
        %1651 = vmatmul.mubr.f32.gmra.mrb[0].mxu0 %v1501
        %v1652 = vpop.f32.mrb[0].mxu0
        %v1653 = vadd.f32 0.0, %v1652
        %v1654 = vpop.f32.mrb[0].mxu0
        %1655 = vmatprep.mubr.f32.mxu0 0.0
        %1656 = vmatmul.mubr.f32.gmra.mrb[0].mxu0 %v1503
        %v1657 = vpop.f32.mrb[0].mxu0
        %v1658 = vadd.f32 0.0, %v1657
        %v1659 = vpop.f32.mrb[0].mxu0
        %1660 = vmatprep.mubr.f32.mxu0 0.0
        %1661 = vmatmul.mubr.f32.gmra.mrb[0].mxu0 %v1505
        %v1662 = vpop.f32.mrb[0].mxu0
        %v1663 = vadd.f32 0.0, %v1662
        %v1664 = vpop.f32.mrb[0].mxu0
        %1665 = vmatprep.mubr.f32.mxu0 0.0
        %1666 = vmatmul.mubr.f32.gmra.mrb[0].mxu0 %v1507
        %v1667 = vpop.f32.mrb[0].mxu0
        %v1668 = vadd.f32 0.0, %v1667
        %v1669 = vpop.f32.mrb[0].mxu0
        %1670 = vmatprep.mubr.f32.mxu0 0.0
        %1671 = vmatmul.mubr.f32.gmra.mrb[0].mxu0 %v1509
        %v1672 = vpop.f32.mrb[0].mxu0
        %v1673 = vadd.f32 0.0, %v1672
        %v1674 = vpop.f32.mrb[0].mxu0
        %1675 = vmatprep.mubr.f32.mxu0 0.0
        %1676 = vmatmul.mubr.f32.gmra.mrb[0].mxu0 %v1511
        %v1677 = vpop.f32.mrb[0].mxu0
        %v1678 = vadd.f32 0.0, %v1677
        %v1679 = vpop.f32.mrb[0].mxu0
        %1680 = vdwg.mxu0
        %v1681 = vadd.f32 %v1391, %v1583
        %v1682 = vadd.f32 %v1392, %v1588
        %v1683 = vadd.f32 %v1393, %v1593
        %v1684 = vadd.f32 %v1394, %v1598
        %v1685 = vadd.f32 %v1395, %v1603
        %v1686 = vadd.f32 %v1396, %v1608
        %v1687 = vadd.f32 %v1397, %v1613
        %v1688 = vadd.f32 %v1398, %v1618
        %v1689 = vadd.f32 %v1399, %v1623
        %v1690 = vadd.f32 %v1400, %v1628
        %v1691 = vadd.f32 %v1401, %v1633
        %v1692 = vadd.f32 %v1402, %v1638
        %v1693 = vadd.f32 %v1403, %v1643
        %v1694 = vadd.f32 %v1404, %v1648
        %v1695 = vadd.f32 %v1405, %v1653
        %v1696 = vadd.f32 %v1406, %v1658
        %v1697 = vadd.f32 %v1407, %v1663
        %v1698 = vadd.f32 %v1408, %v1668
        %v1699 = vadd.f32 %v1409, %v1673
        %v1700 = vadd.f32 %v1410, %v1678
        %v1701 = vrot.slane %v1131, 2
        %v1702 = vrot.slane %v1132, 2
        %v1703 = vsel %vm847, %v1701, %v1702
        %v1704 = vrot.slane %v1133, 2
        %v1705 = vsel %vm847, %v1702, %v1704
        %v1706 = vrot.slane %v1134, 2
        %v1707 = vrot.slane %v1135, 2
        %v1708 = vsel %vm847, %v1706, %v1707
        %v1709 = vrot.slane %v1136, 2
        %v1710 = vsel %vm847, %v1707, %v1709
        %v1711 = vrot.slane %v1137, 2
        %v1712 = vrot.slane %v1138, 2
        %v1713 = vsel %vm847, %v1711, %v1712
        %v1714 = vrot.slane %v1139, 2
        %v1715 = vsel %vm847, %v1712, %v1714
        %v1716 = vrot.slane %v1140, 2
        %v1717 = vrot.slane %v1141, 2
        %v1718 = vsel %vm847, %v1716, %v1717
        %v1719 = vrot.slane %v1142, 2
        %v1720 = vsel %vm847, %v1717, %v1719
        %v1721 = vrot.slane %v1143, 2
        %v1722 = vrot.slane %v1144, 2
        %v1723 = vsel %vm847, %v1721, %v1722
        %v1724 = vrot.slane %v1145, 2
        %v1725 = vsel %vm847, %v1722, %v1724
        %v1726 = vrot.slane %v1146, 2
        %v1727 = vrot.slane %v1147, 2
        %v1728 = vsel %vm847, %v1726, %v1727
        %v1729 = vrot.slane %v1148, 2
        %v1730 = vsel %vm847, %v1727, %v1729
        %v1731 = vrot.slane %v1149, 2
        %v1732 = vrot.slane %v1150, 2
        %v1733 = vsel %vm847, %v1731, %v1732
        %v1734 = vrot.slane %v1151, 2
        %v1735 = vsel %vm847, %v1732, %v1734
        %v1736 = vrot.slane %v1152, 2
        %v1737 = vrot.slane %v1153, 2
        %v1738 = vsel %vm847, %v1736, %v1737
        %v1739 = vrot.slane %v1154, 2
        %v1740 = vsel %vm847, %v1737, %v1739
        %v1741 = vrot.slane %v1155, 2
        %v1742 = vrot.slane %v1156, 2
        %v1743 = vsel %vm847, %v1741, %v1742
        %v1744 = vrot.slane %v1157, 2
        %v1745 = vsel %vm847, %v1742, %v1744
        %v1746 = vrot.slane %v1158, 2
        %v1747 = vrot.slane %v1159, 2
        %v1748 = vsel %vm847, %v1746, %v1747
        %v1749 = vrot.slane %v1160, 2
        %v1750 = vsel %vm847, %v1747, %v1749
        %s1751 = scalar_lea.vmem [#allocation6], 20
        %v1752 = vld [vmem:[%s1751] sm:$0xf]
        %v1753 = vsel %vm429, %v1703, 0
        %v1755 = vsel %vm429, %v1705, 0
        %v1757 = vsel %vm429, %v1708, 0
        %v1759 = vsel %vm429, %v1710, 0
        %v1761 = vsel %vm429, %v1713, 0
        %v1763 = vsel %vm429, %v1715, 0
        %v1765 = vsel %vm429, %v1718, 0
        %v1767 = vsel %vm429, %v1720, 0
        %v1769 = vsel %vm429, %v1723, 0
        %v1771 = vsel %vm429, %v1725, 0
        %v1773 = vsel %vm429, %v1728, 0
        %v1775 = vsel %vm429, %v1730, 0
        %v1777 = vsel %vm429, %v1733, 0
        %v1779 = vsel %vm429, %v1735, 0
        %v1781 = vsel %vm429, %v1738, 0
        %v1783 = vsel %vm429, %v1740, 0
        %v1785 = vsel %vm429, %v1743, 0
        %v1787 = vsel %vm429, %v1745, 0
        %v1789 = vsel %vm429, %v1748, 0
        %v1791 = vsel %vm429, %v1750, 0
        %v1794 = vsel %vm470, %v1752, 0
        %1796 = vmatprep.subr.mxu0 0.0
        %1797 = vmatpush1.msra.mxu0 %v1794
        %1798 = vmatprep.subr.mxu0 0.0
        %1799 = vmatpush1.msra.mxu0 0.0
        %1800 = vmatprep.subr.mxu0 0.0
        %1801 = vmatpush1.msra.mxu0 0.0
        %1802 = vmatprep.subr.mxu0 0.0
        %1803 = vmatpush1.msra.mxu0 0.0
        %1804 = vmatprep.subr.mxu0 0.0
        %1805 = vmatpush1.msra.mxu0 0.0
        %1806 = vmatprep.subr.mxu0 0.0
        %1807 = vmatpush1.msra.mxu0 0.0
        %1808 = vmatprep.subr.mxu0 0.0
        %1809 = vmatpush1.msra.mxu0 0.0
        %1810 = vmatprep.subr.mxu0 0.0
        %1811 = vmatpush1.msra.mxu0 0.0
        %1812 = vmatprep.subr.mxu0 0.0
        %1813 = vmatpush1.msra.mxu0 0.0
        %1814 = vmatprep.subr.mxu0 0.0
        %1815 = vmatpush1.msra.mxu0 0.0
        %1816 = vmatprep.subr.mxu0 0.0
        %1817 = vmatpush1.msra.mxu0 0.0
        %1818 = vmatprep.subr.mxu0 0.0
        %1819 = vmatpush1.msra.mxu0 0.0
        %1820 = vmatprep.subr.mxu0 0.0
        %1821 = vmatpush1.msra.mxu0 0.0
        %1822 = vmatprep.subr.mxu0 0.0
        %1823 = vmatpush1.msra.mxu0 0.0
        %1824 = vmatprep.subr.mxu0 0.0
        %1825 = vmatpush1.msra.mxu0 0.0
        %1826 = vmatprep.subr.mxu0 0.0
        %1827 = vmatpush1.msra.mxu0 0.0
        %1828 = vmatprep.subr.mxu0 0.0
        %1829 = vmatpush1.msra.mxu0 0.0
        %1830 = vmatprep.subr.mxu0 0.0
        %1831 = vmatpush1.msra.mxu0 0.0
        %1832 = vmatprep.subr.mxu0 0.0
        %1833 = vmatpush1.msra.mxu0 0.0
        %1834 = vmatprep.subr.mxu0 0.0
        %1835 = vmatpush1.msra.mxu0 0.0
        %1836 = vmatprep.subr.mxu0 0.0
        %1837 = vmatpush1.msra.mxu0 0.0
        %1838 = vmatprep.subr.mxu0 0.0
        %1839 = vmatpush1.msra.mxu0 0.0
        %1840 = vmatprep.subr.mxu0 0.0
        %1841 = vmatpush1.msra.mxu0 0.0
        %1842 = vmatprep.subr.mxu0 0.0
        %1843 = vmatpush1.msra.mxu0 0.0
        %1844 = vmatprep.subr.mxu0 0.0
        %1845 = vmatpush1.msra.mxu0 0.0
        %1846 = vmatprep.subr.mxu0 0.0
        %1847 = vmatpush1.msra.mxu0 0.0
        %1848 = vmatprep.subr.mxu0 0.0
        %1849 = vmatpush1.msra.mxu0 0.0
        %1850 = vmatprep.subr.mxu0 0.0
        %1851 = vmatpush1.msra.mxu0 0.0
        %1852 = vmatprep.subr.mxu0 0.0
        %1853 = vmatpush1.msra.mxu0 0.0
        %1854 = vmatprep.subr.mxu0 0.0
        %1855 = vmatpush1.msra.mxu0 0.0
        %1856 = vmatprep.subr.mxu0 0.0
        %1857 = vmatpush1.msra.mxu0 0.0
        %1858 = vmatprep.subr.mxu0 0.0
        %1859 = vmatpush1.msra.mxu0 0.0
        %1860 = vmatprep.mubr.f32.mxu0 0.0
        %1861 = vmatmul.mubr.f32.gmra.mrb[0].mxu0 %v1753
        %v1862 = vpop.f32.mrb[0].mxu0
        %v1863 = vadd.f32 0.0, %v1862
        %v1864 = vpop.f32.mrb[0].mxu0
        %1865 = vmatprep.mubr.f32.mxu0 0.0
        %1866 = vmatmul.mubr.f32.gmra.mrb[0].mxu0 %v1755
        %v1867 = vpop.f32.mrb[0].mxu0
        %v1868 = vadd.f32 0.0, %v1867
        %v1869 = vpop.f32.mrb[0].mxu0
        %1870 = vmatprep.mubr.f32.mxu0 0.0
        %1871 = vmatmul.mubr.f32.gmra.mrb[0].mxu0 %v1757
        %v1872 = vpop.f32.mrb[0].mxu0
        %v1873 = vadd.f32 0.0, %v1872
        %v1874 = vpop.f32.mrb[0].mxu0
        %1875 = vmatprep.mubr.f32.mxu0 0.0
        %1876 = vmatmul.mubr.f32.gmra.mrb[0].mxu0 %v1759
        %v1877 = vpop.f32.mrb[0].mxu0
        %v1878 = vadd.f32 0.0, %v1877
        %v1879 = vpop.f32.mrb[0].mxu0
        %1880 = vmatprep.mubr.f32.mxu0 0.0
        %1881 = vmatmul.mubr.f32.gmra.mrb[0].mxu0 %v1761
        %v1882 = vpop.f32.mrb[0].mxu0
        %v1883 = vadd.f32 0.0, %v1882
        %v1884 = vpop.f32.mrb[0].mxu0
        %1885 = vmatprep.mubr.f32.mxu0 0.0
        %1886 = vmatmul.mubr.f32.gmra.mrb[0].mxu0 %v1763
        %v1887 = vpop.f32.mrb[0].mxu0
        %v1888 = vadd.f32 0.0, %v1887
        %v1889 = vpop.f32.mrb[0].mxu0
        %1890 = vmatprep.mubr.f32.mxu0 0.0
        %1891 = vmatmul.mubr.f32.gmra.mrb[0].mxu0 %v1765
        %v1892 = vpop.f32.mrb[0].mxu0
        %v1893 = vadd.f32 0.0, %v1892
        %v1894 = vpop.f32.mrb[0].mxu0
        %1895 = vmatprep.mubr.f32.mxu0 0.0
        %1896 = vmatmul.mubr.f32.gmra.mrb[0].mxu0 %v1767
        %v1897 = vpop.f32.mrb[0].mxu0
        %v1898 = vadd.f32 0.0, %v1897
        %v1899 = vpop.f32.mrb[0].mxu0
        %1900 = vmatprep.mubr.f32.mxu0 0.0
        %1901 = vmatmul.mubr.f32.gmra.mrb[0].mxu0 %v1769
        %v1902 = vpop.f32.mrb[0].mxu0
        %v1903 = vadd.f32 0.0, %v1902
        %v1904 = vpop.f32.mrb[0].mxu0
        %1905 = vmatprep.mubr.f32.mxu0 0.0
        %1906 = vmatmul.mubr.f32.gmra.mrb[0].mxu0 %v1771
        %v1907 = vpop.f32.mrb[0].mxu0
        %v1908 = vadd.f32 0.0, %v1907
        %v1909 = vpop.f32.mrb[0].mxu0
        %1910 = vmatprep.mubr.f32.mxu0 0.0
        %1911 = vmatmul.mubr.f32.gmra.mrb[0].mxu0 %v1773
        %v1912 = vpop.f32.mrb[0].mxu0
        %v1913 = vadd.f32 0.0, %v1912
        %v1914 = vpop.f32.mrb[0].mxu0
        %1915 = vmatprep.mubr.f32.mxu0 0.0
        %1916 = vmatmul.mubr.f32.gmra.mrb[0].mxu0 %v1775
        %v1917 = vpop.f32.mrb[0].mxu0
        %v1918 = vadd.f32 0.0, %v1917
        %v1919 = vpop.f32.mrb[0].mxu0
        %1920 = vmatprep.mubr.f32.mxu0 0.0
        %1921 = vmatmul.mubr.f32.gmra.mrb[0].mxu0 %v1777
        %v1922 = vpop.f32.mrb[0].mxu0
        %v1923 = vadd.f32 0.0, %v1922
        %v1924 = vpop.f32.mrb[0].mxu0
        %1925 = vmatprep.mubr.f32.mxu0 0.0
        %1926 = vmatmul.mubr.f32.gmra.mrb[0].mxu0 %v1779
        %v1927 = vpop.f32.mrb[0].mxu0
        %v1928 = vadd.f32 0.0, %v1927
        %v1929 = vpop.f32.mrb[0].mxu0
        %1930 = vmatprep.mubr.f32.mxu0 0.0
        %1931 = vmatmul.mubr.f32.gmra.mrb[0].mxu0 %v1781
        %v1932 = vpop.f32.mrb[0].mxu0
        %v1933 = vadd.f32 0.0, %v1932
        %v1934 = vpop.f32.mrb[0].mxu0
        %1935 = vmatprep.mubr.f32.mxu0 0.0
        %1936 = vmatmul.mubr.f32.gmra.mrb[0].mxu0 %v1783
        %v1937 = vpop.f32.mrb[0].mxu0
        %v1938 = vadd.f32 0.0, %v1937
        %v1939 = vpop.f32.mrb[0].mxu0
        %1940 = vmatprep.mubr.f32.mxu0 0.0
        %1941 = vmatmul.mubr.f32.gmra.mrb[0].mxu0 %v1785
        %v1942 = vpop.f32.mrb[0].mxu0
        %v1943 = vadd.f32 0.0, %v1942
        %v1944 = vpop.f32.mrb[0].mxu0
        %1945 = vmatprep.mubr.f32.mxu0 0.0
        %1946 = vmatmul.mubr.f32.gmra.mrb[0].mxu0 %v1787
        %v1947 = vpop.f32.mrb[0].mxu0
        %v1948 = vadd.f32 0.0, %v1947
        %v1949 = vpop.f32.mrb[0].mxu0
        %1950 = vmatprep.mubr.f32.mxu0 0.0
        %1951 = vmatmul.mubr.f32.gmra.mrb[0].mxu0 %v1789
        %v1952 = vpop.f32.mrb[0].mxu0
        %v1953 = vadd.f32 0.0, %v1952
        %v1954 = vpop.f32.mrb[0].mxu0
        %1955 = vmatprep.mubr.f32.mxu0 0.0
        %1956 = vmatmul.mubr.f32.gmra.mrb[0].mxu0 %v1791
        %v1957 = vpop.f32.mrb[0].mxu0
        %v1958 = vadd.f32 0.0, %v1957
        %v1959 = vpop.f32.mrb[0].mxu0
        %1960 = vdwg.mxu0
        %v1961 = vadd.f32 %v1681, %v1863
        %v1962 = vadd.f32 %v1682, %v1868
        %v1963 = vadd.f32 %v1683, %v1873
        %v1964 = vadd.f32 %v1684, %v1878
        %v1965 = vadd.f32 %v1685, %v1883
        %v1966 = vadd.f32 %v1686, %v1888
        %v1967 = vadd.f32 %v1687, %v1893
        %v1968 = vadd.f32 %v1688, %v1898
        %v1969 = vadd.f32 %v1689, %v1903
        %v1970 = vadd.f32 %v1690, %v1908
        %v1971 = vadd.f32 %v1691, %v1913
        %v1972 = vadd.f32 %v1692, %v1918
        %v1973 = vadd.f32 %v1693, %v1923
        %v1974 = vadd.f32 %v1694, %v1928
        %v1975 = vadd.f32 %v1695, %v1933
        %v1976 = vadd.f32 %v1696, %v1938
        %v1977 = vadd.f32 %v1697, %v1943
        %v1978 = vadd.f32 %v1698, %v1948
        %v1979 = vadd.f32 %v1699, %v1953
        %v1980 = vadd.f32 %v1700, %v1958
        %s1981 = sadd.s32 %s312, 2
        %s1982 = smul.u32 %s1981, 24
        %s1983 = scalar_lea.vmem %s268, %s1982 [#allocation3]
        %v1984 = vld [vmem:[%s1983] sm:$0xff]
        %v1985 = vld [vmem:[%s1983 + $0x8] sm:$0xff]
        %v1986 = vld [vmem:[%s1983 + $0x10] sm:$0x3]
        %v1987 = vld [vmem:[%s1983 + $0x18] sm:$0xff]
        %v1988 = vld [vmem:[%s1983 + $0x20] sm:$0xff]
        %v1989 = vld [vmem:[%s1983 + $0x28] sm:$0x3]
        %v1990 = vld [vmem:[%s1983 + $0x30] sm:$0xff]
        %v1991 = vld [vmem:[%s1983 + $0x38] sm:$0xff]
        %v1992 = vld [vmem:[%s1983 + $0x40] sm:$0x3]
        %v1993 = vld [vmem:[%s1983 + $0x48] sm:$0xff]
        %v1994 = vld [vmem:[%s1983 + $0x50] sm:$0xff]
        %v1995 = vld [vmem:[%s1983 + $0x58] sm:$0x3]
        %v1996 = vld [vmem:[%s1983 + $0x60] sm:$0xff]
        %v1997 = vld [vmem:[%s1983 + $0x68] sm:$0xff]
        %v1998 = vld [vmem:[%s1983 + $0x70] sm:$0x3]
        %v1999 = vld [vmem:[%s1983 + $0x78] sm:$0xff]
        %v2000 = vld [vmem:[%s1983 + $0x80] sm:$0xff]
        %v2001 = vld [vmem:[%s1983 + $0x88] sm:$0x3]
        %v2002 = vld [vmem:[%s1983 + $0x90] sm:$0xff]
        %v2003 = vld [vmem:[%s1983 + $0x98] sm:$0xff]
        %v2004 = vld [vmem:[%s1983 + $0xa0] sm:$0x3]
        %v2005 = vld [vmem:[%s1983 + $0xa8] sm:$0xff]
        %v2006 = vld [vmem:[%s1983 + $0xb0] sm:$0xff]
        %v2007 = vld [vmem:[%s1983 + $0xb8] sm:$0x3]
        %v2008 = vld [vmem:[%s1983 + $0xc0] sm:$0xff]
        %v2009 = vld [vmem:[%s1983 + $0xc8] sm:$0xff]
        %v2010 = vld [vmem:[%s1983 + $0xd0] sm:$0x3]
        %v2011 = vld [vmem:[%s1983 + $0xd8] sm:$0xff]
        %v2012 = vld [vmem:[%s1983 + $0xe0] sm:$0xff]
        %v2013 = vld [vmem:[%s1983 + $0xe8] sm:$0x3]
        %s2014 = scalar_lea.vmem [#allocation6], 24
        %v2015 = vld [vmem:[%s2014] sm:$0xf]
        %v2017 = vsel %vm429, %v1984, 0
        %v2020 = vsel %vm429, %v1985, 0
        %v2023 = vsel %vm429, %v1987, 0
        %v2026 = vsel %vm429, %v1988, 0
        %v2029 = vsel %vm429, %v1990, 0
        %v2032 = vsel %vm429, %v1991, 0
        %v2035 = vsel %vm429, %v1993, 0
        %v2038 = vsel %vm429, %v1994, 0
        %v2041 = vsel %vm429, %v1996, 0
        %v2044 = vsel %vm429, %v1997, 0
        %v2047 = vsel %vm429, %v1999, 0
        %v2050 = vsel %vm429, %v2000, 0
        %v2053 = vsel %vm429, %v2002, 0
        %v2056 = vsel %vm429, %v2003, 0
        %v2059 = vsel %vm429, %v2005, 0
        %v2062 = vsel %vm429, %v2006, 0
        %v2065 = vsel %vm429, %v2008, 0
        %v2068 = vsel %vm429, %v2009, 0
        %v2071 = vsel %vm429, %v2011, 0
        %v2074 = vsel %vm429, %v2012, 0
        %v2077 = vsel %vm470, %v2015, 0
        %2079 = vmatprep.subr.mxu0 0.0
        %2080 = vmatpush1.msra.mxu0 %v2077
        %2081 = vmatprep.subr.mxu0 0.0
        %2082 = vmatpush1.msra.mxu0 0.0
        %2083 = vmatprep.subr.mxu0 0.0
        %2084 = vmatpush1.msra.mxu0 0.0
        %2085 = vmatprep.subr.mxu0 0.0
        %2086 = vmatpush1.msra.mxu0 0.0
        %2087 = vmatprep.subr.mxu0 0.0
        %2088 = vmatpush1.msra.mxu0 0.0
        %2089 = vmatprep.subr.mxu0 0.0
        %2090 = vmatpush1.msra.mxu0 0.0
        %2091 = vmatprep.subr.mxu0 0.0
        %2092 = vmatpush1.msra.mxu0 0.0
        %2093 = vmatprep.subr.mxu0 0.0
        %2094 = vmatpush1.msra.mxu0 0.0
        %2095 = vmatprep.subr.mxu0 0.0
        %2096 = vmatpush1.msra.mxu0 0.0
        %2097 = vmatprep.subr.mxu0 0.0
        %2098 = vmatpush1.msra.mxu0 0.0
        %2099 = vmatprep.subr.mxu0 0.0
        %2100 = vmatpush1.msra.mxu0 0.0
        %2101 = vmatprep.subr.mxu0 0.0
        %2102 = vmatpush1.msra.mxu0 0.0
        %2103 = vmatprep.subr.mxu0 0.0
        %2104 = vmatpush1.msra.mxu0 0.0
        %2105 = vmatprep.subr.mxu0 0.0
        %2106 = vmatpush1.msra.mxu0 0.0
        %2107 = vmatprep.subr.mxu0 0.0
        %2108 = vmatpush1.msra.mxu0 0.0
        %2109 = vmatprep.subr.mxu0 0.0
        %2110 = vmatpush1.msra.mxu0 0.0
        %2111 = vmatprep.subr.mxu0 0.0
        %2112 = vmatpush1.msra.mxu0 0.0
        %2113 = vmatprep.subr.mxu0 0.0
        %2114 = vmatpush1.msra.mxu0 0.0
        %2115 = vmatprep.subr.mxu0 0.0
        %2116 = vmatpush1.msra.mxu0 0.0
        %2117 = vmatprep.subr.mxu0 0.0
        %2118 = vmatpush1.msra.mxu0 0.0
        %2119 = vmatprep.subr.mxu0 0.0
        %2120 = vmatpush1.msra.mxu0 0.0
        %2121 = vmatprep.subr.mxu0 0.0
        %2122 = vmatpush1.msra.mxu0 0.0
        %2123 = vmatprep.subr.mxu0 0.0
        %2124 = vmatpush1.msra.mxu0 0.0
        %2125 = vmatprep.subr.mxu0 0.0
        %2126 = vmatpush1.msra.mxu0 0.0
        %2127 = vmatprep.subr.mxu0 0.0
        %2128 = vmatpush1.msra.mxu0 0.0
        %2129 = vmatprep.subr.mxu0 0.0
        %2130 = vmatpush1.msra.mxu0 0.0
        %2131 = vmatprep.subr.mxu0 0.0
        %2132 = vmatpush1.msra.mxu0 0.0
        %2133 = vmatprep.subr.mxu0 0.0
        %2134 = vmatpush1.msra.mxu0 0.0
        %2135 = vmatprep.subr.mxu0 0.0
        %2136 = vmatpush1.msra.mxu0 0.0
        %2137 = vmatprep.subr.mxu0 0.0
        %2138 = vmatpush1.msra.mxu0 0.0
        %2139 = vmatprep.subr.mxu0 0.0
        %2140 = vmatpush1.msra.mxu0 0.0
        %2141 = vmatprep.subr.mxu0 0.0
        %2142 = vmatpush1.msra.mxu0 0.0
        %2143 = vmatprep.mubr.f32.mxu0 0.0
        %2144 = vmatmul.mubr.f32.gmra.mrb[0].mxu0 %v2017
        %v2145 = vpop.f32.mrb[0].mxu0
        %v2146 = vadd.f32 0.0, %v2145
        %v2147 = vpop.f32.mrb[0].mxu0
        %2148 = vmatprep.mubr.f32.mxu0 0.0
        %2149 = vmatmul.mubr.f32.gmra.mrb[0].mxu0 %v2020
        %v2150 = vpop.f32.mrb[0].mxu0
        %v2151 = vadd.f32 0.0, %v2150
        %v2152 = vpop.f32.mrb[0].mxu0
        %2153 = vmatprep.mubr.f32.mxu0 0.0
        %2154 = vmatmul.mubr.f32.gmra.mrb[0].mxu0 %v2023
        %v2155 = vpop.f32.mrb[0].mxu0
        %v2156 = vadd.f32 0.0, %v2155
        %v2157 = vpop.f32.mrb[0].mxu0
        %2158 = vmatprep.mubr.f32.mxu0 0.0
        %2159 = vmatmul.mubr.f32.gmra.mrb[0].mxu0 %v2026
        %v2160 = vpop.f32.mrb[0].mxu0
        %v2161 = vadd.f32 0.0, %v2160
        %v2162 = vpop.f32.mrb[0].mxu0
        %2163 = vmatprep.mubr.f32.mxu0 0.0
        %2164 = vmatmul.mubr.f32.gmra.mrb[0].mxu0 %v2029
        %v2165 = vpop.f32.mrb[0].mxu0
        %v2166 = vadd.f32 0.0, %v2165
        %v2167 = vpop.f32.mrb[0].mxu0
        %2168 = vmatprep.mubr.f32.mxu0 0.0
        %2169 = vmatmul.mubr.f32.gmra.mrb[0].mxu0 %v2032
        %v2170 = vpop.f32.mrb[0].mxu0
        %v2171 = vadd.f32 0.0, %v2170
        %v2172 = vpop.f32.mrb[0].mxu0
        %2173 = vmatprep.mubr.f32.mxu0 0.0
        %2174 = vmatmul.mubr.f32.gmra.mrb[0].mxu0 %v2035
        %v2175 = vpop.f32.mrb[0].mxu0
        %v2176 = vadd.f32 0.0, %v2175
        %v2177 = vpop.f32.mrb[0].mxu0
        %2178 = vmatprep.mubr.f32.mxu0 0.0
        %2179 = vmatmul.mubr.f32.gmra.mrb[0].mxu0 %v2038
        %v2180 = vpop.f32.mrb[0].mxu0
        %v2181 = vadd.f32 0.0, %v2180
        %v2182 = vpop.f32.mrb[0].mxu0
        %2183 = vmatprep.mubr.f32.mxu0 0.0
        %2184 = vmatmul.mubr.f32.gmra.mrb[0].mxu0 %v2041
        %v2185 = vpop.f32.mrb[0].mxu0
        %v2186 = vadd.f32 0.0, %v2185
        %v2187 = vpop.f32.mrb[0].mxu0
        %2188 = vmatprep.mubr.f32.mxu0 0.0
        %2189 = vmatmul.mubr.f32.gmra.mrb[0].mxu0 %v2044
        %v2190 = vpop.f32.mrb[0].mxu0
        %v2191 = vadd.f32 0.0, %v2190
        %v2192 = vpop.f32.mrb[0].mxu0
        %2193 = vmatprep.mubr.f32.mxu0 0.0
        %2194 = vmatmul.mubr.f32.gmra.mrb[0].mxu0 %v2047
        %v2195 = vpop.f32.mrb[0].mxu0
        %v2196 = vadd.f32 0.0, %v2195
        %v2197 = vpop.f32.mrb[0].mxu0
        %2198 = vmatprep.mubr.f32.mxu0 0.0
        %2199 = vmatmul.mubr.f32.gmra.mrb[0].mxu0 %v2050
        %v2200 = vpop.f32.mrb[0].mxu0
        %v2201 = vadd.f32 0.0, %v2200
        %v2202 = vpop.f32.mrb[0].mxu0
        %2203 = vmatprep.mubr.f32.mxu0 0.0
        %2204 = vmatmul.mubr.f32.gmra.mrb[0].mxu0 %v2053
        %v2205 = vpop.f32.mrb[0].mxu0
        %v2206 = vadd.f32 0.0, %v2205
        %v2207 = vpop.f32.mrb[0].mxu0
        %2208 = vmatprep.mubr.f32.mxu0 0.0
        %2209 = vmatmul.mubr.f32.gmra.mrb[0].mxu0 %v2056
        %v2210 = vpop.f32.mrb[0].mxu0
        %v2211 = vadd.f32 0.0, %v2210
        %v2212 = vpop.f32.mrb[0].mxu0
        %2213 = vmatprep.mubr.f32.mxu0 0.0
        %2214 = vmatmul.mubr.f32.gmra.mrb[0].mxu0 %v2059
        %v2215 = vpop.f32.mrb[0].mxu0
        %v2216 = vadd.f32 0.0, %v2215
        %v2217 = vpop.f32.mrb[0].mxu0
        %2218 = vmatprep.mubr.f32.mxu0 0.0
        %2219 = vmatmul.mubr.f32.gmra.mrb[0].mxu0 %v2062
        %v2220 = vpop.f32.mrb[0].mxu0
        %v2221 = vadd.f32 0.0, %v2220
        %v2222 = vpop.f32.mrb[0].mxu0
        %2223 = vmatprep.mubr.f32.mxu0 0.0
        %2224 = vmatmul.mubr.f32.gmra.mrb[0].mxu0 %v2065
        %v2225 = vpop.f32.mrb[0].mxu0
        %v2226 = vadd.f32 0.0, %v2225
        %v2227 = vpop.f32.mrb[0].mxu0
        %2228 = vmatprep.mubr.f32.mxu0 0.0
        %2229 = vmatmul.mubr.f32.gmra.mrb[0].mxu0 %v2068
        %v2230 = vpop.f32.mrb[0].mxu0
        %v2231 = vadd.f32 0.0, %v2230
        %v2232 = vpop.f32.mrb[0].mxu0
        %2233 = vmatprep.mubr.f32.mxu0 0.0
        %2234 = vmatmul.mubr.f32.gmra.mrb[0].mxu0 %v2071
        %v2235 = vpop.f32.mrb[0].mxu0
        %v2236 = vadd.f32 0.0, %v2235
        %v2237 = vpop.f32.mrb[0].mxu0
        %2238 = vmatprep.mubr.f32.mxu0 0.0
        %2239 = vmatmul.mubr.f32.gmra.mrb[0].mxu0 %v2074
        %v2240 = vpop.f32.mrb[0].mxu0
        %v2241 = vadd.f32 0.0, %v2240
        %v2242 = vpop.f32.mrb[0].mxu0
        %2243 = vdwg.mxu0
        %v2244 = vadd.f32 %v1961, %v2146
        %v2245 = vadd.f32 %v1962, %v2151
        %v2246 = vadd.f32 %v1963, %v2156
        %v2247 = vadd.f32 %v1964, %v2161
        %v2248 = vadd.f32 %v1965, %v2166
        %v2249 = vadd.f32 %v1966, %v2171
        %v2250 = vadd.f32 %v1967, %v2176
        %v2251 = vadd.f32 %v1968, %v2181
        %v2252 = vadd.f32 %v1969, %v2186
        %v2253 = vadd.f32 %v1970, %v2191
        %v2254 = vadd.f32 %v1971, %v2196
        %v2255 = vadd.f32 %v1972, %v2201
        %v2256 = vadd.f32 %v1973, %v2206
        %v2257 = vadd.f32 %v1974, %v2211
        %v2258 = vadd.f32 %v1975, %v2216
        %v2259 = vadd.f32 %v1976, %v2221
        %v2260 = vadd.f32 %v1977, %v2226
        %v2261 = vadd.f32 %v1978, %v2231
        %v2262 = vadd.f32 %v1979, %v2236
        %v2263 = vadd.f32 %v1980, %v2241
        %v2274 = vrot.slane %v1984, 1
        %v2275 = vrot.slane %v1985, 1
        %v2276 = vsel %vm376, %v2274, %v2275
        %v2277 = vrot.slane %v1986, 1
        %v2278 = vsel %vm376, %v2275, %v2277
        %v2279 = vrot.slane %v1987, 1
        %v2280 = vrot.slane %v1988, 1
        %v2281 = vsel %vm376, %v2279, %v2280
        %v2282 = vrot.slane %v1989, 1
        %v2283 = vsel %vm376, %v2280, %v2282
        %v2284 = vrot.slane %v1990, 1
        %v2285 = vrot.slane %v1991, 1
        %v2286 = vsel %vm376, %v2284, %v2285
        %v2287 = vrot.slane %v1992, 1
        %v2288 = vsel %vm376, %v2285, %v2287
        %v2289 = vrot.slane %v1993, 1
        %v2290 = vrot.slane %v1994, 1
        %v2291 = vsel %vm376, %v2289, %v2290
        %v2292 = vrot.slane %v1995, 1
        %v2293 = vsel %vm376, %v2290, %v2292
        %v2294 = vrot.slane %v1996, 1
        %v2295 = vrot.slane %v1997, 1
        %v2296 = vsel %vm376, %v2294, %v2295
        %v2297 = vrot.slane %v1998, 1
        %v2298 = vsel %vm376, %v2295, %v2297
        %v2299 = vrot.slane %v1999, 1
        %v2300 = vrot.slane %v2000, 1
        %v2301 = vsel %vm376, %v2299, %v2300
        %v2302 = vrot.slane %v2001, 1
        %v2303 = vsel %vm376, %v2300, %v2302
        %v2304 = vrot.slane %v2002, 1
        %v2305 = vrot.slane %v2003, 1
        %v2306 = vsel %vm376, %v2304, %v2305
        %v2307 = vrot.slane %v2004, 1
        %v2308 = vsel %vm376, %v2305, %v2307
        %v2309 = vrot.slane %v2005, 1
        %v2310 = vrot.slane %v2006, 1
        %v2311 = vsel %vm376, %v2309, %v2310
        %v2312 = vrot.slane %v2007, 1
        %v2313 = vsel %vm376, %v2310, %v2312
        %v2314 = vrot.slane %v2008, 1
        %v2315 = vrot.slane %v2009, 1
        %v2316 = vsel %vm376, %v2314, %v2315
        %v2317 = vrot.slane %v2010, 1
        %v2318 = vsel %vm376, %v2315, %v2317
        %v2319 = vrot.slane %v2011, 1
        %v2320 = vrot.slane %v2012, 1
        %v2321 = vsel %vm376, %v2319, %v2320
        %v2322 = vrot.slane %v2013, 1
        %v2323 = vsel %vm376, %v2320, %v2322
        %s2324 = scalar_lea.vmem [#allocation6], 28
        %v2325 = vld [vmem:[%s2324] sm:$0xf]
        %v2326 = vsel %vm429, %v2276, 0
        %v2328 = vsel %vm429, %v2278, 0
        %v2330 = vsel %vm429, %v2281, 0
        %v2332 = vsel %vm429, %v2283, 0
        %v2334 = vsel %vm429, %v2286, 0
        %v2336 = vsel %vm429, %v2288, 0
        %v2338 = vsel %vm429, %v2291, 0
        %v2340 = vsel %vm429, %v2293, 0
        %v2342 = vsel %vm429, %v2296, 0
        %v2344 = vsel %vm429, %v2298, 0
        %v2346 = vsel %vm429, %v2301, 0
        %v2348 = vsel %vm429, %v2303, 0
        %v2350 = vsel %vm429, %v2306, 0
        %v2352 = vsel %vm429, %v2308, 0
        %v2354 = vsel %vm429, %v2311, 0
        %v2356 = vsel %vm429, %v2313, 0
        %v2358 = vsel %vm429, %v2316, 0
        %v2360 = vsel %vm429, %v2318, 0
        %v2362 = vsel %vm429, %v2321, 0
        %v2364 = vsel %vm429, %v2323, 0
        %v2367 = vsel %vm470, %v2325, 0
        %2369 = vmatprep.subr.mxu0 0.0
        %2370 = vmatpush1.msra.mxu0 %v2367
        %2371 = vmatprep.subr.mxu0 0.0
        %2372 = vmatpush1.msra.mxu0 0.0
        %2373 = vmatprep.subr.mxu0 0.0
        %2374 = vmatpush1.msra.mxu0 0.0
        %2375 = vmatprep.subr.mxu0 0.0
        %2376 = vmatpush1.msra.mxu0 0.0
        %2377 = vmatprep.subr.mxu0 0.0
        %2378 = vmatpush1.msra.mxu0 0.0
        %2379 = vmatprep.subr.mxu0 0.0
        %2380 = vmatpush1.msra.mxu0 0.0
        %2381 = vmatprep.subr.mxu0 0.0
        %2382 = vmatpush1.msra.mxu0 0.0
        %2383 = vmatprep.subr.mxu0 0.0
        %2384 = vmatpush1.msra.mxu0 0.0
        %2385 = vmatprep.subr.mxu0 0.0
        %2386 = vmatpush1.msra.mxu0 0.0
        %2387 = vmatprep.subr.mxu0 0.0
        %2388 = vmatpush1.msra.mxu0 0.0
        %2389 = vmatprep.subr.mxu0 0.0
        %2390 = vmatpush1.msra.mxu0 0.0
        %2391 = vmatprep.subr.mxu0 0.0
        %2392 = vmatpush1.msra.mxu0 0.0
        %2393 = vmatprep.subr.mxu0 0.0
        %2394 = vmatpush1.msra.mxu0 0.0
        %2395 = vmatprep.subr.mxu0 0.0
        %2396 = vmatpush1.msra.mxu0 0.0
        %2397 = vmatprep.subr.mxu0 0.0
        %2398 = vmatpush1.msra.mxu0 0.0
        %2399 = vmatprep.subr.mxu0 0.0
        %2400 = vmatpush1.msra.mxu0 0.0
        %2401 = vmatprep.subr.mxu0 0.0
        %2402 = vmatpush1.msra.mxu0 0.0
        %2403 = vmatprep.subr.mxu0 0.0
        %2404 = vmatpush1.msra.mxu0 0.0
        %2405 = vmatprep.subr.mxu0 0.0
        %2406 = vmatpush1.msra.mxu0 0.0
        %2407 = vmatprep.subr.mxu0 0.0
        %2408 = vmatpush1.msra.mxu0 0.0
        %2409 = vmatprep.subr.mxu0 0.0
        %2410 = vmatpush1.msra.mxu0 0.0
        %2411 = vmatprep.subr.mxu0 0.0
        %2412 = vmatpush1.msra.mxu0 0.0
        %2413 = vmatprep.subr.mxu0 0.0
        %2414 = vmatpush1.msra.mxu0 0.0
        %2415 = vmatprep.subr.mxu0 0.0
        %2416 = vmatpush1.msra.mxu0 0.0
        %2417 = vmatprep.subr.mxu0 0.0
        %2418 = vmatpush1.msra.mxu0 0.0
        %2419 = vmatprep.subr.mxu0 0.0
        %2420 = vmatpush1.msra.mxu0 0.0
        %2421 = vmatprep.subr.mxu0 0.0
        %2422 = vmatpush1.msra.mxu0 0.0
        %2423 = vmatprep.subr.mxu0 0.0
        %2424 = vmatpush1.msra.mxu0 0.0
        %2425 = vmatprep.subr.mxu0 0.0
        %2426 = vmatpush1.msra.mxu0 0.0
        %2427 = vmatprep.subr.mxu0 0.0
        %2428 = vmatpush1.msra.mxu0 0.0
        %2429 = vmatprep.subr.mxu0 0.0
        %2430 = vmatpush1.msra.mxu0 0.0
        %2431 = vmatprep.subr.mxu0 0.0
        %2432 = vmatpush1.msra.mxu0 0.0
        %2433 = vmatprep.mubr.f32.mxu0 0.0
        %2434 = vmatmul.mubr.f32.gmra.mrb[0].mxu0 %v2326
        %v2435 = vpop.f32.mrb[0].mxu0
        %v2436 = vadd.f32 0.0, %v2435
        %v2437 = vpop.f32.mrb[0].mxu0
        %2438 = vmatprep.mubr.f32.mxu0 0.0
        %2439 = vmatmul.mubr.f32.gmra.mrb[0].mxu0 %v2328
        %v2440 = vpop.f32.mrb[0].mxu0
        %v2441 = vadd.f32 0.0, %v2440
        %v2442 = vpop.f32.mrb[0].mxu0
        %2443 = vmatprep.mubr.f32.mxu0 0.0
        %2444 = vmatmul.mubr.f32.gmra.mrb[0].mxu0 %v2330
        %v2445 = vpop.f32.mrb[0].mxu0
        %v2446 = vadd.f32 0.0, %v2445
        %v2447 = vpop.f32.mrb[0].mxu0
        %2448 = vmatprep.mubr.f32.mxu0 0.0
        %2449 = vmatmul.mubr.f32.gmra.mrb[0].mxu0 %v2332
        %v2450 = vpop.f32.mrb[0].mxu0
        %v2451 = vadd.f32 0.0, %v2450
        %v2452 = vpop.f32.mrb[0].mxu0
        %2453 = vmatprep.mubr.f32.mxu0 0.0
        %2454 = vmatmul.mubr.f32.gmra.mrb[0].mxu0 %v2334
        %v2455 = vpop.f32.mrb[0].mxu0
        %v2456 = vadd.f32 0.0, %v2455
        %v2457 = vpop.f32.mrb[0].mxu0
        %2458 = vmatprep.mubr.f32.mxu0 0.0
        %2459 = vmatmul.mubr.f32.gmra.mrb[0].mxu0 %v2336
        %v2460 = vpop.f32.mrb[0].mxu0
        %v2461 = vadd.f32 0.0, %v2460
        %v2462 = vpop.f32.mrb[0].mxu0
        %2463 = vmatprep.mubr.f32.mxu0 0.0
        %2464 = vmatmul.mubr.f32.gmra.mrb[0].mxu0 %v2338
        %v2465 = vpop.f32.mrb[0].mxu0
        %v2466 = vadd.f32 0.0, %v2465
        %v2467 = vpop.f32.mrb[0].mxu0
        %2468 = vmatprep.mubr.f32.mxu0 0.0
        %2469 = vmatmul.mubr.f32.gmra.mrb[0].mxu0 %v2340
        %v2470 = vpop.f32.mrb[0].mxu0
        %v2471 = vadd.f32 0.0, %v2470
        %v2472 = vpop.f32.mrb[0].mxu0
        %2473 = vmatprep.mubr.f32.mxu0 0.0
        %2474 = vmatmul.mubr.f32.gmra.mrb[0].mxu0 %v2342
        %v2475 = vpop.f32.mrb[0].mxu0
        %v2476 = vadd.f32 0.0, %v2475
        %v2477 = vpop.f32.mrb[0].mxu0
        %2478 = vmatprep.mubr.f32.mxu0 0.0
        %2479 = vmatmul.mubr.f32.gmra.mrb[0].mxu0 %v2344
        %v2480 = vpop.f32.mrb[0].mxu0
        %v2481 = vadd.f32 0.0, %v2480
        %v2482 = vpop.f32.mrb[0].mxu0
        %2483 = vmatprep.mubr.f32.mxu0 0.0
        %2484 = vmatmul.mubr.f32.gmra.mrb[0].mxu0 %v2346
        %v2485 = vpop.f32.mrb[0].mxu0
        %v2486 = vadd.f32 0.0, %v2485
        %v2487 = vpop.f32.mrb[0].mxu0
        %2488 = vmatprep.mubr.f32.mxu0 0.0
        %2489 = vmatmul.mubr.f32.gmra.mrb[0].mxu0 %v2348
        %v2490 = vpop.f32.mrb[0].mxu0
        %v2491 = vadd.f32 0.0, %v2490
        %v2492 = vpop.f32.mrb[0].mxu0
        %2493 = vmatprep.mubr.f32.mxu0 0.0
        %2494 = vmatmul.mubr.f32.gmra.mrb[0].mxu0 %v2350
        %v2495 = vpop.f32.mrb[0].mxu0
        %v2496 = vadd.f32 0.0, %v2495
        %v2497 = vpop.f32.mrb[0].mxu0
        %2498 = vmatprep.mubr.f32.mxu0 0.0
        %2499 = vmatmul.mubr.f32.gmra.mrb[0].mxu0 %v2352
        %v2500 = vpop.f32.mrb[0].mxu0
        %v2501 = vadd.f32 0.0, %v2500
        %v2502 = vpop.f32.mrb[0].mxu0
        %2503 = vmatprep.mubr.f32.mxu0 0.0
        %2504 = vmatmul.mubr.f32.gmra.mrb[0].mxu0 %v2354
        %v2505 = vpop.f32.mrb[0].mxu0
        %v2506 = vadd.f32 0.0, %v2505
        %v2507 = vpop.f32.mrb[0].mxu0
        %2508 = vmatprep.mubr.f32.mxu0 0.0
        %2509 = vmatmul.mubr.f32.gmra.mrb[0].mxu0 %v2356
        %v2510 = vpop.f32.mrb[0].mxu0
        %v2511 = vadd.f32 0.0, %v2510
        %v2512 = vpop.f32.mrb[0].mxu0
        %2513 = vmatprep.mubr.f32.mxu0 0.0
        %2514 = vmatmul.mubr.f32.gmra.mrb[0].mxu0 %v2358
        %v2515 = vpop.f32.mrb[0].mxu0
        %v2516 = vadd.f32 0.0, %v2515
        %v2517 = vpop.f32.mrb[0].mxu0
        %2518 = vmatprep.mubr.f32.mxu0 0.0
        %2519 = vmatmul.mubr.f32.gmra.mrb[0].mxu0 %v2360
        %v2520 = vpop.f32.mrb[0].mxu0
        %v2521 = vadd.f32 0.0, %v2520
        %v2522 = vpop.f32.mrb[0].mxu0
        %2523 = vmatprep.mubr.f32.mxu0 0.0
        %2524 = vmatmul.mubr.f32.gmra.mrb[0].mxu0 %v2362
        %v2525 = vpop.f32.mrb[0].mxu0
        %v2526 = vadd.f32 0.0, %v2525
        %v2527 = vpop.f32.mrb[0].mxu0
        %2528 = vmatprep.mubr.f32.mxu0 0.0
        %2529 = vmatmul.mubr.f32.gmra.mrb[0].mxu0 %v2364
        %v2530 = vpop.f32.mrb[0].mxu0
        %v2531 = vadd.f32 0.0, %v2530
        %v2532 = vpop.f32.mrb[0].mxu0
        %2533 = vdwg.mxu0
        %v2534 = vadd.f32 %v2244, %v2436
        %v2535 = vadd.f32 %v2245, %v2441
        %v2536 = vadd.f32 %v2246, %v2446
        %v2537 = vadd.f32 %v2247, %v2451
        %v2538 = vadd.f32 %v2248, %v2456
        %v2539 = vadd.f32 %v2249, %v2461
        %v2540 = vadd.f32 %v2250, %v2466
        %v2541 = vadd.f32 %v2251, %v2471
        %v2542 = vadd.f32 %v2252, %v2476
        %v2543 = vadd.f32 %v2253, %v2481
        %v2544 = vadd.f32 %v2254, %v2486
        %v2545 = vadd.f32 %v2255, %v2491
        %v2546 = vadd.f32 %v2256, %v2496
        %v2547 = vadd.f32 %v2257, %v2501
        %v2548 = vadd.f32 %v2258, %v2506
        %v2549 = vadd.f32 %v2259, %v2511
        %v2550 = vadd.f32 %v2260, %v2516
        %v2551 = vadd.f32 %v2261, %v2521
        %v2552 = vadd.f32 %v2262, %v2526
        %v2553 = vadd.f32 %v2263, %v2531
        %v2554 = vrot.slane %v1984, 2
        %v2555 = vrot.slane %v1985, 2
        %v2556 = vsel %vm847, %v2554, %v2555
        %v2557 = vrot.slane %v1986, 2
        %v2558 = vsel %vm847, %v2555, %v2557
        %v2559 = vrot.slane %v1987, 2
        %v2560 = vrot.slane %v1988, 2
        %v2561 = vsel %vm847, %v2559, %v2560
        %v2562 = vrot.slane %v1989, 2
        %v2563 = vsel %vm847, %v2560, %v2562
        %v2564 = vrot.slane %v1990, 2
        %v2565 = vrot.slane %v1991, 2
        %v2566 = vsel %vm847, %v2564, %v2565
        %v2567 = vrot.slane %v1992, 2
        %v2568 = vsel %vm847, %v2565, %v2567
        %v2569 = vrot.slane %v1993, 2
        %v2570 = vrot.slane %v1994, 2
        %v2571 = vsel %vm847, %v2569, %v2570
        %v2572 = vrot.slane %v1995, 2
        %v2573 = vsel %vm847, %v2570, %v2572
        %v2574 = vrot.slane %v1996, 2
        %v2575 = vrot.slane %v1997, 2
        %v2576 = vsel %vm847, %v2574, %v2575
        %v2577 = vrot.slane %v1998, 2
        %v2578 = vsel %vm847, %v2575, %v2577
        %v2579 = vrot.slane %v1999, 2
        %v2580 = vrot.slane %v2000, 2
        %v2581 = vsel %vm847, %v2579, %v2580
        %v2582 = vrot.slane %v2001, 2
        %v2583 = vsel %vm847, %v2580, %v2582
        %v2584 = vrot.slane %v2002, 2
        %v2585 = vrot.slane %v2003, 2
        %v2586 = vsel %vm847, %v2584, %v2585
        %v2587 = vrot.slane %v2004, 2
        %v2588 = vsel %vm847, %v2585, %v2587
        %v2589 = vrot.slane %v2005, 2
        %v2590 = vrot.slane %v2006, 2
        %v2591 = vsel %vm847, %v2589, %v2590
        %v2592 = vrot.slane %v2007, 2
        %v2593 = vsel %vm847, %v2590, %v2592
        %v2594 = vrot.slane %v2008, 2
        %v2595 = vrot.slane %v2009, 2
        %v2596 = vsel %vm847, %v2594, %v2595
        %v2597 = vrot.slane %v2010, 2
        %v2598 = vsel %vm847, %v2595, %v2597
        %v2599 = vrot.slane %v2011, 2
        %v2600 = vrot.slane %v2012, 2
        %v2601 = vsel %vm847, %v2599, %v2600
        %v2602 = vrot.slane %v2013, 2
        %v2603 = vsel %vm847, %v2600, %v2602
        %s2604 = scalar_lea.vmem [#allocation6], 32
        %v2605 = vld [vmem:[%s2604] sm:$0xf]
        %v2606 = vsel %vm429, %v2556, 0
        %v2608 = vsel %vm429, %v2558, 0
        %v2610 = vsel %vm429, %v2561, 0
        %v2612 = vsel %vm429, %v2563, 0
        %v2614 = vsel %vm429, %v2566, 0
        %v2616 = vsel %vm429, %v2568, 0
        %v2618 = vsel %vm429, %v2571, 0
        %v2620 = vsel %vm429, %v2573, 0
        %v2622 = vsel %vm429, %v2576, 0
        %v2624 = vsel %vm429, %v2578, 0
        %v2626 = vsel %vm429, %v2581, 0
        %v2628 = vsel %vm429, %v2583, 0
        %v2630 = vsel %vm429, %v2586, 0
        %v2632 = vsel %vm429, %v2588, 0
        %v2634 = vsel %vm429, %v2591, 0
        %v2636 = vsel %vm429, %v2593, 0
        %v2638 = vsel %vm429, %v2596, 0
        %v2640 = vsel %vm429, %v2598, 0
        %v2642 = vsel %vm429, %v2601, 0
        %v2644 = vsel %vm429, %v2603, 0
        %v2647 = vsel %vm470, %v2605, 0
        %2649 = vmatprep.subr.mxu0 0.0
        %2650 = vmatpush1.msra.mxu0 %v2647
        %2651 = vmatprep.subr.mxu0 0.0
        %2652 = vmatpush1.msra.mxu0 0.0
        %2653 = vmatprep.subr.mxu0 0.0
        %2654 = vmatpush1.msra.mxu0 0.0
        %2655 = vmatprep.subr.mxu0 0.0
        %2656 = vmatpush1.msra.mxu0 0.0
        %2657 = vmatprep.subr.mxu0 0.0
        %2658 = vmatpush1.msra.mxu0 0.0
        %2659 = vmatprep.subr.mxu0 0.0
        %2660 = vmatpush1.msra.mxu0 0.0
        %2661 = vmatprep.subr.mxu0 0.0
        %2662 = vmatpush1.msra.mxu0 0.0
        %2663 = vmatprep.subr.mxu0 0.0
        %2664 = vmatpush1.msra.mxu0 0.0
        %2665 = vmatprep.subr.mxu0 0.0
        %2666 = vmatpush1.msra.mxu0 0.0
        %2667 = vmatprep.subr.mxu0 0.0
        %2668 = vmatpush1.msra.mxu0 0.0
        %2669 = vmatprep.subr.mxu0 0.0
        %2670 = vmatpush1.msra.mxu0 0.0
        %2671 = vmatprep.subr.mxu0 0.0
        %2672 = vmatpush1.msra.mxu0 0.0
        %2673 = vmatprep.subr.mxu0 0.0
        %2674 = vmatpush1.msra.mxu0 0.0
        %2675 = vmatprep.subr.mxu0 0.0
        %2676 = vmatpush1.msra.mxu0 0.0
        %2677 = vmatprep.subr.mxu0 0.0
        %2678 = vmatpush1.msra.mxu0 0.0
        %2679 = vmatprep.subr.mxu0 0.0
        %2680 = vmatpush1.msra.mxu0 0.0
        %2681 = vmatprep.subr.mxu0 0.0
        %2682 = vmatpush1.msra.mxu0 0.0
        %2683 = vmatprep.subr.mxu0 0.0
        %2684 = vmatpush1.msra.mxu0 0.0
        %2685 = vmatprep.subr.mxu0 0.0
        %2686 = vmatpush1.msra.mxu0 0.0
        %2687 = vmatprep.subr.mxu0 0.0
        %2688 = vmatpush1.msra.mxu0 0.0
        %2689 = vmatprep.subr.mxu0 0.0
        %2690 = vmatpush1.msra.mxu0 0.0
        %2691 = vmatprep.subr.mxu0 0.0
        %2692 = vmatpush1.msra.mxu0 0.0
        %2693 = vmatprep.subr.mxu0 0.0
        %2694 = vmatpush1.msra.mxu0 0.0
        %2695 = vmatprep.subr.mxu0 0.0
        %2696 = vmatpush1.msra.mxu0 0.0
        %2697 = vmatprep.subr.mxu0 0.0
        %2698 = vmatpush1.msra.mxu0 0.0
        %2699 = vmatprep.subr.mxu0 0.0
        %2700 = vmatpush1.msra.mxu0 0.0
        %2701 = vmatprep.subr.mxu0 0.0
        %2702 = vmatpush1.msra.mxu0 0.0
        %2703 = vmatprep.subr.mxu0 0.0
        %2704 = vmatpush1.msra.mxu0 0.0
        %2705 = vmatprep.subr.mxu0 0.0
        %2706 = vmatpush1.msra.mxu0 0.0
        %2707 = vmatprep.subr.mxu0 0.0
        %2708 = vmatpush1.msra.mxu0 0.0
        %2709 = vmatprep.subr.mxu0 0.0
        %2710 = vmatpush1.msra.mxu0 0.0
        %2711 = vmatprep.subr.mxu0 0.0
        %2712 = vmatpush1.msra.mxu0 0.0
        %2713 = vmatprep.mubr.f32.mxu0 0.0
        %2714 = vmatmul.mubr.f32.gmra.mrb[0].mxu0 %v2606
        %v2715 = vpop.f32.mrb[0].mxu0
        %v2716 = vadd.f32 0.0, %v2715
        %v2717 = vpop.f32.mrb[0].mxu0
        %2718 = vmatprep.mubr.f32.mxu0 0.0
        %2719 = vmatmul.mubr.f32.gmra.mrb[0].mxu0 %v2608
        %v2720 = vpop.f32.mrb[0].mxu0
        %v2721 = vadd.f32 0.0, %v2720
        %v2722 = vpop.f32.mrb[0].mxu0
        %2723 = vmatprep.mubr.f32.mxu0 0.0
        %2724 = vmatmul.mubr.f32.gmra.mrb[0].mxu0 %v2610
        %v2725 = vpop.f32.mrb[0].mxu0
        %v2726 = vadd.f32 0.0, %v2725
        %v2727 = vpop.f32.mrb[0].mxu0
        %2728 = vmatprep.mubr.f32.mxu0 0.0
        %2729 = vmatmul.mubr.f32.gmra.mrb[0].mxu0 %v2612
        %v2730 = vpop.f32.mrb[0].mxu0
        %v2731 = vadd.f32 0.0, %v2730
        %v2732 = vpop.f32.mrb[0].mxu0
        %2733 = vmatprep.mubr.f32.mxu0 0.0
        %2734 = vmatmul.mubr.f32.gmra.mrb[0].mxu0 %v2614
        %v2735 = vpop.f32.mrb[0].mxu0
        %v2736 = vadd.f32 0.0, %v2735
        %v2737 = vpop.f32.mrb[0].mxu0
        %2738 = vmatprep.mubr.f32.mxu0 0.0
        %2739 = vmatmul.mubr.f32.gmra.mrb[0].mxu0 %v2616
        %v2740 = vpop.f32.mrb[0].mxu0
        %v2741 = vadd.f32 0.0, %v2740
        %v2742 = vpop.f32.mrb[0].mxu0
        %2743 = vmatprep.mubr.f32.mxu0 0.0
        %2744 = vmatmul.mubr.f32.gmra.mrb[0].mxu0 %v2618
        %v2745 = vpop.f32.mrb[0].mxu0
        %v2746 = vadd.f32 0.0, %v2745
        %v2747 = vpop.f32.mrb[0].mxu0
        %2748 = vmatprep.mubr.f32.mxu0 0.0
        %2749 = vmatmul.mubr.f32.gmra.mrb[0].mxu0 %v2620
        %v2750 = vpop.f32.mrb[0].mxu0
        %v2751 = vadd.f32 0.0, %v2750
        %v2752 = vpop.f32.mrb[0].mxu0
        %2753 = vmatprep.mubr.f32.mxu0 0.0
        %2754 = vmatmul.mubr.f32.gmra.mrb[0].mxu0 %v2622
        %v2755 = vpop.f32.mrb[0].mxu0
        %v2756 = vadd.f32 0.0, %v2755
        %v2757 = vpop.f32.mrb[0].mxu0
        %2758 = vmatprep.mubr.f32.mxu0 0.0
        %2759 = vmatmul.mubr.f32.gmra.mrb[0].mxu0 %v2624
        %v2760 = vpop.f32.mrb[0].mxu0
        %v2761 = vadd.f32 0.0, %v2760
        %v2762 = vpop.f32.mrb[0].mxu0
        %2763 = vmatprep.mubr.f32.mxu0 0.0
        %2764 = vmatmul.mubr.f32.gmra.mrb[0].mxu0 %v2626
        %v2765 = vpop.f32.mrb[0].mxu0
        %v2766 = vadd.f32 0.0, %v2765
        %v2767 = vpop.f32.mrb[0].mxu0
        %2768 = vmatprep.mubr.f32.mxu0 0.0
        %2769 = vmatmul.mubr.f32.gmra.mrb[0].mxu0 %v2628
        %v2770 = vpop.f32.mrb[0].mxu0
        %v2771 = vadd.f32 0.0, %v2770
        %v2772 = vpop.f32.mrb[0].mxu0
        %2773 = vmatprep.mubr.f32.mxu0 0.0
        %2774 = vmatmul.mubr.f32.gmra.mrb[0].mxu0 %v2630
        %v2775 = vpop.f32.mrb[0].mxu0
        %v2776 = vadd.f32 0.0, %v2775
        %v2777 = vpop.f32.mrb[0].mxu0
        %2778 = vmatprep.mubr.f32.mxu0 0.0
        %2779 = vmatmul.mubr.f32.gmra.mrb[0].mxu0 %v2632
        %v2780 = vpop.f32.mrb[0].mxu0
        %v2781 = vadd.f32 0.0, %v2780
        %v2782 = vpop.f32.mrb[0].mxu0
        %2783 = vmatprep.mubr.f32.mxu0 0.0
        %2784 = vmatmul.mubr.f32.gmra.mrb[0].mxu0 %v2634
        %v2785 = vpop.f32.mrb[0].mxu0
        %v2786 = vadd.f32 0.0, %v2785
        %v2787 = vpop.f32.mrb[0].mxu0
        %2788 = vmatprep.mubr.f32.mxu0 0.0
        %2789 = vmatmul.mubr.f32.gmra.mrb[0].mxu0 %v2636
        %v2790 = vpop.f32.mrb[0].mxu0
        %v2791 = vadd.f32 0.0, %v2790
        %v2792 = vpop.f32.mrb[0].mxu0
        %2793 = vmatprep.mubr.f32.mxu0 0.0
        %2794 = vmatmul.mubr.f32.gmra.mrb[0].mxu0 %v2638
        %v2795 = vpop.f32.mrb[0].mxu0
        %v2796 = vadd.f32 0.0, %v2795
        %v2797 = vpop.f32.mrb[0].mxu0
        %2798 = vmatprep.mubr.f32.mxu0 0.0
        %2799 = vmatmul.mubr.f32.gmra.mrb[0].mxu0 %v2640
        %v2800 = vpop.f32.mrb[0].mxu0
        %v2801 = vadd.f32 0.0, %v2800
        %v2802 = vpop.f32.mrb[0].mxu0
        %2803 = vmatprep.mubr.f32.mxu0 0.0
        %2804 = vmatmul.mubr.f32.gmra.mrb[0].mxu0 %v2642
        %v2805 = vpop.f32.mrb[0].mxu0
        %v2806 = vadd.f32 0.0, %v2805
        %v2807 = vpop.f32.mrb[0].mxu0
        %2808 = vmatprep.mubr.f32.mxu0 0.0
        %2809 = vmatmul.mubr.f32.gmra.mrb[0].mxu0 %v2644
        %v2810 = vpop.f32.mrb[0].mxu0
        %v2811 = vadd.f32 0.0, %v2810
        %v2812 = vpop.f32.mrb[0].mxu0
        %2813 = vdwg.mxu0
        %v2814 = vadd.f32 %v2534, %v2716
        %v2815 = vadd.f32 %v2535, %v2721
        %v2816 = vadd.f32 %v2536, %v2726
        %v2817 = vadd.f32 %v2537, %v2731
        %v2818 = vadd.f32 %v2538, %v2736
        %v2819 = vadd.f32 %v2539, %v2741
        %v2820 = vadd.f32 %v2540, %v2746
        %v2821 = vadd.f32 %v2541, %v2751
        %v2822 = vadd.f32 %v2542, %v2756
        %v2823 = vadd.f32 %v2543, %v2761
        %v2824 = vadd.f32 %v2544, %v2766
        %v2825 = vadd.f32 %v2545, %v2771
        %v2826 = vadd.f32 %v2546, %v2776
        %v2827 = vadd.f32 %v2547, %v2781
        %v2828 = vadd.f32 %v2548, %v2786
        %v2829 = vadd.f32 %v2549, %v2791
        %v2830 = vadd.f32 %v2550, %v2796
        %v2831 = vadd.f32 %v2551, %v2801
        %v2832 = vadd.f32 %v2552, %v2806
        %v2833 = vadd.f32 %v2553, %v2811
        %v2834 = vld [vmem:[#allocation9] sm:$0x1]
        %v2836 = vlaneseq
        %v2837 = vshrl.u32 %v2836, 7
        %v2838 = vsub.s32 0, %v2837
        %v2839 = vrot.slane %v2834, %v2838
        %v2841 = vadd.f32 %v2814, %v2839
        %v2842 = vadd.f32 %v2815, %v2839
        %v2843 = vadd.f32 %v2816, %v2839
        %v2844 = vadd.f32 %v2817, %v2839
        %v2845 = vadd.f32 %v2818, %v2839
        %v2846 = vadd.f32 %v2819, %v2839
        %v2847 = vadd.f32 %v2820, %v2839
        %v2848 = vadd.f32 %v2821, %v2839
        %v2849 = vadd.f32 %v2822, %v2839
        %v2850 = vadd.f32 %v2823, %v2839
        %v2851 = vadd.f32 %v2824, %v2839
        %v2852 = vadd.f32 %v2825, %v2839
        %v2853 = vadd.f32 %v2826, %v2839
        %v2854 = vadd.f32 %v2827, %v2839
        %v2855 = vadd.f32 %v2828, %v2839
        %v2856 = vadd.f32 %v2829, %v2839
        %v2857 = vadd.f32 %v2830, %v2839
        %v2858 = vadd.f32 %v2831, %v2839
        %v2859 = vadd.f32 %v2832, %v2839
        %v2860 = vadd.f32 %v2833, %v2839
        %v2861 = vmax.f32 %v2841, 0.0
        %v2862 = vmax.f32 %v2842, 0.0
        %v2863 = vmax.f32 %v2843, 0.0
        %v2864 = vmax.f32 %v2844, 0.0
        %v2865 = vmax.f32 %v2845, 0.0
        %v2866 = vmax.f32 %v2846, 0.0
        %v2867 = vmax.f32 %v2847, 0.0
        %v2868 = vmax.f32 %v2848, 0.0
        %v2869 = vmax.f32 %v2849, 0.0
        %v2870 = vmax.f32 %v2850, 0.0
        %v2871 = vmax.f32 %v2851, 0.0
        %v2872 = vmax.f32 %v2852, 0.0
        %v2873 = vmax.f32 %v2853, 0.0
        %v2874 = vmax.f32 %v2854, 0.0
        %v2875 = vmax.f32 %v2855, 0.0
        %v2876 = vmax.f32 %v2856, 0.0
        %v2877 = vmax.f32 %v2857, 0.0
        %v2878 = vmax.f32 %v2858, 0.0
        %v2879 = vmax.f32 %v2859, 0.0
        %v2880 = vmax.f32 %v2860, 0.0
        %2881 = vst.msk [vmem:[#allocation2 + $0x1] sm:$0xff] %vm429, %v2861
        %2882 = vst.msk [vmem:[#allocation2 + $0x9] sm:$0xff] %vm429, %v2862
        %2883 = vst.msk [vmem:[#allocation2 + $0x19] sm:$0xff] %vm429, %v2863
        %2884 = vst.msk [vmem:[#allocation2 + $0x21] sm:$0xff] %vm429, %v2864
        %2885 = vst.msk [vmem:[#allocation2 + $0x31] sm:$0xff] %vm429, %v2865
        %2886 = vst.msk [vmem:[#allocation2 + $0x39] sm:$0xff] %vm429, %v2866
        %2887 = vst.msk [vmem:[#allocation2 + $0x49] sm:$0xff] %vm429, %v2867
        %2888 = vst.msk [vmem:[#allocation2 + $0x51] sm:$0xff] %vm429, %v2868
        %2889 = vst.msk [vmem:[#allocation2 + $0x61] sm:$0xff] %vm429, %v2869
        %2890 = vst.msk [vmem:[#allocation2 + $0x69] sm:$0xff] %vm429, %v2870
        %2891 = vst.msk [vmem:[#allocation2 + $0x79] sm:$0xff] %vm429, %v2871
        %2892 = vst.msk [vmem:[#allocation2 + $0x81] sm:$0xff] %vm429, %v2872
        %2893 = vst.msk [vmem:[#allocation2 + $0x91] sm:$0xff] %vm429, %v2873
        %2894 = vst.msk [vmem:[#allocation2 + $0x99] sm:$0xff] %vm429, %v2874
        %2895 = vst.msk [vmem:[#allocation2 + $0xa9] sm:$0xff] %vm429, %v2875
        %2896 = vst.msk [vmem:[#allocation2 + $0xb1] sm:$0xff] %vm429, %v2876
        %2897 = vst.msk [vmem:[#allocation2 + $0xc1] sm:$0xff] %vm429, %v2877
        %2898 = vst.msk [vmem:[#allocation2 + $0xc9] sm:$0xff] %vm429, %v2878
        %2899 = vst.msk [vmem:[#allocation2 + $0xd9] sm:$0xff] %vm429, %v2879
        %2900 = vst.msk [vmem:[#allocation2 + $0xe1] sm:$0xff] %vm429, %v2880
        %vm2901 = vcmask 24576
        %2902 = vst.msk [vmem:[#allocation2] sm:$0x1] %vm2901, 0.0
        %2903 = vst.msk [vmem:[#allocation2 + $0x18] sm:$0x1] %vm2901, 0.0
        %2904 = vst.msk [vmem:[#allocation2 + $0x30] sm:$0x1] %vm2901, 0.0
        %2905 = vst.msk [vmem:[#allocation2 + $0x48] sm:$0x1] %vm2901, 0.0
        %2906 = vst.msk [vmem:[#allocation2 + $0x60] sm:$0x1] %vm2901, 0.0
        %2907 = vst.msk [vmem:[#allocation2 + $0x78] sm:$0x1] %vm2901, 0.0
        %2908 = vst.msk [vmem:[#allocation2 + $0x90] sm:$0x1] %vm2901, 0.0
        %2909 = vst.msk [vmem:[#allocation2 + $0xa8] sm:$0x1] %vm2901, 0.0
        %2910 = vst.msk [vmem:[#allocation2 + $0xc0] sm:$0x1] %vm2901, 0.0
        %2911 = vst.msk [vmem:[#allocation2 + $0xd8] sm:$0x1] %vm2901, 0.0
        %2912 = vst.msk [vmem:[#allocation2 + $0x11] sm:$0x1] %vm2901, 0.0
        %2913 = vst.msk [vmem:[#allocation2 + $0x29] sm:$0x1] %vm2901, 0.0
        %2914 = vst.msk [vmem:[#allocation2 + $0x41] sm:$0x1] %vm2901, 0.0
        %2915 = vst.msk [vmem:[#allocation2 + $0x59] sm:$0x1] %vm2901, 0.0
        %2916 = vst.msk [vmem:[#allocation2 + $0x71] sm:$0x1] %vm2901, 0.0
        %2917 = vst.msk [vmem:[#allocation2 + $0x89] sm:$0x1] %vm2901, 0.0
        %2918 = vst.msk [vmem:[#allocation2 + $0xa1] sm:$0x1] %vm2901, 0.0
        %2919 = vst.msk [vmem:[#allocation2 + $0xb9] sm:$0x1] %vm2901, 0.0
        %2920 = vst.msk [vmem:[#allocation2 + $0xd1] sm:$0x1] %vm2901, 0.0
        %2921 = vst.msk [vmem:[#allocation2 + $0xe9] sm:$0x1] %vm2901, 0.0
        %p2922 = scmp.eq.s32.totalorder %s29, 0
        // Predicated region
        $region61: #{tpu_custom_call.1} parent=39 // pred_check
          %p2923 = pneg %p2922
        $region62: #{tpu_custom_call.1} parent=39 // pred_check_branch
          %2925 = sbr.rel (%p2923) target = $region64
        $region63: #{tpu_custom_call.1} parent=39 // pred_region
          %2926 = vst.msk [vmem:[#allocation2 + $0x1] sm:$0xff] %vm429, 0.0
          %2927 = vst.msk [vmem:[#allocation2 + $0x9] sm:$0xff] %vm429, 0.0
        $region64: #{tpu_custom_call.1} parent=39 // pred_fallthru
          _
        %p2928 = scmp.eq.s32.totalorder %s29, 1
        // Predicated region
        $region65: #{tpu_custom_call.1} parent=39 // pred_check
          %p2929 = pneg %p2928
        $region66: #{tpu_custom_call.1} parent=39 // pred_check_branch
          %2931 = sbr.rel (%p2929) target = $region68
        $region67: #{tpu_custom_call.1} parent=39 // pred_region
          %s2932 = scalar_lea.vmem [#allocation2], 216
          %2933 = vst.msk [vmem:[%s2932 + $0x1] sm:$0xff] %vm429, 0.0
          %2934 = vst.msk [vmem:[%s2932 + $0x9] sm:$0xff] %vm429, 0.0
        $region68: #{tpu_custom_call.1} parent=39 // pred_fallthru
          _
        %v2935 = vld [vmem:[#allocation2] sm:$0xff]
        %v2936 = vld [vmem:[#allocation2 + $0x8] sm:$0xff]
        %v2937 = vld [vmem:[#allocation2 + $0x10] sm:$0x3]
        %v2938 = vld [vmem:[#allocation2 + $0x18] sm:$0xff]
        %v2939 = vld [vmem:[#allocation2 + $0x20] sm:$0xff]
        %v2940 = vld [vmem:[#allocation2 + $0x28] sm:$0x3]
        %v2941 = vld [vmem:[#allocation2 + $0x30] sm:$0xff]
        %v2942 = vld [vmem:[#allocation2 + $0x38] sm:$0xff]
        %v2943 = vld [vmem:[#allocation2 + $0x40] sm:$0x3]
        %v2944 = vld [vmem:[#allocation2 + $0x48] sm:$0xff]
        %v2945 = vld [vmem:[#allocation2 + $0x50] sm:$0xff]
        %v2946 = vld [vmem:[#allocation2 + $0x58] sm:$0x3]
        %v2947 = vld [vmem:[#allocation2 + $0x60] sm:$0xff]
        %v2948 = vld [vmem:[#allocation2 + $0x68] sm:$0xff]
        %v2949 = vld [vmem:[#allocation2 + $0x70] sm:$0x3]
        %v2950 = vld [vmem:[#allocation2 + $0x78] sm:$0xff]
        %v2951 = vld [vmem:[#allocation2 + $0x80] sm:$0xff]
        %v2952 = vld [vmem:[#allocation2 + $0x88] sm:$0x3]
        %v2953 = vld [vmem:[#allocation2 + $0x90] sm:$0xff]
        %v2954 = vld [vmem:[#allocation2 + $0x98] sm:$0xff]
        %v2955 = vld [vmem:[#allocation2 + $0xa0] sm:$0x3]
        %v2956 = vld [vmem:[#allocation2 + $0xa8] sm:$0xff]
        %v2957 = vld [vmem:[#allocation2 + $0xb0] sm:$0xff]
        %v2958 = vld [vmem:[#allocation2 + $0xb8] sm:$0x3]
        %v2959 = vld [vmem:[#allocation8] sm:$0xf]
        %v2984 = vrot.slane %v2935, 1
        %v2985 = vrot.slane %v2936, 1
        %v2986 = vsel %vm376, %v2984, %v2985
        %v2987 = vrot.slane %v2937, 1
        %v2988 = vsel %vm376, %v2985, %v2987
        %v2989 = vrot.slane %v2938, 1
        %v2990 = vrot.slane %v2939, 1
        %v2991 = vsel %vm376, %v2989, %v2990
        %v2992 = vrot.slane %v2940, 1
        %v2993 = vsel %vm376, %v2990, %v2992
        %v2994 = vrot.slane %v2941, 1
        %v2995 = vrot.slane %v2942, 1
        %v2996 = vsel %vm376, %v2994, %v2995
        %v2997 = vrot.slane %v2943, 1
        %v2998 = vsel %vm376, %v2995, %v2997
        %v2999 = vrot.slane %v2944, 1
        %v3000 = vrot.slane %v2945, 1
        %v3001 = vsel %vm376, %v2999, %v3000
        %v3002 = vrot.slane %v2946, 1
        %v3003 = vsel %vm376, %v3000, %v3002
        %v3004 = vrot.slane %v2947, 1
        %v3005 = vrot.slane %v2948, 1
        %v3006 = vsel %vm376, %v3004, %v3005
        %v3007 = vrot.slane %v2949, 1
        %v3008 = vsel %vm376, %v3005, %v3007
        %v3009 = vrot.slane %v2950, 1
        %v3010 = vrot.slane %v2951, 1
        %v3011 = vsel %vm376, %v3009, %v3010
        %v3012 = vrot.slane %v2952, 1
        %v3013 = vsel %vm376, %v3010, %v3012
        %v3014 = vrot.slane %v2953, 1
        %v3015 = vrot.slane %v2954, 1
        %v3016 = vsel %vm376, %v3014, %v3015
        %v3017 = vrot.slane %v2955, 1
        %v3018 = vsel %vm376, %v3015, %v3017
        %v3019 = vrot.slane %v2956, 1
        %v3020 = vrot.slane %v2957, 1
        %v3021 = vsel %vm376, %v3019, %v3020
        %v3022 = vrot.slane %v2958, 1
        %v3023 = vsel %vm376, %v3020, %v3022
        %s3024 = scalar_lea.vmem [#allocation8], 4
        %v3025 = vld [vmem:[%s3024] sm:$0xf]
        %v3026 = vsel %vm429, %v2986, 0
        %v3028 = vsel %vm429, %v2988, 0
        %v3030 = vsel %vm429, %v2991, 0
        %v3032 = vsel %vm429, %v2993, 0
        %v3034 = vsel %vm429, %v2996, 0
        %v3036 = vsel %vm429, %v2998, 0
        %v3038 = vsel %vm429, %v3001, 0
        %v3040 = vsel %vm429, %v3003, 0
        %v3042 = vsel %vm429, %v3006, 0
        %v3044 = vsel %vm429, %v3008, 0
        %v3046 = vsel %vm429, %v3011, 0
        %v3048 = vsel %vm429, %v3013, 0
        %v3050 = vsel %vm429, %v3016, 0
        %v3052 = vsel %vm429, %v3018, 0
        %v3054 = vsel %vm429, %v3021, 0
        %v3056 = vsel %vm429, %v3023, 0
        %v3059 = vsel %vm470, %v3025, 0
        %3061 = vmatprep.subr.mxu0 0.0
        %3062 = vmatpush1.msra.mxu0 %v3059
        %3063 = vmatprep.subr.mxu0 0.0
        %3064 = vmatpush1.msra.mxu0 0.0
        %3065 = vmatprep.subr.mxu0 0.0
        %3066 = vmatpush1.msra.mxu0 0.0
        %3067 = vmatprep.subr.mxu0 0.0
        %3068 = vmatpush1.msra.mxu0 0.0
        %3069 = vmatprep.subr.mxu0 0.0
        %3070 = vmatpush1.msra.mxu0 0.0
        %3071 = vmatprep.subr.mxu0 0.0
        %3072 = vmatpush1.msra.mxu0 0.0
        %3073 = vmatprep.subr.mxu0 0.0
        %3074 = vmatpush1.msra.mxu0 0.0
        %3075 = vmatprep.subr.mxu0 0.0
        %3076 = vmatpush1.msra.mxu0 0.0
        %3077 = vmatprep.subr.mxu0 0.0
        %3078 = vmatpush1.msra.mxu0 0.0
        %3079 = vmatprep.subr.mxu0 0.0
        %3080 = vmatpush1.msra.mxu0 0.0
        %3081 = vmatprep.subr.mxu0 0.0
        %3082 = vmatpush1.msra.mxu0 0.0
        %3083 = vmatprep.subr.mxu0 0.0
        %3084 = vmatpush1.msra.mxu0 0.0
        %3085 = vmatprep.subr.mxu0 0.0
        %3086 = vmatpush1.msra.mxu0 0.0
        %3087 = vmatprep.subr.mxu0 0.0
        %3088 = vmatpush1.msra.mxu0 0.0
        %3089 = vmatprep.subr.mxu0 0.0
        %3090 = vmatpush1.msra.mxu0 0.0
        %3091 = vmatprep.subr.mxu0 0.0
        %3092 = vmatpush1.msra.mxu0 0.0
        %3093 = vmatprep.subr.mxu0 0.0
        %3094 = vmatpush1.msra.mxu0 0.0
        %3095 = vmatprep.subr.mxu0 0.0
        %3096 = vmatpush1.msra.mxu0 0.0
        %3097 = vmatprep.subr.mxu0 0.0
        %3098 = vmatpush1.msra.mxu0 0.0
        %3099 = vmatprep.subr.mxu0 0.0
        %3100 = vmatpush1.msra.mxu0 0.0
        %3101 = vmatprep.subr.mxu0 0.0
        %3102 = vmatpush1.msra.mxu0 0.0
        %3103 = vmatprep.subr.mxu0 0.0
        %3104 = vmatpush1.msra.mxu0 0.0
        %3105 = vmatprep.subr.mxu0 0.0
        %3106 = vmatpush1.msra.mxu0 0.0
        %3107 = vmatprep.subr.mxu0 0.0
        %3108 = vmatpush1.msra.mxu0 0.0
        %3109 = vmatprep.subr.mxu0 0.0
        %3110 = vmatpush1.msra.mxu0 0.0
        %3111 = vmatprep.subr.mxu0 0.0
        %3112 = vmatpush1.msra.mxu0 0.0
        %3113 = vmatprep.subr.mxu0 0.0
        %3114 = vmatpush1.msra.mxu0 0.0
        %3115 = vmatprep.subr.mxu0 0.0
        %3116 = vmatpush1.msra.mxu0 0.0
        %3117 = vmatprep.subr.mxu0 0.0
        %3118 = vmatpush1.msra.mxu0 0.0
        %3119 = vmatprep.subr.mxu0 0.0
        %3120 = vmatpush1.msra.mxu0 0.0
        %3121 = vmatprep.subr.mxu0 0.0
        %3122 = vmatpush1.msra.mxu0 0.0
        %3123 = vmatprep.subr.mxu0 0.0
        %3124 = vmatpush1.msra.mxu0 0.0
        %3125 = vmatprep.mubr.f32.mxu0 0.0
        %3126 = vmatmul.mubr.f32.gmra.mrb[0].mxu0 %v3026
        %v3127 = vpop.f32.mrb[0].mxu0
        %v3128 = vadd.f32 0.0, %v3127
        %v3129 = vpop.f32.mrb[0].mxu0
        %3130 = vmatprep.mubr.f32.mxu0 0.0
        %3131 = vmatmul.mubr.f32.gmra.mrb[0].mxu0 %v3028
        %v3132 = vpop.f32.mrb[0].mxu0
        %v3133 = vadd.f32 0.0, %v3132
        %v3134 = vpop.f32.mrb[0].mxu0
        %3135 = vmatprep.mubr.f32.mxu0 0.0
        %3136 = vmatmul.mubr.f32.gmra.mrb[0].mxu0 %v3030
        %v3137 = vpop.f32.mrb[0].mxu0
        %v3138 = vadd.f32 0.0, %v3137
        %v3139 = vpop.f32.mrb[0].mxu0
        %3140 = vmatprep.mubr.f32.mxu0 0.0
        %3141 = vmatmul.mubr.f32.gmra.mrb[0].mxu0 %v3032
        %v3142 = vpop.f32.mrb[0].mxu0
        %v3143 = vadd.f32 0.0, %v3142
        %v3144 = vpop.f32.mrb[0].mxu0
        %3145 = vmatprep.mubr.f32.mxu0 0.0
        %3146 = vmatmul.mubr.f32.gmra.mrb[0].mxu0 %v3034
        %v3147 = vpop.f32.mrb[0].mxu0
        %v3148 = vadd.f32 0.0, %v3147
        %v3149 = vpop.f32.mrb[0].mxu0
        %3150 = vmatprep.mubr.f32.mxu0 0.0
        %3151 = vmatmul.mubr.f32.gmra.mrb[0].mxu0 %v3036
        %v3152 = vpop.f32.mrb[0].mxu0
        %v3153 = vadd.f32 0.0, %v3152
        %v3154 = vpop.f32.mrb[0].mxu0
        %3155 = vmatprep.mubr.f32.mxu0 0.0
        %3156 = vmatmul.mubr.f32.gmra.mrb[0].mxu0 %v3038
        %v3157 = vpop.f32.mrb[0].mxu0
        %v3158 = vadd.f32 0.0, %v3157
        %v3159 = vpop.f32.mrb[0].mxu0
        %3160 = vmatprep.mubr.f32.mxu0 0.0
        %3161 = vmatmul.mubr.f32.gmra.mrb[0].mxu0 %v3040
        %v3162 = vpop.f32.mrb[0].mxu0
        %v3163 = vadd.f32 0.0, %v3162
        %v3164 = vpop.f32.mrb[0].mxu0
        %3165 = vmatprep.mubr.f32.mxu0 0.0
        %3166 = vmatmul.mubr.f32.gmra.mrb[0].mxu0 %v3042
        %v3167 = vpop.f32.mrb[0].mxu0
        %v3168 = vadd.f32 0.0, %v3167
        %v3169 = vpop.f32.mrb[0].mxu0
        %3170 = vmatprep.mubr.f32.mxu0 0.0
        %3171 = vmatmul.mubr.f32.gmra.mrb[0].mxu0 %v3044
        %v3172 = vpop.f32.mrb[0].mxu0
        %v3173 = vadd.f32 0.0, %v3172
        %v3174 = vpop.f32.mrb[0].mxu0
        %3175 = vmatprep.mubr.f32.mxu0 0.0
        %3176 = vmatmul.mubr.f32.gmra.mrb[0].mxu0 %v3046
        %v3177 = vpop.f32.mrb[0].mxu0
        %v3178 = vadd.f32 0.0, %v3177
        %v3179 = vpop.f32.mrb[0].mxu0
        %3180 = vmatprep.mubr.f32.mxu0 0.0
        %3181 = vmatmul.mubr.f32.gmra.mrb[0].mxu0 %v3048
        %v3182 = vpop.f32.mrb[0].mxu0
        %v3183 = vadd.f32 0.0, %v3182
        %v3184 = vpop.f32.mrb[0].mxu0
        %3185 = vmatprep.mubr.f32.mxu0 0.0
        %3186 = vmatmul.mubr.f32.gmra.mrb[0].mxu0 %v3050
        %v3187 = vpop.f32.mrb[0].mxu0
        %v3188 = vadd.f32 0.0, %v3187
        %v3189 = vpop.f32.mrb[0].mxu0
        %3190 = vmatprep.mubr.f32.mxu0 0.0
        %3191 = vmatmul.mubr.f32.gmra.mrb[0].mxu0 %v3052
        %v3192 = vpop.f32.mrb[0].mxu0
        %v3193 = vadd.f32 0.0, %v3192
        %v3194 = vpop.f32.mrb[0].mxu0
        %3195 = vmatprep.mubr.f32.mxu0 0.0
        %3196 = vmatmul.mubr.f32.gmra.mrb[0].mxu0 %v3054
        %v3197 = vpop.f32.mrb[0].mxu0
        %v3198 = vadd.f32 0.0, %v3197
        %v3199 = vpop.f32.mrb[0].mxu0
        %3200 = vmatprep.mubr.f32.mxu0 0.0
        %3201 = vmatmul.mubr.f32.gmra.mrb[0].mxu0 %v3056
        %v3202 = vpop.f32.mrb[0].mxu0
        %v3203 = vadd.f32 0.0, %v3202
        %v3204 = vpop.f32.mrb[0].mxu0
        %3205 = vdwg.mxu0
        %v3206 = vsel %vm429, %v2935, 0
        %v3208 = vsel %vm429, %v2936, 0
        %v3210 = vsel %vm429, %v2938, 0
        %v3212 = vsel %vm429, %v2939, 0
        %v3214 = vsel %vm429, %v2941, 0
        %v3216 = vsel %vm429, %v2942, 0
        %v3218 = vsel %vm429, %v2944, 0
        %v3220 = vsel %vm429, %v2945, 0
        %v3222 = vsel %vm429, %v2947, 0
        %v3224 = vsel %vm429, %v2948, 0
        %v3226 = vsel %vm429, %v2950, 0
        %v3228 = vsel %vm429, %v2951, 0
        %v3230 = vsel %vm429, %v2953, 0
        %v3232 = vsel %vm429, %v2954, 0
        %v3234 = vsel %vm429, %v2956, 0
        %v3236 = vsel %vm429, %v2957, 0
        %v3239 = vsel %vm470, %v2959, 0
        %3241 = vmatprep.subr.mxu0 0.0
        %3242 = vmatpush1.msra.mxu0 %v3239
        %3243 = vmatprep.subr.mxu0 0.0
        %3244 = vmatpush1.msra.mxu0 0.0
        %3245 = vmatprep.subr.mxu0 0.0
        %3246 = vmatpush1.msra.mxu0 0.0
        %3247 = vmatprep.subr.mxu0 0.0
        %3248 = vmatpush1.msra.mxu0 0.0
        %3249 = vmatprep.subr.mxu0 0.0
        %3250 = vmatpush1.msra.mxu0 0.0
        %3251 = vmatprep.subr.mxu0 0.0
        %3252 = vmatpush1.msra.mxu0 0.0
        %3253 = vmatprep.subr.mxu0 0.0
        %3254 = vmatpush1.msra.mxu0 0.0
        %3255 = vmatprep.subr.mxu0 0.0
        %3256 = vmatpush1.msra.mxu0 0.0
        %3257 = vmatprep.subr.mxu0 0.0
        %3258 = vmatpush1.msra.mxu0 0.0
        %3259 = vmatprep.subr.mxu0 0.0
        %3260 = vmatpush1.msra.mxu0 0.0
        %3261 = vmatprep.subr.mxu0 0.0
        %3262 = vmatpush1.msra.mxu0 0.0
        %3263 = vmatprep.subr.mxu0 0.0
        %3264 = vmatpush1.msra.mxu0 0.0
        %3265 = vmatprep.subr.mxu0 0.0
        %3266 = vmatpush1.msra.mxu0 0.0
        %3267 = vmatprep.subr.mxu0 0.0
        %3268 = vmatpush1.msra.mxu0 0.0
        %3269 = vmatprep.subr.mxu0 0.0
        %3270 = vmatpush1.msra.mxu0 0.0
        %3271 = vmatprep.subr.mxu0 0.0
        %3272 = vmatpush1.msra.mxu0 0.0
        %3273 = vmatprep.subr.mxu0 0.0
        %3274 = vmatpush1.msra.mxu0 0.0
        %3275 = vmatprep.subr.mxu0 0.0
        %3276 = vmatpush1.msra.mxu0 0.0
        %3277 = vmatprep.subr.mxu0 0.0
        %3278 = vmatpush1.msra.mxu0 0.0
        %3279 = vmatprep.subr.mxu0 0.0
        %3280 = vmatpush1.msra.mxu0 0.0
        %3281 = vmatprep.subr.mxu0 0.0
        %3282 = vmatpush1.msra.mxu0 0.0
        %3283 = vmatprep.subr.mxu0 0.0
        %3284 = vmatpush1.msra.mxu0 0.0
        %3285 = vmatprep.subr.mxu0 0.0
        %3286 = vmatpush1.msra.mxu0 0.0
        %3287 = vmatprep.subr.mxu0 0.0
        %3288 = vmatpush1.msra.mxu0 0.0
        %3289 = vmatprep.subr.mxu0 0.0
        %3290 = vmatpush1.msra.mxu0 0.0
        %3291 = vmatprep.subr.mxu0 0.0
        %3292 = vmatpush1.msra.mxu0 0.0
        %3293 = vmatprep.subr.mxu0 0.0
        %3294 = vmatpush1.msra.mxu0 0.0
        %3295 = vmatprep.subr.mxu0 0.0
        %3296 = vmatpush1.msra.mxu0 0.0
        %3297 = vmatprep.subr.mxu0 0.0
        %3298 = vmatpush1.msra.mxu0 0.0
        %3299 = vmatprep.subr.mxu0 0.0
        %3300 = vmatpush1.msra.mxu0 0.0
        %3301 = vmatprep.subr.mxu0 0.0
        %3302 = vmatpush1.msra.mxu0 0.0
        %3303 = vmatprep.subr.mxu0 0.0
        %3304 = vmatpush1.msra.mxu0 0.0
        %3305 = vmatprep.mubr.f32.mxu0 0.0
        %3306 = vmatmul.mubr.f32.gmra.mrb[0].mxu0 %v3206
        %v3307 = vpop.f32.mrb[0].mxu0
        %v3308 = vadd.f32 %v3128, %v3307
        %v3309 = vpop.f32.mrb[0].mxu0
        %3310 = vmatprep.mubr.f32.mxu0 0.0
        %3311 = vmatmul.mubr.f32.gmra.mrb[0].mxu0 %v3208
        %v3312 = vpop.f32.mrb[0].mxu0
        %v3313 = vadd.f32 %v3133, %v3312
        %v3314 = vpop.f32.mrb[0].mxu0
        %3315 = vmatprep.mubr.f32.mxu0 0.0
        %3316 = vmatmul.mubr.f32.gmra.mrb[0].mxu0 %v3210
        %v3317 = vpop.f32.mrb[0].mxu0
        %v3318 = vadd.f32 %v3138, %v3317
        %v3319 = vpop.f32.mrb[0].mxu0
        %3320 = vmatprep.mubr.f32.mxu0 0.0
        %3321 = vmatmul.mubr.f32.gmra.mrb[0].mxu0 %v3212
        %v3322 = vpop.f32.mrb[0].mxu0
        %v3323 = vadd.f32 %v3143, %v3322
        %v3324 = vpop.f32.mrb[0].mxu0
        %3325 = vmatprep.mubr.f32.mxu0 0.0
        %3326 = vmatmul.mubr.f32.gmra.mrb[0].mxu0 %v3214
        %v3327 = vpop.f32.mrb[0].mxu0
        %v3328 = vadd.f32 %v3148, %v3327
        %v3329 = vpop.f32.mrb[0].mxu0
        %3330 = vmatprep.mubr.f32.mxu0 0.0
        %3331 = vmatmul.mubr.f32.gmra.mrb[0].mxu0 %v3216
        %v3332 = vpop.f32.mrb[0].mxu0
        %v3333 = vadd.f32 %v3153, %v3332
        %v3334 = vpop.f32.mrb[0].mxu0
        %3335 = vmatprep.mubr.f32.mxu0 0.0
        %3336 = vmatmul.mubr.f32.gmra.mrb[0].mxu0 %v3218
        %v3337 = vpop.f32.mrb[0].mxu0
        %v3338 = vadd.f32 %v3158, %v3337
        %v3339 = vpop.f32.mrb[0].mxu0
        %3340 = vmatprep.mubr.f32.mxu0 0.0
        %3341 = vmatmul.mubr.f32.gmra.mrb[0].mxu0 %v3220
        %v3342 = vpop.f32.mrb[0].mxu0
        %v3343 = vadd.f32 %v3163, %v3342
        %v3344 = vpop.f32.mrb[0].mxu0
        %3345 = vmatprep.mubr.f32.mxu0 0.0
        %3346 = vmatmul.mubr.f32.gmra.mrb[0].mxu0 %v3222
        %v3347 = vpop.f32.mrb[0].mxu0
        %v3348 = vadd.f32 %v3168, %v3347
        %v3349 = vpop.f32.mrb[0].mxu0
        %3350 = vmatprep.mubr.f32.mxu0 0.0
        %3351 = vmatmul.mubr.f32.gmra.mrb[0].mxu0 %v3224
        %v3352 = vpop.f32.mrb[0].mxu0
        %v3353 = vadd.f32 %v3173, %v3352
        %v3354 = vpop.f32.mrb[0].mxu0
        %3355 = vmatprep.mubr.f32.mxu0 0.0
        %3356 = vmatmul.mubr.f32.gmra.mrb[0].mxu0 %v3226
        %v3357 = vpop.f32.mrb[0].mxu0
        %v3358 = vadd.f32 %v3178, %v3357
        %v3359 = vpop.f32.mrb[0].mxu0
        %3360 = vmatprep.mubr.f32.mxu0 0.0
        %3361 = vmatmul.mubr.f32.gmra.mrb[0].mxu0 %v3228
        %v3362 = vpop.f32.mrb[0].mxu0
        %v3363 = vadd.f32 %v3183, %v3362
        %v3364 = vpop.f32.mrb[0].mxu0
        %3365 = vmatprep.mubr.f32.mxu0 0.0
        %3366 = vmatmul.mubr.f32.gmra.mrb[0].mxu0 %v3230
        %v3367 = vpop.f32.mrb[0].mxu0
        %v3368 = vadd.f32 %v3188, %v3367
        %v3369 = vpop.f32.mrb[0].mxu0
        %3370 = vmatprep.mubr.f32.mxu0 0.0
        %3371 = vmatmul.mubr.f32.gmra.mrb[0].mxu0 %v3232
        %v3372 = vpop.f32.mrb[0].mxu0
        %v3373 = vadd.f32 %v3193, %v3372
        %v3374 = vpop.f32.mrb[0].mxu0
        %3375 = vmatprep.mubr.f32.mxu0 0.0
        %3376 = vmatmul.mubr.f32.gmra.mrb[0].mxu0 %v3234
        %v3377 = vpop.f32.mrb[0].mxu0
        %v3378 = vadd.f32 %v3198, %v3377
        %v3379 = vpop.f32.mrb[0].mxu0
        %3380 = vmatprep.mubr.f32.mxu0 0.0
        %3381 = vmatmul.mubr.f32.gmra.mrb[0].mxu0 %v3236
        %v3382 = vpop.f32.mrb[0].mxu0
        %v3383 = vadd.f32 %v3203, %v3382
        %v3384 = vpop.f32.mrb[0].mxu0
        %3385 = vdwg.mxu0
        %v3386 = vrot.slane %v2935, 2
        %v3387 = vrot.slane %v2936, 2
        %v3388 = vsel %vm847, %v3386, %v3387
        %v3389 = vrot.slane %v2937, 2
        %v3390 = vsel %vm847, %v3387, %v3389
        %v3391 = vrot.slane %v2938, 2
        %v3392 = vrot.slane %v2939, 2
        %v3393 = vsel %vm847, %v3391, %v3392
        %v3394 = vrot.slane %v2940, 2
        %v3395 = vsel %vm847, %v3392, %v3394
        %v3396 = vrot.slane %v2941, 2
        %v3397 = vrot.slane %v2942, 2
        %v3398 = vsel %vm847, %v3396, %v3397
        %v3399 = vrot.slane %v2943, 2
        %v3400 = vsel %vm847, %v3397, %v3399
        %v3401 = vrot.slane %v2944, 2
        %v3402 = vrot.slane %v2945, 2
        %v3403 = vsel %vm847, %v3401, %v3402
        %v3404 = vrot.slane %v2946, 2
        %v3405 = vsel %vm847, %v3402, %v3404
        %v3406 = vrot.slane %v2947, 2
        %v3407 = vrot.slane %v2948, 2
        %v3408 = vsel %vm847, %v3406, %v3407
        %v3409 = vrot.slane %v2949, 2
        %v3410 = vsel %vm847, %v3407, %v3409
        %v3411 = vrot.slane %v2950, 2
        %v3412 = vrot.slane %v2951, 2
        %v3413 = vsel %vm847, %v3411, %v3412
        %v3414 = vrot.slane %v2952, 2
        %v3415 = vsel %vm847, %v3412, %v3414
        %v3416 = vrot.slane %v2953, 2
        %v3417 = vrot.slane %v2954, 2
        %v3418 = vsel %vm847, %v3416, %v3417
        %v3419 = vrot.slane %v2955, 2
        %v3420 = vsel %vm847, %v3417, %v3419
        %v3421 = vrot.slane %v2956, 2
        %v3422 = vrot.slane %v2957, 2
        %v3423 = vsel %vm847, %v3421, %v3422
        %v3424 = vrot.slane %v2958, 2
        %v3425 = vsel %vm847, %v3422, %v3424
        %s3426 = scalar_lea.vmem [#allocation8], 8
        %v3427 = vld [vmem:[%s3426] sm:$0xf]
        %v3428 = vsel %vm429, %v3388, 0
        %v3430 = vsel %vm429, %v3390, 0
        %v3432 = vsel %vm429, %v3393, 0
        %v3434 = vsel %vm429, %v3395, 0
        %v3436 = vsel %vm429, %v3398, 0
        %v3438 = vsel %vm429, %v3400, 0
        %v3440 = vsel %vm429, %v3403, 0
        %v3442 = vsel %vm429, %v3405, 0
        %v3444 = vsel %vm429, %v3408, 0
        %v3446 = vsel %vm429, %v3410, 0
        %v3448 = vsel %vm429, %v3413, 0
        %v3450 = vsel %vm429, %v3415, 0
        %v3452 = vsel %vm429, %v3418, 0
        %v3454 = vsel %vm429, %v3420, 0
        %v3456 = vsel %vm429, %v3423, 0
        %v3458 = vsel %vm429, %v3425, 0
        %v3461 = vsel %vm470, %v3427, 0
        %3463 = vmatprep.subr.mxu0 0.0
        %3464 = vmatpush1.msra.mxu0 %v3461
        %3465 = vmatprep.subr.mxu0 0.0
        %3466 = vmatpush1.msra.mxu0 0.0
        %3467 = vmatprep.subr.mxu0 0.0
        %3468 = vmatpush1.msra.mxu0 0.0
        %3469 = vmatprep.subr.mxu0 0.0
        %3470 = vmatpush1.msra.mxu0 0.0
        %3471 = vmatprep.subr.mxu0 0.0
        %3472 = vmatpush1.msra.mxu0 0.0
        %3473 = vmatprep.subr.mxu0 0.0
        %3474 = vmatpush1.msra.mxu0 0.0
        %3475 = vmatprep.subr.mxu0 0.0
        %3476 = vmatpush1.msra.mxu0 0.0
        %3477 = vmatprep.subr.mxu0 0.0
        %3478 = vmatpush1.msra.mxu0 0.0
        %3479 = vmatprep.subr.mxu0 0.0
        %3480 = vmatpush1.msra.mxu0 0.0
        %3481 = vmatprep.subr.mxu0 0.0
        %3482 = vmatpush1.msra.mxu0 0.0
        %3483 = vmatprep.subr.mxu0 0.0
        %3484 = vmatpush1.msra.mxu0 0.0
        %3485 = vmatprep.subr.mxu0 0.0
        %3486 = vmatpush1.msra.mxu0 0.0
        %3487 = vmatprep.subr.mxu0 0.0
        %3488 = vmatpush1.msra.mxu0 0.0
        %3489 = vmatprep.subr.mxu0 0.0
        %3490 = vmatpush1.msra.mxu0 0.0
        %3491 = vmatprep.subr.mxu0 0.0
        %3492 = vmatpush1.msra.mxu0 0.0
        %3493 = vmatprep.subr.mxu0 0.0
        %3494 = vmatpush1.msra.mxu0 0.0
        %3495 = vmatprep.subr.mxu0 0.0
        %3496 = vmatpush1.msra.mxu0 0.0
        %3497 = vmatprep.subr.mxu0 0.0
        %3498 = vmatpush1.msra.mxu0 0.0
        %3499 = vmatprep.subr.mxu0 0.0
        %3500 = vmatpush1.msra.mxu0 0.0
        %3501 = vmatprep.subr.mxu0 0.0
        %3502 = vmatpush1.msra.mxu0 0.0
        %3503 = vmatprep.subr.mxu0 0.0
        %3504 = vmatpush1.msra.mxu0 0.0
        %3505 = vmatprep.subr.mxu0 0.0
        %3506 = vmatpush1.msra.mxu0 0.0
        %3507 = vmatprep.subr.mxu0 0.0
        %3508 = vmatpush1.msra.mxu0 0.0
        %3509 = vmatprep.subr.mxu0 0.0
        %3510 = vmatpush1.msra.mxu0 0.0
        %3511 = vmatprep.subr.mxu0 0.0
        %3512 = vmatpush1.msra.mxu0 0.0
        %3513 = vmatprep.subr.mxu0 0.0
        %3514 = vmatpush1.msra.mxu0 0.0
        %3515 = vmatprep.subr.mxu0 0.0
        %3516 = vmatpush1.msra.mxu0 0.0
        %3517 = vmatprep.subr.mxu0 0.0
        %3518 = vmatpush1.msra.mxu0 0.0
        %3519 = vmatprep.subr.mxu0 0.0
        %3520 = vmatpush1.msra.mxu0 0.0
        %3521 = vmatprep.subr.mxu0 0.0
        %3522 = vmatpush1.msra.mxu0 0.0
        %3523 = vmatprep.subr.mxu0 0.0
        %3524 = vmatpush1.msra.mxu0 0.0
        %3525 = vmatprep.subr.mxu0 0.0
        %3526 = vmatpush1.msra.mxu0 0.0
        %3527 = vmatprep.mubr.f32.mxu0 0.0
        %3528 = vmatmul.mubr.f32.gmra.mrb[0].mxu0 %v3428
        %v3529 = vpop.f32.mrb[0].mxu0
        %v3530 = vadd.f32 0.0, %v3529
        %v3531 = vpop.f32.mrb[0].mxu0
        %3532 = vmatprep.mubr.f32.mxu0 0.0
        %3533 = vmatmul.mubr.f32.gmra.mrb[0].mxu0 %v3430
        %v3534 = vpop.f32.mrb[0].mxu0
        %v3535 = vadd.f32 0.0, %v3534
        %v3536 = vpop.f32.mrb[0].mxu0
        %3537 = vmatprep.mubr.f32.mxu0 0.0
        %3538 = vmatmul.mubr.f32.gmra.mrb[0].mxu0 %v3432
        %v3539 = vpop.f32.mrb[0].mxu0
        %v3540 = vadd.f32 0.0, %v3539
        %v3541 = vpop.f32.mrb[0].mxu0
        %3542 = vmatprep.mubr.f32.mxu0 0.0
        %3543 = vmatmul.mubr.f32.gmra.mrb[0].mxu0 %v3434
        %v3544 = vpop.f32.mrb[0].mxu0
        %v3545 = vadd.f32 0.0, %v3544
        %v3546 = vpop.f32.mrb[0].mxu0
        %3547 = vmatprep.mubr.f32.mxu0 0.0
        %3548 = vmatmul.mubr.f32.gmra.mrb[0].mxu0 %v3436
        %v3549 = vpop.f32.mrb[0].mxu0
        %v3550 = vadd.f32 0.0, %v3549
        %v3551 = vpop.f32.mrb[0].mxu0
        %3552 = vmatprep.mubr.f32.mxu0 0.0
        %3553 = vmatmul.mubr.f32.gmra.mrb[0].mxu0 %v3438
        %v3554 = vpop.f32.mrb[0].mxu0
        %v3555 = vadd.f32 0.0, %v3554
        %v3556 = vpop.f32.mrb[0].mxu0
        %3557 = vmatprep.mubr.f32.mxu0 0.0
        %3558 = vmatmul.mubr.f32.gmra.mrb[0].mxu0 %v3440
        %v3559 = vpop.f32.mrb[0].mxu0
        %v3560 = vadd.f32 0.0, %v3559
        %v3561 = vpop.f32.mrb[0].mxu0
        %3562 = vmatprep.mubr.f32.mxu0 0.0
        %3563 = vmatmul.mubr.f32.gmra.mrb[0].mxu0 %v3442
        %v3564 = vpop.f32.mrb[0].mxu0
        %v3565 = vadd.f32 0.0, %v3564
        %v3566 = vpop.f32.mrb[0].mxu0
        %3567 = vmatprep.mubr.f32.mxu0 0.0
        %3568 = vmatmul.mubr.f32.gmra.mrb[0].mxu0 %v3444
        %v3569 = vpop.f32.mrb[0].mxu0
        %v3570 = vadd.f32 0.0, %v3569
        %v3571 = vpop.f32.mrb[0].mxu0
        %3572 = vmatprep.mubr.f32.mxu0 0.0
        %3573 = vmatmul.mubr.f32.gmra.mrb[0].mxu0 %v3446
        %v3574 = vpop.f32.mrb[0].mxu0
        %v3575 = vadd.f32 0.0, %v3574
        %v3576 = vpop.f32.mrb[0].mxu0
        %3577 = vmatprep.mubr.f32.mxu0 0.0
        %3578 = vmatmul.mubr.f32.gmra.mrb[0].mxu0 %v3448
        %v3579 = vpop.f32.mrb[0].mxu0
        %v3580 = vadd.f32 0.0, %v3579
        %v3581 = vpop.f32.mrb[0].mxu0
        %3582 = vmatprep.mubr.f32.mxu0 0.0
        %3583 = vmatmul.mubr.f32.gmra.mrb[0].mxu0 %v3450
        %v3584 = vpop.f32.mrb[0].mxu0
        %v3585 = vadd.f32 0.0, %v3584
        %v3586 = vpop.f32.mrb[0].mxu0
        %3587 = vmatprep.mubr.f32.mxu0 0.0
        %3588 = vmatmul.mubr.f32.gmra.mrb[0].mxu0 %v3452
        %v3589 = vpop.f32.mrb[0].mxu0
        %v3590 = vadd.f32 0.0, %v3589
        %v3591 = vpop.f32.mrb[0].mxu0
        %3592 = vmatprep.mubr.f32.mxu0 0.0
        %3593 = vmatmul.mubr.f32.gmra.mrb[0].mxu0 %v3454
        %v3594 = vpop.f32.mrb[0].mxu0
        %v3595 = vadd.f32 0.0, %v3594
        %v3596 = vpop.f32.mrb[0].mxu0
        %3597 = vmatprep.mubr.f32.mxu0 0.0
        %3598 = vmatmul.mubr.f32.gmra.mrb[0].mxu0 %v3456
        %v3599 = vpop.f32.mrb[0].mxu0
        %v3600 = vadd.f32 0.0, %v3599
        %v3601 = vpop.f32.mrb[0].mxu0
        %3602 = vmatprep.mubr.f32.mxu0 0.0
        %3603 = vmatmul.mubr.f32.gmra.mrb[0].mxu0 %v3458
        %v3604 = vpop.f32.mrb[0].mxu0
        %v3605 = vadd.f32 0.0, %v3604
        %v3606 = vpop.f32.mrb[0].mxu0
        %3607 = vdwg.mxu0
        %v3608 = vadd.f32 %v3308, %v3530
        %v3609 = vadd.f32 %v3313, %v3535
        %v3610 = vadd.f32 %v3318, %v3540
        %v3611 = vadd.f32 %v3323, %v3545
        %v3612 = vadd.f32 %v3328, %v3550
        %v3613 = vadd.f32 %v3333, %v3555
        %v3614 = vadd.f32 %v3338, %v3560
        %v3615 = vadd.f32 %v3343, %v3565
        %v3616 = vadd.f32 %v3348, %v3570
        %v3617 = vadd.f32 %v3353, %v3575
        %v3618 = vadd.f32 %v3358, %v3580
        %v3619 = vadd.f32 %v3363, %v3585
        %v3620 = vadd.f32 %v3368, %v3590
        %v3621 = vadd.f32 %v3373, %v3595
        %v3622 = vadd.f32 %v3378, %v3600
        %v3623 = vadd.f32 %v3383, %v3605
        %s3624 = scalar_lea.vmem [#allocation2], 24
        %v3625 = vld [vmem:[%s3624] sm:$0xff]
        %v3626 = vld [vmem:[%s3624 + $0x8] sm:$0xff]
        %v3627 = vld [vmem:[%s3624 + $0x10] sm:$0x3]
        %v3628 = vld [vmem:[%s3624 + $0x18] sm:$0xff]
        %v3629 = vld [vmem:[%s3624 + $0x20] sm:$0xff]
        %v3630 = vld [vmem:[%s3624 + $0x28] sm:$0x3]
        %v3631 = vld [vmem:[%s3624 + $0x30] sm:$0xff]
        %v3632 = vld [vmem:[%s3624 + $0x38] sm:$0xff]
        %v3633 = vld [vmem:[%s3624 + $0x40] sm:$0x3]
        %v3634 = vld [vmem:[%s3624 + $0x48] sm:$0xff]
        %v3635 = vld [vmem:[%s3624 + $0x50] sm:$0xff]
        %v3636 = vld [vmem:[%s3624 + $0x58] sm:$0x3]
        %v3637 = vld [vmem:[%s3624 + $0x60] sm:$0xff]
        %v3638 = vld [vmem:[%s3624 + $0x68] sm:$0xff]
        %v3639 = vld [vmem:[%s3624 + $0x70] sm:$0x3]
        %v3640 = vld [vmem:[%s3624 + $0x78] sm:$0xff]
        %v3641 = vld [vmem:[%s3624 + $0x80] sm:$0xff]
        %v3642 = vld [vmem:[%s3624 + $0x88] sm:$0x3]
        %v3643 = vld [vmem:[%s3624 + $0x90] sm:$0xff]
        %v3644 = vld [vmem:[%s3624 + $0x98] sm:$0xff]
        %v3645 = vld [vmem:[%s3624 + $0xa0] sm:$0x3]
        %v3646 = vld [vmem:[%s3624 + $0xa8] sm:$0xff]
        %v3647 = vld [vmem:[%s3624 + $0xb0] sm:$0xff]
        %v3648 = vld [vmem:[%s3624 + $0xb8] sm:$0x3]
        %s3649 = scalar_lea.vmem [#allocation8], 12
        %v3650 = vld [vmem:[%s3649] sm:$0xf]
        %v3652 = vsel %vm429, %v3625, 0
        %v3655 = vsel %vm429, %v3626, 0
        %v3658 = vsel %vm429, %v3628, 0
        %v3661 = vsel %vm429, %v3629, 0
        %v3664 = vsel %vm429, %v3631, 0
        %v3667 = vsel %vm429, %v3632, 0
        %v3670 = vsel %vm429, %v3634, 0
        %v3673 = vsel %vm429, %v3635, 0
        %v3676 = vsel %vm429, %v3637, 0
        %v3679 = vsel %vm429, %v3638, 0
        %v3682 = vsel %vm429, %v3640, 0
        %v3685 = vsel %vm429, %v3641, 0
        %v3688 = vsel %vm429, %v3643, 0
        %v3691 = vsel %vm429, %v3644, 0
        %v3694 = vsel %vm429, %v3646, 0
        %v3697 = vsel %vm429, %v3647, 0
        %v3700 = vsel %vm470, %v3650, 0
        %3702 = vmatprep.subr.mxu0 0.0
        %3703 = vmatpush1.msra.mxu0 %v3700
        %3704 = vmatprep.subr.mxu0 0.0
        %3705 = vmatpush1.msra.mxu0 0.0
        %3706 = vmatprep.subr.mxu0 0.0
        %3707 = vmatpush1.msra.mxu0 0.0
        %3708 = vmatprep.subr.mxu0 0.0
        %3709 = vmatpush1.msra.mxu0 0.0
        %3710 = vmatprep.subr.mxu0 0.0
        %3711 = vmatpush1.msra.mxu0 0.0
        %3712 = vmatprep.subr.mxu0 0.0
        %3713 = vmatpush1.msra.mxu0 0.0
        %3714 = vmatprep.subr.mxu0 0.0
        %3715 = vmatpush1.msra.mxu0 0.0
        %3716 = vmatprep.subr.mxu0 0.0
        %3717 = vmatpush1.msra.mxu0 0.0
        %3718 = vmatprep.subr.mxu0 0.0
        %3719 = vmatpush1.msra.mxu0 0.0
        %3720 = vmatprep.subr.mxu0 0.0
        %3721 = vmatpush1.msra.mxu0 0.0
        %3722 = vmatprep.subr.mxu0 0.0
        %3723 = vmatpush1.msra.mxu0 0.0
        %3724 = vmatprep.subr.mxu0 0.0
        %3725 = vmatpush1.msra.mxu0 0.0
        %3726 = vmatprep.subr.mxu0 0.0
        %3727 = vmatpush1.msra.mxu0 0.0
        %3728 = vmatprep.subr.mxu0 0.0
        %3729 = vmatpush1.msra.mxu0 0.0
        %3730 = vmatprep.subr.mxu0 0.0
        %3731 = vmatpush1.msra.mxu0 0.0
        %3732 = vmatprep.subr.mxu0 0.0
        %3733 = vmatpush1.msra.mxu0 0.0
        %3734 = vmatprep.subr.mxu0 0.0
        %3735 = vmatpush1.msra.mxu0 0.0
        %3736 = vmatprep.subr.mxu0 0.0
        %3737 = vmatpush1.msra.mxu0 0.0
        %3738 = vmatprep.subr.mxu0 0.0
        %3739 = vmatpush1.msra.mxu0 0.0
        %3740 = vmatprep.subr.mxu0 0.0
        %3741 = vmatpush1.msra.mxu0 0.0
        %3742 = vmatprep.subr.mxu0 0.0
        %3743 = vmatpush1.msra.mxu0 0.0
        %3744 = vmatprep.subr.mxu0 0.0
        %3745 = vmatpush1.msra.mxu0 0.0
        %3746 = vmatprep.subr.mxu0 0.0
        %3747 = vmatpush1.msra.mxu0 0.0
        %3748 = vmatprep.subr.mxu0 0.0
        %3749 = vmatpush1.msra.mxu0 0.0
        %3750 = vmatprep.subr.mxu0 0.0
        %3751 = vmatpush1.msra.mxu0 0.0
        %3752 = vmatprep.subr.mxu0 0.0
        %3753 = vmatpush1.msra.mxu0 0.0
        %3754 = vmatprep.subr.mxu0 0.0
        %3755 = vmatpush1.msra.mxu0 0.0
        %3756 = vmatprep.subr.mxu0 0.0
        %3757 = vmatpush1.msra.mxu0 0.0
        %3758 = vmatprep.subr.mxu0 0.0
        %3759 = vmatpush1.msra.mxu0 0.0
        %3760 = vmatprep.subr.mxu0 0.0
        %3761 = vmatpush1.msra.mxu0 0.0
        %3762 = vmatprep.subr.mxu0 0.0
        %3763 = vmatpush1.msra.mxu0 0.0
        %3764 = vmatprep.subr.mxu0 0.0
        %3765 = vmatpush1.msra.mxu0 0.0
        %3766 = vmatprep.mubr.f32.mxu0 0.0
        %3767 = vmatmul.mubr.f32.gmra.mrb[0].mxu0 %v3652
        %v3768 = vpop.f32.mrb[0].mxu0
        %v3769 = vadd.f32 0.0, %v3768
        %v3770 = vpop.f32.mrb[0].mxu0
        %3771 = vmatprep.mubr.f32.mxu0 0.0
        %3772 = vmatmul.mubr.f32.gmra.mrb[0].mxu0 %v3655
        %v3773 = vpop.f32.mrb[0].mxu0
        %v3774 = vadd.f32 0.0, %v3773
        %v3775 = vpop.f32.mrb[0].mxu0
        %3776 = vmatprep.mubr.f32.mxu0 0.0
        %3777 = vmatmul.mubr.f32.gmra.mrb[0].mxu0 %v3658
        %v3778 = vpop.f32.mrb[0].mxu0
        %v3779 = vadd.f32 0.0, %v3778
        %v3780 = vpop.f32.mrb[0].mxu0
        %3781 = vmatprep.mubr.f32.mxu0 0.0
        %3782 = vmatmul.mubr.f32.gmra.mrb[0].mxu0 %v3661
        %v3783 = vpop.f32.mrb[0].mxu0
        %v3784 = vadd.f32 0.0, %v3783
        %v3785 = vpop.f32.mrb[0].mxu0
        %3786 = vmatprep.mubr.f32.mxu0 0.0
        %3787 = vmatmul.mubr.f32.gmra.mrb[0].mxu0 %v3664
        %v3788 = vpop.f32.mrb[0].mxu0
        %v3789 = vadd.f32 0.0, %v3788
        %v3790 = vpop.f32.mrb[0].mxu0
        %3791 = vmatprep.mubr.f32.mxu0 0.0
        %3792 = vmatmul.mubr.f32.gmra.mrb[0].mxu0 %v3667
        %v3793 = vpop.f32.mrb[0].mxu0
        %v3794 = vadd.f32 0.0, %v3793
        %v3795 = vpop.f32.mrb[0].mxu0
        %3796 = vmatprep.mubr.f32.mxu0 0.0
        %3797 = vmatmul.mubr.f32.gmra.mrb[0].mxu0 %v3670
        %v3798 = vpop.f32.mrb[0].mxu0
        %v3799 = vadd.f32 0.0, %v3798
        %v3800 = vpop.f32.mrb[0].mxu0
        %3801 = vmatprep.mubr.f32.mxu0 0.0
        %3802 = vmatmul.mubr.f32.gmra.mrb[0].mxu0 %v3673
        %v3803 = vpop.f32.mrb[0].mxu0
        %v3804 = vadd.f32 0.0, %v3803
        %v3805 = vpop.f32.mrb[0].mxu0
        %3806 = vmatprep.mubr.f32.mxu0 0.0
        %3807 = vmatmul.mubr.f32.gmra.mrb[0].mxu0 %v3676
        %v3808 = vpop.f32.mrb[0].mxu0
        %v3809 = vadd.f32 0.0, %v3808
        %v3810 = vpop.f32.mrb[0].mxu0
        %3811 = vmatprep.mubr.f32.mxu0 0.0
        %3812 = vmatmul.mubr.f32.gmra.mrb[0].mxu0 %v3679
        %v3813 = vpop.f32.mrb[0].mxu0
        %v3814 = vadd.f32 0.0, %v3813
        %v3815 = vpop.f32.mrb[0].mxu0
        %3816 = vmatprep.mubr.f32.mxu0 0.0
        %3817 = vmatmul.mubr.f32.gmra.mrb[0].mxu0 %v3682
        %v3818 = vpop.f32.mrb[0].mxu0
        %v3819 = vadd.f32 0.0, %v3818
        %v3820 = vpop.f32.mrb[0].mxu0
        %3821 = vmatprep.mubr.f32.mxu0 0.0
        %3822 = vmatmul.mubr.f32.gmra.mrb[0].mxu0 %v3685
        %v3823 = vpop.f32.mrb[0].mxu0
        %v3824 = vadd.f32 0.0, %v3823
        %v3825 = vpop.f32.mrb[0].mxu0
        %3826 = vmatprep.mubr.f32.mxu0 0.0
        %3827 = vmatmul.mubr.f32.gmra.mrb[0].mxu0 %v3688
        %v3828 = vpop.f32.mrb[0].mxu0
        %v3829 = vadd.f32 0.0, %v3828
        %v3830 = vpop.f32.mrb[0].mxu0
        %3831 = vmatprep.mubr.f32.mxu0 0.0
        %3832 = vmatmul.mubr.f32.gmra.mrb[0].mxu0 %v3691
        %v3833 = vpop.f32.mrb[0].mxu0
        %v3834 = vadd.f32 0.0, %v3833
        %v3835 = vpop.f32.mrb[0].mxu0
        %3836 = vmatprep.mubr.f32.mxu0 0.0
        %3837 = vmatmul.mubr.f32.gmra.mrb[0].mxu0 %v3694
        %v3838 = vpop.f32.mrb[0].mxu0
        %v3839 = vadd.f32 0.0, %v3838
        %v3840 = vpop.f32.mrb[0].mxu0
        %3841 = vmatprep.mubr.f32.mxu0 0.0
        %3842 = vmatmul.mubr.f32.gmra.mrb[0].mxu0 %v3697
        %v3843 = vpop.f32.mrb[0].mxu0
        %v3844 = vadd.f32 0.0, %v3843
        %v3845 = vpop.f32.mrb[0].mxu0
        %3846 = vdwg.mxu0
        %v3847 = vadd.f32 %v3608, %v3769
        %v3848 = vadd.f32 %v3609, %v3774
        %v3849 = vadd.f32 %v3610, %v3779
        %v3850 = vadd.f32 %v3611, %v3784
        %v3851 = vadd.f32 %v3612, %v3789
        %v3852 = vadd.f32 %v3613, %v3794
        %v3853 = vadd.f32 %v3614, %v3799
        %v3854 = vadd.f32 %v3615, %v3804
        %v3855 = vadd.f32 %v3616, %v3809
        %v3856 = vadd.f32 %v3617, %v3814
        %v3857 = vadd.f32 %v3618, %v3819
        %v3858 = vadd.f32 %v3619, %v3824
        %v3859 = vadd.f32 %v3620, %v3829
        %v3860 = vadd.f32 %v3621, %v3834
        %v3861 = vadd.f32 %v3622, %v3839
        %v3862 = vadd.f32 %v3623, %v3844
        %v3871 = vrot.slane %v3625, 1
        %v3872 = vrot.slane %v3626, 1
        %v3873 = vsel %vm376, %v3871, %v3872
        %v3874 = vrot.slane %v3627, 1
        %v3875 = vsel %vm376, %v3872, %v3874
        %v3876 = vrot.slane %v3628, 1
        %v3877 = vrot.slane %v3629, 1
        %v3878 = vsel %vm376, %v3876, %v3877
        %v3879 = vrot.slane %v3630, 1
        %v3880 = vsel %vm376, %v3877, %v3879
        %v3881 = vrot.slane %v3631, 1
        %v3882 = vrot.slane %v3632, 1
        %v3883 = vsel %vm376, %v3881, %v3882
        %v3884 = vrot.slane %v3633, 1
        %v3885 = vsel %vm376, %v3882, %v3884
        %v3886 = vrot.slane %v3634, 1
        %v3887 = vrot.slane %v3635, 1
        %v3888 = vsel %vm376, %v3886, %v3887
        %v3889 = vrot.slane %v3636, 1
        %v3890 = vsel %vm376, %v3887, %v3889
        %v3891 = vrot.slane %v3637, 1
        %v3892 = vrot.slane %v3638, 1
        %v3893 = vsel %vm376, %v3891, %v3892
        %v3894 = vrot.slane %v3639, 1
        %v3895 = vsel %vm376, %v3892, %v3894
        %v3896 = vrot.slane %v3640, 1
        %v3897 = vrot.slane %v3641, 1
        %v3898 = vsel %vm376, %v3896, %v3897
        %v3899 = vrot.slane %v3642, 1
        %v3900 = vsel %vm376, %v3897, %v3899
        %v3901 = vrot.slane %v3643, 1
        %v3902 = vrot.slane %v3644, 1
        %v3903 = vsel %vm376, %v3901, %v3902
        %v3904 = vrot.slane %v3645, 1
        %v3905 = vsel %vm376, %v3902, %v3904
        %v3906 = vrot.slane %v3646, 1
        %v3907 = vrot.slane %v3647, 1
        %v3908 = vsel %vm376, %v3906, %v3907
        %v3909 = vrot.slane %v3648, 1
        %v3910 = vsel %vm376, %v3907, %v3909
        %s3911 = scalar_lea.vmem [#allocation8], 16
        %v3912 = vld [vmem:[%s3911] sm:$0xf]
        %v3913 = vsel %vm429, %v3873, 0
        %v3915 = vsel %vm429, %v3875, 0
        %v3917 = vsel %vm429, %v3878, 0
        %v3919 = vsel %vm429, %v3880, 0
        %v3921 = vsel %vm429, %v3883, 0
        %v3923 = vsel %vm429, %v3885, 0
        %v3925 = vsel %vm429, %v3888, 0
        %v3927 = vsel %vm429, %v3890, 0
        %v3929 = vsel %vm429, %v3893, 0
        %v3931 = vsel %vm429, %v3895, 0
        %v3933 = vsel %vm429, %v3898, 0
        %v3935 = vsel %vm429, %v3900, 0
        %v3937 = vsel %vm429, %v3903, 0
        %v3939 = vsel %vm429, %v3905, 0
        %v3941 = vsel %vm429, %v3908, 0
        %v3943 = vsel %vm429, %v3910, 0
        %v3946 = vsel %vm470, %v3912, 0
        %3948 = vmatprep.subr.mxu0 0.0
        %3949 = vmatpush1.msra.mxu0 %v3946
        %3950 = vmatprep.subr.mxu0 0.0
        %3951 = vmatpush1.msra.mxu0 0.0
        %3952 = vmatprep.subr.mxu0 0.0
        %3953 = vmatpush1.msra.mxu0 0.0
        %3954 = vmatprep.subr.mxu0 0.0
        %3955 = vmatpush1.msra.mxu0 0.0
        %3956 = vmatprep.subr.mxu0 0.0
        %3957 = vmatpush1.msra.mxu0 0.0
        %3958 = vmatprep.subr.mxu0 0.0
        %3959 = vmatpush1.msra.mxu0 0.0
        %3960 = vmatprep.subr.mxu0 0.0
        %3961 = vmatpush1.msra.mxu0 0.0
        %3962 = vmatprep.subr.mxu0 0.0
        %3963 = vmatpush1.msra.mxu0 0.0
        %3964 = vmatprep.subr.mxu0 0.0
        %3965 = vmatpush1.msra.mxu0 0.0
        %3966 = vmatprep.subr.mxu0 0.0
        %3967 = vmatpush1.msra.mxu0 0.0
        %3968 = vmatprep.subr.mxu0 0.0
        %3969 = vmatpush1.msra.mxu0 0.0
        %3970 = vmatprep.subr.mxu0 0.0
        %3971 = vmatpush1.msra.mxu0 0.0
        %3972 = vmatprep.subr.mxu0 0.0
        %3973 = vmatpush1.msra.mxu0 0.0
        %3974 = vmatprep.subr.mxu0 0.0
        %3975 = vmatpush1.msra.mxu0 0.0
        %3976 = vmatprep.subr.mxu0 0.0
        %3977 = vmatpush1.msra.mxu0 0.0
        %3978 = vmatprep.subr.mxu0 0.0
        %3979 = vmatpush1.msra.mxu0 0.0
        %3980 = vmatprep.subr.mxu0 0.0
        %3981 = vmatpush1.msra.mxu0 0.0
        %3982 = vmatprep.subr.mxu0 0.0
        %3983 = vmatpush1.msra.mxu0 0.0
        %3984 = vmatprep.subr.mxu0 0.0
        %3985 = vmatpush1.msra.mxu0 0.0
        %3986 = vmatprep.subr.mxu0 0.0
        %3987 = vmatpush1.msra.mxu0 0.0
        %3988 = vmatprep.subr.mxu0 0.0
        %3989 = vmatpush1.msra.mxu0 0.0
        %3990 = vmatprep.subr.mxu0 0.0
        %3991 = vmatpush1.msra.mxu0 0.0
        %3992 = vmatprep.subr.mxu0 0.0
        %3993 = vmatpush1.msra.mxu0 0.0
        %3994 = vmatprep.subr.mxu0 0.0
        %3995 = vmatpush1.msra.mxu0 0.0
        %3996 = vmatprep.subr.mxu0 0.0
        %3997 = vmatpush1.msra.mxu0 0.0
        %3998 = vmatprep.subr.mxu0 0.0
        %3999 = vmatpush1.msra.mxu0 0.0
        %4000 = vmatprep.subr.mxu0 0.0
        %4001 = vmatpush1.msra.mxu0 0.0
        %4002 = vmatprep.subr.mxu0 0.0
        %4003 = vmatpush1.msra.mxu0 0.0
        %4004 = vmatprep.subr.mxu0 0.0
        %4005 = vmatpush1.msra.mxu0 0.0
        %4006 = vmatprep.subr.mxu0 0.0
        %4007 = vmatpush1.msra.mxu0 0.0
        %4008 = vmatprep.subr.mxu0 0.0
        %4009 = vmatpush1.msra.mxu0 0.0
        %4010 = vmatprep.subr.mxu0 0.0
        %4011 = vmatpush1.msra.mxu0 0.0
        %4012 = vmatprep.mubr.f32.mxu0 0.0
        %4013 = vmatmul.mubr.f32.gmra.mrb[0].mxu0 %v3913
        %v4014 = vpop.f32.mrb[0].mxu0
        %v4015 = vadd.f32 0.0, %v4014
        %v4016 = vpop.f32.mrb[0].mxu0
        %4017 = vmatprep.mubr.f32.mxu0 0.0
        %4018 = vmatmul.mubr.f32.gmra.mrb[0].mxu0 %v3915
        %v4019 = vpop.f32.mrb[0].mxu0
        %v4020 = vadd.f32 0.0, %v4019
        %v4021 = vpop.f32.mrb[0].mxu0
        %4022 = vmatprep.mubr.f32.mxu0 0.0
        %4023 = vmatmul.mubr.f32.gmra.mrb[0].mxu0 %v3917
        %v4024 = vpop.f32.mrb[0].mxu0
        %v4025 = vadd.f32 0.0, %v4024
        %v4026 = vpop.f32.mrb[0].mxu0
        %4027 = vmatprep.mubr.f32.mxu0 0.0
        %4028 = vmatmul.mubr.f32.gmra.mrb[0].mxu0 %v3919
        %v4029 = vpop.f32.mrb[0].mxu0
        %v4030 = vadd.f32 0.0, %v4029
        %v4031 = vpop.f32.mrb[0].mxu0
        %4032 = vmatprep.mubr.f32.mxu0 0.0
        %4033 = vmatmul.mubr.f32.gmra.mrb[0].mxu0 %v3921
        %v4034 = vpop.f32.mrb[0].mxu0
        %v4035 = vadd.f32 0.0, %v4034
        %v4036 = vpop.f32.mrb[0].mxu0
        %4037 = vmatprep.mubr.f32.mxu0 0.0
        %4038 = vmatmul.mubr.f32.gmra.mrb[0].mxu0 %v3923
        %v4039 = vpop.f32.mrb[0].mxu0
        %v4040 = vadd.f32 0.0, %v4039
        %v4041 = vpop.f32.mrb[0].mxu0
        %4042 = vmatprep.mubr.f32.mxu0 0.0
        %4043 = vmatmul.mubr.f32.gmra.mrb[0].mxu0 %v3925
        %v4044 = vpop.f32.mrb[0].mxu0
        %v4045 = vadd.f32 0.0, %v4044
        %v4046 = vpop.f32.mrb[0].mxu0
        %4047 = vmatprep.mubr.f32.mxu0 0.0
        %4048 = vmatmul.mubr.f32.gmra.mrb[0].mxu0 %v3927
        %v4049 = vpop.f32.mrb[0].mxu0
        %v4050 = vadd.f32 0.0, %v4049
        %v4051 = vpop.f32.mrb[0].mxu0
        %4052 = vmatprep.mubr.f32.mxu0 0.0
        %4053 = vmatmul.mubr.f32.gmra.mrb[0].mxu0 %v3929
        %v4054 = vpop.f32.mrb[0].mxu0
        %v4055 = vadd.f32 0.0, %v4054
        %v4056 = vpop.f32.mrb[0].mxu0
        %4057 = vmatprep.mubr.f32.mxu0 0.0
        %4058 = vmatmul.mubr.f32.gmra.mrb[0].mxu0 %v3931
        %v4059 = vpop.f32.mrb[0].mxu0
        %v4060 = vadd.f32 0.0, %v4059
        %v4061 = vpop.f32.mrb[0].mxu0
        %4062 = vmatprep.mubr.f32.mxu0 0.0
        %4063 = vmatmul.mubr.f32.gmra.mrb[0].mxu0 %v3933
        %v4064 = vpop.f32.mrb[0].mxu0
        %v4065 = vadd.f32 0.0, %v4064
        %v4066 = vpop.f32.mrb[0].mxu0
        %4067 = vmatprep.mubr.f32.mxu0 0.0
        %4068 = vmatmul.mubr.f32.gmra.mrb[0].mxu0 %v3935
        %v4069 = vpop.f32.mrb[0].mxu0
        %v4070 = vadd.f32 0.0, %v4069
        %v4071 = vpop.f32.mrb[0].mxu0
        %4072 = vmatprep.mubr.f32.mxu0 0.0
        %4073 = vmatmul.mubr.f32.gmra.mrb[0].mxu0 %v3937
        %v4074 = vpop.f32.mrb[0].mxu0
        %v4075 = vadd.f32 0.0, %v4074
        %v4076 = vpop.f32.mrb[0].mxu0
        %4077 = vmatprep.mubr.f32.mxu0 0.0
        %4078 = vmatmul.mubr.f32.gmra.mrb[0].mxu0 %v3939
        %v4079 = vpop.f32.mrb[0].mxu0
        %v4080 = vadd.f32 0.0, %v4079
        %v4081 = vpop.f32.mrb[0].mxu0
        %4082 = vmatprep.mubr.f32.mxu0 0.0
        %4083 = vmatmul.mubr.f32.gmra.mrb[0].mxu0 %v3941
        %v4084 = vpop.f32.mrb[0].mxu0
        %v4085 = vadd.f32 0.0, %v4084
        %v4086 = vpop.f32.mrb[0].mxu0
        %4087 = vmatprep.mubr.f32.mxu0 0.0
        %4088 = vmatmul.mubr.f32.gmra.mrb[0].mxu0 %v3943
        %v4089 = vpop.f32.mrb[0].mxu0
        %v4090 = vadd.f32 0.0, %v4089
        %v4091 = vpop.f32.mrb[0].mxu0
        %4092 = vdwg.mxu0
        %v4093 = vadd.f32 %v3847, %v4015
        %v4094 = vadd.f32 %v3848, %v4020
        %v4095 = vadd.f32 %v3849, %v4025
        %v4096 = vadd.f32 %v3850, %v4030
        %v4097 = vadd.f32 %v3851, %v4035
        %v4098 = vadd.f32 %v3852, %v4040
        %v4099 = vadd.f32 %v3853, %v4045
        %v4100 = vadd.f32 %v3854, %v4050
        %v4101 = vadd.f32 %v3855, %v4055
        %v4102 = vadd.f32 %v3856, %v4060
        %v4103 = vadd.f32 %v3857, %v4065
        %v4104 = vadd.f32 %v3858, %v4070
        %v4105 = vadd.f32 %v3859, %v4075
        %v4106 = vadd.f32 %v3860, %v4080
        %v4107 = vadd.f32 %v3861, %v4085
        %v4108 = vadd.f32 %v3862, %v4090
        %v4109 = vrot.slane %v3625, 2
        %v4110 = vrot.slane %v3626, 2
        %v4111 = vsel %vm847, %v4109, %v4110
        %v4112 = vrot.slane %v3627, 2
        %v4113 = vsel %vm847, %v4110, %v4112
        %v4114 = vrot.slane %v3628, 2
        %v4115 = vrot.slane %v3629, 2
        %v4116 = vsel %vm847, %v4114, %v4115
        %v4117 = vrot.slane %v3630, 2
        %v4118 = vsel %vm847, %v4115, %v4117
        %v4119 = vrot.slane %v3631, 2
        %v4120 = vrot.slane %v3632, 2
        %v4121 = vsel %vm847, %v4119, %v4120
        %v4122 = vrot.slane %v3633, 2
        %v4123 = vsel %vm847, %v4120, %v4122
        %v4124 = vrot.slane %v3634, 2
        %v4125 = vrot.slane %v3635, 2
        %v4126 = vsel %vm847, %v4124, %v4125
        %v4127 = vrot.slane %v3636, 2
        %v4128 = vsel %vm847, %v4125, %v4127
        %v4129 = vrot.slane %v3637, 2
        %v4130 = vrot.slane %v3638, 2
        %v4131 = vsel %vm847, %v4129, %v4130
        %v4132 = vrot.slane %v3639, 2
        %v4133 = vsel %vm847, %v4130, %v4132
        %v4134 = vrot.slane %v3640, 2
        %v4135 = vrot.slane %v3641, 2
        %v4136 = vsel %vm847, %v4134, %v4135
        %v4137 = vrot.slane %v3642, 2
        %v4138 = vsel %vm847, %v4135, %v4137
        %v4139 = vrot.slane %v3643, 2
        %v4140 = vrot.slane %v3644, 2
        %v4141 = vsel %vm847, %v4139, %v4140
        %v4142 = vrot.slane %v3645, 2
        %v4143 = vsel %vm847, %v4140, %v4142
        %v4144 = vrot.slane %v3646, 2
        %v4145 = vrot.slane %v3647, 2
        %v4146 = vsel %vm847, %v4144, %v4145
        %v4147 = vrot.slane %v3648, 2
        %v4148 = vsel %vm847, %v4145, %v4147
        %s4149 = scalar_lea.vmem [#allocation8], 20
        %v4150 = vld [vmem:[%s4149] sm:$0xf]
        %v4151 = vsel %vm429, %v4111, 0
        %v4153 = vsel %vm429, %v4113, 0
        %v4155 = vsel %vm429, %v4116, 0
        %v4157 = vsel %vm429, %v4118, 0
        %v4159 = vsel %vm429, %v4121, 0
        %v4161 = vsel %vm429, %v4123, 0
        %v4163 = vsel %vm429, %v4126, 0
        %v4165 = vsel %vm429, %v4128, 0
        %v4167 = vsel %vm429, %v4131, 0
        %v4169 = vsel %vm429, %v4133, 0
        %v4171 = vsel %vm429, %v4136, 0
        %v4173 = vsel %vm429, %v4138, 0
        %v4175 = vsel %vm429, %v4141, 0
        %v4177 = vsel %vm429, %v4143, 0
        %v4179 = vsel %vm429, %v4146, 0
        %v4181 = vsel %vm429, %v4148, 0
        %v4184 = vsel %vm470, %v4150, 0
        %4186 = vmatprep.subr.mxu0 0.0
        %4187 = vmatpush1.msra.mxu0 %v4184
        %4188 = vmatprep.subr.mxu0 0.0
        %4189 = vmatpush1.msra.mxu0 0.0
        %4190 = vmatprep.subr.mxu0 0.0
        %4191 = vmatpush1.msra.mxu0 0.0
        %4192 = vmatprep.subr.mxu0 0.0
        %4193 = vmatpush1.msra.mxu0 0.0
        %4194 = vmatprep.subr.mxu0 0.0
        %4195 = vmatpush1.msra.mxu0 0.0
        %4196 = vmatprep.subr.mxu0 0.0
        %4197 = vmatpush1.msra.mxu0 0.0
        %4198 = vmatprep.subr.mxu0 0.0
        %4199 = vmatpush1.msra.mxu0 0.0
        %4200 = vmatprep.subr.mxu0 0.0
        %4201 = vmatpush1.msra.mxu0 0.0
        %4202 = vmatprep.subr.mxu0 0.0
        %4203 = vmatpush1.msra.mxu0 0.0
        %4204 = vmatprep.subr.mxu0 0.0
        %4205 = vmatpush1.msra.mxu0 0.0
        %4206 = vmatprep.subr.mxu0 0.0
        %4207 = vmatpush1.msra.mxu0 0.0
        %4208 = vmatprep.subr.mxu0 0.0
        %4209 = vmatpush1.msra.mxu0 0.0
        %4210 = vmatprep.subr.mxu0 0.0
        %4211 = vmatpush1.msra.mxu0 0.0
        %4212 = vmatprep.subr.mxu0 0.0
        %4213 = vmatpush1.msra.mxu0 0.0
        %4214 = vmatprep.subr.mxu0 0.0
        %4215 = vmatpush1.msra.mxu0 0.0
        %4216 = vmatprep.subr.mxu0 0.0
        %4217 = vmatpush1.msra.mxu0 0.0
        %4218 = vmatprep.subr.mxu0 0.0
        %4219 = vmatpush1.msra.mxu0 0.0
        %4220 = vmatprep.subr.mxu0 0.0
        %4221 = vmatpush1.msra.mxu0 0.0
        %4222 = vmatprep.subr.mxu0 0.0
        %4223 = vmatpush1.msra.mxu0 0.0
        %4224 = vmatprep.subr.mxu0 0.0
        %4225 = vmatpush1.msra.mxu0 0.0
        %4226 = vmatprep.subr.mxu0 0.0
        %4227 = vmatpush1.msra.mxu0 0.0
        %4228 = vmatprep.subr.mxu0 0.0
        %4229 = vmatpush1.msra.mxu0 0.0
        %4230 = vmatprep.subr.mxu0 0.0
        %4231 = vmatpush1.msra.mxu0 0.0
        %4232 = vmatprep.subr.mxu0 0.0
        %4233 = vmatpush1.msra.mxu0 0.0
        %4234 = vmatprep.subr.mxu0 0.0
        %4235 = vmatpush1.msra.mxu0 0.0
        %4236 = vmatprep.subr.mxu0 0.0
        %4237 = vmatpush1.msra.mxu0 0.0
        %4238 = vmatprep.subr.mxu0 0.0
        %4239 = vmatpush1.msra.mxu0 0.0
        %4240 = vmatprep.subr.mxu0 0.0
        %4241 = vmatpush1.msra.mxu0 0.0
        %4242 = vmatprep.subr.mxu0 0.0
        %4243 = vmatpush1.msra.mxu0 0.0
        %4244 = vmatprep.subr.mxu0 0.0
        %4245 = vmatpush1.msra.mxu0 0.0
        %4246 = vmatprep.subr.mxu0 0.0
        %4247 = vmatpush1.msra.mxu0 0.0
        %4248 = vmatprep.subr.mxu0 0.0
        %4249 = vmatpush1.msra.mxu0 0.0
        %4250 = vmatprep.mubr.f32.mxu0 0.0
        %4251 = vmatmul.mubr.f32.gmra.mrb[0].mxu0 %v4151
        %v4252 = vpop.f32.mrb[0].mxu0
        %v4253 = vadd.f32 0.0, %v4252
        %v4254 = vpop.f32.mrb[0].mxu0
        %4255 = vmatprep.mubr.f32.mxu0 0.0
        %4256 = vmatmul.mubr.f32.gmra.mrb[0].mxu0 %v4153
        %v4257 = vpop.f32.mrb[0].mxu0
        %v4258 = vadd.f32 0.0, %v4257
        %v4259 = vpop.f32.mrb[0].mxu0
        %4260 = vmatprep.mubr.f32.mxu0 0.0
        %4261 = vmatmul.mubr.f32.gmra.mrb[0].mxu0 %v4155
        %v4262 = vpop.f32.mrb[0].mxu0
        %v4263 = vadd.f32 0.0, %v4262
        %v4264 = vpop.f32.mrb[0].mxu0
        %4265 = vmatprep.mubr.f32.mxu0 0.0
        %4266 = vmatmul.mubr.f32.gmra.mrb[0].mxu0 %v4157
        %v4267 = vpop.f32.mrb[0].mxu0
        %v4268 = vadd.f32 0.0, %v4267
        %v4269 = vpop.f32.mrb[0].mxu0
        %4270 = vmatprep.mubr.f32.mxu0 0.0
        %4271 = vmatmul.mubr.f32.gmra.mrb[0].mxu0 %v4159
        %v4272 = vpop.f32.mrb[0].mxu0
        %v4273 = vadd.f32 0.0, %v4272
        %v4274 = vpop.f32.mrb[0].mxu0
        %4275 = vmatprep.mubr.f32.mxu0 0.0
        %4276 = vmatmul.mubr.f32.gmra.mrb[0].mxu0 %v4161
        %v4277 = vpop.f32.mrb[0].mxu0
        %v4278 = vadd.f32 0.0, %v4277
        %v4279 = vpop.f32.mrb[0].mxu0
        %4280 = vmatprep.mubr.f32.mxu0 0.0
        %4281 = vmatmul.mubr.f32.gmra.mrb[0].mxu0 %v4163
        %v4282 = vpop.f32.mrb[0].mxu0
        %v4283 = vadd.f32 0.0, %v4282
        %v4284 = vpop.f32.mrb[0].mxu0
        %4285 = vmatprep.mubr.f32.mxu0 0.0
        %4286 = vmatmul.mubr.f32.gmra.mrb[0].mxu0 %v4165
        %v4287 = vpop.f32.mrb[0].mxu0
        %v4288 = vadd.f32 0.0, %v4287
        %v4289 = vpop.f32.mrb[0].mxu0
        %4290 = vmatprep.mubr.f32.mxu0 0.0
        %4291 = vmatmul.mubr.f32.gmra.mrb[0].mxu0 %v4167
        %v4292 = vpop.f32.mrb[0].mxu0
        %v4293 = vadd.f32 0.0, %v4292
        %v4294 = vpop.f32.mrb[0].mxu0
        %4295 = vmatprep.mubr.f32.mxu0 0.0
        %4296 = vmatmul.mubr.f32.gmra.mrb[0].mxu0 %v4169
        %v4297 = vpop.f32.mrb[0].mxu0
        %v4298 = vadd.f32 0.0, %v4297
        %v4299 = vpop.f32.mrb[0].mxu0
        %4300 = vmatprep.mubr.f32.mxu0 0.0
        %4301 = vmatmul.mubr.f32.gmra.mrb[0].mxu0 %v4171
        %v4302 = vpop.f32.mrb[0].mxu0
        %v4303 = vadd.f32 0.0, %v4302
        %v4304 = vpop.f32.mrb[0].mxu0
        %4305 = vmatprep.mubr.f32.mxu0 0.0
        %4306 = vmatmul.mubr.f32.gmra.mrb[0].mxu0 %v4173
        %v4307 = vpop.f32.mrb[0].mxu0
        %v4308 = vadd.f32 0.0, %v4307
        %v4309 = vpop.f32.mrb[0].mxu0
        %4310 = vmatprep.mubr.f32.mxu0 0.0
        %4311 = vmatmul.mubr.f32.gmra.mrb[0].mxu0 %v4175
        %v4312 = vpop.f32.mrb[0].mxu0
        %v4313 = vadd.f32 0.0, %v4312
        %v4314 = vpop.f32.mrb[0].mxu0
        %4315 = vmatprep.mubr.f32.mxu0 0.0
        %4316 = vmatmul.mubr.f32.gmra.mrb[0].mxu0 %v4177
        %v4317 = vpop.f32.mrb[0].mxu0
        %v4318 = vadd.f32 0.0, %v4317
        %v4319 = vpop.f32.mrb[0].mxu0
        %4320 = vmatprep.mubr.f32.mxu0 0.0
        %4321 = vmatmul.mubr.f32.gmra.mrb[0].mxu0 %v4179
        %v4322 = vpop.f32.mrb[0].mxu0
        %v4323 = vadd.f32 0.0, %v4322
        %v4324 = vpop.f32.mrb[0].mxu0
        %4325 = vmatprep.mubr.f32.mxu0 0.0
        %4326 = vmatmul.mubr.f32.gmra.mrb[0].mxu0 %v4181
        %v4327 = vpop.f32.mrb[0].mxu0
        %v4328 = vadd.f32 0.0, %v4327
        %v4329 = vpop.f32.mrb[0].mxu0
        %4330 = vdwg.mxu0
        %v4331 = vadd.f32 %v4093, %v4253
        %v4332 = vadd.f32 %v4094, %v4258
        %v4333 = vadd.f32 %v4095, %v4263
        %v4334 = vadd.f32 %v4096, %v4268
        %v4335 = vadd.f32 %v4097, %v4273
        %v4336 = vadd.f32 %v4098, %v4278
        %v4337 = vadd.f32 %v4099, %v4283
        %v4338 = vadd.f32 %v4100, %v4288
        %v4339 = vadd.f32 %v4101, %v4293
        %v4340 = vadd.f32 %v4102, %v4298
        %v4341 = vadd.f32 %v4103, %v4303
        %v4342 = vadd.f32 %v4104, %v4308
        %v4343 = vadd.f32 %v4105, %v4313
        %v4344 = vadd.f32 %v4106, %v4318
        %v4345 = vadd.f32 %v4107, %v4323
        %v4346 = vadd.f32 %v4108, %v4328
        %s4347 = scalar_lea.vmem [#allocation2], 48
        %v4348 = vld [vmem:[%s4347] sm:$0xff]
        %v4349 = vld [vmem:[%s4347 + $0x8] sm:$0xff]
        %v4350 = vld [vmem:[%s4347 + $0x10] sm:$0x3]
        %v4351 = vld [vmem:[%s4347 + $0x18] sm:$0xff]
        %v4352 = vld [vmem:[%s4347 + $0x20] sm:$0xff]
        %v4353 = vld [vmem:[%s4347 + $0x28] sm:$0x3]
        %v4354 = vld [vmem:[%s4347 + $0x30] sm:$0xff]
        %v4355 = vld [vmem:[%s4347 + $0x38] sm:$0xff]
        %v4356 = vld [vmem:[%s4347 + $0x40] sm:$0x3]
        %v4357 = vld [vmem:[%s4347 + $0x48] sm:$0xff]
        %v4358 = vld [vmem:[%s4347 + $0x50] sm:$0xff]
        %v4359 = vld [vmem:[%s4347 + $0x58] sm:$0x3]
        %v4360 = vld [vmem:[%s4347 + $0x60] sm:$0xff]
        %v4361 = vld [vmem:[%s4347 + $0x68] sm:$0xff]
        %v4362 = vld [vmem:[%s4347 + $0x70] sm:$0x3]
        %v4363 = vld [vmem:[%s4347 + $0x78] sm:$0xff]
        %v4364 = vld [vmem:[%s4347 + $0x80] sm:$0xff]
        %v4365 = vld [vmem:[%s4347 + $0x88] sm:$0x3]
        %v4366 = vld [vmem:[%s4347 + $0x90] sm:$0xff]
        %v4367 = vld [vmem:[%s4347 + $0x98] sm:$0xff]
        %v4368 = vld [vmem:[%s4347 + $0xa0] sm:$0x3]
        %v4369 = vld [vmem:[%s4347 + $0xa8] sm:$0xff]
        %v4370 = vld [vmem:[%s4347 + $0xb0] sm:$0xff]
        %v4371 = vld [vmem:[%s4347 + $0xb8] sm:$0x3]
        %s4372 = scalar_lea.vmem [#allocation8], 24
        %v4373 = vld [vmem:[%s4372] sm:$0xf]
        %v4375 = vsel %vm429, %v4348, 0
        %v4378 = vsel %vm429, %v4349, 0
        %v4381 = vsel %vm429, %v4351, 0
        %v4384 = vsel %vm429, %v4352, 0
        %v4387 = vsel %vm429, %v4354, 0
        %v4390 = vsel %vm429, %v4355, 0
        %v4393 = vsel %vm429, %v4357, 0
        %v4396 = vsel %vm429, %v4358, 0
        %v4399 = vsel %vm429, %v4360, 0
        %v4402 = vsel %vm429, %v4361, 0
        %v4405 = vsel %vm429, %v4363, 0
        %v4408 = vsel %vm429, %v4364, 0
        %v4411 = vsel %vm429, %v4366, 0
        %v4414 = vsel %vm429, %v4367, 0
        %v4417 = vsel %vm429, %v4369, 0
        %v4420 = vsel %vm429, %v4370, 0
        %v4423 = vsel %vm470, %v4373, 0
        %4425 = vmatprep.subr.mxu0 0.0
        %4426 = vmatpush1.msra.mxu0 %v4423
        %4427 = vmatprep.subr.mxu0 0.0
        %4428 = vmatpush1.msra.mxu0 0.0
        %4429 = vmatprep.subr.mxu0 0.0
        %4430 = vmatpush1.msra.mxu0 0.0
        %4431 = vmatprep.subr.mxu0 0.0
        %4432 = vmatpush1.msra.mxu0 0.0
        %4433 = vmatprep.subr.mxu0 0.0
        %4434 = vmatpush1.msra.mxu0 0.0
        %4435 = vmatprep.subr.mxu0 0.0
        %4436 = vmatpush1.msra.mxu0 0.0
        %4437 = vmatprep.subr.mxu0 0.0
        %4438 = vmatpush1.msra.mxu0 0.0
        %4439 = vmatprep.subr.mxu0 0.0
        %4440 = vmatpush1.msra.mxu0 0.0
        %4441 = vmatprep.subr.mxu0 0.0
        %4442 = vmatpush1.msra.mxu0 0.0
        %4443 = vmatprep.subr.mxu0 0.0
        %4444 = vmatpush1.msra.mxu0 0.0
        %4445 = vmatprep.subr.mxu0 0.0
        %4446 = vmatpush1.msra.mxu0 0.0
        %4447 = vmatprep.subr.mxu0 0.0
        %4448 = vmatpush1.msra.mxu0 0.0
        %4449 = vmatprep.subr.mxu0 0.0
        %4450 = vmatpush1.msra.mxu0 0.0
        %4451 = vmatprep.subr.mxu0 0.0
        %4452 = vmatpush1.msra.mxu0 0.0
        %4453 = vmatprep.subr.mxu0 0.0
        %4454 = vmatpush1.msra.mxu0 0.0
        %4455 = vmatprep.subr.mxu0 0.0
        %4456 = vmatpush1.msra.mxu0 0.0
        %4457 = vmatprep.subr.mxu0 0.0
        %4458 = vmatpush1.msra.mxu0 0.0
        %4459 = vmatprep.subr.mxu0 0.0
        %4460 = vmatpush1.msra.mxu0 0.0
        %4461 = vmatprep.subr.mxu0 0.0
        %4462 = vmatpush1.msra.mxu0 0.0
        %4463 = vmatprep.subr.mxu0 0.0
        %4464 = vmatpush1.msra.mxu0 0.0
        %4465 = vmatprep.subr.mxu0 0.0
        %4466 = vmatpush1.msra.mxu0 0.0
        %4467 = vmatprep.subr.mxu0 0.0
        %4468 = vmatpush1.msra.mxu0 0.0
        %4469 = vmatprep.subr.mxu0 0.0
        %4470 = vmatpush1.msra.mxu0 0.0
        %4471 = vmatprep.subr.mxu0 0.0
        %4472 = vmatpush1.msra.mxu0 0.0
        %4473 = vmatprep.subr.mxu0 0.0
        %4474 = vmatpush1.msra.mxu0 0.0
        %4475 = vmatprep.subr.mxu0 0.0
        %4476 = vmatpush1.msra.mxu0 0.0
        %4477 = vmatprep.subr.mxu0 0.0
        %4478 = vmatpush1.msra.mxu0 0.0
        %4479 = vmatprep.subr.mxu0 0.0
        %4480 = vmatpush1.msra.mxu0 0.0
        %4481 = vmatprep.subr.mxu0 0.0
        %4482 = vmatpush1.msra.mxu0 0.0
        %4483 = vmatprep.subr.mxu0 0.0
        %4484 = vmatpush1.msra.mxu0 0.0
        %4485 = vmatprep.subr.mxu0 0.0
        %4486 = vmatpush1.msra.mxu0 0.0
        %4487 = vmatprep.subr.mxu0 0.0
        %4488 = vmatpush1.msra.mxu0 0.0
        %4489 = vmatprep.mubr.f32.mxu0 0.0
        %4490 = vmatmul.mubr.f32.gmra.mrb[0].mxu0 %v4375
        %v4491 = vpop.f32.mrb[0].mxu0
        %v4492 = vadd.f32 0.0, %v4491
        %v4493 = vpop.f32.mrb[0].mxu0
        %4494 = vmatprep.mubr.f32.mxu0 0.0
        %4495 = vmatmul.mubr.f32.gmra.mrb[0].mxu0 %v4378
        %v4496 = vpop.f32.mrb[0].mxu0
        %v4497 = vadd.f32 0.0, %v4496
        %v4498 = vpop.f32.mrb[0].mxu0
        %4499 = vmatprep.mubr.f32.mxu0 0.0
        %4500 = vmatmul.mubr.f32.gmra.mrb[0].mxu0 %v4381
        %v4501 = vpop.f32.mrb[0].mxu0
        %v4502 = vadd.f32 0.0, %v4501
        %v4503 = vpop.f32.mrb[0].mxu0
        %4504 = vmatprep.mubr.f32.mxu0 0.0
        %4505 = vmatmul.mubr.f32.gmra.mrb[0].mxu0 %v4384
        %v4506 = vpop.f32.mrb[0].mxu0
        %v4507 = vadd.f32 0.0, %v4506
        %v4508 = vpop.f32.mrb[0].mxu0
        %4509 = vmatprep.mubr.f32.mxu0 0.0
        %4510 = vmatmul.mubr.f32.gmra.mrb[0].mxu0 %v4387
        %v4511 = vpop.f32.mrb[0].mxu0
        %v4512 = vadd.f32 0.0, %v4511
        %v4513 = vpop.f32.mrb[0].mxu0
        %4514 = vmatprep.mubr.f32.mxu0 0.0
        %4515 = vmatmul.mubr.f32.gmra.mrb[0].mxu0 %v4390
        %v4516 = vpop.f32.mrb[0].mxu0
        %v4517 = vadd.f32 0.0, %v4516
        %v4518 = vpop.f32.mrb[0].mxu0
        %4519 = vmatprep.mubr.f32.mxu0 0.0
        %4520 = vmatmul.mubr.f32.gmra.mrb[0].mxu0 %v4393
        %v4521 = vpop.f32.mrb[0].mxu0
        %v4522 = vadd.f32 0.0, %v4521
        %v4523 = vpop.f32.mrb[0].mxu0
        %4524 = vmatprep.mubr.f32.mxu0 0.0
        %4525 = vmatmul.mubr.f32.gmra.mrb[0].mxu0 %v4396
        %v4526 = vpop.f32.mrb[0].mxu0
        %v4527 = vadd.f32 0.0, %v4526
        %v4528 = vpop.f32.mrb[0].mxu0
        %4529 = vmatprep.mubr.f32.mxu0 0.0
        %4530 = vmatmul.mubr.f32.gmra.mrb[0].mxu0 %v4399
        %v4531 = vpop.f32.mrb[0].mxu0
        %v4532 = vadd.f32 0.0, %v4531
        %v4533 = vpop.f32.mrb[0].mxu0
        %4534 = vmatprep.mubr.f32.mxu0 0.0
        %4535 = vmatmul.mubr.f32.gmra.mrb[0].mxu0 %v4402
        %v4536 = vpop.f32.mrb[0].mxu0
        %v4537 = vadd.f32 0.0, %v4536
        %v4538 = vpop.f32.mrb[0].mxu0
        %4539 = vmatprep.mubr.f32.mxu0 0.0
        %4540 = vmatmul.mubr.f32.gmra.mrb[0].mxu0 %v4405
        %v4541 = vpop.f32.mrb[0].mxu0
        %v4542 = vadd.f32 0.0, %v4541
        %v4543 = vpop.f32.mrb[0].mxu0
        %4544 = vmatprep.mubr.f32.mxu0 0.0
        %4545 = vmatmul.mubr.f32.gmra.mrb[0].mxu0 %v4408
        %v4546 = vpop.f32.mrb[0].mxu0
        %v4547 = vadd.f32 0.0, %v4546
        %v4548 = vpop.f32.mrb[0].mxu0
        %4549 = vmatprep.mubr.f32.mxu0 0.0
        %4550 = vmatmul.mubr.f32.gmra.mrb[0].mxu0 %v4411
        %v4551 = vpop.f32.mrb[0].mxu0
        %v4552 = vadd.f32 0.0, %v4551
        %v4553 = vpop.f32.mrb[0].mxu0
        %4554 = vmatprep.mubr.f32.mxu0 0.0
        %4555 = vmatmul.mubr.f32.gmra.mrb[0].mxu0 %v4414
        %v4556 = vpop.f32.mrb[0].mxu0
        %v4557 = vadd.f32 0.0, %v4556
        %v4558 = vpop.f32.mrb[0].mxu0
        %4559 = vmatprep.mubr.f32.mxu0 0.0
        %4560 = vmatmul.mubr.f32.gmra.mrb[0].mxu0 %v4417
        %v4561 = vpop.f32.mrb[0].mxu0
        %v4562 = vadd.f32 0.0, %v4561
        %v4563 = vpop.f32.mrb[0].mxu0
        %4564 = vmatprep.mubr.f32.mxu0 0.0
        %4565 = vmatmul.mubr.f32.gmra.mrb[0].mxu0 %v4420
        %v4566 = vpop.f32.mrb[0].mxu0
        %v4567 = vadd.f32 0.0, %v4566
        %v4568 = vpop.f32.mrb[0].mxu0
        %4569 = vdwg.mxu0
        %v4570 = vadd.f32 %v4331, %v4492
        %v4571 = vadd.f32 %v4332, %v4497
        %v4572 = vadd.f32 %v4333, %v4502
        %v4573 = vadd.f32 %v4334, %v4507
        %v4574 = vadd.f32 %v4335, %v4512
        %v4575 = vadd.f32 %v4336, %v4517
        %v4576 = vadd.f32 %v4337, %v4522
        %v4577 = vadd.f32 %v4338, %v4527
        %v4578 = vadd.f32 %v4339, %v4532
        %v4579 = vadd.f32 %v4340, %v4537
        %v4580 = vadd.f32 %v4341, %v4542
        %v4581 = vadd.f32 %v4342, %v4547
        %v4582 = vadd.f32 %v4343, %v4552
        %v4583 = vadd.f32 %v4344, %v4557
        %v4584 = vadd.f32 %v4345, %v4562
        %v4585 = vadd.f32 %v4346, %v4567
        %v4594 = vrot.slane %v4348, 1
        %v4595 = vrot.slane %v4349, 1
        %v4596 = vsel %vm376, %v4594, %v4595
        %v4597 = vrot.slane %v4350, 1
        %v4598 = vsel %vm376, %v4595, %v4597
        %v4599 = vrot.slane %v4351, 1
        %v4600 = vrot.slane %v4352, 1
        %v4601 = vsel %vm376, %v4599, %v4600
        %v4602 = vrot.slane %v4353, 1
        %v4603 = vsel %vm376, %v4600, %v4602
        %v4604 = vrot.slane %v4354, 1
        %v4605 = vrot.slane %v4355, 1
        %v4606 = vsel %vm376, %v4604, %v4605
        %v4607 = vrot.slane %v4356, 1
        %v4608 = vsel %vm376, %v4605, %v4607
        %v4609 = vrot.slane %v4357, 1
        %v4610 = vrot.slane %v4358, 1
        %v4611 = vsel %vm376, %v4609, %v4610
        %v4612 = vrot.slane %v4359, 1
        %v4613 = vsel %vm376, %v4610, %v4612
        %v4614 = vrot.slane %v4360, 1
        %v4615 = vrot.slane %v4361, 1
        %v4616 = vsel %vm376, %v4614, %v4615
        %v4617 = vrot.slane %v4362, 1
        %v4618 = vsel %vm376, %v4615, %v4617
        %v4619 = vrot.slane %v4363, 1
        %v4620 = vrot.slane %v4364, 1
        %v4621 = vsel %vm376, %v4619, %v4620
        %v4622 = vrot.slane %v4365, 1
        %v4623 = vsel %vm376, %v4620, %v4622
        %v4624 = vrot.slane %v4366, 1
        %v4625 = vrot.slane %v4367, 1
        %v4626 = vsel %vm376, %v4624, %v4625
        %v4627 = vrot.slane %v4368, 1
        %v4628 = vsel %vm376, %v4625, %v4627
        %v4629 = vrot.slane %v4369, 1
        %v4630 = vrot.slane %v4370, 1
        %v4631 = vsel %vm376, %v4629, %v4630
        %v4632 = vrot.slane %v4371, 1
        %v4633 = vsel %vm376, %v4630, %v4632
        %s4634 = scalar_lea.vmem [#allocation8], 28
        %v4635 = vld [vmem:[%s4634] sm:$0xf]
        %v4636 = vsel %vm429, %v4596, 0
        %v4638 = vsel %vm429, %v4598, 0
        %v4640 = vsel %vm429, %v4601, 0
        %v4642 = vsel %vm429, %v4603, 0
        %v4644 = vsel %vm429, %v4606, 0
        %v4646 = vsel %vm429, %v4608, 0
        %v4648 = vsel %vm429, %v4611, 0
        %v4650 = vsel %vm429, %v4613, 0
        %v4652 = vsel %vm429, %v4616, 0
        %v4654 = vsel %vm429, %v4618, 0
        %v4656 = vsel %vm429, %v4621, 0
        %v4658 = vsel %vm429, %v4623, 0
        %v4660 = vsel %vm429, %v4626, 0
        %v4662 = vsel %vm429, %v4628, 0
        %v4664 = vsel %vm429, %v4631, 0
        %v4666 = vsel %vm429, %v4633, 0
        %v4669 = vsel %vm470, %v4635, 0
        %4671 = vmatprep.subr.mxu0 0.0
        %4672 = vmatpush1.msra.mxu0 %v4669
        %4673 = vmatprep.subr.mxu0 0.0
        %4674 = vmatpush1.msra.mxu0 0.0
        %4675 = vmatprep.subr.mxu0 0.0
        %4676 = vmatpush1.msra.mxu0 0.0
        %4677 = vmatprep.subr.mxu0 0.0
        %4678 = vmatpush1.msra.mxu0 0.0
        %4679 = vmatprep.subr.mxu0 0.0
        %4680 = vmatpush1.msra.mxu0 0.0
        %4681 = vmatprep.subr.mxu0 0.0
        %4682 = vmatpush1.msra.mxu0 0.0
        %4683 = vmatprep.subr.mxu0 0.0
        %4684 = vmatpush1.msra.mxu0 0.0
        %4685 = vmatprep.subr.mxu0 0.0
        %4686 = vmatpush1.msra.mxu0 0.0
        %4687 = vmatprep.subr.mxu0 0.0
        %4688 = vmatpush1.msra.mxu0 0.0
        %4689 = vmatprep.subr.mxu0 0.0
        %4690 = vmatpush1.msra.mxu0 0.0
        %4691 = vmatprep.subr.mxu0 0.0
        %4692 = vmatpush1.msra.mxu0 0.0
        %4693 = vmatprep.subr.mxu0 0.0
        %4694 = vmatpush1.msra.mxu0 0.0
        %4695 = vmatprep.subr.mxu0 0.0
        %4696 = vmatpush1.msra.mxu0 0.0
        %4697 = vmatprep.subr.mxu0 0.0
        %4698 = vmatpush1.msra.mxu0 0.0
        %4699 = vmatprep.subr.mxu0 0.0
        %4700 = vmatpush1.msra.mxu0 0.0
        %4701 = vmatprep.subr.mxu0 0.0
        %4702 = vmatpush1.msra.mxu0 0.0
        %4703 = vmatprep.subr.mxu0 0.0
        %4704 = vmatpush1.msra.mxu0 0.0
        %4705 = vmatprep.subr.mxu0 0.0
        %4706 = vmatpush1.msra.mxu0 0.0
        %4707 = vmatprep.subr.mxu0 0.0
        %4708 = vmatpush1.msra.mxu0 0.0
        %4709 = vmatprep.subr.mxu0 0.0
        %4710 = vmatpush1.msra.mxu0 0.0
        %4711 = vmatprep.subr.mxu0 0.0
        %4712 = vmatpush1.msra.mxu0 0.0
        %4713 = vmatprep.subr.mxu0 0.0
        %4714 = vmatpush1.msra.mxu0 0.0
        %4715 = vmatprep.subr.mxu0 0.0
        %4716 = vmatpush1.msra.mxu0 0.0
        %4717 = vmatprep.subr.mxu0 0.0
        %4718 = vmatpush1.msra.mxu0 0.0
        %4719 = vmatprep.subr.mxu0 0.0
        %4720 = vmatpush1.msra.mxu0 0.0
        %4721 = vmatprep.subr.mxu0 0.0
        %4722 = vmatpush1.msra.mxu0 0.0
        %4723 = vmatprep.subr.mxu0 0.0
        %4724 = vmatpush1.msra.mxu0 0.0
        %4725 = vmatprep.subr.mxu0 0.0
        %4726 = vmatpush1.msra.mxu0 0.0
        %4727 = vmatprep.subr.mxu0 0.0
        %4728 = vmatpush1.msra.mxu0 0.0
        %4729 = vmatprep.subr.mxu0 0.0
        %4730 = vmatpush1.msra.mxu0 0.0
        %4731 = vmatprep.subr.mxu0 0.0
        %4732 = vmatpush1.msra.mxu0 0.0
        %4733 = vmatprep.subr.mxu0 0.0
        %4734 = vmatpush1.msra.mxu0 0.0
        %4735 = vmatprep.mubr.f32.mxu0 0.0
        %4736 = vmatmul.mubr.f32.gmra.mrb[0].mxu0 %v4636
        %v4737 = vpop.f32.mrb[0].mxu0
        %v4738 = vadd.f32 0.0, %v4737
        %v4739 = vpop.f32.mrb[0].mxu0
        %4740 = vmatprep.mubr.f32.mxu0 0.0
        %4741 = vmatmul.mubr.f32.gmra.mrb[0].mxu0 %v4638
        %v4742 = vpop.f32.mrb[0].mxu0
        %v4743 = vadd.f32 0.0, %v4742
        %v4744 = vpop.f32.mrb[0].mxu0
        %4745 = vmatprep.mubr.f32.mxu0 0.0
        %4746 = vmatmul.mubr.f32.gmra.mrb[0].mxu0 %v4640
        %v4747 = vpop.f32.mrb[0].mxu0
        %v4748 = vadd.f32 0.0, %v4747
        %v4749 = vpop.f32.mrb[0].mxu0
        %4750 = vmatprep.mubr.f32.mxu0 0.0
        %4751 = vmatmul.mubr.f32.gmra.mrb[0].mxu0 %v4642
        %v4752 = vpop.f32.mrb[0].mxu0
        %v4753 = vadd.f32 0.0, %v4752
        %v4754 = vpop.f32.mrb[0].mxu0
        %4755 = vmatprep.mubr.f32.mxu0 0.0
        %4756 = vmatmul.mubr.f32.gmra.mrb[0].mxu0 %v4644
        %v4757 = vpop.f32.mrb[0].mxu0
        %v4758 = vadd.f32 0.0, %v4757
        %v4759 = vpop.f32.mrb[0].mxu0
        %4760 = vmatprep.mubr.f32.mxu0 0.0
        %4761 = vmatmul.mubr.f32.gmra.mrb[0].mxu0 %v4646
        %v4762 = vpop.f32.mrb[0].mxu0
        %v4763 = vadd.f32 0.0, %v4762
        %v4764 = vpop.f32.mrb[0].mxu0
        %4765 = vmatprep.mubr.f32.mxu0 0.0
        %4766 = vmatmul.mubr.f32.gmra.mrb[0].mxu0 %v4648
        %v4767 = vpop.f32.mrb[0].mxu0
        %v4768 = vadd.f32 0.0, %v4767
        %v4769 = vpop.f32.mrb[0].mxu0
        %4770 = vmatprep.mubr.f32.mxu0 0.0
        %4771 = vmatmul.mubr.f32.gmra.mrb[0].mxu0 %v4650
        %v4772 = vpop.f32.mrb[0].mxu0
        %v4773 = vadd.f32 0.0, %v4772
        %v4774 = vpop.f32.mrb[0].mxu0
        %4775 = vmatprep.mubr.f32.mxu0 0.0
        %4776 = vmatmul.mubr.f32.gmra.mrb[0].mxu0 %v4652
        %v4777 = vpop.f32.mrb[0].mxu0
        %v4778 = vadd.f32 0.0, %v4777
        %v4779 = vpop.f32.mrb[0].mxu0
        %4780 = vmatprep.mubr.f32.mxu0 0.0
        %4781 = vmatmul.mubr.f32.gmra.mrb[0].mxu0 %v4654
        %v4782 = vpop.f32.mrb[0].mxu0
        %v4783 = vadd.f32 0.0, %v4782
        %v4784 = vpop.f32.mrb[0].mxu0
        %4785 = vmatprep.mubr.f32.mxu0 0.0
        %4786 = vmatmul.mubr.f32.gmra.mrb[0].mxu0 %v4656
        %v4787 = vpop.f32.mrb[0].mxu0
        %v4788 = vadd.f32 0.0, %v4787
        %v4789 = vpop.f32.mrb[0].mxu0
        %4790 = vmatprep.mubr.f32.mxu0 0.0
        %4791 = vmatmul.mubr.f32.gmra.mrb[0].mxu0 %v4658
        %v4792 = vpop.f32.mrb[0].mxu0
        %v4793 = vadd.f32 0.0, %v4792
        %v4794 = vpop.f32.mrb[0].mxu0
        %4795 = vmatprep.mubr.f32.mxu0 0.0
        %4796 = vmatmul.mubr.f32.gmra.mrb[0].mxu0 %v4660
        %v4797 = vpop.f32.mrb[0].mxu0
        %v4798 = vadd.f32 0.0, %v4797
        %v4799 = vpop.f32.mrb[0].mxu0
        %4800 = vmatprep.mubr.f32.mxu0 0.0
        %4801 = vmatmul.mubr.f32.gmra.mrb[0].mxu0 %v4662
        %v4802 = vpop.f32.mrb[0].mxu0
        %v4803 = vadd.f32 0.0, %v4802
        %v4804 = vpop.f32.mrb[0].mxu0
        %4805 = vmatprep.mubr.f32.mxu0 0.0
        %4806 = vmatmul.mubr.f32.gmra.mrb[0].mxu0 %v4664
        %v4807 = vpop.f32.mrb[0].mxu0
        %v4808 = vadd.f32 0.0, %v4807
        %v4809 = vpop.f32.mrb[0].mxu0
        %4810 = vmatprep.mubr.f32.mxu0 0.0
        %4811 = vmatmul.mubr.f32.gmra.mrb[0].mxu0 %v4666
        %v4812 = vpop.f32.mrb[0].mxu0
        %v4813 = vadd.f32 0.0, %v4812
        %v4814 = vpop.f32.mrb[0].mxu0
        %4815 = vdwg.mxu0
        %v4816 = vadd.f32 %v4570, %v4738
        %v4817 = vadd.f32 %v4571, %v4743
        %v4818 = vadd.f32 %v4572, %v4748
        %v4819 = vadd.f32 %v4573, %v4753
        %v4820 = vadd.f32 %v4574, %v4758
        %v4821 = vadd.f32 %v4575, %v4763
        %v4822 = vadd.f32 %v4576, %v4768
        %v4823 = vadd.f32 %v4577, %v4773
        %v4824 = vadd.f32 %v4578, %v4778
        %v4825 = vadd.f32 %v4579, %v4783
        %v4826 = vadd.f32 %v4580, %v4788
        %v4827 = vadd.f32 %v4581, %v4793
        %v4828 = vadd.f32 %v4582, %v4798
        %v4829 = vadd.f32 %v4583, %v4803
        %v4830 = vadd.f32 %v4584, %v4808
        %v4831 = vadd.f32 %v4585, %v4813
        %v4832 = vrot.slane %v4348, 2
        %v4833 = vrot.slane %v4349, 2
        %v4834 = vsel %vm847, %v4832, %v4833
        %v4835 = vrot.slane %v4350, 2
        %v4836 = vsel %vm847, %v4833, %v4835
        %v4837 = vrot.slane %v4351, 2
        %v4838 = vrot.slane %v4352, 2
        %v4839 = vsel %vm847, %v4837, %v4838
        %v4840 = vrot.slane %v4353, 2
        %v4841 = vsel %vm847, %v4838, %v4840
        %v4842 = vrot.slane %v4354, 2
        %v4843 = vrot.slane %v4355, 2
        %v4844 = vsel %vm847, %v4842, %v4843
        %v4845 = vrot.slane %v4356, 2
        %v4846 = vsel %vm847, %v4843, %v4845
        %v4847 = vrot.slane %v4357, 2
        %v4848 = vrot.slane %v4358, 2
        %v4849 = vsel %vm847, %v4847, %v4848
        %v4850 = vrot.slane %v4359, 2
        %v4851 = vsel %vm847, %v4848, %v4850
        %v4852 = vrot.slane %v4360, 2
        %v4853 = vrot.slane %v4361, 2
        %v4854 = vsel %vm847, %v4852, %v4853
        %v4855 = vrot.slane %v4362, 2
        %v4856 = vsel %vm847, %v4853, %v4855
        %v4857 = vrot.slane %v4363, 2
        %v4858 = vrot.slane %v4364, 2
        %v4859 = vsel %vm847, %v4857, %v4858
        %v4860 = vrot.slane %v4365, 2
        %v4861 = vsel %vm847, %v4858, %v4860
        %v4862 = vrot.slane %v4366, 2
        %v4863 = vrot.slane %v4367, 2
        %v4864 = vsel %vm847, %v4862, %v4863
        %v4865 = vrot.slane %v4368, 2
        %v4866 = vsel %vm847, %v4863, %v4865
        %v4867 = vrot.slane %v4369, 2
        %v4868 = vrot.slane %v4370, 2
        %v4869 = vsel %vm847, %v4867, %v4868
        %v4870 = vrot.slane %v4371, 2
        %v4871 = vsel %vm847, %v4868, %v4870
        %s4872 = scalar_lea.vmem [#allocation8], 32
        %v4873 = vld [vmem:[%s4872] sm:$0xf]
        %v4874 = vsel %vm429, %v4834, 0
        %v4876 = vsel %vm429, %v4836, 0
        %v4878 = vsel %vm429, %v4839, 0
        %v4880 = vsel %vm429, %v4841, 0
        %v4882 = vsel %vm429, %v4844, 0
        %v4884 = vsel %vm429, %v4846, 0
        %v4886 = vsel %vm429, %v4849, 0
        %v4888 = vsel %vm429, %v4851, 0
        %v4890 = vsel %vm429, %v4854, 0
        %v4892 = vsel %vm429, %v4856, 0
        %v4894 = vsel %vm429, %v4859, 0
        %v4896 = vsel %vm429, %v4861, 0
        %v4898 = vsel %vm429, %v4864, 0
        %v4900 = vsel %vm429, %v4866, 0
        %v4902 = vsel %vm429, %v4869, 0
        %v4904 = vsel %vm429, %v4871, 0
        %v4907 = vsel %vm470, %v4873, 0
        %4909 = vmatprep.subr.mxu0 0.0
        %4910 = vmatpush1.msra.mxu0 %v4907
        %4911 = vmatprep.subr.mxu0 0.0
        %4912 = vmatpush1.msra.mxu0 0.0
        %4913 = vmatprep.subr.mxu0 0.0
        %4914 = vmatpush1.msra.mxu0 0.0
        %4915 = vmatprep.subr.mxu0 0.0
        %4916 = vmatpush1.msra.mxu0 0.0
        %4917 = vmatprep.subr.mxu0 0.0
        %4918 = vmatpush1.msra.mxu0 0.0
        %4919 = vmatprep.subr.mxu0 0.0
        %4920 = vmatpush1.msra.mxu0 0.0
        %4921 = vmatprep.subr.mxu0 0.0
        %4922 = vmatpush1.msra.mxu0 0.0
        %4923 = vmatprep.subr.mxu0 0.0
        %4924 = vmatpush1.msra.mxu0 0.0
        %4925 = vmatprep.subr.mxu0 0.0
        %4926 = vmatpush1.msra.mxu0 0.0
        %4927 = vmatprep.subr.mxu0 0.0
        %4928 = vmatpush1.msra.mxu0 0.0
        %4929 = vmatprep.subr.mxu0 0.0
        %4930 = vmatpush1.msra.mxu0 0.0
        %4931 = vmatprep.subr.mxu0 0.0
        %4932 = vmatpush1.msra.mxu0 0.0
        %4933 = vmatprep.subr.mxu0 0.0
        %4934 = vmatpush1.msra.mxu0 0.0
        %4935 = vmatprep.subr.mxu0 0.0
        %4936 = vmatpush1.msra.mxu0 0.0
        %4937 = vmatprep.subr.mxu0 0.0
        %4938 = vmatpush1.msra.mxu0 0.0
        %4939 = vmatprep.subr.mxu0 0.0
        %4940 = vmatpush1.msra.mxu0 0.0
        %4941 = vmatprep.subr.mxu0 0.0
        %4942 = vmatpush1.msra.mxu0 0.0
        %4943 = vmatprep.subr.mxu0 0.0
        %4944 = vmatpush1.msra.mxu0 0.0
        %4945 = vmatprep.subr.mxu0 0.0
        %4946 = vmatpush1.msra.mxu0 0.0
        %4947 = vmatprep.subr.mxu0 0.0
        %4948 = vmatpush1.msra.mxu0 0.0
        %4949 = vmatprep.subr.mxu0 0.0
        %4950 = vmatpush1.msra.mxu0 0.0
        %4951 = vmatprep.subr.mxu0 0.0
        %4952 = vmatpush1.msra.mxu0 0.0
        %4953 = vmatprep.subr.mxu0 0.0
        %4954 = vmatpush1.msra.mxu0 0.0
        %4955 = vmatprep.subr.mxu0 0.0
        %4956 = vmatpush1.msra.mxu0 0.0
        %4957 = vmatprep.subr.mxu0 0.0
        %4958 = vmatpush1.msra.mxu0 0.0
        %4959 = vmatprep.subr.mxu0 0.0
        %4960 = vmatpush1.msra.mxu0 0.0
        %4961 = vmatprep.subr.mxu0 0.0
        %4962 = vmatpush1.msra.mxu0 0.0
        %4963 = vmatprep.subr.mxu0 0.0
        %4964 = vmatpush1.msra.mxu0 0.0
        %4965 = vmatprep.subr.mxu0 0.0
        %4966 = vmatpush1.msra.mxu0 0.0
        %4967 = vmatprep.subr.mxu0 0.0
        %4968 = vmatpush1.msra.mxu0 0.0
        %4969 = vmatprep.subr.mxu0 0.0
        %4970 = vmatpush1.msra.mxu0 0.0
        %4971 = vmatprep.subr.mxu0 0.0
        %4972 = vmatpush1.msra.mxu0 0.0
        %4973 = vmatprep.mubr.f32.mxu0 0.0
        %4974 = vmatmul.mubr.f32.gmra.mrb[0].mxu0 %v4874
        %v4975 = vpop.f32.mrb[0].mxu0
        %v4976 = vadd.f32 0.0, %v4975
        %v4977 = vpop.f32.mrb[0].mxu0
        %4978 = vmatprep.mubr.f32.mxu0 0.0
        %4979 = vmatmul.mubr.f32.gmra.mrb[0].mxu0 %v4876
        %v4980 = vpop.f32.mrb[0].mxu0
        %v4981 = vadd.f32 0.0, %v4980
        %v4982 = vpop.f32.mrb[0].mxu0
        %4983 = vmatprep.mubr.f32.mxu0 0.0
        %4984 = vmatmul.mubr.f32.gmra.mrb[0].mxu0 %v4878
        %v4985 = vpop.f32.mrb[0].mxu0
        %v4986 = vadd.f32 0.0, %v4985
        %v4987 = vpop.f32.mrb[0].mxu0
        %4988 = vmatprep.mubr.f32.mxu0 0.0
        %4989 = vmatmul.mubr.f32.gmra.mrb[0].mxu0 %v4880
        %v4990 = vpop.f32.mrb[0].mxu0
        %v4991 = vadd.f32 0.0, %v4990
        %v4992 = vpop.f32.mrb[0].mxu0
        %4993 = vmatprep.mubr.f32.mxu0 0.0
        %4994 = vmatmul.mubr.f32.gmra.mrb[0].mxu0 %v4882
        %v4995 = vpop.f32.mrb[0].mxu0
        %v4996 = vadd.f32 0.0, %v4995
        %v4997 = vpop.f32.mrb[0].mxu0
        %4998 = vmatprep.mubr.f32.mxu0 0.0
        %4999 = vmatmul.mubr.f32.gmra.mrb[0].mxu0 %v4884
        %v5000 = vpop.f32.mrb[0].mxu0
        %v5001 = vadd.f32 0.0, %v5000
        %v5002 = vpop.f32.mrb[0].mxu0
        %5003 = vmatprep.mubr.f32.mxu0 0.0
        %5004 = vmatmul.mubr.f32.gmra.mrb[0].mxu0 %v4886
        %v5005 = vpop.f32.mrb[0].mxu0
        %v5006 = vadd.f32 0.0, %v5005
        %v5007 = vpop.f32.mrb[0].mxu0
        %5008 = vmatprep.mubr.f32.mxu0 0.0
        %5009 = vmatmul.mubr.f32.gmra.mrb[0].mxu0 %v4888
        %v5010 = vpop.f32.mrb[0].mxu0
        %v5011 = vadd.f32 0.0, %v5010
        %v5012 = vpop.f32.mrb[0].mxu0
        %5013 = vmatprep.mubr.f32.mxu0 0.0
        %5014 = vmatmul.mubr.f32.gmra.mrb[0].mxu0 %v4890
        %v5015 = vpop.f32.mrb[0].mxu0
        %v5016 = vadd.f32 0.0, %v5015
        %v5017 = vpop.f32.mrb[0].mxu0
        %5018 = vmatprep.mubr.f32.mxu0 0.0
        %5019 = vmatmul.mubr.f32.gmra.mrb[0].mxu0 %v4892
        %v5020 = vpop.f32.mrb[0].mxu0
        %v5021 = vadd.f32 0.0, %v5020
        %v5022 = vpop.f32.mrb[0].mxu0
        %5023 = vmatprep.mubr.f32.mxu0 0.0
        %5024 = vmatmul.mubr.f32.gmra.mrb[0].mxu0 %v4894
        %v5025 = vpop.f32.mrb[0].mxu0
        %v5026 = vadd.f32 0.0, %v5025
        %v5027 = vpop.f32.mrb[0].mxu0
        %5028 = vmatprep.mubr.f32.mxu0 0.0
        %5029 = vmatmul.mubr.f32.gmra.mrb[0].mxu0 %v4896
        %v5030 = vpop.f32.mrb[0].mxu0
        %v5031 = vadd.f32 0.0, %v5030
        %v5032 = vpop.f32.mrb[0].mxu0
        %5033 = vmatprep.mubr.f32.mxu0 0.0
        %5034 = vmatmul.mubr.f32.gmra.mrb[0].mxu0 %v4898
        %v5035 = vpop.f32.mrb[0].mxu0
        %v5036 = vadd.f32 0.0, %v5035
        %v5037 = vpop.f32.mrb[0].mxu0
        %5038 = vmatprep.mubr.f32.mxu0 0.0
        %5039 = vmatmul.mubr.f32.gmra.mrb[0].mxu0 %v4900
        %v5040 = vpop.f32.mrb[0].mxu0
        %v5041 = vadd.f32 0.0, %v5040
        %v5042 = vpop.f32.mrb[0].mxu0
        %5043 = vmatprep.mubr.f32.mxu0 0.0
        %5044 = vmatmul.mubr.f32.gmra.mrb[0].mxu0 %v4902
        %v5045 = vpop.f32.mrb[0].mxu0
        %v5046 = vadd.f32 0.0, %v5045
        %v5047 = vpop.f32.mrb[0].mxu0
        %5048 = vmatprep.mubr.f32.mxu0 0.0
        %5049 = vmatmul.mubr.f32.gmra.mrb[0].mxu0 %v4904
        %v5050 = vpop.f32.mrb[0].mxu0
        %v5051 = vadd.f32 0.0, %v5050
        %v5052 = vpop.f32.mrb[0].mxu0
        %5053 = vdwg.mxu0
        %v5054 = vadd.f32 %v4816, %v4976
        %v5055 = vadd.f32 %v4817, %v4981
        %v5056 = vadd.f32 %v4818, %v4986
        %v5057 = vadd.f32 %v4819, %v4991
        %v5058 = vadd.f32 %v4820, %v4996
        %v5059 = vadd.f32 %v4821, %v5001
        %v5060 = vadd.f32 %v4822, %v5006
        %v5061 = vadd.f32 %v4823, %v5011
        %v5062 = vadd.f32 %v4824, %v5016
        %v5063 = vadd.f32 %v4825, %v5021
        %v5064 = vadd.f32 %v4826, %v5026
        %v5065 = vadd.f32 %v4827, %v5031
        %v5066 = vadd.f32 %v4828, %v5036
        %v5067 = vadd.f32 %v4829, %v5041
        %v5068 = vadd.f32 %v4830, %v5046
        %v5069 = vadd.f32 %v4831, %v5051
        %v5070 = vld [vmem:[%s1983] sm:$0xff]
        %v5071 = vld [vmem:[%s1983 + $0x8] sm:$0xff]
        %v5072 = vld [vmem:[%s1983 + $0x10] sm:$0x3]
        %v5073 = vld [vmem:[%s1983 + $0x18] sm:$0xff]
        %v5074 = vld [vmem:[%s1983 + $0x20] sm:$0xff]
        %v5075 = vld [vmem:[%s1983 + $0x28] sm:$0x3]
        %v5076 = vld [vmem:[%s1983 + $0x30] sm:$0xff]
        %v5077 = vld [vmem:[%s1983 + $0x38] sm:$0xff]
        %v5078 = vld [vmem:[%s1983 + $0x40] sm:$0x3]
        %v5079 = vld [vmem:[%s1983 + $0x48] sm:$0xff]
        %v5080 = vld [vmem:[%s1983 + $0x50] sm:$0xff]
        %v5081 = vld [vmem:[%s1983 + $0x58] sm:$0x3]
        %v5082 = vld [vmem:[%s1983 + $0x60] sm:$0xff]
        %v5083 = vld [vmem:[%s1983 + $0x68] sm:$0xff]
        %v5084 = vld [vmem:[%s1983 + $0x70] sm:$0x3]
        %v5085 = vld [vmem:[%s1983 + $0x78] sm:$0xff]
        %v5086 = vld [vmem:[%s1983 + $0x80] sm:$0xff]
        %v5087 = vld [vmem:[%s1983 + $0x88] sm:$0x3]
        %v5088 = vld [vmem:[%s1983 + $0x90] sm:$0xff]
        %v5089 = vld [vmem:[%s1983 + $0x98] sm:$0xff]
        %v5090 = vld [vmem:[%s1983 + $0xa0] sm:$0x3]
        %v5091 = vld [vmem:[%s1983 + $0xa8] sm:$0xff]
        %v5092 = vld [vmem:[%s1983 + $0xb0] sm:$0xff]
        %v5093 = vld [vmem:[%s1983 + $0xb8] sm:$0x3]
        %v5118 = vrot.slane %v5070, 1
        %v5119 = vrot.slane %v5071, 1
        %v5120 = vsel %vm376, %v5118, %v5119
        %v5121 = vrot.slane %v5072, 1
        %v5122 = vsel %vm376, %v5119, %v5121
        %v5123 = vrot.slane %v5073, 1
        %v5124 = vrot.slane %v5074, 1
        %v5125 = vsel %vm376, %v5123, %v5124
        %v5126 = vrot.slane %v5075, 1
        %v5127 = vsel %vm376, %v5124, %v5126
        %v5128 = vrot.slane %v5076, 1
        %v5129 = vrot.slane %v5077, 1
        %v5130 = vsel %vm376, %v5128, %v5129
        %v5131 = vrot.slane %v5078, 1
        %v5132 = vsel %vm376, %v5129, %v5131
        %v5133 = vrot.slane %v5079, 1
        %v5134 = vrot.slane %v5080, 1
        %v5135 = vsel %vm376, %v5133, %v5134
        %v5136 = vrot.slane %v5081, 1
        %v5137 = vsel %vm376, %v5134, %v5136
        %v5138 = vrot.slane %v5082, 1
        %v5139 = vrot.slane %v5083, 1
        %v5140 = vsel %vm376, %v5138, %v5139
        %v5141 = vrot.slane %v5084, 1
        %v5142 = vsel %vm376, %v5139, %v5141
        %v5143 = vrot.slane %v5085, 1
        %v5144 = vrot.slane %v5086, 1
        %v5145 = vsel %vm376, %v5143, %v5144
        %v5146 = vrot.slane %v5087, 1
        %v5147 = vsel %vm376, %v5144, %v5146
        %v5148 = vrot.slane %v5088, 1
        %v5149 = vrot.slane %v5089, 1
        %v5150 = vsel %vm376, %v5148, %v5149
        %v5151 = vrot.slane %v5090, 1
        %v5152 = vsel %vm376, %v5149, %v5151
        %v5153 = vrot.slane %v5091, 1
        %v5154 = vrot.slane %v5092, 1
        %v5155 = vsel %vm376, %v5153, %v5154
        %v5156 = vrot.slane %v5093, 1
        %v5157 = vsel %vm376, %v5154, %v5156
        %v5174 = vld [vmem:[#allocation11] sm:$0x1]
        %v5176 = vlaneseq
        %v5177 = vshrl.u32 %v5176, 7
        %v5178 = vsub.s32 0, %v5177
        %v5179 = vrot.slane %v5174, %v5178
        %v5181 = vadd.f32 %v5054, %v5179
        %v5182 = vadd.f32 %v5055, %v5179
        %v5183 = vadd.f32 %v5056, %v5179
        %v5184 = vadd.f32 %v5057, %v5179
        %v5185 = vadd.f32 %v5058, %v5179
        %v5186 = vadd.f32 %v5059, %v5179
        %v5187 = vadd.f32 %v5060, %v5179
        %v5188 = vadd.f32 %v5061, %v5179
        %v5189 = vadd.f32 %v5062, %v5179
        %v5190 = vadd.f32 %v5063, %v5179
        %v5191 = vadd.f32 %v5064, %v5179
        %v5192 = vadd.f32 %v5065, %v5179
        %v5193 = vadd.f32 %v5066, %v5179
        %v5194 = vadd.f32 %v5067, %v5179
        %v5195 = vadd.f32 %v5068, %v5179
        %v5196 = vadd.f32 %v5069, %v5179
        %v5197 = vadd.f32 %v5181, %v5120
        %v5198 = vadd.f32 %v5182, %v5122
        %v5199 = vadd.f32 %v5183, %v5125
        %v5200 = vadd.f32 %v5184, %v5127
        %v5201 = vadd.f32 %v5185, %v5130
        %v5202 = vadd.f32 %v5186, %v5132
        %v5203 = vadd.f32 %v5187, %v5135
        %v5204 = vadd.f32 %v5188, %v5137
        %v5205 = vadd.f32 %v5189, %v5140
        %v5206 = vadd.f32 %v5190, %v5142
        %v5207 = vadd.f32 %v5191, %v5145
        %v5208 = vadd.f32 %v5192, %v5147
        %v5209 = vadd.f32 %v5193, %v5150
        %v5210 = vadd.f32 %v5194, %v5152
        %v5211 = vadd.f32 %v5195, %v5155
        %v5212 = vadd.f32 %v5196, %v5157
        %v5213 = vmax.f32 %v5197, 0.0
        %v5214 = vmax.f32 %v5198, 0.0
        %v5215 = vmax.f32 %v5199, 0.0
        %v5216 = vmax.f32 %v5200, 0.0
        %v5217 = vmax.f32 %v5201, 0.0
        %v5218 = vmax.f32 %v5202, 0.0
        %v5219 = vmax.f32 %v5203, 0.0
        %v5220 = vmax.f32 %v5204, 0.0
        %v5221 = vmax.f32 %v5205, 0.0
        %v5222 = vmax.f32 %v5206, 0.0
        %v5223 = vmax.f32 %v5207, 0.0
        %v5224 = vmax.f32 %v5208, 0.0
        %v5225 = vmax.f32 %v5209, 0.0
        %v5226 = vmax.f32 %v5210, 0.0
        %v5227 = vmax.f32 %v5211, 0.0
        %v5228 = vmax.f32 %v5212, 0.0
        %5229 = vst.msk [vmem:[%s310] sm:$0xff] %vm429, %v5213
        %5230 = vst.msk [vmem:[%s310 + $0x8] sm:$0xff] %vm429, %v5214
        %5231 = vst.msk [vmem:[%s310 + $0x10] sm:$0xff] %vm429, %v5215
        %5232 = vst.msk [vmem:[%s310 + $0x18] sm:$0xff] %vm429, %v5216
        %5233 = vst.msk [vmem:[%s310 + $0x20] sm:$0xff] %vm429, %v5217
        %5234 = vst.msk [vmem:[%s310 + $0x28] sm:$0xff] %vm429, %v5218
        %5235 = vst.msk [vmem:[%s310 + $0x30] sm:$0xff] %vm429, %v5219
        %5236 = vst.msk [vmem:[%s310 + $0x38] sm:$0xff] %vm429, %v5220
        %5237 = vst.msk [vmem:[%s310 + $0x40] sm:$0xff] %vm429, %v5221
        %5238 = vst.msk [vmem:[%s310 + $0x48] sm:$0xff] %vm429, %v5222
        %5239 = vst.msk [vmem:[%s310 + $0x50] sm:$0xff] %vm429, %v5223
        %5240 = vst.msk [vmem:[%s310 + $0x58] sm:$0xff] %vm429, %v5224
        %5241 = vst.msk [vmem:[%s310 + $0x60] sm:$0xff] %vm429, %v5225
        %5242 = vst.msk [vmem:[%s310 + $0x68] sm:$0xff] %vm429, %v5226
        %5243 = vst.msk [vmem:[%s310 + $0x70] sm:$0xff] %vm429, %v5227
        %5244 = vst.msk [vmem:[%s310 + $0x78] sm:$0xff] %vm429, %v5228
        %s5245 = sand.u32 %s156, 1
        %s5246 = scalar_lea.sflag [#allocation5], %s5245
        %s5247 = sand.u32 %s156, 1
        %s5248 = smul.addr %s5247, 128
        %s5249 = scalar_lea.vmem [#allocation12], %s5248
        // Predicated region
        $region69: #{tpu_custom_call.1} parent=39 // pred_check
          %p5250 = pneg %p166
        $region70: #{tpu_custom_call.1} parent=39 // pred_check_branch
          %5252 = sbr.rel (%p5250) target = $region72
        $region71: #{tpu_custom_call.1} parent=39 // pred_region
          %s5253 = smul.u32 8, %s29
          %s5255 = ssub.s32 2048, 2048
          %5256 = vsyncadd %s5246, %s5255
          %s5257 = smul.addr %s5253, 2
          %s5258 = smul.addr %s28, 32
          %s5259 = sadd.s32 %s5257, %s5258
          %s5260 = smul.addr %s5259, 128
          %s5261 = scalar_lea.hbm %s5, %s5260
          %s5262 = sshll.u32 %s5249, 4
          %s5263 = int_to_ptr.vmem [resolvable:$true] %s5262
          %5268 = dma.vmem_to_hbm [thread:$0]  %s5263, 2048, %s5261, %s5246, 128, 128, 8
        $region72: #{tpu_custom_call.1} parent=39 // pred_fallthru
          _
      $region40: #{tpu_custom_call.1} parent=5 // pred_fallthru
        _
      %p5269 = scmp.le.s32.totalorder 2, %s19
      // Predicated region
      $region73: #{tpu_custom_call.1} parent=5 // pred_check
        %p5270 = pneg %p5269
      $region74: #{tpu_custom_call.1} parent=5 // pred_check_branch
        %5272 = sbr.rel (%p5270) target = $region76
      $region75: #{tpu_custom_call.1} parent=5 // pred_region
        %s5273 = ssub.s32 %s19, 2
        // Predicated region
        $region77: #{tpu_custom_call.1} parent=75 // pred_check
          %p5274 = pneg %p172
        $region78: #{tpu_custom_call.1} parent=75 // pred_check_branch
          %5276 = sbr.rel (%p5274) target = $region80
        $region79: #{tpu_custom_call.1} parent=75 // pred_region
          %s5277 = sand.u32 %s157, 1
          %s5278 = scalar_lea.sflag [#allocation5], %s5277
          %s5279 = sand.u32 %s157, 1
          %s5280 = smul.addr %s5279, 128
          %s5281 = scalar_lea.vmem [#allocation12], %s5280
          %5282 = dma.done %s5278, 2048
        $region80: #{tpu_custom_call.1} parent=75 // pred_fallthru
          _
      $region76: #{tpu_custom_call.1} parent=5 // pred_fallthru
        _
    $region6: #{tpu_custom_call.1} parent=1 // loop_footer
      %s23 = sadd.s32 1, %s19
    $region7: #{tpu_custom_call.1} parent=1 // loop_footer_branch
      %18 = sbr.rel target = $region3
    $region8: #{tpu_custom_call.1} parent=1 // loop_exit
      _
    %5283 = vsyncpa [#allocation4], 1
    %s5284 = scalar_lea.sflag [#allocation4], 1
    %5285 = vsyncpa %s5284, 1
    %5286 = vsyncpa [#allocation7], 1
    %5287 = vsyncpa [#allocation10], 1
    %5288 = vsyncpa [#allocation5], 1
    %s5289 = scalar_lea.sflag [#allocation5], 1
    %5290 = vsyncpa %s5289, 1

</llo_original>
